<compile_context>
chip_gen: v5e
topology: v5e:2x2
jax: 0.10.0
libtpu: 0.0.40
codegen_flags: <defaults>
</compile_context>

<pallas_src>
import jax
import jax.numpy as jnp
from jax import lax
from jax.experimental import pallas as pl
from jax.experimental.pallas import tpu as pltpu


def _make_kernel(cin, cout, tl, chunk):
    n_full = tl // chunk
    tail = tl - n_full * chunk

    def kernel(w_ref, b_ref, x_ref, o_ref):
        # w_ref: (2, Cin, Cout, 1) f32   per-(tap, in-ch) output-channel column
        # b_ref: (Cout, 1) f32
        # x_ref: (Cin, tl)               lane tile over flattened H*W
        # o_ref: (Cout, 2*tl)            lane-dense NCHW output slab
        bias = b_ref[...]                                   # (Cout, 1) f32

        # Hoist the tiny per-(tap, ic) weight columns out of the chunk loop.
        w0 = [w_ref[0, ic, :, :] for ic in range(cin)]      # each (Cout, 1) f32
        w1 = [w_ref[1, ic, :, :] for ic in range(cin)]

        # TODO(synk): if Cin/Cout ever grow beyond ~32-64, switch this channel mix
        # to an MXU matmul of shape (chunk, Cin) x (Cin, 2*Cout) instead of the
        # unrolled VPU FMAs below.
        def emit_chunk(off, width, bias_tile):
            # Channel mix for one lane sub-chunk, fully in vregs.
            acc0 = bias_tile                                # (Cout, width) f32, tap k=0
            acc1 = bias_tile                                # tap k=1
            for ic in range(cin):
                xr = x_ref[ic:ic + 1, pl.ds(off, width)].astype(jnp.float32)  # (1, width)
                acc0 = acc0 + w0[ic] * xr                   # (Cout,1)*(1,width)->(Cout,width)
                acc1 = acc1 + w1[ic] * xr
            # Small in-register tap interleave (w-major, tap-minor == NCHW memory),
            # then one lane-dense store per chunk.
            pair = jnp.stack([acc0, acc1], axis=-1).reshape(cout, 2 * width)
            o_ref[:, pl.ds(2 * off, 2 * width)] = pair.astype(o_ref.dtype)

        # Hoist the bias broadcast (broadcast_in_dim is not CSE'd by JAX).
        bias_tile = jnp.broadcast_to(bias, (cout, chunk))

        if n_full <= 4:
            for c in range(n_full):
                emit_chunk(c * chunk, chunk, bias_tile)
        else:
            def body(c, carry):
                off = c * chunk
                if chunk % 128 == 0:
                    off = pl.multiple_of(off, 128)
                emit_chunk(off, chunk, bias_tile)
                return carry
            lax.fori_loop(0, n_full, body, 0, unroll=2)

        if tail > 0:  # static ragged tail when chunk does not divide tl
            emit_chunk(n_full * chunk, tail, jnp.broadcast_to(bias, (cout, tail)))

    return kernel


def _round_down_128(v):
    return max(128, (v // 128) * 128)


def _pick_lane_tile(m, cap, bytes_per_lane, vmem_tile_budget):
    """Largest legal lane tile over H*W.

    Capped both by `cap` and by an explicit VMEM budget for the double-buffered
    input + output blocks (the binding constraint on v7x).  Returns the full dim
    or a multiple of 128; the grid uses cdiv, so a non-dividing tile simply gives
    one ragged (padded/masked) last block instead of degrading to tiny tiles.
    """
    by_vmem = _round_down_128(max(128, vmem_tile_budget // (2 * bytes_per_lane)))
    cap = max(128, min(cap, by_vmem))
    if m <= cap:
        return m
    if m % 128 == 0:
        t = _round_down_128(cap)
        lo = max(128, t // 2)
        while t >= lo:
            if m % t == 0:
                return t
            t -= 128
    return _round_down_128(cap)


def _pick_chunk(tl, cout):
    """Lane sub-chunk so acc0/acc1 + the interleave stay within the 64-vreg file."""
    rows = -(-cout // 8)                                   # 8-sublane rows per vreg column
    target = max(128, ((512 // max(1, rows)) // 128) * 128)
    if tl <= target:
        return tl
    if tl % 128 != 0:
        return target                                      # in-kernel static tail handles rest
    c = target
    while c >= 128:
        if tl % c == 0:
            return c
        c -= 128
    return target


def _build_call(B, Cin, Cout, M, tl, chunk, out_dtype, vmem_limit_bytes):
    grid = (B, pl.cdiv(M, tl))

    w_spec = pl.BlockSpec((2, Cin, Cout, 1), lambda b, l: (0, 0, 0, 0))
    b_spec = pl.BlockSpec((Cout, 1), lambda b, l: (0, 0))
    x_spec = pl.BlockSpec((None, Cin, tl), lambda b, l: (b, 0, l))
    o_spec = pl.BlockSpec((None, Cout, 2 * tl), lambda b, l: (b, 0, l))

    return pl.pallas_call(
        _make_kernel(Cin, Cout, tl, chunk),
        out_shape=jax.ShapeDtypeStruct((B, Cout, 2 * M), out_dtype),
        grid_spec=pltpu.PrefetchScalarGridSpec(
            num_scalar_prefetch=0,
            grid=grid,
            in_specs=[w_spec, b_spec, x_spec],
            out_specs=o_spec,
        ),
        compiler_params=pltpu.CompilerParams(
            dimension_semantics=("parallel", "parallel"),
            vmem_limit_bytes=vmem_limit_bytes,
        ),
    )


def upsampling_forward(x_nchw, weight, bias, *, max_lane_tile=32768):
    """ConvTranspose2d(kernel=(1,2), stride=(1,2)) forward.

    x_nchw: (B, Cin, H, W); weight: (Cin, Cout, 1, 2); bias: (Cout,)
    returns (B, Cout, H, 2*W), matching PyTorch nn.ConvTranspose2d exactly.
    """
    B, Cin, H, W = x_nchw.shape
    Cout = weight.shape[1]
    M = H * W

    itemsize = jnp.dtype(x_nchw.dtype).itemsize
    bytes_per_lane = Cin * itemsize + 2 * Cout * itemsize   # one lane column of in+out block
    # Explicit VMEM accounting: keep the double-buffered in/out blocks under
    # ~20 MiB so the tile also fits v7x (64 MiB physical / 32 MiB scoped) with
    # headroom for Mosaic internal scratch; v5e/v6e have far more VMEM so this
    # only binds on v7x or very large channel counts.
    tile_budget = 20 * 2 ** 20
    tl = _pick_lane_tile(M, max_lane_tile, bytes_per_lane, tile_budget)
    chunk = _pick_chunk(tl, Cout)

    # Free contiguous collapse -- no transposes on the big tensors.
    x_flat = x_nchw.reshape(B, Cin, M)

    # Tiny (2*Cin*Cout element) repack: each (tap, ic) weight becomes a (Cout, 1)
    # column broadcast along lanes in-kernel.  Always f32 (v5e has no bf16 VPU).
    w_pack = jnp.transpose(weight[:, :, 0, :], (2, 0, 1)).reshape(2, Cin, Cout, 1)
    w_pack = w_pack.astype(jnp.float32)
    b_col = bias.reshape(Cout, 1).astype(jnp.float32)

    in_blk = Cin * tl * itemsize
    out_blk = Cout * 2 * tl * itemsize
    statics = 2 * Cin * Cout * 4 + Cout * 4
    vmem_limit = int(min(32 * 2 ** 20,
                         2 * (in_blk + out_blk) + statics + 4 * 2 ** 20))

    call = _build_call(B, Cin, Cout, M, tl, chunk, x_nchw.dtype, vmem_limit)
    out = call(w_pack, b_col, x_flat)                        # (B, Cout, 2*M)
    return out.reshape(B, Cout, H, 2 * W)                    # free contiguous reshape


if __name__ == "__main__":
    B, Cin, Cout, Hdim, Wdim = 2, 4, 8, 16, 16

    key = jax.random.PRNGKey(0)
    kx, kw, kb = jax.random.split(key, 3)

    x = jax.random.normal(kx, (B, Cin, Hdim, Wdim), dtype=jnp.float32)
    # nn.ConvTranspose2d(in_ch, out_ch, kernel_size=(1,2)) -> weight (in_ch, out_ch, 1, 2)
    weight = jax.random.normal(kw, (Cin, Cout, 1, 2), dtype=jnp.float32) * 0.1
    bias = jax.random.normal(kb, (Cout,), dtype=jnp.float32) * 0.1

    fwd = jax.jit(upsampling_forward)
    out = jax.block_until_ready(fwd(x, weight, bias))
    assert out.shape == (B, Cout, Hdim, 2 * Wdim)

    # Pure-jnp reference for ConvTranspose2d k=(1,2), s=(1,2) semantics.
    ref = jnp.einsum("bihw,iok->bohwk", x, weight[:, :, 0, :])
    ref = ref.reshape(B, Cout, Hdim, 2 * Wdim) + bias[None, :, None, None]
    assert jnp.allclose(out, ref, atol=1e-5, rtol=1e-5), float(jnp.abs(out - ref).max())

    print("KERNEL_OK")
</pallas_src>

<mosaic_0001>
module attributes {stable_mosaic.version = 11 : i64} {
  func.func @kernel(%arg0: i32, %arg1: i32, %arg2: memref<2x4x8x1xf32, #tpu.memory_space<vmem>>, %arg3: memref<8x1xf32, #tpu.memory_space<vmem>>, %arg4: memref<1x4x256xf32, #tpu.memory_space<vmem>>, %arg5: memref<1x8x512xf32, #tpu.memory_space<vmem>>) attributes {dimension_semantics = [#tpu.dimension_semantics<parallel>, #tpu.dimension_semantics<parallel>], iteration_bounds = array<i64: 2, 1>, scalar_prefetch = 0 : i64, scratch_operands = 0 : i64, tpu.core_type = #tpu.core_type<tc>, window_params = [{pipeline_mode = #tpu.pipeline_mode<synchronous>, transform_indices = @transform_0, window_bounds = array<i64: 2, 4, 8, 1>}, {pipeline_mode = #tpu.pipeline_mode<synchronous>, transform_indices = @transform_1, window_bounds = array<i64: 8, 1>}, {transform_indices = @transform_2, window_bounds = array<i64: 1, 4, 256>}, {transform_indices = @transform_3, window_bounds = array<i64: 1, 8, 512>}]} {
    %c0 = arith.constant 0 : index
    %c0_0 = arith.constant 0 : index
    %0 = vector.load %arg3[%c0, %c0_0] : memref<8x1xf32, #tpu.memory_space<vmem>>, vector<8x1xf32>
    %c0_1 = arith.constant 0 : index
    %c0_2 = arith.constant 0 : index
    %c0_3 = arith.constant 0 : index
    %c0_4 = arith.constant 0 : index
    %1 = vector.load %arg2[%c0_1, %c0_2, %c0_3, %c0_4] : memref<2x4x8x1xf32, #tpu.memory_space<vmem>>, vector<1x1x8x1xf32>
    %2 = vector.shape_cast %1 : vector<1x1x8x1xf32> to vector<8x1xf32>
    %c0_5 = arith.constant 0 : index
    %c1 = arith.constant 1 : index
    %c0_6 = arith.constant 0 : index
    %c0_7 = arith.constant 0 : index
    %3 = vector.load %arg2[%c0_5, %c1, %c0_6, %c0_7] : memref<2x4x8x1xf32, #tpu.memory_space<vmem>>, vector<1x1x8x1xf32>
    %4 = vector.shape_cast %3 : vector<1x1x8x1xf32> to vector<8x1xf32>
    %c0_8 = arith.constant 0 : index
    %c2 = arith.constant 2 : index
    %c0_9 = arith.constant 0 : index
    %c0_10 = arith.constant 0 : index
    %5 = vector.load %arg2[%c0_8, %c2, %c0_9, %c0_10] : memref<2x4x8x1xf32, #tpu.memory_space<vmem>>, vector<1x1x8x1xf32>
    %6 = vector.shape_cast %5 : vector<1x1x8x1xf32> to vector<8x1xf32>
    %c0_11 = arith.constant 0 : index
    %c3 = arith.constant 3 : index
    %c0_12 = arith.constant 0 : index
    %c0_13 = arith.constant 0 : index
    %7 = vector.load %arg2[%c0_11, %c3, %c0_12, %c0_13] : memref<2x4x8x1xf32, #tpu.memory_space<vmem>>, vector<1x1x8x1xf32>
    %8 = vector.shape_cast %7 : vector<1x1x8x1xf32> to vector<8x1xf32>
    %c1_14 = arith.constant 1 : index
    %c0_15 = arith.constant 0 : index
    %c0_16 = arith.constant 0 : index
    %c0_17 = arith.constant 0 : index
    %9 = vector.load %arg2[%c1_14, %c0_15, %c0_16, %c0_17] : memref<2x4x8x1xf32, #tpu.memory_space<vmem>>, vector<1x1x8x1xf32>
    %10 = vector.shape_cast %9 : vector<1x1x8x1xf32> to vector<8x1xf32>
    %c1_18 = arith.constant 1 : index
    %c1_19 = arith.constant 1 : index
    %c0_20 = arith.constant 0 : index
    %c0_21 = arith.constant 0 : index
    %11 = vector.load %arg2[%c1_18, %c1_19, %c0_20, %c0_21] : memref<2x4x8x1xf32, #tpu.memory_space<vmem>>, vector<1x1x8x1xf32>
    %12 = vector.shape_cast %11 : vector<1x1x8x1xf32> to vector<8x1xf32>
    %c1_22 = arith.constant 1 : index
    %c2_23 = arith.constant 2 : index
    %c0_24 = arith.constant 0 : index
    %c0_25 = arith.constant 0 : index
    %13 = vector.load %arg2[%c1_22, %c2_23, %c0_24, %c0_25] : memref<2x4x8x1xf32, #tpu.memory_space<vmem>>, vector<1x1x8x1xf32>
    %14 = vector.shape_cast %13 : vector<1x1x8x1xf32> to vector<8x1xf32>
    %c1_26 = arith.constant 1 : index
    %c3_27 = arith.constant 3 : index
    %c0_28 = arith.constant 0 : index
    %c0_29 = arith.constant 0 : index
    %15 = vector.load %arg2[%c1_26, %c3_27, %c0_28, %c0_29] : memref<2x4x8x1xf32, #tpu.memory_space<vmem>>, vector<1x1x8x1xf32>
    %16 = vector.shape_cast %15 : vector<1x1x8x1xf32> to vector<8x1xf32>
    %17 = vector.shape_cast %0 : vector<8x1xf32> to vector<8x1xf32>
    %18 = vector.broadcast %17 : vector<8x1xf32> to vector<8x256xf32>
    %c0_30 = arith.constant 0 : index
    %c0_31 = arith.constant 0 : index
    %c0_32 = arith.constant 0 : index
    %19 = vector.load %arg4[%c0_30, %c0_31, %c0_32] : memref<1x4x256xf32, #tpu.memory_space<vmem>>, vector<1x1x256xf32>
    %20 = vector.shape_cast %19 : vector<1x1x256xf32> to vector<1x256xf32>
    %21 = vector.broadcast %2 : vector<8x1xf32> to vector<8x256xf32>
    %22 = vector.broadcast %20 : vector<1x256xf32> to vector<8x256xf32>
    %23 = arith.mulf %21, %22 : vector<8x256xf32>
    %24 = arith.addf %18, %23 : vector<8x256xf32>
    %25 = vector.broadcast %10 : vector<8x1xf32> to vector<8x256xf32>
    %26 = vector.broadcast %20 : vector<1x256xf32> to vector<8x256xf32>
    %27 = arith.mulf %25, %26 : vector<8x256xf32>
    %28 = arith.addf %18, %27 : vector<8x256xf32>
    %c0_33 = arith.constant 0 : index
    %c1_34 = arith.constant 1 : index
    %c0_35 = arith.constant 0 : index
    %29 = vector.load %arg4[%c0_33, %c1_34, %c0_35] : memref<1x4x256xf32, #tpu.memory_space<vmem>>, vector<1x1x256xf32>
    %30 = vector.shape_cast %29 : vector<1x1x256xf32> to vector<1x256xf32>
    %31 = vector.broadcast %4 : vector<8x1xf32> to vector<8x256xf32>
    %32 = vector.broadcast %30 : vector<1x256xf32> to vector<8x256xf32>
    %33 = arith.mulf %31, %32 : vector<8x256xf32>
    %34 = arith.addf %24, %33 : vector<8x256xf32>
    %35 = vector.broadcast %12 : vector<8x1xf32> to vector<8x256xf32>
    %36 = vector.broadcast %30 : vector<1x256xf32> to vector<8x256xf32>
    %37 = arith.mulf %35, %36 : vector<8x256xf32>
    %38 = arith.addf %28, %37 : vector<8x256xf32>
    %c0_36 = arith.constant 0 : index
    %c2_37 = arith.constant 2 : index
    %c0_38 = arith.constant 0 : index
    %39 = vector.load %arg4[%c0_36, %c2_37, %c0_38] : memref<1x4x256xf32, #tpu.memory_space<vmem>>, vector<1x1x256xf32>
    %40 = vector.shape_cast %39 : vector<1x1x256xf32> to vector<1x256xf32>
    %41 = vector.broadcast %6 : vector<8x1xf32> to vector<8x256xf32>
    %42 = vector.broadcast %40 : vector<1x256xf32> to vector<8x256xf32>
    %43 = arith.mulf %41, %42 : vector<8x256xf32>
    %44 = arith.addf %34, %43 : vector<8x256xf32>
    %45 = vector.broadcast %14 : vector<8x1xf32> to vector<8x256xf32>
    %46 = vector.broadcast %40 : vector<1x256xf32> to vector<8x256xf32>
    %47 = arith.mulf %45, %46 : vector<8x256xf32>
    %48 = arith.addf %38, %47 : vector<8x256xf32>
    %c0_39 = arith.constant 0 : index
    %c3_40 = arith.constant 3 : index
    %c0_41 = arith.constant 0 : index
    %49 = vector.load %arg4[%c0_39, %c3_40, %c0_41] : memref<1x4x256xf32, #tpu.memory_space<vmem>>, vector<1x1x256xf32>
    %50 = vector.shape_cast %49 : vector<1x1x256xf32> to vector<1x256xf32>
    %51 = vector.broadcast %8 : vector<8x1xf32> to vector<8x256xf32>
    %52 = vector.broadcast %50 : vector<1x256xf32> to vector<8x256xf32>
    %53 = arith.mulf %51, %52 : vector<8x256xf32>
    %54 = arith.addf %44, %53 : vector<8x256xf32>
    %55 = vector.broadcast %16 : vector<8x1xf32> to vector<8x256xf32>
    %56 = vector.broadcast %50 : vector<1x256xf32> to vector<8x256xf32>
    %57 = arith.mulf %55, %56 : vector<8x256xf32>
    %58 = arith.addf %48, %57 : vector<8x256xf32>
    %59 = vector.shape_cast %54 : vector<8x256xf32> to vector<8x256x1xf32>
    %60 = vector.shape_cast %58 : vector<8x256xf32> to vector<8x256x1xf32>
    %61 = tpu.concatenate %59, %60 in 2 : vector<8x256x1xf32>, vector<8x256x1xf32> -> vector<8x256x2xf32>
    %62 = vector.shape_cast %61 : vector<8x256x2xf32> to vector<8x512xf32>
    %c0_42 = arith.constant 0 : index
    %c0_43 = arith.constant 0 : index
    %c0_44 = arith.constant 0 : index
    %63 = vector.load %arg5[%c0_42, %c0_43, %c0_44] : memref<1x8x512xf32, #tpu.memory_space<vmem>>, vector<1x8x512xf32>
    %64 = vector.shape_cast %63 : vector<1x8x512xf32> to vector<8x512xf32>
    %65 = vector.shape_cast %62 : vector<8x512xf32> to vector<1x8x512xf32>
    tpu.vector_store %arg5[%c0_42, %c0_43, %c0_44], %65 {strides = array<i32>} : memref<1x8x512xf32, #tpu.memory_space<vmem>>, vector<1x8x512xf32>,
    return
  }
  func.func @transform_0(%arg0: i32, %arg1: i32) -> (i32, i32, i32, i32) {
    %c0_i32 = arith.constant 0 : i32
    %c0_i32_0 = arith.constant 0 : i32
    %c0_i32_1 = arith.constant 0 : i32
    %c0_i32_2 = arith.constant 0 : i32
    %c0_i32_3 = arith.constant 0 : i32
    return %c0_i32, %c0_i32_0, %c0_i32_1, %c0_i32_2 : i32, i32, i32, i32
  }
  func.func @transform_1(%arg0: i32, %arg1: i32) -> (i32, i32) {
    %c0_i32 = arith.constant 0 : i32
    %c0_i32_0 = arith.constant 0 : i32
    %c0_i32_1 = arith.constant 0 : i32
    return %c0_i32, %c0_i32_0 : i32, i32
  }
  func.func @transform_2(%arg0: i32, %arg1: i32) -> (i32, i32, i32) {
    %c0_i32 = arith.constant 0 : i32
    %c0_i32_0 = arith.constant 0 : i32
    return %arg0, %c0_i32, %arg1 : i32, i32, i32
  }
  func.func @transform_3(%arg0: i32, %arg1: i32) -> (i32, i32, i32) {
    %c0_i32 = arith.constant 0 : i32
    %c0_i32_0 = arith.constant 0 : i32
    return %arg0, %c0_i32, %arg1 : i32, i32, i32
  }
}

</mosaic_0001>

<llo_original>
// kernel: upsampling_forward.1
$region0: #{upsampling_forward.1}
  #allocation0 [shape = 'u32[]', space=smem, size = 0x4, offset = 0x4, fixed_abs, tag = 'smem constant byte address 0x4 - core index']
  #allocation1 [shape = 'u32[72,128]{1,0:T(1,128)}', space=vmem, size = 0x9000, scoped, tag = 'internal scratch']
  %s0 = inlined_call_operand.vmem [shape: f32[2,4,8,1], index: 0, kind: input, shape index: {}]
  %s1 = inlined_call_operand.vmem [shape: f32[8,1], index: 1, kind: input, shape index: {}]
  %s2 = inlined_call_operand.vmem [shape: f32[2,4,256], index: 2, kind: input, shape index: {}]
  %s3 = inlined_call_operand.vmem [shape: f32[2,8,512], index: 3, kind: output, shape index: {}]
  %s4 = sld [smem:[#allocation0]]
  $region45: #{upsampling_forward.1} parent=0
    _
  %s6 = ssub.s32 1, %s4
  %s7 = scalar_select 0, %s6, %s4
  loop: start=0, step=1, limit=4
  $region2: #{upsampling_forward.1} parent=0 // loop_pre_header
    _
  $region3: #{upsampling_forward.1} parent=0 // loop_header
    %s9 = sphi 0, %s13
    %p10 = scmp.ge.s32.totalorder %s9, 4
    %s16 = sphi 0, %s28
    %s17 = sphi 0, %s24
    %s18 = sphi 0, %s16
    %s19 = sphi 0, %s17
    %s20 = sphi 0, %s18
    %s21 = sphi 0, %s19
    %s29 = sphi 0, %s29
    %s31 = sphi 0, %s29
    %s32 = sphi 0, %s31
    %s46 = sphi 0, %s32
    %s50 = sphi 0, %s50
    %s52 = sphi 0, %s50
    %s53 = sphi 0, %s52
    %s67 = sphi 0, %s53
    %s75 = sphi 0, %s77
    %s78 = sphi 0, %s75
    %s79 = sphi 0, %s78
    %s95 = sphi 0, %s79
    %s103 = sphi 0, %s105
    %s106 = sphi 0, %s103
    %s107 = sphi 0, %s106
    %s123 = sphi 0, %s107
  $region4: #{upsampling_forward.1} parent=0 // loop_header_branch
    %12 = sbr.rel (%p10) target = $region8
  $region5: #{upsampling_forward.1} parent=0 // loop_body
    %s14 = ssub.s32 %s9, 1
    %s15 = ssub.s32 %s9, 2
    %s22 = sadd.s32 1, %s17
    %p23 = scmp.ge.s32.totalorder %s22, 1
    %s24 = scalar_select %p23, 0, %s22
    %s25 = sadd.s32 1, %s16
    %s26 = scalar_select %p23, %s25, %s16
    %p27 = scmp.ge.s32.totalorder %s26, 2
    %s28 = scalar_select %p27, 0, %s26
    %s30 = sadd.s32 %s29, 1
    %p33 = scmp.eq.s32.totalorder %s9, 1
    %p34 = scmp.ne.s32.totalorder %s29, %s31
    %p35 = scmp.eq.s32.totalorder %s9, 0
    %p36 = por %p34, %p35
    %p37 = scmp.ne.s32.totalorder %s29, %s31
    %p38 = scmp.eq.s32.totalorder %s14, 1
    %p39 = por %p37, %p38
    %p40 = scmp.ne.s32.totalorder %s31, %s32
    %p41 = scmp.eq.s32.totalorder %s14, 0
    %p42 = por %p40, %p41
    %p43 = scmp.ne.s32.totalorder %s31, %s32
    %p44 = scmp.eq.s32.totalorder %s15, 1
    %p45 = por %p43, %p44
    %p47 = scmp.ne.s32.totalorder %s32, %s46
    %p48 = scmp.eq.s32.totalorder %s15, 0
    %p49 = por %p47, %p48
    %s51 = sadd.s32 %s50, 1
    %p54 = scmp.eq.s32.totalorder %s9, 1
    %p55 = scmp.ne.s32.totalorder %s50, %s52
    %p56 = scmp.eq.s32.totalorder %s9, 0
    %p57 = por %p55, %p56
    %p58 = scmp.ne.s32.totalorder %s50, %s52
    %p59 = scmp.eq.s32.totalorder %s14, 1
    %p60 = por %p58, %p59
    %p61 = scmp.ne.s32.totalorder %s52, %s53
    %p62 = scmp.eq.s32.totalorder %s14, 0
    %p63 = por %p61, %p62
    %p64 = scmp.ne.s32.totalorder %s52, %s53
    %p65 = scmp.eq.s32.totalorder %s15, 1
    %p66 = por %p64, %p65
    %p68 = scmp.ne.s32.totalorder %s53, %s67
    %p69 = scmp.eq.s32.totalorder %s15, 0
    %p70 = por %p68, %p69
    %s71 = ssub.s32 %s16, %s28
    %s72 = ssub.s32 %s17, %s24
    %s73 = sor.u32 %s71, %s72
    %p74 = scmp.eq.s32.totalorder %s73, 0
    %s76 = sadd.s32 %s75, 1
    %s77 = scalar_select %p74, %s75, %s76
    %p80 = pneg %p74
    %p81 = scmp.eq.s32.totalorder %s9, 1
    %p82 = por %p80, %p81
    %p83 = scmp.ne.s32.totalorder %s75, %s78
    %p84 = scmp.eq.s32.totalorder %s9, 0
    %p85 = por %p83, %p84
    %p86 = scmp.ne.s32.totalorder %s75, %s78
    %p87 = scmp.eq.s32.totalorder %s14, 1
    %p88 = por %p86, %p87
    %p89 = scmp.ne.s32.totalorder %s78, %s79
    %p90 = scmp.eq.s32.totalorder %s14, 0
    %p91 = por %p89, %p90
    %p92 = scmp.ne.s32.totalorder %s78, %s79
    %p93 = scmp.eq.s32.totalorder %s15, 1
    %p94 = por %p92, %p93
    %p96 = scmp.ne.s32.totalorder %s79, %s95
    %p97 = scmp.eq.s32.totalorder %s15, 0
    %p98 = por %p96, %p97
    %s99 = ssub.s32 %s16, %s28
    %s100 = ssub.s32 %s17, %s24
    %s101 = sor.u32 %s99, %s100
    %p102 = scmp.eq.s32.totalorder %s101, 0
    %s104 = sadd.s32 %s103, 1
    %s105 = scalar_select %p102, %s103, %s104
    %p108 = pneg %p102
    %p109 = scmp.eq.s32.totalorder %s9, 1
    %p110 = por %p108, %p109
    %p111 = scmp.ne.s32.totalorder %s103, %s106
    %p112 = scmp.eq.s32.totalorder %s9, 0
    %p113 = por %p111, %p112
    %p114 = scmp.ne.s32.totalorder %s103, %s106
    %p115 = scmp.eq.s32.totalorder %s14, 1
    %p116 = por %p114, %p115
    %p117 = scmp.ne.s32.totalorder %s106, %s107
    %p118 = scmp.eq.s32.totalorder %s14, 0
    %p119 = por %p117, %p118
    %p120 = scmp.ne.s32.totalorder %s106, %s107
    %p121 = scmp.eq.s32.totalorder %s15, 1
    %p122 = por %p120, %p121
    %p124 = scmp.ne.s32.totalorder %s107, %s123
    %p125 = scmp.eq.s32.totalorder %s15, 0
    %p126 = por %p124, %p125
    %p127 = scmp.le.s32.totalorder 1, %s9
    %p128 = scmp.lt.s32.totalorder %s9, 3
    %p129 = pnand %p127, %p128
    %p130 = pneg %p129
    // Predicated region
    $region9: #{upsampling_forward.1} parent=5 // pred_check
      _
    $region10: #{upsampling_forward.1} parent=5 // pred_check_branch
      %132 = sbr.rel (%p129) target = $region12
    $region11: #{upsampling_forward.1} parent=5 // pred_region
      %s133 = ssub.s32 %s9, 1
      // Predicated region
      $region13: #{upsampling_forward.1} parent=11 // pred_check
        %p134 = pneg %p42
      $region14: #{upsampling_forward.1} parent=11 // pred_check_branch
        %136 = sbr.rel (%p134) target = $region16
      $region15: #{upsampling_forward.1} parent=11 // pred_region
        _
      $region16: #{upsampling_forward.1} parent=11 // pred_fallthru
        _
      // Predicated region
      $region17: #{upsampling_forward.1} parent=11 // pred_check
        %p137 = pneg %p63
      $region18: #{upsampling_forward.1} parent=11 // pred_check_branch
        %139 = sbr.rel (%p137) target = $region20
      $region19: #{upsampling_forward.1} parent=11 // pred_region
        _
      $region20: #{upsampling_forward.1} parent=11 // pred_fallthru
        _
    $region12: #{upsampling_forward.1} parent=5 // pred_fallthru
      _
    %p140 = scmp.lt.s32.totalorder %s9, 2
    // Predicated region
    $region21: #{upsampling_forward.1} parent=5 // pred_check
      %p141 = pneg %p140
    $region22: #{upsampling_forward.1} parent=5 // pred_check_branch
      %143 = sbr.rel (%p141) target = $region24
    $region23: #{upsampling_forward.1} parent=5 // pred_region
      // Predicated region
      $region25: #{upsampling_forward.1} parent=23 // pred_check
        %p144 = pneg %p85
      $region26: #{upsampling_forward.1} parent=23 // pred_check_branch
        %146 = sbr.rel (%p144) target = $region28
      $region27: #{upsampling_forward.1} parent=23 // pred_region
        %s147 = smul.u32 2, %s17
        %p148 = scmp.lt.s32.totalorder %s16, 1
        %s149 = scalar_select %p148, %s16, 1
        %p150 = scmp.lt.s32.totalorder %s147, 1
        %s151 = scalar_select %p150, %s147, 1
        %s152 = smul.addr %s149, 2
        %s153 = sadd.s32 %s151, %s152
        %s154 = smul.addr %s153, 4
        %s155 = scalar_lea.vmem %s2, %s154
        %s156 = smul.u32 2, %s17
      $region28: #{upsampling_forward.1} parent=23 // pred_fallthru
        _
    $region24: #{upsampling_forward.1} parent=5 // pred_fallthru
      _
    %p157 = scmp.le.s32.totalorder 1, %s9
    %p158 = scmp.lt.s32.totalorder %s9, 3
    %p159 = pnand %p157, %p158
    %p160 = pneg %p159
    // Predicated region
    $region29: #{upsampling_forward.1} parent=5 // pred_check
      _
    $region30: #{upsampling_forward.1} parent=5 // pred_check_branch
      %162 = sbr.rel (%p159) target = $region32
    $region31: #{upsampling_forward.1} parent=5 // pred_region
      %s163 = ssub.s32 %s9, 1
      %p164 = pneg %p42
      %p165 = pneg %p39
      %p166 = pneg %p63
      %p167 = pneg %p60
      %s168 = smul.u32 2, %s19
      %p169 = scmp.lt.s32.totalorder %s18, 1
      %s170 = scalar_select %p169, %s18, 1
      %p171 = scmp.lt.s32.totalorder %s168, 1
      %s172 = scalar_select %p171, %s168, 1
      %s173 = smul.addr %s170, 2
      %s174 = sadd.s32 %s172, %s173
      %s175 = smul.addr %s174, 4
      %s176 = scalar_lea.vmem %s2, %s175
      %p177 = pneg %p91
      %p178 = pneg %p88
      %p179 = pneg %p119
      %p180 = pneg %p116
      %s181 = smul.u32 4, %s19
      %p182 = scmp.lt.s32.totalorder %s18, 1
      %s183 = scalar_select %p182, %s18, 1
      %p184 = scmp.lt.s32.totalorder %s181, 3
      %s185 = scalar_select %p184, %s181, 3
      %s186 = smul.addr %s183, 4
      %s187 = sadd.s32 %s185, %s186
      %s188 = smul.addr %s187, 8
      %s189 = scalar_lea.vmem %s3, %s188
      %s190 = smul.u32 2, %s19
      %p191 = scmp.lt.s32.totalorder %s18, 1
      %s192 = scalar_select %p191, %s18, 1
      %p193 = scmp.lt.s32.totalorder %s190, 1
      %s194 = scalar_select %p193, %s190, 1
      %s195 = smul.addr %s192, 2
      %s196 = sadd.s32 %s194, %s195
      %s197 = smul.addr %s196, 4
      %s198 = scalar_lea.vmem %s2, %s197
      %s199 = smul.u32 2, %s19
      %s200 = smul.u32 4, %s19
      %p201 = scmp.lt.s32.totalorder %s18, 1
      %s202 = scalar_select %p201, %s18, 1
      %p203 = scmp.lt.s32.totalorder %s200, 3
      %s204 = scalar_select %p203, %s200, 3
      %s205 = smul.addr %s202, 4
      %s206 = sadd.s32 %s204, %s205
      %s207 = smul.addr %s206, 8
      %s208 = scalar_lea.vmem %s3, %s207
      %s209 = smul.u32 4, %s19
      %v210 = vld [vmem:[%s1] sm:$0xff]
      %v211 = vld [vmem:[%s0] sm:$0xff]
      %s212 = scalar_lea.vmem %s0, 8
      %v213 = vld [vmem:[%s212] sm:$0xff]
      %s214 = scalar_lea.vmem %s0, 16
      %v215 = vld [vmem:[%s214] sm:$0xff]
      %s216 = scalar_lea.vmem %s0, 24
      %v217 = vld [vmem:[%s216] sm:$0xff]
      %s218 = scalar_lea.vmem %s0, 32
      %v219 = vld [vmem:[%s218] sm:$0xff]
      %s220 = scalar_lea.vmem %s0, 40
      %v221 = vld [vmem:[%s220] sm:$0xff]
      %s222 = scalar_lea.vmem %s0, 48
      %v223 = vld [vmem:[%s222] sm:$0xff]
      %s224 = scalar_lea.vmem %s0, 56
      %v225 = vld [vmem:[%s224] sm:$0xff]
      %227 = vset.pattern.permute.xlu0 0
      %228 = vperm.xlu0 %227, %v210
      %v229 = vpop.permute.xlu0 %228
      %v231 = vld [vmem:[%s198] ss:$4 sm:$0x3]
      %233 = vset.pattern.permute.xlu0 0
      %234 = vperm.xlu0 %233, %v211
      %v235 = vpop.permute.xlu0 %234
      %v238 = vperm.slane %v231, 0
      %v239 = vperm.slane %v231, 1
      %v242 = vmul.f32 %v235, %v238
      %v243 = vmul.f32 %v235, %v239
      %v244 = vadd.f32 %v229, %v242
      %v245 = vadd.f32 %v229, %v243
      %247 = vset.pattern.permute.xlu0 0
      %248 = vperm.xlu0 %247, %v219
      %v249 = vpop.permute.xlu0 %248
      %v251 = vmul.f32 %v249, %v238
      %v252 = vmul.f32 %v249, %v239
      %v253 = vadd.f32 %v229, %v251
      %v254 = vadd.f32 %v229, %v252
      %s255 = scalar_lea.vmem %s198, 1
      %v256 = vld [vmem:[%s255] ss:$4 sm:$0x3]
      %258 = vset.pattern.permute.xlu0 0
      %259 = vperm.xlu0 %258, %v213
      %v260 = vpop.permute.xlu0 %259
      %v263 = vperm.slane %v256, 0
      %v264 = vperm.slane %v256, 1
      %v267 = vmul.f32 %v260, %v263
      %v268 = vmul.f32 %v260, %v264
      %v269 = vadd.f32 %v244, %v267
      %v270 = vadd.f32 %v245, %v268
      %272 = vset.pattern.permute.xlu0 0
      %273 = vperm.xlu0 %272, %v221
      %v274 = vpop.permute.xlu0 %273
      %v276 = vmul.f32 %v274, %v263
      %v277 = vmul.f32 %v274, %v264
      %v278 = vadd.f32 %v253, %v276
      %v279 = vadd.f32 %v254, %v277
      %s280 = scalar_lea.vmem %s198, 2
      %v281 = vld [vmem:[%s280] ss:$4 sm:$0x3]
      %283 = vset.pattern.permute.xlu0 0
      %284 = vperm.xlu0 %283, %v215
      %v285 = vpop.permute.xlu0 %284
      %v288 = vperm.slane %v281, 0
      %v289 = vperm.slane %v281, 1
      %v292 = vmul.f32 %v285, %v288
      %v293 = vmul.f32 %v285, %v289
      %v294 = vadd.f32 %v269, %v292
      %v295 = vadd.f32 %v270, %v293
      %297 = vset.pattern.permute.xlu0 0
      %298 = vperm.xlu0 %297, %v223
      %v299 = vpop.permute.xlu0 %298
      %v301 = vmul.f32 %v299, %v288
      %v302 = vmul.f32 %v299, %v289
      %v303 = vadd.f32 %v278, %v301
      %v304 = vadd.f32 %v279, %v302
      %s305 = scalar_lea.vmem %s198, 3
      %v306 = vld [vmem:[%s305] ss:$4 sm:$0x3]
      %308 = vset.pattern.permute.xlu0 0
      %309 = vperm.xlu0 %308, %v217
      %v310 = vpop.permute.xlu0 %309
      %v313 = vperm.slane %v306, 0
      %v314 = vperm.slane %v306, 1
      %v317 = vmul.f32 %v310, %v313
      %v318 = vmul.f32 %v310, %v314
      %v319 = vadd.f32 %v294, %v317
      %v320 = vadd.f32 %v295, %v318
      %322 = vset.pattern.permute.xlu0 0
      %323 = vperm.xlu0 %322, %v225
      %v324 = vpop.permute.xlu0 %323
      %v326 = vmul.f32 %v324, %v313
      %v327 = vmul.f32 %v324, %v314
      %v328 = vadd.f32 %v303, %v326
      %v329 = vadd.f32 %v304, %v327
      %v330 = vperm.slane %v319, 0
      %v331 = vlaneseq
      %v332 = vshrl.u32 %v331, 7
      %334 = vset.pattern.permute.xlu0 %v332
      %335 = vperm.xlu0 %334, %v330
      %v336 = vpop.permute.xlu0 %335
      %v337 = vlaneseq
      %v338 = vshrl.u32 %v337, 7
      %v339 = vadd.s32 %v338, 8
      %340 = vset.pattern.permute.xlu0 %v339
      %341 = vperm.xlu0 %340, %v330
      %v342 = vpop.permute.xlu0 %341
      %v343 = vlaneseq
      %v344 = vshrl.u32 %v343, 7
      %v345 = vadd.s32 %v344, 16
      %346 = vset.pattern.permute.xlu0 %v345
      %347 = vperm.xlu0 %346, %v330
      %v348 = vpop.permute.xlu0 %347
      %v349 = vlaneseq
      %v350 = vshrl.u32 %v349, 7
      %v351 = vadd.s32 %v350, 24
      %352 = vset.pattern.permute.xlu0 %v351
      %353 = vperm.xlu0 %352, %v330
      %v354 = vpop.permute.xlu0 %353
      %v355 = vlaneseq
      %v356 = vshrl.u32 %v355, 7
      %v357 = vadd.s32 %v356, 32
      %358 = vset.pattern.permute.xlu0 %v357
      %359 = vperm.xlu0 %358, %v330
      %v360 = vpop.permute.xlu0 %359
      %v361 = vlaneseq
      %v362 = vshrl.u32 %v361, 7
      %v363 = vadd.s32 %v362, 40
      %364 = vset.pattern.permute.xlu0 %v363
      %365 = vperm.xlu0 %364, %v330
      %v366 = vpop.permute.xlu0 %365
      %v367 = vlaneseq
      %v368 = vshrl.u32 %v367, 7
      %v369 = vadd.s32 %v368, 48
      %370 = vset.pattern.permute.xlu0 %v369
      %371 = vperm.xlu0 %370, %v330
      %v372 = vpop.permute.xlu0 %371
      %v373 = vlaneseq
      %v374 = vshrl.u32 %v373, 7
      %v375 = vadd.s32 %v374, 56
      %376 = vset.pattern.permute.xlu0 %v375
      %377 = vperm.xlu0 %376, %v330
      %v378 = vpop.permute.xlu0 %377
      %v379 = vlaneseq
      %v380 = vshrl.u32 %v379, 7
      %v381 = vadd.s32 %v380, 64
      %382 = vset.pattern.permute.xlu0 %v381
      %383 = vperm.xlu0 %382, %v330
      %v384 = vpop.permute.xlu0 %383
      %v385 = vlaneseq
      %v386 = vshrl.u32 %v385, 7
      %v387 = vadd.s32 %v386, 72
      %388 = vset.pattern.permute.xlu0 %v387
      %389 = vperm.xlu0 %388, %v330
      %v390 = vpop.permute.xlu0 %389
      %v391 = vlaneseq
      %v392 = vshrl.u32 %v391, 7
      %v393 = vadd.s32 %v392, 80
      %394 = vset.pattern.permute.xlu0 %v393
      %395 = vperm.xlu0 %394, %v330
      %v396 = vpop.permute.xlu0 %395
      %v397 = vlaneseq
      %v398 = vshrl.u32 %v397, 7
      %v399 = vadd.s32 %v398, 88
      %400 = vset.pattern.permute.xlu0 %v399
      %401 = vperm.xlu0 %400, %v330
      %v402 = vpop.permute.xlu0 %401
      %v403 = vlaneseq
      %v404 = vshrl.u32 %v403, 7
      %v405 = vadd.s32 %v404, 96
      %406 = vset.pattern.permute.xlu0 %v405
      %407 = vperm.xlu0 %406, %v330
      %v408 = vpop.permute.xlu0 %407
      %v409 = vlaneseq
      %v410 = vshrl.u32 %v409, 7
      %v411 = vadd.s32 %v410, 104
      %412 = vset.pattern.permute.xlu0 %v411
      %413 = vperm.xlu0 %412, %v330
      %v414 = vpop.permute.xlu0 %413
      %v415 = vlaneseq
      %v416 = vshrl.u32 %v415, 7
      %v417 = vadd.s32 %v416, 112
      %418 = vset.pattern.permute.xlu0 %v417
      %419 = vperm.xlu0 %418, %v330
      %v420 = vpop.permute.xlu0 %419
      %v421 = vlaneseq
      %v422 = vshrl.u32 %v421, 7
      %v423 = vadd.s32 %v422, 120
      %424 = vset.pattern.permute.xlu0 %v423
      %425 = vperm.xlu0 %424, %v330
      %v426 = vpop.permute.xlu0 %425
      %v427 = vperm.slane %v320, 0
      %v428 = vlaneseq
      %v429 = vshrl.u32 %v428, 7
      %431 = vset.pattern.permute.xlu0 %v429
      %432 = vperm.xlu0 %431, %v427
      %v433 = vpop.permute.xlu0 %432
      %v434 = vlaneseq
      %v435 = vshrl.u32 %v434, 7
      %v436 = vadd.s32 %v435, 8
      %437 = vset.pattern.permute.xlu0 %v436
      %438 = vperm.xlu0 %437, %v427
      %v439 = vpop.permute.xlu0 %438
      %v440 = vlaneseq
      %v441 = vshrl.u32 %v440, 7
      %v442 = vadd.s32 %v441, 16
      %443 = vset.pattern.permute.xlu0 %v442
      %444 = vperm.xlu0 %443, %v427
      %v445 = vpop.permute.xlu0 %444
      %v446 = vlaneseq
      %v447 = vshrl.u32 %v446, 7
      %v448 = vadd.s32 %v447, 24
      %449 = vset.pattern.permute.xlu0 %v448
      %450 = vperm.xlu0 %449, %v427
      %v451 = vpop.permute.xlu0 %450
      %v452 = vlaneseq
      %v453 = vshrl.u32 %v452, 7
      %v454 = vadd.s32 %v453, 32
      %455 = vset.pattern.permute.xlu0 %v454
      %456 = vperm.xlu0 %455, %v427
      %v457 = vpop.permute.xlu0 %456
      %v458 = vlaneseq
      %v459 = vshrl.u32 %v458, 7
      %v460 = vadd.s32 %v459, 40
      %461 = vset.pattern.permute.xlu0 %v460
      %462 = vperm.xlu0 %461, %v427
      %v463 = vpop.permute.xlu0 %462
      %v464 = vlaneseq
      %v465 = vshrl.u32 %v464, 7
      %v466 = vadd.s32 %v465, 48
      %467 = vset.pattern.permute.xlu0 %v466
      %468 = vperm.xlu0 %467, %v427
      %v469 = vpop.permute.xlu0 %468
      %v470 = vlaneseq
      %v471 = vshrl.u32 %v470, 7
      %v472 = vadd.s32 %v471, 56
      %473 = vset.pattern.permute.xlu0 %v472
      %474 = vperm.xlu0 %473, %v427
      %v475 = vpop.permute.xlu0 %474
      %v476 = vlaneseq
      %v477 = vshrl.u32 %v476, 7
      %v478 = vadd.s32 %v477, 64
      %479 = vset.pattern.permute.xlu0 %v478
      %480 = vperm.xlu0 %479, %v427
      %v481 = vpop.permute.xlu0 %480
      %v482 = vlaneseq
      %v483 = vshrl.u32 %v482, 7
      %v484 = vadd.s32 %v483, 72
      %485 = vset.pattern.permute.xlu0 %v484
      %486 = vperm.xlu0 %485, %v427
      %v487 = vpop.permute.xlu0 %486
      %v488 = vlaneseq
      %v489 = vshrl.u32 %v488, 7
      %v490 = vadd.s32 %v489, 80
      %491 = vset.pattern.permute.xlu0 %v490
      %492 = vperm.xlu0 %491, %v427
      %v493 = vpop.permute.xlu0 %492
      %v494 = vlaneseq
      %v495 = vshrl.u32 %v494, 7
      %v496 = vadd.s32 %v495, 88
      %497 = vset.pattern.permute.xlu0 %v496
      %498 = vperm.xlu0 %497, %v427
      %v499 = vpop.permute.xlu0 %498
      %v500 = vlaneseq
      %v501 = vshrl.u32 %v500, 7
      %v502 = vadd.s32 %v501, 96
      %503 = vset.pattern.permute.xlu0 %v502
      %504 = vperm.xlu0 %503, %v427
      %v505 = vpop.permute.xlu0 %504
      %v506 = vlaneseq
      %v507 = vshrl.u32 %v506, 7
      %v508 = vadd.s32 %v507, 104
      %509 = vset.pattern.permute.xlu0 %v508
      %510 = vperm.xlu0 %509, %v427
      %v511 = vpop.permute.xlu0 %510
      %v512 = vlaneseq
      %v513 = vshrl.u32 %v512, 7
      %v514 = vadd.s32 %v513, 112
      %515 = vset.pattern.permute.xlu0 %v514
      %516 = vperm.xlu0 %515, %v427
      %v517 = vpop.permute.xlu0 %516
      %v518 = vlaneseq
      %v519 = vshrl.u32 %v518, 7
      %v520 = vadd.s32 %v519, 120
      %521 = vset.pattern.permute.xlu0 %v520
      %522 = vperm.xlu0 %521, %v427
      %v523 = vpop.permute.xlu0 %522
      %v524 = vperm.slane %v319, 1
      %v525 = vlaneseq
      %v526 = vshrl.u32 %v525, 7
      %528 = vset.pattern.permute.xlu0 %v526
      %529 = vperm.xlu0 %528, %v524
      %v530 = vpop.permute.xlu0 %529
      %v531 = vlaneseq
      %v532 = vshrl.u32 %v531, 7
      %v533 = vadd.s32 %v532, 8
      %534 = vset.pattern.permute.xlu0 %v533
      %535 = vperm.xlu0 %534, %v524
      %v536 = vpop.permute.xlu0 %535
      %v537 = vlaneseq
      %v538 = vshrl.u32 %v537, 7
      %v539 = vadd.s32 %v538, 16
      %540 = vset.pattern.permute.xlu0 %v539
      %541 = vperm.xlu0 %540, %v524
      %v542 = vpop.permute.xlu0 %541
      %v543 = vlaneseq
      %v544 = vshrl.u32 %v543, 7
      %v545 = vadd.s32 %v544, 24
      %546 = vset.pattern.permute.xlu0 %v545
      %547 = vperm.xlu0 %546, %v524
      %v548 = vpop.permute.xlu0 %547
      %v549 = vlaneseq
      %v550 = vshrl.u32 %v549, 7
      %v551 = vadd.s32 %v550, 32
      %552 = vset.pattern.permute.xlu0 %v551
      %553 = vperm.xlu0 %552, %v524
      %v554 = vpop.permute.xlu0 %553
      %v555 = vlaneseq
      %v556 = vshrl.u32 %v555, 7
      %v557 = vadd.s32 %v556, 40
      %558 = vset.pattern.permute.xlu0 %v557
      %559 = vperm.xlu0 %558, %v524
      %v560 = vpop.permute.xlu0 %559
      %v561 = vlaneseq
      %v562 = vshrl.u32 %v561, 7
      %v563 = vadd.s32 %v562, 48
      %564 = vset.pattern.permute.xlu0 %v563
      %565 = vperm.xlu0 %564, %v524
      %v566 = vpop.permute.xlu0 %565
      %v567 = vlaneseq
      %v568 = vshrl.u32 %v567, 7
      %v569 = vadd.s32 %v568, 56
      %570 = vset.pattern.permute.xlu0 %v569
      %571 = vperm.xlu0 %570, %v524
      %v572 = vpop.permute.xlu0 %571
      %v573 = vlaneseq
      %v574 = vshrl.u32 %v573, 7
      %v575 = vadd.s32 %v574, 64
      %576 = vset.pattern.permute.xlu0 %v575
      %577 = vperm.xlu0 %576, %v524
      %v578 = vpop.permute.xlu0 %577
      %v579 = vlaneseq
      %v580 = vshrl.u32 %v579, 7
      %v581 = vadd.s32 %v580, 72
      %582 = vset.pattern.permute.xlu0 %v581
      %583 = vperm.xlu0 %582, %v524
      %v584 = vpop.permute.xlu0 %583
      %v585 = vlaneseq
      %v586 = vshrl.u32 %v585, 7
      %v587 = vadd.s32 %v586, 80
      %588 = vset.pattern.permute.xlu0 %v587
      %589 = vperm.xlu0 %588, %v524
      %v590 = vpop.permute.xlu0 %589
      %v591 = vlaneseq
      %v592 = vshrl.u32 %v591, 7
      %v593 = vadd.s32 %v592, 88
      %594 = vset.pattern.permute.xlu0 %v593
      %595 = vperm.xlu0 %594, %v524
      %v596 = vpop.permute.xlu0 %595
      %v597 = vlaneseq
      %v598 = vshrl.u32 %v597, 7
      %v599 = vadd.s32 %v598, 96
      %600 = vset.pattern.permute.xlu0 %v599
      %601 = vperm.xlu0 %600, %v524
      %v602 = vpop.permute.xlu0 %601
      %v603 = vlaneseq
      %v604 = vshrl.u32 %v603, 7
      %v605 = vadd.s32 %v604, 104
      %606 = vset.pattern.permute.xlu0 %v605
      %607 = vperm.xlu0 %606, %v524
      %v608 = vpop.permute.xlu0 %607
      %v609 = vlaneseq
      %v610 = vshrl.u32 %v609, 7
      %v611 = vadd.s32 %v610, 112
      %612 = vset.pattern.permute.xlu0 %v611
      %613 = vperm.xlu0 %612, %v524
      %v614 = vpop.permute.xlu0 %613
      %v615 = vlaneseq
      %v616 = vshrl.u32 %v615, 7
      %v617 = vadd.s32 %v616, 120
      %618 = vset.pattern.permute.xlu0 %v617
      %619 = vperm.xlu0 %618, %v524
      %v620 = vpop.permute.xlu0 %619
      %v621 = vperm.slane %v320, 1
      %v622 = vlaneseq
      %v623 = vshrl.u32 %v622, 7
      %625 = vset.pattern.permute.xlu0 %v623
      %626 = vperm.xlu0 %625, %v621
      %v627 = vpop.permute.xlu0 %626
      %v628 = vlaneseq
      %v629 = vshrl.u32 %v628, 7
      %v630 = vadd.s32 %v629, 8
      %631 = vset.pattern.permute.xlu0 %v630
      %632 = vperm.xlu0 %631, %v621
      %v633 = vpop.permute.xlu0 %632
      %v634 = vlaneseq
      %v635 = vshrl.u32 %v634, 7
      %v636 = vadd.s32 %v635, 16
      %637 = vset.pattern.permute.xlu0 %v636
      %638 = vperm.xlu0 %637, %v621
      %v639 = vpop.permute.xlu0 %638
      %v640 = vlaneseq
      %v641 = vshrl.u32 %v640, 7
      %v642 = vadd.s32 %v641, 24
      %643 = vset.pattern.permute.xlu0 %v642
      %644 = vperm.xlu0 %643, %v621
      %v645 = vpop.permute.xlu0 %644
      %v646 = vlaneseq
      %v647 = vshrl.u32 %v646, 7
      %v648 = vadd.s32 %v647, 32
      %649 = vset.pattern.permute.xlu0 %v648
      %650 = vperm.xlu0 %649, %v621
      %v651 = vpop.permute.xlu0 %650
      %v652 = vlaneseq
      %v653 = vshrl.u32 %v652, 7
      %v654 = vadd.s32 %v653, 40
      %655 = vset.pattern.permute.xlu0 %v654
      %656 = vperm.xlu0 %655, %v621
      %v657 = vpop.permute.xlu0 %656
      %v658 = vlaneseq
      %v659 = vshrl.u32 %v658, 7
      %v660 = vadd.s32 %v659, 48
      %661 = vset.pattern.permute.xlu0 %v660
      %662 = vperm.xlu0 %661, %v621
      %v663 = vpop.permute.xlu0 %662
      %v664 = vlaneseq
      %v665 = vshrl.u32 %v664, 7
      %v666 = vadd.s32 %v665, 56
      %667 = vset.pattern.permute.xlu0 %v666
      %668 = vperm.xlu0 %667, %v621
      %v669 = vpop.permute.xlu0 %668
      %v670 = vlaneseq
      %v671 = vshrl.u32 %v670, 7
      %v672 = vadd.s32 %v671, 64
      %673 = vset.pattern.permute.xlu0 %v672
      %674 = vperm.xlu0 %673, %v621
      %v675 = vpop.permute.xlu0 %674
      %v676 = vlaneseq
      %v677 = vshrl.u32 %v676, 7
      %v678 = vadd.s32 %v677, 72
      %679 = vset.pattern.permute.xlu0 %v678
      %680 = vperm.xlu0 %679, %v621
      %v681 = vpop.permute.xlu0 %680
      %v682 = vlaneseq
      %v683 = vshrl.u32 %v682, 7
      %v684 = vadd.s32 %v683, 80
      %685 = vset.pattern.permute.xlu0 %v684
      %686 = vperm.xlu0 %685, %v621
      %v687 = vpop.permute.xlu0 %686
      %v688 = vlaneseq
      %v689 = vshrl.u32 %v688, 7
      %v690 = vadd.s32 %v689, 88
      %691 = vset.pattern.permute.xlu0 %v690
      %692 = vperm.xlu0 %691, %v621
      %v693 = vpop.permute.xlu0 %692
      %v694 = vlaneseq
      %v695 = vshrl.u32 %v694, 7
      %v696 = vadd.s32 %v695, 96
      %697 = vset.pattern.permute.xlu0 %v696
      %698 = vperm.xlu0 %697, %v621
      %v699 = vpop.permute.xlu0 %698
      %v700 = vlaneseq
      %v701 = vshrl.u32 %v700, 7
      %v702 = vadd.s32 %v701, 104
      %703 = vset.pattern.permute.xlu0 %v702
      %704 = vperm.xlu0 %703, %v621
      %v705 = vpop.permute.xlu0 %704
      %v706 = vlaneseq
      %v707 = vshrl.u32 %v706, 7
      %v708 = vadd.s32 %v707, 112
      %709 = vset.pattern.permute.xlu0 %v708
      %710 = vperm.xlu0 %709, %v621
      %v711 = vpop.permute.xlu0 %710
      %v712 = vlaneseq
      %v713 = vshrl.u32 %v712, 7
      %v714 = vadd.s32 %v713, 120
      %715 = vset.pattern.permute.xlu0 %v714
      %716 = vperm.xlu0 %715, %v621
      %v717 = vpop.permute.xlu0 %716
      %v718 = vperm.slane %v319, 2
      %v719 = vlaneseq
      %v720 = vshrl.u32 %v719, 7
      %722 = vset.pattern.permute.xlu0 %v720
      %723 = vperm.xlu0 %722, %v718
      %v724 = vpop.permute.xlu0 %723
      %v725 = vlaneseq
      %v726 = vshrl.u32 %v725, 7
      %v727 = vadd.s32 %v726, 8
      %728 = vset.pattern.permute.xlu0 %v727
      %729 = vperm.xlu0 %728, %v718
      %v730 = vpop.permute.xlu0 %729
      %v731 = vlaneseq
      %v732 = vshrl.u32 %v731, 7
      %v733 = vadd.s32 %v732, 16
      %734 = vset.pattern.permute.xlu0 %v733
      %735 = vperm.xlu0 %734, %v718
      %v736 = vpop.permute.xlu0 %735
      %v737 = vlaneseq
      %v738 = vshrl.u32 %v737, 7
      %v739 = vadd.s32 %v738, 24
      %740 = vset.pattern.permute.xlu0 %v739
      %741 = vperm.xlu0 %740, %v718
      %v742 = vpop.permute.xlu0 %741
      %v743 = vlaneseq
      %v744 = vshrl.u32 %v743, 7
      %v745 = vadd.s32 %v744, 32
      %746 = vset.pattern.permute.xlu0 %v745
      %747 = vperm.xlu0 %746, %v718
      %v748 = vpop.permute.xlu0 %747
      %v749 = vlaneseq
      %v750 = vshrl.u32 %v749, 7
      %v751 = vadd.s32 %v750, 40
      %752 = vset.pattern.permute.xlu0 %v751
      %753 = vperm.xlu0 %752, %v718
      %v754 = vpop.permute.xlu0 %753
      %v755 = vlaneseq
      %v756 = vshrl.u32 %v755, 7
      %v757 = vadd.s32 %v756, 48
      %758 = vset.pattern.permute.xlu0 %v757
      %759 = vperm.xlu0 %758, %v718
      %v760 = vpop.permute.xlu0 %759
      %v761 = vlaneseq
      %v762 = vshrl.u32 %v761, 7
      %v763 = vadd.s32 %v762, 56
      %764 = vset.pattern.permute.xlu0 %v763
      %765 = vperm.xlu0 %764, %v718
      %v766 = vpop.permute.xlu0 %765
      %v767 = vlaneseq
      %v768 = vshrl.u32 %v767, 7
      %v769 = vadd.s32 %v768, 64
      %770 = vset.pattern.permute.xlu0 %v769
      %771 = vperm.xlu0 %770, %v718
      %v772 = vpop.permute.xlu0 %771
      %v773 = vlaneseq
      %v774 = vshrl.u32 %v773, 7
      %v775 = vadd.s32 %v774, 72
      %776 = vset.pattern.permute.xlu0 %v775
      %777 = vperm.xlu0 %776, %v718
      %v778 = vpop.permute.xlu0 %777
      %v779 = vlaneseq
      %v780 = vshrl.u32 %v779, 7
      %v781 = vadd.s32 %v780, 80
      %782 = vset.pattern.permute.xlu0 %v781
      %783 = vperm.xlu0 %782, %v718
      %v784 = vpop.permute.xlu0 %783
      %v785 = vlaneseq
      %v786 = vshrl.u32 %v785, 7
      %v787 = vadd.s32 %v786, 88
      %788 = vset.pattern.permute.xlu0 %v787
      %789 = vperm.xlu0 %788, %v718
      %v790 = vpop.permute.xlu0 %789
      %v791 = vlaneseq
      %v792 = vshrl.u32 %v791, 7
      %v793 = vadd.s32 %v792, 96
      %794 = vset.pattern.permute.xlu0 %v793
      %795 = vperm.xlu0 %794, %v718
      %v796 = vpop.permute.xlu0 %795
      %v797 = vlaneseq
      %v798 = vshrl.u32 %v797, 7
      %v799 = vadd.s32 %v798, 104
      %800 = vset.pattern.permute.xlu0 %v799
      %801 = vperm.xlu0 %800, %v718
      %v802 = vpop.permute.xlu0 %801
      %v803 = vlaneseq
      %v804 = vshrl.u32 %v803, 7
      %v805 = vadd.s32 %v804, 112
      %806 = vset.pattern.permute.xlu0 %v805
      %807 = vperm.xlu0 %806, %v718
      %v808 = vpop.permute.xlu0 %807
      %v809 = vlaneseq
      %v810 = vshrl.u32 %v809, 7
      %v811 = vadd.s32 %v810, 120
      %812 = vset.pattern.permute.xlu0 %v811
      %813 = vperm.xlu0 %812, %v718
      %v814 = vpop.permute.xlu0 %813
      %v815 = vperm.slane %v320, 2
      %v816 = vlaneseq
      %v817 = vshrl.u32 %v816, 7
      %819 = vset.pattern.permute.xlu0 %v817
      %820 = vperm.xlu0 %819, %v815
      %v821 = vpop.permute.xlu0 %820
      %v822 = vlaneseq
      %v823 = vshrl.u32 %v822, 7
      %v824 = vadd.s32 %v823, 8
      %825 = vset.pattern.permute.xlu0 %v824
      %826 = vperm.xlu0 %825, %v815
      %v827 = vpop.permute.xlu0 %826
      %v828 = vlaneseq
      %v829 = vshrl.u32 %v828, 7
      %v830 = vadd.s32 %v829, 16
      %831 = vset.pattern.permute.xlu0 %v830
      %832 = vperm.xlu0 %831, %v815
      %v833 = vpop.permute.xlu0 %832
      %v834 = vlaneseq
      %v835 = vshrl.u32 %v834, 7
      %v836 = vadd.s32 %v835, 24
      %837 = vset.pattern.permute.xlu0 %v836
      %838 = vperm.xlu0 %837, %v815
      %v839 = vpop.permute.xlu0 %838
      %v840 = vlaneseq
      %v841 = vshrl.u32 %v840, 7
      %v842 = vadd.s32 %v841, 32
      %843 = vset.pattern.permute.xlu0 %v842
      %844 = vperm.xlu0 %843, %v815
      %v845 = vpop.permute.xlu0 %844
      %v846 = vlaneseq
      %v847 = vshrl.u32 %v846, 7
      %v848 = vadd.s32 %v847, 40
      %849 = vset.pattern.permute.xlu0 %v848
      %850 = vperm.xlu0 %849, %v815
      %v851 = vpop.permute.xlu0 %850
      %v852 = vlaneseq
      %v853 = vshrl.u32 %v852, 7
      %v854 = vadd.s32 %v853, 48
      %855 = vset.pattern.permute.xlu0 %v854
      %856 = vperm.xlu0 %855, %v815
      %v857 = vpop.permute.xlu0 %856
      %v858 = vlaneseq
      %v859 = vshrl.u32 %v858, 7
      %v860 = vadd.s32 %v859, 56
      %861 = vset.pattern.permute.xlu0 %v860
      %862 = vperm.xlu0 %861, %v815
      %v863 = vpop.permute.xlu0 %862
      %v864 = vlaneseq
      %v865 = vshrl.u32 %v864, 7
      %v866 = vadd.s32 %v865, 64
      %867 = vset.pattern.permute.xlu0 %v866
      %868 = vperm.xlu0 %867, %v815
      %v869 = vpop.permute.xlu0 %868
      %v870 = vlaneseq
      %v871 = vshrl.u32 %v870, 7
      %v872 = vadd.s32 %v871, 72
      %873 = vset.pattern.permute.xlu0 %v872
      %874 = vperm.xlu0 %873, %v815
      %v875 = vpop.permute.xlu0 %874
      %v876 = vlaneseq
      %v877 = vshrl.u32 %v876, 7
      %v878 = vadd.s32 %v877, 80
      %879 = vset.pattern.permute.xlu0 %v878
      %880 = vperm.xlu0 %879, %v815
      %v881 = vpop.permute.xlu0 %880
      %v882 = vlaneseq
      %v883 = vshrl.u32 %v882, 7
      %v884 = vadd.s32 %v883, 88
      %885 = vset.pattern.permute.xlu0 %v884
      %886 = vperm.xlu0 %885, %v815
      %v887 = vpop.permute.xlu0 %886
      %v888 = vlaneseq
      %v889 = vshrl.u32 %v888, 7
      %v890 = vadd.s32 %v889, 96
      %891 = vset.pattern.permute.xlu0 %v890
      %892 = vperm.xlu0 %891, %v815
      %v893 = vpop.permute.xlu0 %892
      %v894 = vlaneseq
      %v895 = vshrl.u32 %v894, 7
      %v896 = vadd.s32 %v895, 104
      %897 = vset.pattern.permute.xlu0 %v896
      %898 = vperm.xlu0 %897, %v815
      %v899 = vpop.permute.xlu0 %898
      %v900 = vlaneseq
      %v901 = vshrl.u32 %v900, 7
      %v902 = vadd.s32 %v901, 112
      %903 = vset.pattern.permute.xlu0 %v902
      %904 = vperm.xlu0 %903, %v815
      %v905 = vpop.permute.xlu0 %904
      %v906 = vlaneseq
      %v907 = vshrl.u32 %v906, 7
      %v908 = vadd.s32 %v907, 120
      %909 = vset.pattern.permute.xlu0 %v908
      %910 = vperm.xlu0 %909, %v815
      %v911 = vpop.permute.xlu0 %910
      %v912 = vperm.slane %v319, 3
      %v913 = vlaneseq
      %v914 = vshrl.u32 %v913, 7
      %916 = vset.pattern.permute.xlu0 %v914
      %917 = vperm.xlu0 %916, %v912
      %v918 = vpop.permute.xlu0 %917
      %v919 = vlaneseq
      %v920 = vshrl.u32 %v919, 7
      %v921 = vadd.s32 %v920, 8
      %922 = vset.pattern.permute.xlu0 %v921
      %923 = vperm.xlu0 %922, %v912
      %v924 = vpop.permute.xlu0 %923
      %v925 = vlaneseq
      %v926 = vshrl.u32 %v925, 7
      %v927 = vadd.s32 %v926, 16
      %928 = vset.pattern.permute.xlu0 %v927
      %929 = vperm.xlu0 %928, %v912
      %v930 = vpop.permute.xlu0 %929
      %v931 = vlaneseq
      %v932 = vshrl.u32 %v931, 7
      %v933 = vadd.s32 %v932, 24
      %934 = vset.pattern.permute.xlu0 %v933
      %935 = vperm.xlu0 %934, %v912
      %v936 = vpop.permute.xlu0 %935
      %v937 = vlaneseq
      %v938 = vshrl.u32 %v937, 7
      %v939 = vadd.s32 %v938, 32
      %940 = vset.pattern.permute.xlu0 %v939
      %941 = vperm.xlu0 %940, %v912
      %v942 = vpop.permute.xlu0 %941
      %v943 = vlaneseq
      %v944 = vshrl.u32 %v943, 7
      %v945 = vadd.s32 %v944, 40
      %946 = vset.pattern.permute.xlu0 %v945
      %947 = vperm.xlu0 %946, %v912
      %v948 = vpop.permute.xlu0 %947
      %v949 = vlaneseq
      %v950 = vshrl.u32 %v949, 7
      %v951 = vadd.s32 %v950, 48
      %952 = vset.pattern.permute.xlu0 %v951
      %953 = vperm.xlu0 %952, %v912
      %v954 = vpop.permute.xlu0 %953
      %v955 = vlaneseq
      %v956 = vshrl.u32 %v955, 7
      %v957 = vadd.s32 %v956, 56
      %958 = vset.pattern.permute.xlu0 %v957
      %959 = vperm.xlu0 %958, %v912
      %v960 = vpop.permute.xlu0 %959
      %v961 = vlaneseq
      %v962 = vshrl.u32 %v961, 7
      %v963 = vadd.s32 %v962, 64
      %964 = vset.pattern.permute.xlu0 %v963
      %965 = vperm.xlu0 %964, %v912
      %v966 = vpop.permute.xlu0 %965
      %v967 = vlaneseq
      %v968 = vshrl.u32 %v967, 7
      %v969 = vadd.s32 %v968, 72
      %970 = vset.pattern.permute.xlu0 %v969
      %971 = vperm.xlu0 %970, %v912
      %v972 = vpop.permute.xlu0 %971
      %v973 = vlaneseq
      %v974 = vshrl.u32 %v973, 7
      %v975 = vadd.s32 %v974, 80
      %976 = vset.pattern.permute.xlu0 %v975
      %977 = vperm.xlu0 %976, %v912
      %v978 = vpop.permute.xlu0 %977
      %v979 = vlaneseq
      %v980 = vshrl.u32 %v979, 7
      %v981 = vadd.s32 %v980, 88
      %982 = vset.pattern.permute.xlu0 %v981
      %983 = vperm.xlu0 %982, %v912
      %v984 = vpop.permute.xlu0 %983
      %v985 = vlaneseq
      %v986 = vshrl.u32 %v985, 7
      %v987 = vadd.s32 %v986, 96
      %988 = vset.pattern.permute.xlu0 %v987
      %989 = vperm.xlu0 %988, %v912
      %v990 = vpop.permute.xlu0 %989
      %v991 = vlaneseq
      %v992 = vshrl.u32 %v991, 7
      %v993 = vadd.s32 %v992, 104
      %994 = vset.pattern.permute.xlu0 %v993
      %995 = vperm.xlu0 %994, %v912
      %v996 = vpop.permute.xlu0 %995
      %v997 = vlaneseq
      %v998 = vshrl.u32 %v997, 7
      %v999 = vadd.s32 %v998, 112
      %1000 = vset.pattern.permute.xlu0 %v999
      %1001 = vperm.xlu0 %1000, %v912
      %v1002 = vpop.permute.xlu0 %1001
      %v1003 = vlaneseq
      %v1004 = vshrl.u32 %v1003, 7
      %v1005 = vadd.s32 %v1004, 120
      %1006 = vset.pattern.permute.xlu0 %v1005
      %1007 = vperm.xlu0 %1006, %v912
      %v1008 = vpop.permute.xlu0 %1007
      %v1009 = vperm.slane %v320, 3
      %v1010 = vlaneseq
      %v1011 = vshrl.u32 %v1010, 7
      %1013 = vset.pattern.permute.xlu0 %v1011
      %1014 = vperm.xlu0 %1013, %v1009
      %v1015 = vpop.permute.xlu0 %1014
      %v1016 = vlaneseq
      %v1017 = vshrl.u32 %v1016, 7
      %v1018 = vadd.s32 %v1017, 8
      %1019 = vset.pattern.permute.xlu0 %v1018
      %1020 = vperm.xlu0 %1019, %v1009
      %v1021 = vpop.permute.xlu0 %1020
      %v1022 = vlaneseq
      %v1023 = vshrl.u32 %v1022, 7
      %v1024 = vadd.s32 %v1023, 16
      %1025 = vset.pattern.permute.xlu0 %v1024
      %1026 = vperm.xlu0 %1025, %v1009
      %v1027 = vpop.permute.xlu0 %1026
      %v1028 = vlaneseq
      %v1029 = vshrl.u32 %v1028, 7
      %v1030 = vadd.s32 %v1029, 24
      %1031 = vset.pattern.permute.xlu0 %v1030
      %1032 = vperm.xlu0 %1031, %v1009
      %v1033 = vpop.permute.xlu0 %1032
      %v1034 = vlaneseq
      %v1035 = vshrl.u32 %v1034, 7
      %v1036 = vadd.s32 %v1035, 32
      %1037 = vset.pattern.permute.xlu0 %v1036
      %1038 = vperm.xlu0 %1037, %v1009
      %v1039 = vpop.permute.xlu0 %1038
      %v1040 = vlaneseq
      %v1041 = vshrl.u32 %v1040, 7
      %v1042 = vadd.s32 %v1041, 40
      %1043 = vset.pattern.permute.xlu0 %v1042
      %1044 = vperm.xlu0 %1043, %v1009
      %v1045 = vpop.permute.xlu0 %1044
      %v1046 = vlaneseq
      %v1047 = vshrl.u32 %v1046, 7
      %v1048 = vadd.s32 %v1047, 48
      %1049 = vset.pattern.permute.xlu0 %v1048
      %1050 = vperm.xlu0 %1049, %v1009
      %v1051 = vpop.permute.xlu0 %1050
      %v1052 = vlaneseq
      %v1053 = vshrl.u32 %v1052, 7
      %v1054 = vadd.s32 %v1053, 56
      %1055 = vset.pattern.permute.xlu0 %v1054
      %1056 = vperm.xlu0 %1055, %v1009
      %v1057 = vpop.permute.xlu0 %1056
      %v1058 = vlaneseq
      %v1059 = vshrl.u32 %v1058, 7
      %v1060 = vadd.s32 %v1059, 64
      %1061 = vset.pattern.permute.xlu0 %v1060
      %1062 = vperm.xlu0 %1061, %v1009
      %v1063 = vpop.permute.xlu0 %1062
      %v1064 = vlaneseq
      %v1065 = vshrl.u32 %v1064, 7
      %v1066 = vadd.s32 %v1065, 72
      %1067 = vset.pattern.permute.xlu0 %v1066
      %1068 = vperm.xlu0 %1067, %v1009
      %v1069 = vpop.permute.xlu0 %1068
      %v1070 = vlaneseq
      %v1071 = vshrl.u32 %v1070, 7
      %v1072 = vadd.s32 %v1071, 80
      %1073 = vset.pattern.permute.xlu0 %v1072
      %1074 = vperm.xlu0 %1073, %v1009
      %v1075 = vpop.permute.xlu0 %1074
      %v1076 = vlaneseq
      %v1077 = vshrl.u32 %v1076, 7
      %v1078 = vadd.s32 %v1077, 88
      %1079 = vset.pattern.permute.xlu0 %v1078
      %1080 = vperm.xlu0 %1079, %v1009
      %v1081 = vpop.permute.xlu0 %1080
      %v1082 = vlaneseq
      %v1083 = vshrl.u32 %v1082, 7
      %v1084 = vadd.s32 %v1083, 96
      %1085 = vset.pattern.permute.xlu0 %v1084
      %1086 = vperm.xlu0 %1085, %v1009
      %v1087 = vpop.permute.xlu0 %1086
      %v1088 = vlaneseq
      %v1089 = vshrl.u32 %v1088, 7
      %v1090 = vadd.s32 %v1089, 104
      %1091 = vset.pattern.permute.xlu0 %v1090
      %1092 = vperm.xlu0 %1091, %v1009
      %v1093 = vpop.permute.xlu0 %1092
      %v1094 = vlaneseq
      %v1095 = vshrl.u32 %v1094, 7
      %v1096 = vadd.s32 %v1095, 112
      %1097 = vset.pattern.permute.xlu0 %v1096
      %1098 = vperm.xlu0 %1097, %v1009
      %v1099 = vpop.permute.xlu0 %1098
      %v1100 = vlaneseq
      %v1101 = vshrl.u32 %v1100, 7
      %v1102 = vadd.s32 %v1101, 120
      %1103 = vset.pattern.permute.xlu0 %v1102
      %1104 = vperm.xlu0 %1103, %v1009
      %v1105 = vpop.permute.xlu0 %1104
      %v1106 = vperm.slane %v319, 4
      %v1107 = vlaneseq
      %v1108 = vshrl.u32 %v1107, 7
      %1110 = vset.pattern.permute.xlu0 %v1108
      %1111 = vperm.xlu0 %1110, %v1106
      %v1112 = vpop.permute.xlu0 %1111
      %v1113 = vlaneseq
      %v1114 = vshrl.u32 %v1113, 7
      %v1115 = vadd.s32 %v1114, 8
      %1116 = vset.pattern.permute.xlu0 %v1115
      %1117 = vperm.xlu0 %1116, %v1106
      %v1118 = vpop.permute.xlu0 %1117
      %v1119 = vlaneseq
      %v1120 = vshrl.u32 %v1119, 7
      %v1121 = vadd.s32 %v1120, 16
      %1122 = vset.pattern.permute.xlu0 %v1121
      %1123 = vperm.xlu0 %1122, %v1106
      %v1124 = vpop.permute.xlu0 %1123
      %v1125 = vlaneseq
      %v1126 = vshrl.u32 %v1125, 7
      %v1127 = vadd.s32 %v1126, 24
      %1128 = vset.pattern.permute.xlu0 %v1127
      %1129 = vperm.xlu0 %1128, %v1106
      %v1130 = vpop.permute.xlu0 %1129
      %v1131 = vlaneseq
      %v1132 = vshrl.u32 %v1131, 7
      %v1133 = vadd.s32 %v1132, 32
      %1134 = vset.pattern.permute.xlu0 %v1133
      %1135 = vperm.xlu0 %1134, %v1106
      %v1136 = vpop.permute.xlu0 %1135
      %v1137 = vlaneseq
      %v1138 = vshrl.u32 %v1137, 7
      %v1139 = vadd.s32 %v1138, 40
      %1140 = vset.pattern.permute.xlu0 %v1139
      %1141 = vperm.xlu0 %1140, %v1106
      %v1142 = vpop.permute.xlu0 %1141
      %v1143 = vlaneseq
      %v1144 = vshrl.u32 %v1143, 7
      %v1145 = vadd.s32 %v1144, 48
      %1146 = vset.pattern.permute.xlu0 %v1145
      %1147 = vperm.xlu0 %1146, %v1106
      %v1148 = vpop.permute.xlu0 %1147
      %v1149 = vlaneseq
      %v1150 = vshrl.u32 %v1149, 7
      %v1151 = vadd.s32 %v1150, 56
      %1152 = vset.pattern.permute.xlu0 %v1151
      %1153 = vperm.xlu0 %1152, %v1106
      %v1154 = vpop.permute.xlu0 %1153
      %v1155 = vlaneseq
      %v1156 = vshrl.u32 %v1155, 7
      %v1157 = vadd.s32 %v1156, 64
      %1158 = vset.pattern.permute.xlu0 %v1157
      %1159 = vperm.xlu0 %1158, %v1106
      %v1160 = vpop.permute.xlu0 %1159
      %v1161 = vlaneseq
      %v1162 = vshrl.u32 %v1161, 7
      %v1163 = vadd.s32 %v1162, 72
      %1164 = vset.pattern.permute.xlu0 %v1163
      %1165 = vperm.xlu0 %1164, %v1106
      %v1166 = vpop.permute.xlu0 %1165
      %v1167 = vlaneseq
      %v1168 = vshrl.u32 %v1167, 7
      %v1169 = vadd.s32 %v1168, 80
      %1170 = vset.pattern.permute.xlu0 %v1169
      %1171 = vperm.xlu0 %1170, %v1106
      %v1172 = vpop.permute.xlu0 %1171
      %v1173 = vlaneseq
      %v1174 = vshrl.u32 %v1173, 7
      %v1175 = vadd.s32 %v1174, 88
      %1176 = vset.pattern.permute.xlu0 %v1175
      %1177 = vperm.xlu0 %1176, %v1106
      %v1178 = vpop.permute.xlu0 %1177
      %v1179 = vlaneseq
      %v1180 = vshrl.u32 %v1179, 7
      %v1181 = vadd.s32 %v1180, 96
      %1182 = vset.pattern.permute.xlu0 %v1181
      %1183 = vperm.xlu0 %1182, %v1106
      %v1184 = vpop.permute.xlu0 %1183
      %v1185 = vlaneseq
      %v1186 = vshrl.u32 %v1185, 7
      %v1187 = vadd.s32 %v1186, 104
      %1188 = vset.pattern.permute.xlu0 %v1187
      %1189 = vperm.xlu0 %1188, %v1106
      %v1190 = vpop.permute.xlu0 %1189
      %v1191 = vlaneseq
      %v1192 = vshrl.u32 %v1191, 7
      %v1193 = vadd.s32 %v1192, 112
      %1194 = vset.pattern.permute.xlu0 %v1193
      %1195 = vperm.xlu0 %1194, %v1106
      %v1196 = vpop.permute.xlu0 %1195
      %v1197 = vlaneseq
      %v1198 = vshrl.u32 %v1197, 7
      %v1199 = vadd.s32 %v1198, 120
      %1200 = vset.pattern.permute.xlu0 %v1199
      %1201 = vperm.xlu0 %1200, %v1106
      %v1202 = vpop.permute.xlu0 %1201
      %v1203 = vperm.slane %v320, 4
      %v1204 = vlaneseq
      %v1205 = vshrl.u32 %v1204, 7
      %1207 = vset.pattern.permute.xlu0 %v1205
      %1208 = vperm.xlu0 %1207, %v1203
      %v1209 = vpop.permute.xlu0 %1208
      %v1210 = vlaneseq
      %v1211 = vshrl.u32 %v1210, 7
      %v1212 = vadd.s32 %v1211, 8
      %1213 = vset.pattern.permute.xlu0 %v1212
      %1214 = vperm.xlu0 %1213, %v1203
      %v1215 = vpop.permute.xlu0 %1214
      %v1216 = vlaneseq
      %v1217 = vshrl.u32 %v1216, 7
      %v1218 = vadd.s32 %v1217, 16
      %1219 = vset.pattern.permute.xlu0 %v1218
      %1220 = vperm.xlu0 %1219, %v1203
      %v1221 = vpop.permute.xlu0 %1220
      %v1222 = vlaneseq
      %v1223 = vshrl.u32 %v1222, 7
      %v1224 = vadd.s32 %v1223, 24
      %1225 = vset.pattern.permute.xlu0 %v1224
      %1226 = vperm.xlu0 %1225, %v1203
      %v1227 = vpop.permute.xlu0 %1226
      %v1228 = vlaneseq
      %v1229 = vshrl.u32 %v1228, 7
      %v1230 = vadd.s32 %v1229, 32
      %1231 = vset.pattern.permute.xlu0 %v1230
      %1232 = vperm.xlu0 %1231, %v1203
      %v1233 = vpop.permute.xlu0 %1232
      %v1234 = vlaneseq
      %v1235 = vshrl.u32 %v1234, 7
      %v1236 = vadd.s32 %v1235, 40
      %1237 = vset.pattern.permute.xlu0 %v1236
      %1238 = vperm.xlu0 %1237, %v1203
      %v1239 = vpop.permute.xlu0 %1238
      %v1240 = vlaneseq
      %v1241 = vshrl.u32 %v1240, 7
      %v1242 = vadd.s32 %v1241, 48
      %1243 = vset.pattern.permute.xlu0 %v1242
      %1244 = vperm.xlu0 %1243, %v1203
      %v1245 = vpop.permute.xlu0 %1244
      %v1246 = vlaneseq
      %v1247 = vshrl.u32 %v1246, 7
      %v1248 = vadd.s32 %v1247, 56
      %1249 = vset.pattern.permute.xlu0 %v1248
      %1250 = vperm.xlu0 %1249, %v1203
      %v1251 = vpop.permute.xlu0 %1250
      %v1252 = vlaneseq
      %v1253 = vshrl.u32 %v1252, 7
      %v1254 = vadd.s32 %v1253, 64
      %1255 = vset.pattern.permute.xlu0 %v1254
      %1256 = vperm.xlu0 %1255, %v1203
      %v1257 = vpop.permute.xlu0 %1256
      %v1258 = vlaneseq
      %v1259 = vshrl.u32 %v1258, 7
      %v1260 = vadd.s32 %v1259, 72
      %1261 = vset.pattern.permute.xlu0 %v1260
      %1262 = vperm.xlu0 %1261, %v1203
      %v1263 = vpop.permute.xlu0 %1262
      %v1264 = vlaneseq
      %v1265 = vshrl.u32 %v1264, 7
      %v1266 = vadd.s32 %v1265, 80
      %1267 = vset.pattern.permute.xlu0 %v1266
      %1268 = vperm.xlu0 %1267, %v1203
      %v1269 = vpop.permute.xlu0 %1268
      %v1270 = vlaneseq
      %v1271 = vshrl.u32 %v1270, 7
      %v1272 = vadd.s32 %v1271, 88
      %1273 = vset.pattern.permute.xlu0 %v1272
      %1274 = vperm.xlu0 %1273, %v1203
      %v1275 = vpop.permute.xlu0 %1274
      %v1276 = vlaneseq
      %v1277 = vshrl.u32 %v1276, 7
      %v1278 = vadd.s32 %v1277, 96
      %1279 = vset.pattern.permute.xlu0 %v1278
      %1280 = vperm.xlu0 %1279, %v1203
      %v1281 = vpop.permute.xlu0 %1280
      %v1282 = vlaneseq
      %v1283 = vshrl.u32 %v1282, 7
      %v1284 = vadd.s32 %v1283, 104
      %1285 = vset.pattern.permute.xlu0 %v1284
      %1286 = vperm.xlu0 %1285, %v1203
      %v1287 = vpop.permute.xlu0 %1286
      %v1288 = vlaneseq
      %v1289 = vshrl.u32 %v1288, 7
      %v1290 = vadd.s32 %v1289, 112
      %1291 = vset.pattern.permute.xlu0 %v1290
      %1292 = vperm.xlu0 %1291, %v1203
      %v1293 = vpop.permute.xlu0 %1292
      %v1294 = vlaneseq
      %v1295 = vshrl.u32 %v1294, 7
      %v1296 = vadd.s32 %v1295, 120
      %1297 = vset.pattern.permute.xlu0 %v1296
      %1298 = vperm.xlu0 %1297, %v1203
      %v1299 = vpop.permute.xlu0 %1298
      %v1300 = vperm.slane %v319, 5
      %v1301 = vlaneseq
      %v1302 = vshrl.u32 %v1301, 7
      %1304 = vset.pattern.permute.xlu0 %v1302
      %1305 = vperm.xlu0 %1304, %v1300
      %v1306 = vpop.permute.xlu0 %1305
      %v1307 = vlaneseq
      %v1308 = vshrl.u32 %v1307, 7
      %v1309 = vadd.s32 %v1308, 8
      %1310 = vset.pattern.permute.xlu0 %v1309
      %1311 = vperm.xlu0 %1310, %v1300
      %v1312 = vpop.permute.xlu0 %1311
      %v1313 = vlaneseq
      %v1314 = vshrl.u32 %v1313, 7
      %v1315 = vadd.s32 %v1314, 16
      %1316 = vset.pattern.permute.xlu0 %v1315
      %1317 = vperm.xlu0 %1316, %v1300
      %v1318 = vpop.permute.xlu0 %1317
      %v1319 = vlaneseq
      %v1320 = vshrl.u32 %v1319, 7
      %v1321 = vadd.s32 %v1320, 24
      %1322 = vset.pattern.permute.xlu0 %v1321
      %1323 = vperm.xlu0 %1322, %v1300
      %v1324 = vpop.permute.xlu0 %1323
      %v1325 = vlaneseq
      %v1326 = vshrl.u32 %v1325, 7
      %v1327 = vadd.s32 %v1326, 32
      %1328 = vset.pattern.permute.xlu0 %v1327
      %1329 = vperm.xlu0 %1328, %v1300
      %v1330 = vpop.permute.xlu0 %1329
      %v1331 = vlaneseq
      %v1332 = vshrl.u32 %v1331, 7
      %v1333 = vadd.s32 %v1332, 40
      %1334 = vset.pattern.permute.xlu0 %v1333
      %1335 = vperm.xlu0 %1334, %v1300
      %v1336 = vpop.permute.xlu0 %1335
      %v1337 = vlaneseq
      %v1338 = vshrl.u32 %v1337, 7
      %v1339 = vadd.s32 %v1338, 48
      %1340 = vset.pattern.permute.xlu0 %v1339
      %1341 = vperm.xlu0 %1340, %v1300
      %v1342 = vpop.permute.xlu0 %1341
      %v1343 = vlaneseq
      %v1344 = vshrl.u32 %v1343, 7
      %v1345 = vadd.s32 %v1344, 56
      %1346 = vset.pattern.permute.xlu0 %v1345
      %1347 = vperm.xlu0 %1346, %v1300
      %v1348 = vpop.permute.xlu0 %1347
      %v1349 = vlaneseq
      %v1350 = vshrl.u32 %v1349, 7
      %v1351 = vadd.s32 %v1350, 64
      %1352 = vset.pattern.permute.xlu0 %v1351
      %1353 = vperm.xlu0 %1352, %v1300
      %v1354 = vpop.permute.xlu0 %1353
      %v1355 = vlaneseq
      %v1356 = vshrl.u32 %v1355, 7
      %v1357 = vadd.s32 %v1356, 72
      %1358 = vset.pattern.permute.xlu0 %v1357
      %1359 = vperm.xlu0 %1358, %v1300
      %v1360 = vpop.permute.xlu0 %1359
      %v1361 = vlaneseq
      %v1362 = vshrl.u32 %v1361, 7
      %v1363 = vadd.s32 %v1362, 80
      %1364 = vset.pattern.permute.xlu0 %v1363
      %1365 = vperm.xlu0 %1364, %v1300
      %v1366 = vpop.permute.xlu0 %1365
      %v1367 = vlaneseq
      %v1368 = vshrl.u32 %v1367, 7
      %v1369 = vadd.s32 %v1368, 88
      %1370 = vset.pattern.permute.xlu0 %v1369
      %1371 = vperm.xlu0 %1370, %v1300
      %v1372 = vpop.permute.xlu0 %1371
      %v1373 = vlaneseq
      %v1374 = vshrl.u32 %v1373, 7
      %v1375 = vadd.s32 %v1374, 96
      %1376 = vset.pattern.permute.xlu0 %v1375
      %1377 = vperm.xlu0 %1376, %v1300
      %v1378 = vpop.permute.xlu0 %1377
      %v1379 = vlaneseq
      %v1380 = vshrl.u32 %v1379, 7
      %v1381 = vadd.s32 %v1380, 104
      %1382 = vset.pattern.permute.xlu0 %v1381
      %1383 = vperm.xlu0 %1382, %v1300
      %v1384 = vpop.permute.xlu0 %1383
      %v1385 = vlaneseq
      %v1386 = vshrl.u32 %v1385, 7
      %v1387 = vadd.s32 %v1386, 112
      %1388 = vset.pattern.permute.xlu0 %v1387
      %1389 = vperm.xlu0 %1388, %v1300
      %v1390 = vpop.permute.xlu0 %1389
      %v1391 = vlaneseq
      %v1392 = vshrl.u32 %v1391, 7
      %v1393 = vadd.s32 %v1392, 120
      %1394 = vset.pattern.permute.xlu0 %v1393
      %1395 = vperm.xlu0 %1394, %v1300
      %v1396 = vpop.permute.xlu0 %1395
      %v1397 = vperm.slane %v320, 5
      %v1398 = vlaneseq
      %v1399 = vshrl.u32 %v1398, 7
      %1401 = vset.pattern.permute.xlu0 %v1399
      %1402 = vperm.xlu0 %1401, %v1397
      %v1403 = vpop.permute.xlu0 %1402
      %v1404 = vlaneseq
      %v1405 = vshrl.u32 %v1404, 7
      %v1406 = vadd.s32 %v1405, 8
      %1407 = vset.pattern.permute.xlu0 %v1406
      %1408 = vperm.xlu0 %1407, %v1397
      %v1409 = vpop.permute.xlu0 %1408
      %v1410 = vlaneseq
      %v1411 = vshrl.u32 %v1410, 7
      %v1412 = vadd.s32 %v1411, 16
      %1413 = vset.pattern.permute.xlu0 %v1412
      %1414 = vperm.xlu0 %1413, %v1397
      %v1415 = vpop.permute.xlu0 %1414
      %v1416 = vlaneseq
      %v1417 = vshrl.u32 %v1416, 7
      %v1418 = vadd.s32 %v1417, 24
      %1419 = vset.pattern.permute.xlu0 %v1418
      %1420 = vperm.xlu0 %1419, %v1397
      %v1421 = vpop.permute.xlu0 %1420
      %v1422 = vlaneseq
      %v1423 = vshrl.u32 %v1422, 7
      %v1424 = vadd.s32 %v1423, 32
      %1425 = vset.pattern.permute.xlu0 %v1424
      %1426 = vperm.xlu0 %1425, %v1397
      %v1427 = vpop.permute.xlu0 %1426
      %v1428 = vlaneseq
      %v1429 = vshrl.u32 %v1428, 7
      %v1430 = vadd.s32 %v1429, 40
      %1431 = vset.pattern.permute.xlu0 %v1430
      %1432 = vperm.xlu0 %1431, %v1397
      %v1433 = vpop.permute.xlu0 %1432
      %v1434 = vlaneseq
      %v1435 = vshrl.u32 %v1434, 7
      %v1436 = vadd.s32 %v1435, 48
      %1437 = vset.pattern.permute.xlu0 %v1436
      %1438 = vperm.xlu0 %1437, %v1397
      %v1439 = vpop.permute.xlu0 %1438
      %v1440 = vlaneseq
      %v1441 = vshrl.u32 %v1440, 7
      %v1442 = vadd.s32 %v1441, 56
      %1443 = vset.pattern.permute.xlu0 %v1442
      %1444 = vperm.xlu0 %1443, %v1397
      %v1445 = vpop.permute.xlu0 %1444
      %v1446 = vlaneseq
      %v1447 = vshrl.u32 %v1446, 7
      %v1448 = vadd.s32 %v1447, 64
      %1449 = vset.pattern.permute.xlu0 %v1448
      %1450 = vperm.xlu0 %1449, %v1397
      %v1451 = vpop.permute.xlu0 %1450
      %v1452 = vlaneseq
      %v1453 = vshrl.u32 %v1452, 7
      %v1454 = vadd.s32 %v1453, 72
      %1455 = vset.pattern.permute.xlu0 %v1454
      %1456 = vperm.xlu0 %1455, %v1397
      %v1457 = vpop.permute.xlu0 %1456
      %v1458 = vlaneseq
      %v1459 = vshrl.u32 %v1458, 7
      %v1460 = vadd.s32 %v1459, 80
      %1461 = vset.pattern.permute.xlu0 %v1460
      %1462 = vperm.xlu0 %1461, %v1397
      %v1463 = vpop.permute.xlu0 %1462
      %v1464 = vlaneseq
      %v1465 = vshrl.u32 %v1464, 7
      %v1466 = vadd.s32 %v1465, 88
      %1467 = vset.pattern.permute.xlu0 %v1466
      %1468 = vperm.xlu0 %1467, %v1397
      %v1469 = vpop.permute.xlu0 %1468
      %v1470 = vlaneseq
      %v1471 = vshrl.u32 %v1470, 7
      %v1472 = vadd.s32 %v1471, 96
      %1473 = vset.pattern.permute.xlu0 %v1472
      %1474 = vperm.xlu0 %1473, %v1397
      %v1475 = vpop.permute.xlu0 %1474
      %v1476 = vlaneseq
      %v1477 = vshrl.u32 %v1476, 7
      %v1478 = vadd.s32 %v1477, 104
      %1479 = vset.pattern.permute.xlu0 %v1478
      %1480 = vperm.xlu0 %1479, %v1397
      %v1481 = vpop.permute.xlu0 %1480
      %v1482 = vlaneseq
      %v1483 = vshrl.u32 %v1482, 7
      %v1484 = vadd.s32 %v1483, 112
      %1485 = vset.pattern.permute.xlu0 %v1484
      %1486 = vperm.xlu0 %1485, %v1397
      %v1487 = vpop.permute.xlu0 %1486
      %v1488 = vlaneseq
      %v1489 = vshrl.u32 %v1488, 7
      %v1490 = vadd.s32 %v1489, 120
      %1491 = vset.pattern.permute.xlu0 %v1490
      %1492 = vperm.xlu0 %1491, %v1397
      %v1493 = vpop.permute.xlu0 %1492
      %v1494 = vperm.slane %v319, 6
      %v1495 = vlaneseq
      %v1496 = vshrl.u32 %v1495, 7
      %1498 = vset.pattern.permute.xlu0 %v1496
      %1499 = vperm.xlu0 %1498, %v1494
      %v1500 = vpop.permute.xlu0 %1499
      %v1501 = vlaneseq
      %v1502 = vshrl.u32 %v1501, 7
      %v1503 = vadd.s32 %v1502, 8
      %1504 = vset.pattern.permute.xlu0 %v1503
      %1505 = vperm.xlu0 %1504, %v1494
      %v1506 = vpop.permute.xlu0 %1505
      %v1507 = vlaneseq
      %v1508 = vshrl.u32 %v1507, 7
      %v1509 = vadd.s32 %v1508, 16
      %1510 = vset.pattern.permute.xlu0 %v1509
      %1511 = vperm.xlu0 %1510, %v1494
      %v1512 = vpop.permute.xlu0 %1511
      %v1513 = vlaneseq
      %v1514 = vshrl.u32 %v1513, 7
      %v1515 = vadd.s32 %v1514, 24
      %1516 = vset.pattern.permute.xlu0 %v1515
      %1517 = vperm.xlu0 %1516, %v1494
      %v1518 = vpop.permute.xlu0 %1517
      %v1519 = vlaneseq
      %v1520 = vshrl.u32 %v1519, 7
      %v1521 = vadd.s32 %v1520, 32
      %1522 = vset.pattern.permute.xlu0 %v1521
      %1523 = vperm.xlu0 %1522, %v1494
      %v1524 = vpop.permute.xlu0 %1523
      %v1525 = vlaneseq
      %v1526 = vshrl.u32 %v1525, 7
      %v1527 = vadd.s32 %v1526, 40
      %1528 = vset.pattern.permute.xlu0 %v1527
      %1529 = vperm.xlu0 %1528, %v1494
      %v1530 = vpop.permute.xlu0 %1529
      %v1531 = vlaneseq
      %v1532 = vshrl.u32 %v1531, 7
      %v1533 = vadd.s32 %v1532, 48
      %1534 = vset.pattern.permute.xlu0 %v1533
      %1535 = vperm.xlu0 %1534, %v1494
      %v1536 = vpop.permute.xlu0 %1535
      %v1537 = vlaneseq
      %v1538 = vshrl.u32 %v1537, 7
      %v1539 = vadd.s32 %v1538, 56
      %1540 = vset.pattern.permute.xlu0 %v1539
      %1541 = vperm.xlu0 %1540, %v1494
      %v1542 = vpop.permute.xlu0 %1541
      %v1543 = vlaneseq
      %v1544 = vshrl.u32 %v1543, 7
      %v1545 = vadd.s32 %v1544, 64
      %1546 = vset.pattern.permute.xlu0 %v1545
      %1547 = vperm.xlu0 %1546, %v1494
      %v1548 = vpop.permute.xlu0 %1547
      %v1549 = vlaneseq
      %v1550 = vshrl.u32 %v1549, 7
      %v1551 = vadd.s32 %v1550, 72
      %1552 = vset.pattern.permute.xlu0 %v1551
      %1553 = vperm.xlu0 %1552, %v1494
      %v1554 = vpop.permute.xlu0 %1553
      %v1555 = vlaneseq
      %v1556 = vshrl.u32 %v1555, 7
      %v1557 = vadd.s32 %v1556, 80
      %1558 = vset.pattern.permute.xlu0 %v1557
      %1559 = vperm.xlu0 %1558, %v1494
      %v1560 = vpop.permute.xlu0 %1559
      %v1561 = vlaneseq
      %v1562 = vshrl.u32 %v1561, 7
      %v1563 = vadd.s32 %v1562, 88
      %1564 = vset.pattern.permute.xlu0 %v1563
      %1565 = vperm.xlu0 %1564, %v1494
      %v1566 = vpop.permute.xlu0 %1565
      %v1567 = vlaneseq
      %v1568 = vshrl.u32 %v1567, 7
      %v1569 = vadd.s32 %v1568, 96
      %1570 = vset.pattern.permute.xlu0 %v1569
      %1571 = vperm.xlu0 %1570, %v1494
      %v1572 = vpop.permute.xlu0 %1571
      %v1573 = vlaneseq
      %v1574 = vshrl.u32 %v1573, 7
      %v1575 = vadd.s32 %v1574, 104
      %1576 = vset.pattern.permute.xlu0 %v1575
      %1577 = vperm.xlu0 %1576, %v1494
      %v1578 = vpop.permute.xlu0 %1577
      %v1579 = vlaneseq
      %v1580 = vshrl.u32 %v1579, 7
      %v1581 = vadd.s32 %v1580, 112
      %1582 = vset.pattern.permute.xlu0 %v1581
      %1583 = vperm.xlu0 %1582, %v1494
      %v1584 = vpop.permute.xlu0 %1583
      %v1585 = vlaneseq
      %v1586 = vshrl.u32 %v1585, 7
      %v1587 = vadd.s32 %v1586, 120
      %1588 = vset.pattern.permute.xlu0 %v1587
      %1589 = vperm.xlu0 %1588, %v1494
      %v1590 = vpop.permute.xlu0 %1589
      %v1591 = vperm.slane %v320, 6
      %v1592 = vlaneseq
      %v1593 = vshrl.u32 %v1592, 7
      %1595 = vset.pattern.permute.xlu0 %v1593
      %1596 = vperm.xlu0 %1595, %v1591
      %v1597 = vpop.permute.xlu0 %1596
      %v1598 = vlaneseq
      %v1599 = vshrl.u32 %v1598, 7
      %v1600 = vadd.s32 %v1599, 8
      %1601 = vset.pattern.permute.xlu0 %v1600
      %1602 = vperm.xlu0 %1601, %v1591
      %v1603 = vpop.permute.xlu0 %1602
      %v1604 = vlaneseq
      %v1605 = vshrl.u32 %v1604, 7
      %v1606 = vadd.s32 %v1605, 16
      %1607 = vset.pattern.permute.xlu0 %v1606
      %1608 = vperm.xlu0 %1607, %v1591
      %v1609 = vpop.permute.xlu0 %1608
      %v1610 = vlaneseq
      %v1611 = vshrl.u32 %v1610, 7
      %v1612 = vadd.s32 %v1611, 24
      %1613 = vset.pattern.permute.xlu0 %v1612
      %1614 = vperm.xlu0 %1613, %v1591
      %v1615 = vpop.permute.xlu0 %1614
      %v1616 = vlaneseq
      %v1617 = vshrl.u32 %v1616, 7
      %v1618 = vadd.s32 %v1617, 32
      %1619 = vset.pattern.permute.xlu0 %v1618
      %1620 = vperm.xlu0 %1619, %v1591
      %v1621 = vpop.permute.xlu0 %1620
      %v1622 = vlaneseq
      %v1623 = vshrl.u32 %v1622, 7
      %v1624 = vadd.s32 %v1623, 40
      %1625 = vset.pattern.permute.xlu0 %v1624
      %1626 = vperm.xlu0 %1625, %v1591
      %v1627 = vpop.permute.xlu0 %1626
      %v1628 = vlaneseq
      %v1629 = vshrl.u32 %v1628, 7
      %v1630 = vadd.s32 %v1629, 48
      %1631 = vset.pattern.permute.xlu0 %v1630
      %1632 = vperm.xlu0 %1631, %v1591
      %v1633 = vpop.permute.xlu0 %1632
      %v1634 = vlaneseq
      %v1635 = vshrl.u32 %v1634, 7
      %v1636 = vadd.s32 %v1635, 56
      %1637 = vset.pattern.permute.xlu0 %v1636
      %1638 = vperm.xlu0 %1637, %v1591
      %v1639 = vpop.permute.xlu0 %1638
      %v1640 = vlaneseq
      %v1641 = vshrl.u32 %v1640, 7
      %v1642 = vadd.s32 %v1641, 64
      %1643 = vset.pattern.permute.xlu0 %v1642
      %1644 = vperm.xlu0 %1643, %v1591
      %v1645 = vpop.permute.xlu0 %1644
      %v1646 = vlaneseq
      %v1647 = vshrl.u32 %v1646, 7
      %v1648 = vadd.s32 %v1647, 72
      %1649 = vset.pattern.permute.xlu0 %v1648
      %1650 = vperm.xlu0 %1649, %v1591
      %v1651 = vpop.permute.xlu0 %1650
      %v1652 = vlaneseq
      %v1653 = vshrl.u32 %v1652, 7
      %v1654 = vadd.s32 %v1653, 80
      %1655 = vset.pattern.permute.xlu0 %v1654
      %1656 = vperm.xlu0 %1655, %v1591
      %v1657 = vpop.permute.xlu0 %1656
      %v1658 = vlaneseq
      %v1659 = vshrl.u32 %v1658, 7
      %v1660 = vadd.s32 %v1659, 88
      %1661 = vset.pattern.permute.xlu0 %v1660
      %1662 = vperm.xlu0 %1661, %v1591
      %v1663 = vpop.permute.xlu0 %1662
      %v1664 = vlaneseq
      %v1665 = vshrl.u32 %v1664, 7
      %v1666 = vadd.s32 %v1665, 96
      %1667 = vset.pattern.permute.xlu0 %v1666
      %1668 = vperm.xlu0 %1667, %v1591
      %v1669 = vpop.permute.xlu0 %1668
      %v1670 = vlaneseq
      %v1671 = vshrl.u32 %v1670, 7
      %v1672 = vadd.s32 %v1671, 104
      %1673 = vset.pattern.permute.xlu0 %v1672
      %1674 = vperm.xlu0 %1673, %v1591
      %v1675 = vpop.permute.xlu0 %1674
      %v1676 = vlaneseq
      %v1677 = vshrl.u32 %v1676, 7
      %v1678 = vadd.s32 %v1677, 112
      %1679 = vset.pattern.permute.xlu0 %v1678
      %1680 = vperm.xlu0 %1679, %v1591
      %v1681 = vpop.permute.xlu0 %1680
      %v1682 = vlaneseq
      %v1683 = vshrl.u32 %v1682, 7
      %v1684 = vadd.s32 %v1683, 120
      %1685 = vset.pattern.permute.xlu0 %v1684
      %1686 = vperm.xlu0 %1685, %v1591
      %v1687 = vpop.permute.xlu0 %1686
      %v1688 = vperm.slane %v319, 7
      %v1689 = vlaneseq
      %v1690 = vshrl.u32 %v1689, 7
      %1692 = vset.pattern.permute.xlu0 %v1690
      %1693 = vperm.xlu0 %1692, %v1688
      %v1694 = vpop.permute.xlu0 %1693
      %v1695 = vlaneseq
      %v1696 = vshrl.u32 %v1695, 7
      %v1697 = vadd.s32 %v1696, 8
      %1698 = vset.pattern.permute.xlu0 %v1697
      %1699 = vperm.xlu0 %1698, %v1688
      %v1700 = vpop.permute.xlu0 %1699
      %v1701 = vlaneseq
      %v1702 = vshrl.u32 %v1701, 7
      %v1703 = vadd.s32 %v1702, 16
      %1704 = vset.pattern.permute.xlu0 %v1703
      %1705 = vperm.xlu0 %1704, %v1688
      %v1706 = vpop.permute.xlu0 %1705
      %v1707 = vlaneseq
      %v1708 = vshrl.u32 %v1707, 7
      %v1709 = vadd.s32 %v1708, 24
      %1710 = vset.pattern.permute.xlu0 %v1709
      %1711 = vperm.xlu0 %1710, %v1688
      %v1712 = vpop.permute.xlu0 %1711
      %v1713 = vlaneseq
      %v1714 = vshrl.u32 %v1713, 7
      %v1715 = vadd.s32 %v1714, 32
      %1716 = vset.pattern.permute.xlu0 %v1715
      %1717 = vperm.xlu0 %1716, %v1688
      %v1718 = vpop.permute.xlu0 %1717
      %v1719 = vlaneseq
      %v1720 = vshrl.u32 %v1719, 7
      %v1721 = vadd.s32 %v1720, 40
      %1722 = vset.pattern.permute.xlu0 %v1721
      %1723 = vperm.xlu0 %1722, %v1688
      %v1724 = vpop.permute.xlu0 %1723
      %v1725 = vlaneseq
      %v1726 = vshrl.u32 %v1725, 7
      %v1727 = vadd.s32 %v1726, 48
      %1728 = vset.pattern.permute.xlu0 %v1727
      %1729 = vperm.xlu0 %1728, %v1688
      %v1730 = vpop.permute.xlu0 %1729
      %v1731 = vlaneseq
      %v1732 = vshrl.u32 %v1731, 7
      %v1733 = vadd.s32 %v1732, 56
      %1734 = vset.pattern.permute.xlu0 %v1733
      %1735 = vperm.xlu0 %1734, %v1688
      %v1736 = vpop.permute.xlu0 %1735
      %v1737 = vlaneseq
      %v1738 = vshrl.u32 %v1737, 7
      %v1739 = vadd.s32 %v1738, 64
      %1740 = vset.pattern.permute.xlu0 %v1739
      %1741 = vperm.xlu0 %1740, %v1688
      %v1742 = vpop.permute.xlu0 %1741
      %v1743 = vlaneseq
      %v1744 = vshrl.u32 %v1743, 7
      %v1745 = vadd.s32 %v1744, 72
      %1746 = vset.pattern.permute.xlu0 %v1745
      %1747 = vperm.xlu0 %1746, %v1688
      %v1748 = vpop.permute.xlu0 %1747
      %v1749 = vlaneseq
      %v1750 = vshrl.u32 %v1749, 7
      %v1751 = vadd.s32 %v1750, 80
      %1752 = vset.pattern.permute.xlu0 %v1751
      %1753 = vperm.xlu0 %1752, %v1688
      %v1754 = vpop.permute.xlu0 %1753
      %v1755 = vlaneseq
      %v1756 = vshrl.u32 %v1755, 7
      %v1757 = vadd.s32 %v1756, 88
      %1758 = vset.pattern.permute.xlu0 %v1757
      %1759 = vperm.xlu0 %1758, %v1688
      %v1760 = vpop.permute.xlu0 %1759
      %v1761 = vlaneseq
      %v1762 = vshrl.u32 %v1761, 7
      %v1763 = vadd.s32 %v1762, 96
      %1764 = vset.pattern.permute.xlu0 %v1763
      %1765 = vperm.xlu0 %1764, %v1688
      %v1766 = vpop.permute.xlu0 %1765
      %v1767 = vlaneseq
      %v1768 = vshrl.u32 %v1767, 7
      %v1769 = vadd.s32 %v1768, 104
      %1770 = vset.pattern.permute.xlu0 %v1769
      %1771 = vperm.xlu0 %1770, %v1688
      %v1772 = vpop.permute.xlu0 %1771
      %v1773 = vlaneseq
      %v1774 = vshrl.u32 %v1773, 7
      %v1775 = vadd.s32 %v1774, 112
      %1776 = vset.pattern.permute.xlu0 %v1775
      %1777 = vperm.xlu0 %1776, %v1688
      %v1778 = vpop.permute.xlu0 %1777
      %v1779 = vlaneseq
      %v1780 = vshrl.u32 %v1779, 7
      %v1781 = vadd.s32 %v1780, 120
      %1782 = vset.pattern.permute.xlu0 %v1781
      %1783 = vperm.xlu0 %1782, %v1688
      %v1784 = vpop.permute.xlu0 %1783
      %v1785 = vperm.slane %v320, 7
      %v1786 = vlaneseq
      %v1787 = vshrl.u32 %v1786, 7
      %1789 = vset.pattern.permute.xlu0 %v1787
      %1790 = vperm.xlu0 %1789, %v1785
      %v1791 = vpop.permute.xlu0 %1790
      %v1792 = vlaneseq
      %v1793 = vshrl.u32 %v1792, 7
      %v1794 = vadd.s32 %v1793, 8
      %1795 = vset.pattern.permute.xlu0 %v1794
      %1796 = vperm.xlu0 %1795, %v1785
      %v1797 = vpop.permute.xlu0 %1796
      %v1798 = vlaneseq
      %v1799 = vshrl.u32 %v1798, 7
      %v1800 = vadd.s32 %v1799, 16
      %1801 = vset.pattern.permute.xlu0 %v1800
      %1802 = vperm.xlu0 %1801, %v1785
      %v1803 = vpop.permute.xlu0 %1802
      %v1804 = vlaneseq
      %v1805 = vshrl.u32 %v1804, 7
      %v1806 = vadd.s32 %v1805, 24
      %1807 = vset.pattern.permute.xlu0 %v1806
      %1808 = vperm.xlu0 %1807, %v1785
      %v1809 = vpop.permute.xlu0 %1808
      %v1810 = vlaneseq
      %v1811 = vshrl.u32 %v1810, 7
      %v1812 = vadd.s32 %v1811, 32
      %1813 = vset.pattern.permute.xlu0 %v1812
      %1814 = vperm.xlu0 %1813, %v1785
      %v1815 = vpop.permute.xlu0 %1814
      %v1816 = vlaneseq
      %v1817 = vshrl.u32 %v1816, 7
      %v1818 = vadd.s32 %v1817, 40
      %1819 = vset.pattern.permute.xlu0 %v1818
      %1820 = vperm.xlu0 %1819, %v1785
      %v1821 = vpop.permute.xlu0 %1820
      %v1822 = vlaneseq
      %v1823 = vshrl.u32 %v1822, 7
      %v1824 = vadd.s32 %v1823, 48
      %1825 = vset.pattern.permute.xlu0 %v1824
      %1826 = vperm.xlu0 %1825, %v1785
      %v1827 = vpop.permute.xlu0 %1826
      %v1828 = vlaneseq
      %v1829 = vshrl.u32 %v1828, 7
      %v1830 = vadd.s32 %v1829, 56
      %1831 = vset.pattern.permute.xlu0 %v1830
      %1832 = vperm.xlu0 %1831, %v1785
      %v1833 = vpop.permute.xlu0 %1832
      %v1834 = vlaneseq
      %v1835 = vshrl.u32 %v1834, 7
      %v1836 = vadd.s32 %v1835, 64
      %1837 = vset.pattern.permute.xlu0 %v1836
      %1838 = vperm.xlu0 %1837, %v1785
      %v1839 = vpop.permute.xlu0 %1838
      %v1840 = vlaneseq
      %v1841 = vshrl.u32 %v1840, 7
      %v1842 = vadd.s32 %v1841, 72
      %1843 = vset.pattern.permute.xlu0 %v1842
      %1844 = vperm.xlu0 %1843, %v1785
      %v1845 = vpop.permute.xlu0 %1844
      %v1846 = vlaneseq
      %v1847 = vshrl.u32 %v1846, 7
      %v1848 = vadd.s32 %v1847, 80
      %1849 = vset.pattern.permute.xlu0 %v1848
      %1850 = vperm.xlu0 %1849, %v1785
      %v1851 = vpop.permute.xlu0 %1850
      %v1852 = vlaneseq
      %v1853 = vshrl.u32 %v1852, 7
      %v1854 = vadd.s32 %v1853, 88
      %1855 = vset.pattern.permute.xlu0 %v1854
      %1856 = vperm.xlu0 %1855, %v1785
      %v1857 = vpop.permute.xlu0 %1856
      %v1858 = vlaneseq
      %v1859 = vshrl.u32 %v1858, 7
      %v1860 = vadd.s32 %v1859, 96
      %1861 = vset.pattern.permute.xlu0 %v1860
      %1862 = vperm.xlu0 %1861, %v1785
      %v1863 = vpop.permute.xlu0 %1862
      %v1864 = vlaneseq
      %v1865 = vshrl.u32 %v1864, 7
      %v1866 = vadd.s32 %v1865, 104
      %1867 = vset.pattern.permute.xlu0 %v1866
      %1868 = vperm.xlu0 %1867, %v1785
      %v1869 = vpop.permute.xlu0 %1868
      %v1870 = vlaneseq
      %v1871 = vshrl.u32 %v1870, 7
      %v1872 = vadd.s32 %v1871, 112
      %1873 = vset.pattern.permute.xlu0 %v1872
      %1874 = vperm.xlu0 %1873, %v1785
      %v1875 = vpop.permute.xlu0 %1874
      %v1876 = vlaneseq
      %v1877 = vshrl.u32 %v1876, 7
      %v1878 = vadd.s32 %v1877, 120
      %1879 = vset.pattern.permute.xlu0 %v1878
      %1880 = vperm.xlu0 %1879, %v1785
      %v1881 = vpop.permute.xlu0 %1880
      %v1882 = vperm.slane %v328, 0
      %v1883 = vlaneseq
      %v1884 = vshrl.u32 %v1883, 7
      %1886 = vset.pattern.permute.xlu0 %v1884
      %1887 = vperm.xlu0 %1886, %v1882
      %v1888 = vpop.permute.xlu0 %1887
      %v1889 = vlaneseq
      %v1890 = vshrl.u32 %v1889, 7
      %v1891 = vadd.s32 %v1890, 8
      %1892 = vset.pattern.permute.xlu0 %v1891
      %1893 = vperm.xlu0 %1892, %v1882
      %v1894 = vpop.permute.xlu0 %1893
      %v1895 = vlaneseq
      %v1896 = vshrl.u32 %v1895, 7
      %v1897 = vadd.s32 %v1896, 16
      %1898 = vset.pattern.permute.xlu0 %v1897
      %1899 = vperm.xlu0 %1898, %v1882
      %v1900 = vpop.permute.xlu0 %1899
      %v1901 = vlaneseq
      %v1902 = vshrl.u32 %v1901, 7
      %v1903 = vadd.s32 %v1902, 24
      %1904 = vset.pattern.permute.xlu0 %v1903
      %1905 = vperm.xlu0 %1904, %v1882
      %v1906 = vpop.permute.xlu0 %1905
      %v1907 = vlaneseq
      %v1908 = vshrl.u32 %v1907, 7
      %v1909 = vadd.s32 %v1908, 32
      %1910 = vset.pattern.permute.xlu0 %v1909
      %1911 = vperm.xlu0 %1910, %v1882
      %v1912 = vpop.permute.xlu0 %1911
      %v1913 = vlaneseq
      %v1914 = vshrl.u32 %v1913, 7
      %v1915 = vadd.s32 %v1914, 40
      %1916 = vset.pattern.permute.xlu0 %v1915
      %1917 = vperm.xlu0 %1916, %v1882
      %v1918 = vpop.permute.xlu0 %1917
      %v1919 = vlaneseq
      %v1920 = vshrl.u32 %v1919, 7
      %v1921 = vadd.s32 %v1920, 48
      %1922 = vset.pattern.permute.xlu0 %v1921
      %1923 = vperm.xlu0 %1922, %v1882
      %v1924 = vpop.permute.xlu0 %1923
      %v1925 = vlaneseq
      %v1926 = vshrl.u32 %v1925, 7
      %v1927 = vadd.s32 %v1926, 56
      %1928 = vset.pattern.permute.xlu0 %v1927
      %1929 = vperm.xlu0 %1928, %v1882
      %v1930 = vpop.permute.xlu0 %1929
      %v1931 = vlaneseq
      %v1932 = vshrl.u32 %v1931, 7
      %v1933 = vadd.s32 %v1932, 64
      %1934 = vset.pattern.permute.xlu0 %v1933
      %1935 = vperm.xlu0 %1934, %v1882
      %v1936 = vpop.permute.xlu0 %1935
      %v1937 = vlaneseq
      %v1938 = vshrl.u32 %v1937, 7
      %v1939 = vadd.s32 %v1938, 72
      %1940 = vset.pattern.permute.xlu0 %v1939
      %1941 = vperm.xlu0 %1940, %v1882
      %v1942 = vpop.permute.xlu0 %1941
      %v1943 = vlaneseq
      %v1944 = vshrl.u32 %v1943, 7
      %v1945 = vadd.s32 %v1944, 80
      %1946 = vset.pattern.permute.xlu0 %v1945
      %1947 = vperm.xlu0 %1946, %v1882
      %v1948 = vpop.permute.xlu0 %1947
      %v1949 = vlaneseq
      %v1950 = vshrl.u32 %v1949, 7
      %v1951 = vadd.s32 %v1950, 88
      %1952 = vset.pattern.permute.xlu0 %v1951
      %1953 = vperm.xlu0 %1952, %v1882
      %v1954 = vpop.permute.xlu0 %1953
      %v1955 = vlaneseq
      %v1956 = vshrl.u32 %v1955, 7
      %v1957 = vadd.s32 %v1956, 96
      %1958 = vset.pattern.permute.xlu0 %v1957
      %1959 = vperm.xlu0 %1958, %v1882
      %v1960 = vpop.permute.xlu0 %1959
      %v1961 = vlaneseq
      %v1962 = vshrl.u32 %v1961, 7
      %v1963 = vadd.s32 %v1962, 104
      %1964 = vset.pattern.permute.xlu0 %v1963
      %1965 = vperm.xlu0 %1964, %v1882
      %v1966 = vpop.permute.xlu0 %1965
      %v1967 = vlaneseq
      %v1968 = vshrl.u32 %v1967, 7
      %v1969 = vadd.s32 %v1968, 112
      %1970 = vset.pattern.permute.xlu0 %v1969
      %1971 = vperm.xlu0 %1970, %v1882
      %v1972 = vpop.permute.xlu0 %1971
      %v1973 = vlaneseq
      %v1974 = vshrl.u32 %v1973, 7
      %v1975 = vadd.s32 %v1974, 120
      %1976 = vset.pattern.permute.xlu0 %v1975
      %1977 = vperm.xlu0 %1976, %v1882
      %v1978 = vpop.permute.xlu0 %1977
      %v1979 = vperm.slane %v329, 0
      %v1980 = vlaneseq
      %v1981 = vshrl.u32 %v1980, 7
      %1983 = vset.pattern.permute.xlu0 %v1981
      %1984 = vperm.xlu0 %1983, %v1979
      %v1985 = vpop.permute.xlu0 %1984
      %v1986 = vlaneseq
      %v1987 = vshrl.u32 %v1986, 7
      %v1988 = vadd.s32 %v1987, 8
      %1989 = vset.pattern.permute.xlu0 %v1988
      %1990 = vperm.xlu0 %1989, %v1979
      %v1991 = vpop.permute.xlu0 %1990
      %v1992 = vlaneseq
      %v1993 = vshrl.u32 %v1992, 7
      %v1994 = vadd.s32 %v1993, 16
      %1995 = vset.pattern.permute.xlu0 %v1994
      %1996 = vperm.xlu0 %1995, %v1979
      %v1997 = vpop.permute.xlu0 %1996
      %v1998 = vlaneseq
      %v1999 = vshrl.u32 %v1998, 7
      %v2000 = vadd.s32 %v1999, 24
      %2001 = vset.pattern.permute.xlu0 %v2000
      %2002 = vperm.xlu0 %2001, %v1979
      %v2003 = vpop.permute.xlu0 %2002
      %v2004 = vlaneseq
      %v2005 = vshrl.u32 %v2004, 7
      %v2006 = vadd.s32 %v2005, 32
      %2007 = vset.pattern.permute.xlu0 %v2006
      %2008 = vperm.xlu0 %2007, %v1979
      %v2009 = vpop.permute.xlu0 %2008
      %v2010 = vlaneseq
      %v2011 = vshrl.u32 %v2010, 7
      %v2012 = vadd.s32 %v2011, 40
      %2013 = vset.pattern.permute.xlu0 %v2012
      %2014 = vperm.xlu0 %2013, %v1979
      %v2015 = vpop.permute.xlu0 %2014
      %v2016 = vlaneseq
      %v2017 = vshrl.u32 %v2016, 7
      %v2018 = vadd.s32 %v2017, 48
      %2019 = vset.pattern.permute.xlu0 %v2018
      %2020 = vperm.xlu0 %2019, %v1979
      %v2021 = vpop.permute.xlu0 %2020
      %v2022 = vlaneseq
      %v2023 = vshrl.u32 %v2022, 7
      %v2024 = vadd.s32 %v2023, 56
      %2025 = vset.pattern.permute.xlu0 %v2024
      %2026 = vperm.xlu0 %2025, %v1979
      %v2027 = vpop.permute.xlu0 %2026
      %v2028 = vlaneseq
      %v2029 = vshrl.u32 %v2028, 7
      %v2030 = vadd.s32 %v2029, 64
      %2031 = vset.pattern.permute.xlu0 %v2030
      %2032 = vperm.xlu0 %2031, %v1979
      %v2033 = vpop.permute.xlu0 %2032
      %v2034 = vlaneseq
      %v2035 = vshrl.u32 %v2034, 7
      %v2036 = vadd.s32 %v2035, 72
      %2037 = vset.pattern.permute.xlu0 %v2036
      %2038 = vperm.xlu0 %2037, %v1979
      %v2039 = vpop.permute.xlu0 %2038
      %v2040 = vlaneseq
      %v2041 = vshrl.u32 %v2040, 7
      %v2042 = vadd.s32 %v2041, 80
      %2043 = vset.pattern.permute.xlu0 %v2042
      %2044 = vperm.xlu0 %2043, %v1979
      %v2045 = vpop.permute.xlu0 %2044
      %v2046 = vlaneseq
      %v2047 = vshrl.u32 %v2046, 7
      %v2048 = vadd.s32 %v2047, 88
      %2049 = vset.pattern.permute.xlu0 %v2048
      %2050 = vperm.xlu0 %2049, %v1979
      %v2051 = vpop.permute.xlu0 %2050
      %v2052 = vlaneseq
      %v2053 = vshrl.u32 %v2052, 7
      %v2054 = vadd.s32 %v2053, 96
      %2055 = vset.pattern.permute.xlu0 %v2054
      %2056 = vperm.xlu0 %2055, %v1979
      %v2057 = vpop.permute.xlu0 %2056
      %v2058 = vlaneseq
      %v2059 = vshrl.u32 %v2058, 7
      %v2060 = vadd.s32 %v2059, 104
      %2061 = vset.pattern.permute.xlu0 %v2060
      %2062 = vperm.xlu0 %2061, %v1979
      %v2063 = vpop.permute.xlu0 %2062
      %v2064 = vlaneseq
      %v2065 = vshrl.u32 %v2064, 7
      %v2066 = vadd.s32 %v2065, 112
      %2067 = vset.pattern.permute.xlu0 %v2066
      %2068 = vperm.xlu0 %2067, %v1979
      %v2069 = vpop.permute.xlu0 %2068
      %v2070 = vlaneseq
      %v2071 = vshrl.u32 %v2070, 7
      %v2072 = vadd.s32 %v2071, 120
      %2073 = vset.pattern.permute.xlu0 %v2072
      %2074 = vperm.xlu0 %2073, %v1979
      %v2075 = vpop.permute.xlu0 %2074
      %v2076 = vperm.slane %v328, 1
      %v2077 = vlaneseq
      %v2078 = vshrl.u32 %v2077, 7
      %2080 = vset.pattern.permute.xlu0 %v2078
      %2081 = vperm.xlu0 %2080, %v2076
      %v2082 = vpop.permute.xlu0 %2081
      %v2083 = vlaneseq
      %v2084 = vshrl.u32 %v2083, 7
      %v2085 = vadd.s32 %v2084, 8
      %2086 = vset.pattern.permute.xlu0 %v2085
      %2087 = vperm.xlu0 %2086, %v2076
      %v2088 = vpop.permute.xlu0 %2087
      %v2089 = vlaneseq
      %v2090 = vshrl.u32 %v2089, 7
      %v2091 = vadd.s32 %v2090, 16
      %2092 = vset.pattern.permute.xlu0 %v2091
      %2093 = vperm.xlu0 %2092, %v2076
      %v2094 = vpop.permute.xlu0 %2093
      %v2095 = vlaneseq
      %v2096 = vshrl.u32 %v2095, 7
      %v2097 = vadd.s32 %v2096, 24
      %2098 = vset.pattern.permute.xlu0 %v2097
      %2099 = vperm.xlu0 %2098, %v2076
      %v2100 = vpop.permute.xlu0 %2099
      %v2101 = vlaneseq
      %v2102 = vshrl.u32 %v2101, 7
      %v2103 = vadd.s32 %v2102, 32
      %2104 = vset.pattern.permute.xlu0 %v2103
      %2105 = vperm.xlu0 %2104, %v2076
      %v2106 = vpop.permute.xlu0 %2105
      %v2107 = vlaneseq
      %v2108 = vshrl.u32 %v2107, 7
      %v2109 = vadd.s32 %v2108, 40
      %2110 = vset.pattern.permute.xlu0 %v2109
      %2111 = vperm.xlu0 %2110, %v2076
      %v2112 = vpop.permute.xlu0 %2111
      %v2113 = vlaneseq
      %v2114 = vshrl.u32 %v2113, 7
      %v2115 = vadd.s32 %v2114, 48
      %2116 = vset.pattern.permute.xlu0 %v2115
      %2117 = vperm.xlu0 %2116, %v2076
      %v2118 = vpop.permute.xlu0 %2117
      %v2119 = vlaneseq
      %v2120 = vshrl.u32 %v2119, 7
      %v2121 = vadd.s32 %v2120, 56
      %2122 = vset.pattern.permute.xlu0 %v2121
      %2123 = vperm.xlu0 %2122, %v2076
      %v2124 = vpop.permute.xlu0 %2123
      %v2125 = vlaneseq
      %v2126 = vshrl.u32 %v2125, 7
      %v2127 = vadd.s32 %v2126, 64
      %2128 = vset.pattern.permute.xlu0 %v2127
      %2129 = vperm.xlu0 %2128, %v2076
      %v2130 = vpop.permute.xlu0 %2129
      %v2131 = vlaneseq
      %v2132 = vshrl.u32 %v2131, 7
      %v2133 = vadd.s32 %v2132, 72
      %2134 = vset.pattern.permute.xlu0 %v2133
      %2135 = vperm.xlu0 %2134, %v2076
      %v2136 = vpop.permute.xlu0 %2135
      %v2137 = vlaneseq
      %v2138 = vshrl.u32 %v2137, 7
      %v2139 = vadd.s32 %v2138, 80
      %2140 = vset.pattern.permute.xlu0 %v2139
      %2141 = vperm.xlu0 %2140, %v2076
      %v2142 = vpop.permute.xlu0 %2141
      %v2143 = vlaneseq
      %v2144 = vshrl.u32 %v2143, 7
      %v2145 = vadd.s32 %v2144, 88
      %2146 = vset.pattern.permute.xlu0 %v2145
      %2147 = vperm.xlu0 %2146, %v2076
      %v2148 = vpop.permute.xlu0 %2147
      %v2149 = vlaneseq
      %v2150 = vshrl.u32 %v2149, 7
      %v2151 = vadd.s32 %v2150, 96
      %2152 = vset.pattern.permute.xlu0 %v2151
      %2153 = vperm.xlu0 %2152, %v2076
      %v2154 = vpop.permute.xlu0 %2153
      %v2155 = vlaneseq
      %v2156 = vshrl.u32 %v2155, 7
      %v2157 = vadd.s32 %v2156, 104
      %2158 = vset.pattern.permute.xlu0 %v2157
      %2159 = vperm.xlu0 %2158, %v2076
      %v2160 = vpop.permute.xlu0 %2159
      %v2161 = vlaneseq
      %v2162 = vshrl.u32 %v2161, 7
      %v2163 = vadd.s32 %v2162, 112
      %2164 = vset.pattern.permute.xlu0 %v2163
      %2165 = vperm.xlu0 %2164, %v2076
      %v2166 = vpop.permute.xlu0 %2165
      %v2167 = vlaneseq
      %v2168 = vshrl.u32 %v2167, 7
      %v2169 = vadd.s32 %v2168, 120
      %2170 = vset.pattern.permute.xlu0 %v2169
      %2171 = vperm.xlu0 %2170, %v2076
      %v2172 = vpop.permute.xlu0 %2171
      %v2173 = vperm.slane %v329, 1
      %v2174 = vlaneseq
      %v2175 = vshrl.u32 %v2174, 7
      %2177 = vset.pattern.permute.xlu0 %v2175
      %2178 = vperm.xlu0 %2177, %v2173
      %v2179 = vpop.permute.xlu0 %2178
      %v2180 = vlaneseq
      %v2181 = vshrl.u32 %v2180, 7
      %v2182 = vadd.s32 %v2181, 8
      %2183 = vset.pattern.permute.xlu0 %v2182
      %2184 = vperm.xlu0 %2183, %v2173
      %v2185 = vpop.permute.xlu0 %2184
      %v2186 = vlaneseq
      %v2187 = vshrl.u32 %v2186, 7
      %v2188 = vadd.s32 %v2187, 16
      %2189 = vset.pattern.permute.xlu0 %v2188
      %2190 = vperm.xlu0 %2189, %v2173
      %v2191 = vpop.permute.xlu0 %2190
      %v2192 = vlaneseq
      %v2193 = vshrl.u32 %v2192, 7
      %v2194 = vadd.s32 %v2193, 24
      %2195 = vset.pattern.permute.xlu0 %v2194
      %2196 = vperm.xlu0 %2195, %v2173
      %v2197 = vpop.permute.xlu0 %2196
      %v2198 = vlaneseq
      %v2199 = vshrl.u32 %v2198, 7
      %v2200 = vadd.s32 %v2199, 32
      %2201 = vset.pattern.permute.xlu0 %v2200
      %2202 = vperm.xlu0 %2201, %v2173
      %v2203 = vpop.permute.xlu0 %2202
      %v2204 = vlaneseq
      %v2205 = vshrl.u32 %v2204, 7
      %v2206 = vadd.s32 %v2205, 40
      %2207 = vset.pattern.permute.xlu0 %v2206
      %2208 = vperm.xlu0 %2207, %v2173
      %v2209 = vpop.permute.xlu0 %2208
      %v2210 = vlaneseq
      %v2211 = vshrl.u32 %v2210, 7
      %v2212 = vadd.s32 %v2211, 48
      %2213 = vset.pattern.permute.xlu0 %v2212
      %2214 = vperm.xlu0 %2213, %v2173
      %v2215 = vpop.permute.xlu0 %2214
      %v2216 = vlaneseq
      %v2217 = vshrl.u32 %v2216, 7
      %v2218 = vadd.s32 %v2217, 56
      %2219 = vset.pattern.permute.xlu0 %v2218
      %2220 = vperm.xlu0 %2219, %v2173
      %v2221 = vpop.permute.xlu0 %2220
      %v2222 = vlaneseq
      %v2223 = vshrl.u32 %v2222, 7
      %v2224 = vadd.s32 %v2223, 64
      %2225 = vset.pattern.permute.xlu0 %v2224
      %2226 = vperm.xlu0 %2225, %v2173
      %v2227 = vpop.permute.xlu0 %2226
      %v2228 = vlaneseq
      %v2229 = vshrl.u32 %v2228, 7
      %v2230 = vadd.s32 %v2229, 72
      %2231 = vset.pattern.permute.xlu0 %v2230
      %2232 = vperm.xlu0 %2231, %v2173
      %v2233 = vpop.permute.xlu0 %2232
      %v2234 = vlaneseq
      %v2235 = vshrl.u32 %v2234, 7
      %v2236 = vadd.s32 %v2235, 80
      %2237 = vset.pattern.permute.xlu0 %v2236
      %2238 = vperm.xlu0 %2237, %v2173
      %v2239 = vpop.permute.xlu0 %2238
      %v2240 = vlaneseq
      %v2241 = vshrl.u32 %v2240, 7
      %v2242 = vadd.s32 %v2241, 88
      %2243 = vset.pattern.permute.xlu0 %v2242
      %2244 = vperm.xlu0 %2243, %v2173
      %v2245 = vpop.permute.xlu0 %2244
      %v2246 = vlaneseq
      %v2247 = vshrl.u32 %v2246, 7
      %v2248 = vadd.s32 %v2247, 96
      %2249 = vset.pattern.permute.xlu0 %v2248
      %2250 = vperm.xlu0 %2249, %v2173
      %v2251 = vpop.permute.xlu0 %2250
      %v2252 = vlaneseq
      %v2253 = vshrl.u32 %v2252, 7
      %v2254 = vadd.s32 %v2253, 104
      %2255 = vset.pattern.permute.xlu0 %v2254
      %2256 = vperm.xlu0 %2255, %v2173
      %v2257 = vpop.permute.xlu0 %2256
      %v2258 = vlaneseq
      %v2259 = vshrl.u32 %v2258, 7
      %v2260 = vadd.s32 %v2259, 112
      %2261 = vset.pattern.permute.xlu0 %v2260
      %2262 = vperm.xlu0 %2261, %v2173
      %v2263 = vpop.permute.xlu0 %2262
      %v2264 = vlaneseq
      %v2265 = vshrl.u32 %v2264, 7
      %v2266 = vadd.s32 %v2265, 120
      %2267 = vset.pattern.permute.xlu0 %v2266
      %2268 = vperm.xlu0 %2267, %v2173
      %v2269 = vpop.permute.xlu0 %2268
      %v2270 = vperm.slane %v328, 2
      %v2271 = vlaneseq
      %v2272 = vshrl.u32 %v2271, 7
      %2274 = vset.pattern.permute.xlu0 %v2272
      %2275 = vperm.xlu0 %2274, %v2270
      %v2276 = vpop.permute.xlu0 %2275
      %v2277 = vlaneseq
      %v2278 = vshrl.u32 %v2277, 7
      %v2279 = vadd.s32 %v2278, 8
      %2280 = vset.pattern.permute.xlu0 %v2279
      %2281 = vperm.xlu0 %2280, %v2270
      %v2282 = vpop.permute.xlu0 %2281
      %v2283 = vlaneseq
      %v2284 = vshrl.u32 %v2283, 7
      %v2285 = vadd.s32 %v2284, 16
      %2286 = vset.pattern.permute.xlu0 %v2285
      %2287 = vperm.xlu0 %2286, %v2270
      %v2288 = vpop.permute.xlu0 %2287
      %v2289 = vlaneseq
      %v2290 = vshrl.u32 %v2289, 7
      %v2291 = vadd.s32 %v2290, 24
      %2292 = vset.pattern.permute.xlu0 %v2291
      %2293 = vperm.xlu0 %2292, %v2270
      %v2294 = vpop.permute.xlu0 %2293
      %v2295 = vlaneseq
      %v2296 = vshrl.u32 %v2295, 7
      %v2297 = vadd.s32 %v2296, 32
      %2298 = vset.pattern.permute.xlu0 %v2297
      %2299 = vperm.xlu0 %2298, %v2270
      %v2300 = vpop.permute.xlu0 %2299
      %v2301 = vlaneseq
      %v2302 = vshrl.u32 %v2301, 7
      %v2303 = vadd.s32 %v2302, 40
      %2304 = vset.pattern.permute.xlu0 %v2303
      %2305 = vperm.xlu0 %2304, %v2270
      %v2306 = vpop.permute.xlu0 %2305
      %v2307 = vlaneseq
      %v2308 = vshrl.u32 %v2307, 7
      %v2309 = vadd.s32 %v2308, 48
      %2310 = vset.pattern.permute.xlu0 %v2309
      %2311 = vperm.xlu0 %2310, %v2270
      %v2312 = vpop.permute.xlu0 %2311
      %v2313 = vlaneseq
      %v2314 = vshrl.u32 %v2313, 7
      %v2315 = vadd.s32 %v2314, 56
      %2316 = vset.pattern.permute.xlu0 %v2315
      %2317 = vperm.xlu0 %2316, %v2270
      %v2318 = vpop.permute.xlu0 %2317
      %v2319 = vlaneseq
      %v2320 = vshrl.u32 %v2319, 7
      %v2321 = vadd.s32 %v2320, 64
      %2322 = vset.pattern.permute.xlu0 %v2321
      %2323 = vperm.xlu0 %2322, %v2270
      %v2324 = vpop.permute.xlu0 %2323
      %v2325 = vlaneseq
      %v2326 = vshrl.u32 %v2325, 7
      %v2327 = vadd.s32 %v2326, 72
      %2328 = vset.pattern.permute.xlu0 %v2327
      %2329 = vperm.xlu0 %2328, %v2270
      %v2330 = vpop.permute.xlu0 %2329
      %v2331 = vlaneseq
      %v2332 = vshrl.u32 %v2331, 7
      %v2333 = vadd.s32 %v2332, 80
      %2334 = vset.pattern.permute.xlu0 %v2333
      %2335 = vperm.xlu0 %2334, %v2270
      %v2336 = vpop.permute.xlu0 %2335
      %v2337 = vlaneseq
      %v2338 = vshrl.u32 %v2337, 7
      %v2339 = vadd.s32 %v2338, 88
      %2340 = vset.pattern.permute.xlu0 %v2339
      %2341 = vperm.xlu0 %2340, %v2270
      %v2342 = vpop.permute.xlu0 %2341
      %v2343 = vlaneseq
      %v2344 = vshrl.u32 %v2343, 7
      %v2345 = vadd.s32 %v2344, 96
      %2346 = vset.pattern.permute.xlu0 %v2345
      %2347 = vperm.xlu0 %2346, %v2270
      %v2348 = vpop.permute.xlu0 %2347
      %v2349 = vlaneseq
      %v2350 = vshrl.u32 %v2349, 7
      %v2351 = vadd.s32 %v2350, 104
      %2352 = vset.pattern.permute.xlu0 %v2351
      %2353 = vperm.xlu0 %2352, %v2270
      %v2354 = vpop.permute.xlu0 %2353
      %v2355 = vlaneseq
      %v2356 = vshrl.u32 %v2355, 7
      %v2357 = vadd.s32 %v2356, 112
      %2358 = vset.pattern.permute.xlu0 %v2357
      %2359 = vperm.xlu0 %2358, %v2270
      %v2360 = vpop.permute.xlu0 %2359
      %v2361 = vlaneseq
      %v2362 = vshrl.u32 %v2361, 7
      %v2363 = vadd.s32 %v2362, 120
      %2364 = vset.pattern.permute.xlu0 %v2363
      %2365 = vperm.xlu0 %2364, %v2270
      %v2366 = vpop.permute.xlu0 %2365
      %v2367 = vperm.slane %v329, 2
      %v2368 = vlaneseq
      %v2369 = vshrl.u32 %v2368, 7
      %2371 = vset.pattern.permute.xlu0 %v2369
      %2372 = vperm.xlu0 %2371, %v2367
      %v2373 = vpop.permute.xlu0 %2372
      %v2374 = vlaneseq
      %v2375 = vshrl.u32 %v2374, 7
      %v2376 = vadd.s32 %v2375, 8
      %2377 = vset.pattern.permute.xlu0 %v2376
      %2378 = vperm.xlu0 %2377, %v2367
      %v2379 = vpop.permute.xlu0 %2378
      %v2380 = vlaneseq
      %v2381 = vshrl.u32 %v2380, 7
      %v2382 = vadd.s32 %v2381, 16
      %2383 = vset.pattern.permute.xlu0 %v2382
      %2384 = vperm.xlu0 %2383, %v2367
      %v2385 = vpop.permute.xlu0 %2384
      %v2386 = vlaneseq
      %v2387 = vshrl.u32 %v2386, 7
      %v2388 = vadd.s32 %v2387, 24
      %2389 = vset.pattern.permute.xlu0 %v2388
      %2390 = vperm.xlu0 %2389, %v2367
      %v2391 = vpop.permute.xlu0 %2390
      %v2392 = vlaneseq
      %v2393 = vshrl.u32 %v2392, 7
      %v2394 = vadd.s32 %v2393, 32
      %2395 = vset.pattern.permute.xlu0 %v2394
      %2396 = vperm.xlu0 %2395, %v2367
      %v2397 = vpop.permute.xlu0 %2396
      %v2398 = vlaneseq
      %v2399 = vshrl.u32 %v2398, 7
      %v2400 = vadd.s32 %v2399, 40
      %2401 = vset.pattern.permute.xlu0 %v2400
      %2402 = vperm.xlu0 %2401, %v2367
      %v2403 = vpop.permute.xlu0 %2402
      %v2404 = vlaneseq
      %v2405 = vshrl.u32 %v2404, 7
      %v2406 = vadd.s32 %v2405, 48
      %2407 = vset.pattern.permute.xlu0 %v2406
      %2408 = vperm.xlu0 %2407, %v2367
      %v2409 = vpop.permute.xlu0 %2408
      %v2410 = vlaneseq
      %v2411 = vshrl.u32 %v2410, 7
      %v2412 = vadd.s32 %v2411, 56
      %2413 = vset.pattern.permute.xlu0 %v2412
      %2414 = vperm.xlu0 %2413, %v2367
      %v2415 = vpop.permute.xlu0 %2414
      %v2416 = vlaneseq
      %v2417 = vshrl.u32 %v2416, 7
      %v2418 = vadd.s32 %v2417, 64
      %2419 = vset.pattern.permute.xlu0 %v2418
      %2420 = vperm.xlu0 %2419, %v2367
      %v2421 = vpop.permute.xlu0 %2420
      %v2422 = vlaneseq
      %v2423 = vshrl.u32 %v2422, 7
      %v2424 = vadd.s32 %v2423, 72
      %2425 = vset.pattern.permute.xlu0 %v2424
      %2426 = vperm.xlu0 %2425, %v2367
      %v2427 = vpop.permute.xlu0 %2426
      %v2428 = vlaneseq
      %v2429 = vshrl.u32 %v2428, 7
      %v2430 = vadd.s32 %v2429, 80
      %2431 = vset.pattern.permute.xlu0 %v2430
      %2432 = vperm.xlu0 %2431, %v2367
      %v2433 = vpop.permute.xlu0 %2432
      %v2434 = vlaneseq
      %v2435 = vshrl.u32 %v2434, 7
      %v2436 = vadd.s32 %v2435, 88
      %2437 = vset.pattern.permute.xlu0 %v2436
      %2438 = vperm.xlu0 %2437, %v2367
      %v2439 = vpop.permute.xlu0 %2438
      %v2440 = vlaneseq
      %v2441 = vshrl.u32 %v2440, 7
      %v2442 = vadd.s32 %v2441, 96
      %2443 = vset.pattern.permute.xlu0 %v2442
      %2444 = vperm.xlu0 %2443, %v2367
      %v2445 = vpop.permute.xlu0 %2444
      %v2446 = vlaneseq
      %v2447 = vshrl.u32 %v2446, 7
      %v2448 = vadd.s32 %v2447, 104
      %2449 = vset.pattern.permute.xlu0 %v2448
      %2450 = vperm.xlu0 %2449, %v2367
      %v2451 = vpop.permute.xlu0 %2450
      %v2452 = vlaneseq
      %v2453 = vshrl.u32 %v2452, 7
      %v2454 = vadd.s32 %v2453, 112
      %2455 = vset.pattern.permute.xlu0 %v2454
      %2456 = vperm.xlu0 %2455, %v2367
      %v2457 = vpop.permute.xlu0 %2456
      %v2458 = vlaneseq
      %v2459 = vshrl.u32 %v2458, 7
      %v2460 = vadd.s32 %v2459, 120
      %2461 = vset.pattern.permute.xlu0 %v2460
      %2462 = vperm.xlu0 %2461, %v2367
      %v2463 = vpop.permute.xlu0 %2462
      %v2464 = vperm.slane %v328, 3
      %v2465 = vlaneseq
      %v2466 = vshrl.u32 %v2465, 7
      %2468 = vset.pattern.permute.xlu0 %v2466
      %2469 = vperm.xlu0 %2468, %v2464
      %v2470 = vpop.permute.xlu0 %2469
      %v2471 = vlaneseq
      %v2472 = vshrl.u32 %v2471, 7
      %v2473 = vadd.s32 %v2472, 8
      %2474 = vset.pattern.permute.xlu0 %v2473
      %2475 = vperm.xlu0 %2474, %v2464
      %v2476 = vpop.permute.xlu0 %2475
      %v2477 = vlaneseq
      %v2478 = vshrl.u32 %v2477, 7
      %v2479 = vadd.s32 %v2478, 16
      %2480 = vset.pattern.permute.xlu0 %v2479
      %2481 = vperm.xlu0 %2480, %v2464
      %v2482 = vpop.permute.xlu0 %2481
      %v2483 = vlaneseq
      %v2484 = vshrl.u32 %v2483, 7
      %v2485 = vadd.s32 %v2484, 24
      %2486 = vset.pattern.permute.xlu0 %v2485
      %2487 = vperm.xlu0 %2486, %v2464
      %v2488 = vpop.permute.xlu0 %2487
      %v2489 = vlaneseq
      %v2490 = vshrl.u32 %v2489, 7
      %v2491 = vadd.s32 %v2490, 32
      %2492 = vset.pattern.permute.xlu0 %v2491
      %2493 = vperm.xlu0 %2492, %v2464
      %v2494 = vpop.permute.xlu0 %2493
      %v2495 = vlaneseq
      %v2496 = vshrl.u32 %v2495, 7
      %v2497 = vadd.s32 %v2496, 40
      %2498 = vset.pattern.permute.xlu0 %v2497
      %2499 = vperm.xlu0 %2498, %v2464
      %v2500 = vpop.permute.xlu0 %2499
      %v2501 = vlaneseq
      %v2502 = vshrl.u32 %v2501, 7
      %v2503 = vadd.s32 %v2502, 48
      %2504 = vset.pattern.permute.xlu0 %v2503
      %2505 = vperm.xlu0 %2504, %v2464
      %v2506 = vpop.permute.xlu0 %2505
      %v2507 = vlaneseq
      %v2508 = vshrl.u32 %v2507, 7
      %v2509 = vadd.s32 %v2508, 56
      %2510 = vset.pattern.permute.xlu0 %v2509
      %2511 = vperm.xlu0 %2510, %v2464
      %v2512 = vpop.permute.xlu0 %2511
      %v2513 = vlaneseq
      %v2514 = vshrl.u32 %v2513, 7
      %v2515 = vadd.s32 %v2514, 64
      %2516 = vset.pattern.permute.xlu0 %v2515
      %2517 = vperm.xlu0 %2516, %v2464
      %v2518 = vpop.permute.xlu0 %2517
      %v2519 = vlaneseq
      %v2520 = vshrl.u32 %v2519, 7
      %v2521 = vadd.s32 %v2520, 72
      %2522 = vset.pattern.permute.xlu0 %v2521
      %2523 = vperm.xlu0 %2522, %v2464
      %v2524 = vpop.permute.xlu0 %2523
      %v2525 = vlaneseq
      %v2526 = vshrl.u32 %v2525, 7
      %v2527 = vadd.s32 %v2526, 80
      %2528 = vset.pattern.permute.xlu0 %v2527
      %2529 = vperm.xlu0 %2528, %v2464
      %v2530 = vpop.permute.xlu0 %2529
      %v2531 = vlaneseq
      %v2532 = vshrl.u32 %v2531, 7
      %v2533 = vadd.s32 %v2532, 88
      %2534 = vset.pattern.permute.xlu0 %v2533
      %2535 = vperm.xlu0 %2534, %v2464
      %v2536 = vpop.permute.xlu0 %2535
      %v2537 = vlaneseq
      %v2538 = vshrl.u32 %v2537, 7
      %v2539 = vadd.s32 %v2538, 96
      %2540 = vset.pattern.permute.xlu0 %v2539
      %2541 = vperm.xlu0 %2540, %v2464
      %v2542 = vpop.permute.xlu0 %2541
      %v2543 = vlaneseq
      %v2544 = vshrl.u32 %v2543, 7
      %v2545 = vadd.s32 %v2544, 104
      %2546 = vset.pattern.permute.xlu0 %v2545
      %2547 = vperm.xlu0 %2546, %v2464
      %v2548 = vpop.permute.xlu0 %2547
      %v2549 = vlaneseq
      %v2550 = vshrl.u32 %v2549, 7
      %v2551 = vadd.s32 %v2550, 112
      %2552 = vset.pattern.permute.xlu0 %v2551
      %2553 = vperm.xlu0 %2552, %v2464
      %v2554 = vpop.permute.xlu0 %2553
      %v2555 = vlaneseq
      %v2556 = vshrl.u32 %v2555, 7
      %v2557 = vadd.s32 %v2556, 120
      %2558 = vset.pattern.permute.xlu0 %v2557
      %2559 = vperm.xlu0 %2558, %v2464
      %v2560 = vpop.permute.xlu0 %2559
      %v2561 = vperm.slane %v329, 3
      %v2562 = vlaneseq
      %v2563 = vshrl.u32 %v2562, 7
      %2565 = vset.pattern.permute.xlu0 %v2563
      %2566 = vperm.xlu0 %2565, %v2561
      %v2567 = vpop.permute.xlu0 %2566
      %v2568 = vlaneseq
      %v2569 = vshrl.u32 %v2568, 7
      %v2570 = vadd.s32 %v2569, 8
      %2571 = vset.pattern.permute.xlu0 %v2570
      %2572 = vperm.xlu0 %2571, %v2561
      %v2573 = vpop.permute.xlu0 %2572
      %v2574 = vlaneseq
      %v2575 = vshrl.u32 %v2574, 7
      %v2576 = vadd.s32 %v2575, 16
      %2577 = vset.pattern.permute.xlu0 %v2576
      %2578 = vperm.xlu0 %2577, %v2561
      %v2579 = vpop.permute.xlu0 %2578
      %v2580 = vlaneseq
      %v2581 = vshrl.u32 %v2580, 7
      %v2582 = vadd.s32 %v2581, 24
      %2583 = vset.pattern.permute.xlu0 %v2582
      %2584 = vperm.xlu0 %2583, %v2561
      %v2585 = vpop.permute.xlu0 %2584
      %v2586 = vlaneseq
      %v2587 = vshrl.u32 %v2586, 7
      %v2588 = vadd.s32 %v2587, 32
      %2589 = vset.pattern.permute.xlu0 %v2588
      %2590 = vperm.xlu0 %2589, %v2561
      %v2591 = vpop.permute.xlu0 %2590
      %v2592 = vlaneseq
      %v2593 = vshrl.u32 %v2592, 7
      %v2594 = vadd.s32 %v2593, 40
      %2595 = vset.pattern.permute.xlu0 %v2594
      %2596 = vperm.xlu0 %2595, %v2561
      %v2597 = vpop.permute.xlu0 %2596
      %v2598 = vlaneseq
      %v2599 = vshrl.u32 %v2598, 7
      %v2600 = vadd.s32 %v2599, 48
      %2601 = vset.pattern.permute.xlu0 %v2600
      %2602 = vperm.xlu0 %2601, %v2561
      %v2603 = vpop.permute.xlu0 %2602
      %v2604 = vlaneseq
      %v2605 = vshrl.u32 %v2604, 7
      %v2606 = vadd.s32 %v2605, 56
      %2607 = vset.pattern.permute.xlu0 %v2606
      %2608 = vperm.xlu0 %2607, %v2561
      %v2609 = vpop.permute.xlu0 %2608
      %v2610 = vlaneseq
      %v2611 = vshrl.u32 %v2610, 7
      %v2612 = vadd.s32 %v2611, 64
      %2613 = vset.pattern.permute.xlu0 %v2612
      %2614 = vperm.xlu0 %2613, %v2561
      %v2615 = vpop.permute.xlu0 %2614
      %v2616 = vlaneseq
      %v2617 = vshrl.u32 %v2616, 7
      %v2618 = vadd.s32 %v2617, 72
      %2619 = vset.pattern.permute.xlu0 %v2618
      %2620 = vperm.xlu0 %2619, %v2561
      %v2621 = vpop.permute.xlu0 %2620
      %v2622 = vlaneseq
      %v2623 = vshrl.u32 %v2622, 7
      %v2624 = vadd.s32 %v2623, 80
      %2625 = vset.pattern.permute.xlu0 %v2624
      %2626 = vperm.xlu0 %2625, %v2561
      %v2627 = vpop.permute.xlu0 %2626
      %v2628 = vlaneseq
      %v2629 = vshrl.u32 %v2628, 7
      %v2630 = vadd.s32 %v2629, 88
      %2631 = vset.pattern.permute.xlu0 %v2630
      %2632 = vperm.xlu0 %2631, %v2561
      %v2633 = vpop.permute.xlu0 %2632
      %v2634 = vlaneseq
      %v2635 = vshrl.u32 %v2634, 7
      %v2636 = vadd.s32 %v2635, 96
      %2637 = vset.pattern.permute.xlu0 %v2636
      %2638 = vperm.xlu0 %2637, %v2561
      %v2639 = vpop.permute.xlu0 %2638
      %v2640 = vlaneseq
      %v2641 = vshrl.u32 %v2640, 7
      %v2642 = vadd.s32 %v2641, 104
      %2643 = vset.pattern.permute.xlu0 %v2642
      %2644 = vperm.xlu0 %2643, %v2561
      %v2645 = vpop.permute.xlu0 %2644
      %v2646 = vlaneseq
      %v2647 = vshrl.u32 %v2646, 7
      %v2648 = vadd.s32 %v2647, 112
      %2649 = vset.pattern.permute.xlu0 %v2648
      %2650 = vperm.xlu0 %2649, %v2561
      %v2651 = vpop.permute.xlu0 %2650
      %v2652 = vlaneseq
      %v2653 = vshrl.u32 %v2652, 7
      %v2654 = vadd.s32 %v2653, 120
      %2655 = vset.pattern.permute.xlu0 %v2654
      %2656 = vperm.xlu0 %2655, %v2561
      %v2657 = vpop.permute.xlu0 %2656
      %v2658 = vperm.slane %v328, 4
      %v2659 = vlaneseq
      %v2660 = vshrl.u32 %v2659, 7
      %2662 = vset.pattern.permute.xlu0 %v2660
      %2663 = vperm.xlu0 %2662, %v2658
      %v2664 = vpop.permute.xlu0 %2663
      %v2665 = vlaneseq
      %v2666 = vshrl.u32 %v2665, 7
      %v2667 = vadd.s32 %v2666, 8
      %2668 = vset.pattern.permute.xlu0 %v2667
      %2669 = vperm.xlu0 %2668, %v2658
      %v2670 = vpop.permute.xlu0 %2669
      %v2671 = vlaneseq
      %v2672 = vshrl.u32 %v2671, 7
      %v2673 = vadd.s32 %v2672, 16
      %2674 = vset.pattern.permute.xlu0 %v2673
      %2675 = vperm.xlu0 %2674, %v2658
      %v2676 = vpop.permute.xlu0 %2675
      %v2677 = vlaneseq
      %v2678 = vshrl.u32 %v2677, 7
      %v2679 = vadd.s32 %v2678, 24
      %2680 = vset.pattern.permute.xlu0 %v2679
      %2681 = vperm.xlu0 %2680, %v2658
      %v2682 = vpop.permute.xlu0 %2681
      %v2683 = vlaneseq
      %v2684 = vshrl.u32 %v2683, 7
      %v2685 = vadd.s32 %v2684, 32
      %2686 = vset.pattern.permute.xlu0 %v2685
      %2687 = vperm.xlu0 %2686, %v2658
      %v2688 = vpop.permute.xlu0 %2687
      %v2689 = vlaneseq
      %v2690 = vshrl.u32 %v2689, 7
      %v2691 = vadd.s32 %v2690, 40
      %2692 = vset.pattern.permute.xlu0 %v2691
      %2693 = vperm.xlu0 %2692, %v2658
      %v2694 = vpop.permute.xlu0 %2693
      %v2695 = vlaneseq
      %v2696 = vshrl.u32 %v2695, 7
      %v2697 = vadd.s32 %v2696, 48
      %2698 = vset.pattern.permute.xlu0 %v2697
      %2699 = vperm.xlu0 %2698, %v2658
      %v2700 = vpop.permute.xlu0 %2699
      %v2701 = vlaneseq
      %v2702 = vshrl.u32 %v2701, 7
      %v2703 = vadd.s32 %v2702, 56
      %2704 = vset.pattern.permute.xlu0 %v2703
      %2705 = vperm.xlu0 %2704, %v2658
      %v2706 = vpop.permute.xlu0 %2705
      %v2707 = vlaneseq
      %v2708 = vshrl.u32 %v2707, 7
      %v2709 = vadd.s32 %v2708, 64
      %2710 = vset.pattern.permute.xlu0 %v2709
      %2711 = vperm.xlu0 %2710, %v2658
      %v2712 = vpop.permute.xlu0 %2711
      %v2713 = vlaneseq
      %v2714 = vshrl.u32 %v2713, 7
      %v2715 = vadd.s32 %v2714, 72
      %2716 = vset.pattern.permute.xlu0 %v2715
      %2717 = vperm.xlu0 %2716, %v2658
      %v2718 = vpop.permute.xlu0 %2717
      %v2719 = vlaneseq
      %v2720 = vshrl.u32 %v2719, 7
      %v2721 = vadd.s32 %v2720, 80
      %2722 = vset.pattern.permute.xlu0 %v2721
      %2723 = vperm.xlu0 %2722, %v2658
      %v2724 = vpop.permute.xlu0 %2723
      %v2725 = vlaneseq
      %v2726 = vshrl.u32 %v2725, 7
      %v2727 = vadd.s32 %v2726, 88
      %2728 = vset.pattern.permute.xlu0 %v2727
      %2729 = vperm.xlu0 %2728, %v2658
      %v2730 = vpop.permute.xlu0 %2729
      %v2731 = vlaneseq
      %v2732 = vshrl.u32 %v2731, 7
      %v2733 = vadd.s32 %v2732, 96
      %2734 = vset.pattern.permute.xlu0 %v2733
      %2735 = vperm.xlu0 %2734, %v2658
      %v2736 = vpop.permute.xlu0 %2735
      %v2737 = vlaneseq
      %v2738 = vshrl.u32 %v2737, 7
      %v2739 = vadd.s32 %v2738, 104
      %2740 = vset.pattern.permute.xlu0 %v2739
      %2741 = vperm.xlu0 %2740, %v2658
      %v2742 = vpop.permute.xlu0 %2741
      %v2743 = vlaneseq
      %v2744 = vshrl.u32 %v2743, 7
      %v2745 = vadd.s32 %v2744, 112
      %2746 = vset.pattern.permute.xlu0 %v2745
      %2747 = vperm.xlu0 %2746, %v2658
      %v2748 = vpop.permute.xlu0 %2747
      %v2749 = vlaneseq
      %v2750 = vshrl.u32 %v2749, 7
      %v2751 = vadd.s32 %v2750, 120
      %2752 = vset.pattern.permute.xlu0 %v2751
      %2753 = vperm.xlu0 %2752, %v2658
      %v2754 = vpop.permute.xlu0 %2753
      %v2755 = vperm.slane %v329, 4
      %v2756 = vlaneseq
      %v2757 = vshrl.u32 %v2756, 7
      %2759 = vset.pattern.permute.xlu0 %v2757
      %2760 = vperm.xlu0 %2759, %v2755
      %v2761 = vpop.permute.xlu0 %2760
      %v2762 = vlaneseq
      %v2763 = vshrl.u32 %v2762, 7
      %v2764 = vadd.s32 %v2763, 8
      %2765 = vset.pattern.permute.xlu0 %v2764
      %2766 = vperm.xlu0 %2765, %v2755
      %v2767 = vpop.permute.xlu0 %2766
      %v2768 = vlaneseq
      %v2769 = vshrl.u32 %v2768, 7
      %v2770 = vadd.s32 %v2769, 16
      %2771 = vset.pattern.permute.xlu0 %v2770
      %2772 = vperm.xlu0 %2771, %v2755
      %v2773 = vpop.permute.xlu0 %2772
      %v2774 = vlaneseq
      %v2775 = vshrl.u32 %v2774, 7
      %v2776 = vadd.s32 %v2775, 24
      %2777 = vset.pattern.permute.xlu0 %v2776
      %2778 = vperm.xlu0 %2777, %v2755
      %v2779 = vpop.permute.xlu0 %2778
      %v2780 = vlaneseq
      %v2781 = vshrl.u32 %v2780, 7
      %v2782 = vadd.s32 %v2781, 32
      %2783 = vset.pattern.permute.xlu0 %v2782
      %2784 = vperm.xlu0 %2783, %v2755
      %v2785 = vpop.permute.xlu0 %2784
      %v2786 = vlaneseq
      %v2787 = vshrl.u32 %v2786, 7
      %v2788 = vadd.s32 %v2787, 40
      %2789 = vset.pattern.permute.xlu0 %v2788
      %2790 = vperm.xlu0 %2789, %v2755
      %v2791 = vpop.permute.xlu0 %2790
      %v2792 = vlaneseq
      %v2793 = vshrl.u32 %v2792, 7
      %v2794 = vadd.s32 %v2793, 48
      %2795 = vset.pattern.permute.xlu0 %v2794
      %2796 = vperm.xlu0 %2795, %v2755
      %v2797 = vpop.permute.xlu0 %2796
      %v2798 = vlaneseq
      %v2799 = vshrl.u32 %v2798, 7
      %v2800 = vadd.s32 %v2799, 56
      %2801 = vset.pattern.permute.xlu0 %v2800
      %2802 = vperm.xlu0 %2801, %v2755
      %v2803 = vpop.permute.xlu0 %2802
      %v2804 = vlaneseq
      %v2805 = vshrl.u32 %v2804, 7
      %v2806 = vadd.s32 %v2805, 64
      %2807 = vset.pattern.permute.xlu0 %v2806
      %2808 = vperm.xlu0 %2807, %v2755
      %v2809 = vpop.permute.xlu0 %2808
      %v2810 = vlaneseq
      %v2811 = vshrl.u32 %v2810, 7
      %v2812 = vadd.s32 %v2811, 72
      %2813 = vset.pattern.permute.xlu0 %v2812
      %2814 = vperm.xlu0 %2813, %v2755
      %v2815 = vpop.permute.xlu0 %2814
      %v2816 = vlaneseq
      %v2817 = vshrl.u32 %v2816, 7
      %v2818 = vadd.s32 %v2817, 80
      %2819 = vset.pattern.permute.xlu0 %v2818
      %2820 = vperm.xlu0 %2819, %v2755
      %v2821 = vpop.permute.xlu0 %2820
      %v2822 = vlaneseq
      %v2823 = vshrl.u32 %v2822, 7
      %v2824 = vadd.s32 %v2823, 88
      %2825 = vset.pattern.permute.xlu0 %v2824
      %2826 = vperm.xlu0 %2825, %v2755
      %v2827 = vpop.permute.xlu0 %2826
      %v2828 = vlaneseq
      %v2829 = vshrl.u32 %v2828, 7
      %v2830 = vadd.s32 %v2829, 96
      %2831 = vset.pattern.permute.xlu0 %v2830
      %2832 = vperm.xlu0 %2831, %v2755
      %v2833 = vpop.permute.xlu0 %2832
      %v2834 = vlaneseq
      %v2835 = vshrl.u32 %v2834, 7
      %v2836 = vadd.s32 %v2835, 104
      %2837 = vset.pattern.permute.xlu0 %v2836
      %2838 = vperm.xlu0 %2837, %v2755
      %v2839 = vpop.permute.xlu0 %2838
      %v2840 = vlaneseq
      %v2841 = vshrl.u32 %v2840, 7
      %v2842 = vadd.s32 %v2841, 112
      %2843 = vset.pattern.permute.xlu0 %v2842
      %2844 = vperm.xlu0 %2843, %v2755
      %v2845 = vpop.permute.xlu0 %2844
      %v2846 = vlaneseq
      %v2847 = vshrl.u32 %v2846, 7
      %v2848 = vadd.s32 %v2847, 120
      %2849 = vset.pattern.permute.xlu0 %v2848
      %2850 = vperm.xlu0 %2849, %v2755
      %v2851 = vpop.permute.xlu0 %2850
      %v2852 = vperm.slane %v328, 5
      %v2853 = vlaneseq
      %v2854 = vshrl.u32 %v2853, 7
      %2856 = vset.pattern.permute.xlu0 %v2854
      %2857 = vperm.xlu0 %2856, %v2852
      %v2858 = vpop.permute.xlu0 %2857
      %v2859 = vlaneseq
      %v2860 = vshrl.u32 %v2859, 7
      %v2861 = vadd.s32 %v2860, 8
      %2862 = vset.pattern.permute.xlu0 %v2861
      %2863 = vperm.xlu0 %2862, %v2852
      %v2864 = vpop.permute.xlu0 %2863
      %v2865 = vlaneseq
      %v2866 = vshrl.u32 %v2865, 7
      %v2867 = vadd.s32 %v2866, 16
      %2868 = vset.pattern.permute.xlu0 %v2867
      %2869 = vperm.xlu0 %2868, %v2852
      %v2870 = vpop.permute.xlu0 %2869
      %v2871 = vlaneseq
      %v2872 = vshrl.u32 %v2871, 7
      %v2873 = vadd.s32 %v2872, 24
      %2874 = vset.pattern.permute.xlu0 %v2873
      %2875 = vperm.xlu0 %2874, %v2852
      %v2876 = vpop.permute.xlu0 %2875
      %v2877 = vlaneseq
      %v2878 = vshrl.u32 %v2877, 7
      %v2879 = vadd.s32 %v2878, 32
      %2880 = vset.pattern.permute.xlu0 %v2879
      %2881 = vperm.xlu0 %2880, %v2852
      %v2882 = vpop.permute.xlu0 %2881
      %v2883 = vlaneseq
      %v2884 = vshrl.u32 %v2883, 7
      %v2885 = vadd.s32 %v2884, 40
      %2886 = vset.pattern.permute.xlu0 %v2885
      %2887 = vperm.xlu0 %2886, %v2852
      %v2888 = vpop.permute.xlu0 %2887
      %v2889 = vlaneseq
      %v2890 = vshrl.u32 %v2889, 7
      %v2891 = vadd.s32 %v2890, 48
      %2892 = vset.pattern.permute.xlu0 %v2891
      %2893 = vperm.xlu0 %2892, %v2852
      %v2894 = vpop.permute.xlu0 %2893
      %v2895 = vlaneseq
      %v2896 = vshrl.u32 %v2895, 7
      %v2897 = vadd.s32 %v2896, 56
      %2898 = vset.pattern.permute.xlu0 %v2897
      %2899 = vperm.xlu0 %2898, %v2852
      %v2900 = vpop.permute.xlu0 %2899
      %v2901 = vlaneseq
      %v2902 = vshrl.u32 %v2901, 7
      %v2903 = vadd.s32 %v2902, 64
      %2904 = vset.pattern.permute.xlu0 %v2903
      %2905 = vperm.xlu0 %2904, %v2852
      %v2906 = vpop.permute.xlu0 %2905
      %v2907 = vlaneseq
      %v2908 = vshrl.u32 %v2907, 7
      %v2909 = vadd.s32 %v2908, 72
      %2910 = vset.pattern.permute.xlu0 %v2909
      %2911 = vperm.xlu0 %2910, %v2852
      %v2912 = vpop.permute.xlu0 %2911
      %v2913 = vlaneseq
      %v2914 = vshrl.u32 %v2913, 7
      %v2915 = vadd.s32 %v2914, 80
      %2916 = vset.pattern.permute.xlu0 %v2915
      %2917 = vperm.xlu0 %2916, %v2852
      %v2918 = vpop.permute.xlu0 %2917
      %v2919 = vlaneseq
      %v2920 = vshrl.u32 %v2919, 7
      %v2921 = vadd.s32 %v2920, 88
      %2922 = vset.pattern.permute.xlu0 %v2921
      %2923 = vperm.xlu0 %2922, %v2852
      %v2924 = vpop.permute.xlu0 %2923
      %v2925 = vlaneseq
      %v2926 = vshrl.u32 %v2925, 7
      %v2927 = vadd.s32 %v2926, 96
      %2928 = vset.pattern.permute.xlu0 %v2927
      %2929 = vperm.xlu0 %2928, %v2852
      %v2930 = vpop.permute.xlu0 %2929
      %v2931 = vlaneseq
      %v2932 = vshrl.u32 %v2931, 7
      %v2933 = vadd.s32 %v2932, 104
      %2934 = vset.pattern.permute.xlu0 %v2933
      %2935 = vperm.xlu0 %2934, %v2852
      %v2936 = vpop.permute.xlu0 %2935
      %v2937 = vlaneseq
      %v2938 = vshrl.u32 %v2937, 7
      %v2939 = vadd.s32 %v2938, 112
      %2940 = vset.pattern.permute.xlu0 %v2939
      %2941 = vperm.xlu0 %2940, %v2852
      %v2942 = vpop.permute.xlu0 %2941
      %v2943 = vlaneseq
      %v2944 = vshrl.u32 %v2943, 7
      %v2945 = vadd.s32 %v2944, 120
      %2946 = vset.pattern.permute.xlu0 %v2945
      %2947 = vperm.xlu0 %2946, %v2852
      %v2948 = vpop.permute.xlu0 %2947
      %v2949 = vperm.slane %v329, 5
      %v2950 = vlaneseq
      %v2951 = vshrl.u32 %v2950, 7
      %2953 = vset.pattern.permute.xlu0 %v2951
      %2954 = vperm.xlu0 %2953, %v2949
      %v2955 = vpop.permute.xlu0 %2954
      %v2956 = vlaneseq
      %v2957 = vshrl.u32 %v2956, 7
      %v2958 = vadd.s32 %v2957, 8
      %2959 = vset.pattern.permute.xlu0 %v2958
      %2960 = vperm.xlu0 %2959, %v2949
      %v2961 = vpop.permute.xlu0 %2960
      %v2962 = vlaneseq
      %v2963 = vshrl.u32 %v2962, 7
      %v2964 = vadd.s32 %v2963, 16
      %2965 = vset.pattern.permute.xlu0 %v2964
      %2966 = vperm.xlu0 %2965, %v2949
      %v2967 = vpop.permute.xlu0 %2966
      %v2968 = vlaneseq
      %v2969 = vshrl.u32 %v2968, 7
      %v2970 = vadd.s32 %v2969, 24
      %2971 = vset.pattern.permute.xlu0 %v2970
      %2972 = vperm.xlu0 %2971, %v2949
      %v2973 = vpop.permute.xlu0 %2972
      %v2974 = vlaneseq
      %v2975 = vshrl.u32 %v2974, 7
      %v2976 = vadd.s32 %v2975, 32
      %2977 = vset.pattern.permute.xlu0 %v2976
      %2978 = vperm.xlu0 %2977, %v2949
      %v2979 = vpop.permute.xlu0 %2978
      %v2980 = vlaneseq
      %v2981 = vshrl.u32 %v2980, 7
      %v2982 = vadd.s32 %v2981, 40
      %2983 = vset.pattern.permute.xlu0 %v2982
      %2984 = vperm.xlu0 %2983, %v2949
      %v2985 = vpop.permute.xlu0 %2984
      %v2986 = vlaneseq
      %v2987 = vshrl.u32 %v2986, 7
      %v2988 = vadd.s32 %v2987, 48
      %2989 = vset.pattern.permute.xlu0 %v2988
      %2990 = vperm.xlu0 %2989, %v2949
      %v2991 = vpop.permute.xlu0 %2990
      %v2992 = vlaneseq
      %v2993 = vshrl.u32 %v2992, 7
      %v2994 = vadd.s32 %v2993, 56
      %2995 = vset.pattern.permute.xlu0 %v2994
      %2996 = vperm.xlu0 %2995, %v2949
      %v2997 = vpop.permute.xlu0 %2996
      %v2998 = vlaneseq
      %v2999 = vshrl.u32 %v2998, 7
      %v3000 = vadd.s32 %v2999, 64
      %3001 = vset.pattern.permute.xlu0 %v3000
      %3002 = vperm.xlu0 %3001, %v2949
      %v3003 = vpop.permute.xlu0 %3002
      %v3004 = vlaneseq
      %v3005 = vshrl.u32 %v3004, 7
      %v3006 = vadd.s32 %v3005, 72
      %3007 = vset.pattern.permute.xlu0 %v3006
      %3008 = vperm.xlu0 %3007, %v2949
      %v3009 = vpop.permute.xlu0 %3008
      %v3010 = vlaneseq
      %v3011 = vshrl.u32 %v3010, 7
      %v3012 = vadd.s32 %v3011, 80
      %3013 = vset.pattern.permute.xlu0 %v3012
      %3014 = vperm.xlu0 %3013, %v2949
      %v3015 = vpop.permute.xlu0 %3014
      %v3016 = vlaneseq
      %v3017 = vshrl.u32 %v3016, 7
      %v3018 = vadd.s32 %v3017, 88
      %3019 = vset.pattern.permute.xlu0 %v3018
      %3020 = vperm.xlu0 %3019, %v2949
      %v3021 = vpop.permute.xlu0 %3020
      %v3022 = vlaneseq
      %v3023 = vshrl.u32 %v3022, 7
      %v3024 = vadd.s32 %v3023, 96
      %3025 = vset.pattern.permute.xlu0 %v3024
      %3026 = vperm.xlu0 %3025, %v2949
      %v3027 = vpop.permute.xlu0 %3026
      %v3028 = vlaneseq
      %v3029 = vshrl.u32 %v3028, 7
      %v3030 = vadd.s32 %v3029, 104
      %3031 = vset.pattern.permute.xlu0 %v3030
      %3032 = vperm.xlu0 %3031, %v2949
      %v3033 = vpop.permute.xlu0 %3032
      %v3034 = vlaneseq
      %v3035 = vshrl.u32 %v3034, 7
      %v3036 = vadd.s32 %v3035, 112
      %3037 = vset.pattern.permute.xlu0 %v3036
      %3038 = vperm.xlu0 %3037, %v2949
      %v3039 = vpop.permute.xlu0 %3038
      %v3040 = vlaneseq
      %v3041 = vshrl.u32 %v3040, 7
      %v3042 = vadd.s32 %v3041, 120
      %3043 = vset.pattern.permute.xlu0 %v3042
      %3044 = vperm.xlu0 %3043, %v2949
      %v3045 = vpop.permute.xlu0 %3044
      %v3046 = vperm.slane %v328, 6
      %v3047 = vlaneseq
      %v3048 = vshrl.u32 %v3047, 7
      %3050 = vset.pattern.permute.xlu0 %v3048
      %3051 = vperm.xlu0 %3050, %v3046
      %v3052 = vpop.permute.xlu0 %3051
      %v3053 = vlaneseq
      %v3054 = vshrl.u32 %v3053, 7
      %v3055 = vadd.s32 %v3054, 8
      %3056 = vset.pattern.permute.xlu0 %v3055
      %3057 = vperm.xlu0 %3056, %v3046
      %v3058 = vpop.permute.xlu0 %3057
      %v3059 = vlaneseq
      %v3060 = vshrl.u32 %v3059, 7
      %v3061 = vadd.s32 %v3060, 16
      %3062 = vset.pattern.permute.xlu0 %v3061
      %3063 = vperm.xlu0 %3062, %v3046
      %v3064 = vpop.permute.xlu0 %3063
      %v3065 = vlaneseq
      %v3066 = vshrl.u32 %v3065, 7
      %v3067 = vadd.s32 %v3066, 24
      %3068 = vset.pattern.permute.xlu0 %v3067
      %3069 = vperm.xlu0 %3068, %v3046
      %v3070 = vpop.permute.xlu0 %3069
      %v3071 = vlaneseq
      %v3072 = vshrl.u32 %v3071, 7
      %v3073 = vadd.s32 %v3072, 32
      %3074 = vset.pattern.permute.xlu0 %v3073
      %3075 = vperm.xlu0 %3074, %v3046
      %v3076 = vpop.permute.xlu0 %3075
      %v3077 = vlaneseq
      %v3078 = vshrl.u32 %v3077, 7
      %v3079 = vadd.s32 %v3078, 40
      %3080 = vset.pattern.permute.xlu0 %v3079
      %3081 = vperm.xlu0 %3080, %v3046
      %v3082 = vpop.permute.xlu0 %3081
      %v3083 = vlaneseq
      %v3084 = vshrl.u32 %v3083, 7
      %v3085 = vadd.s32 %v3084, 48
      %3086 = vset.pattern.permute.xlu0 %v3085
      %3087 = vperm.xlu0 %3086, %v3046
      %v3088 = vpop.permute.xlu0 %3087
      %v3089 = vlaneseq
      %v3090 = vshrl.u32 %v3089, 7
      %v3091 = vadd.s32 %v3090, 56
      %3092 = vset.pattern.permute.xlu0 %v3091
      %3093 = vperm.xlu0 %3092, %v3046
      %v3094 = vpop.permute.xlu0 %3093
      %v3095 = vlaneseq
      %v3096 = vshrl.u32 %v3095, 7
      %v3097 = vadd.s32 %v3096, 64
      %3098 = vset.pattern.permute.xlu0 %v3097
      %3099 = vperm.xlu0 %3098, %v3046
      %v3100 = vpop.permute.xlu0 %3099
      %v3101 = vlaneseq
      %v3102 = vshrl.u32 %v3101, 7
      %v3103 = vadd.s32 %v3102, 72
      %3104 = vset.pattern.permute.xlu0 %v3103
      %3105 = vperm.xlu0 %3104, %v3046
      %v3106 = vpop.permute.xlu0 %3105
      %v3107 = vlaneseq
      %v3108 = vshrl.u32 %v3107, 7
      %v3109 = vadd.s32 %v3108, 80
      %3110 = vset.pattern.permute.xlu0 %v3109
      %3111 = vperm.xlu0 %3110, %v3046
      %v3112 = vpop.permute.xlu0 %3111
      %v3113 = vlaneseq
      %v3114 = vshrl.u32 %v3113, 7
      %v3115 = vadd.s32 %v3114, 88
      %3116 = vset.pattern.permute.xlu0 %v3115
      %3117 = vperm.xlu0 %3116, %v3046
      %v3118 = vpop.permute.xlu0 %3117
      %v3119 = vlaneseq
      %v3120 = vshrl.u32 %v3119, 7
      %v3121 = vadd.s32 %v3120, 96
      %3122 = vset.pattern.permute.xlu0 %v3121
      %3123 = vperm.xlu0 %3122, %v3046
      %v3124 = vpop.permute.xlu0 %3123
      %v3125 = vlaneseq
      %v3126 = vshrl.u32 %v3125, 7
      %v3127 = vadd.s32 %v3126, 104
      %3128 = vset.pattern.permute.xlu0 %v3127
      %3129 = vperm.xlu0 %3128, %v3046
      %v3130 = vpop.permute.xlu0 %3129
      %v3131 = vlaneseq
      %v3132 = vshrl.u32 %v3131, 7
      %v3133 = vadd.s32 %v3132, 112
      %3134 = vset.pattern.permute.xlu0 %v3133
      %3135 = vperm.xlu0 %3134, %v3046
      %v3136 = vpop.permute.xlu0 %3135
      %v3137 = vlaneseq
      %v3138 = vshrl.u32 %v3137, 7
      %v3139 = vadd.s32 %v3138, 120
      %3140 = vset.pattern.permute.xlu0 %v3139
      %3141 = vperm.xlu0 %3140, %v3046
      %v3142 = vpop.permute.xlu0 %3141
      %v3143 = vperm.slane %v329, 6
      %v3144 = vlaneseq
      %v3145 = vshrl.u32 %v3144, 7
      %3147 = vset.pattern.permute.xlu0 %v3145
      %3148 = vperm.xlu0 %3147, %v3143
      %v3149 = vpop.permute.xlu0 %3148
      %v3150 = vlaneseq
      %v3151 = vshrl.u32 %v3150, 7
      %v3152 = vadd.s32 %v3151, 8
      %3153 = vset.pattern.permute.xlu0 %v3152
      %3154 = vperm.xlu0 %3153, %v3143
      %v3155 = vpop.permute.xlu0 %3154
      %v3156 = vlaneseq
      %v3157 = vshrl.u32 %v3156, 7
      %v3158 = vadd.s32 %v3157, 16
      %3159 = vset.pattern.permute.xlu0 %v3158
      %3160 = vperm.xlu0 %3159, %v3143
      %v3161 = vpop.permute.xlu0 %3160
      %v3162 = vlaneseq
      %v3163 = vshrl.u32 %v3162, 7
      %v3164 = vadd.s32 %v3163, 24
      %3165 = vset.pattern.permute.xlu0 %v3164
      %3166 = vperm.xlu0 %3165, %v3143
      %v3167 = vpop.permute.xlu0 %3166
      %v3168 = vlaneseq
      %v3169 = vshrl.u32 %v3168, 7
      %v3170 = vadd.s32 %v3169, 32
      %3171 = vset.pattern.permute.xlu0 %v3170
      %3172 = vperm.xlu0 %3171, %v3143
      %v3173 = vpop.permute.xlu0 %3172
      %v3174 = vlaneseq
      %v3175 = vshrl.u32 %v3174, 7
      %v3176 = vadd.s32 %v3175, 40
      %3177 = vset.pattern.permute.xlu0 %v3176
      %3178 = vperm.xlu0 %3177, %v3143
      %v3179 = vpop.permute.xlu0 %3178
      %v3180 = vlaneseq
      %v3181 = vshrl.u32 %v3180, 7
      %v3182 = vadd.s32 %v3181, 48
      %3183 = vset.pattern.permute.xlu0 %v3182
      %3184 = vperm.xlu0 %3183, %v3143
      %v3185 = vpop.permute.xlu0 %3184
      %v3186 = vlaneseq
      %v3187 = vshrl.u32 %v3186, 7
      %v3188 = vadd.s32 %v3187, 56
      %3189 = vset.pattern.permute.xlu0 %v3188
      %3190 = vperm.xlu0 %3189, %v3143
      %v3191 = vpop.permute.xlu0 %3190
      %v3192 = vlaneseq
      %v3193 = vshrl.u32 %v3192, 7
      %v3194 = vadd.s32 %v3193, 64
      %3195 = vset.pattern.permute.xlu0 %v3194
      %3196 = vperm.xlu0 %3195, %v3143
      %v3197 = vpop.permute.xlu0 %3196
      %v3198 = vlaneseq
      %v3199 = vshrl.u32 %v3198, 7
      %v3200 = vadd.s32 %v3199, 72
      %3201 = vset.pattern.permute.xlu0 %v3200
      %3202 = vperm.xlu0 %3201, %v3143
      %v3203 = vpop.permute.xlu0 %3202
      %v3204 = vlaneseq
      %v3205 = vshrl.u32 %v3204, 7
      %v3206 = vadd.s32 %v3205, 80
      %3207 = vset.pattern.permute.xlu0 %v3206
      %3208 = vperm.xlu0 %3207, %v3143
      %v3209 = vpop.permute.xlu0 %3208
      %v3210 = vlaneseq
      %v3211 = vshrl.u32 %v3210, 7
      %v3212 = vadd.s32 %v3211, 88
      %3213 = vset.pattern.permute.xlu0 %v3212
      %3214 = vperm.xlu0 %3213, %v3143
      %v3215 = vpop.permute.xlu0 %3214
      %v3216 = vlaneseq
      %v3217 = vshrl.u32 %v3216, 7
      %v3218 = vadd.s32 %v3217, 96
      %3219 = vset.pattern.permute.xlu0 %v3218
      %3220 = vperm.xlu0 %3219, %v3143
      %v3221 = vpop.permute.xlu0 %3220
      %v3222 = vlaneseq
      %v3223 = vshrl.u32 %v3222, 7
      %v3224 = vadd.s32 %v3223, 104
      %3225 = vset.pattern.permute.xlu0 %v3224
      %3226 = vperm.xlu0 %3225, %v3143
      %v3227 = vpop.permute.xlu0 %3226
      %v3228 = vlaneseq
      %v3229 = vshrl.u32 %v3228, 7
      %v3230 = vadd.s32 %v3229, 112
      %3231 = vset.pattern.permute.xlu0 %v3230
      %3232 = vperm.xlu0 %3231, %v3143
      %v3233 = vpop.permute.xlu0 %3232
      %v3234 = vlaneseq
      %v3235 = vshrl.u32 %v3234, 7
      %v3236 = vadd.s32 %v3235, 120
      %3237 = vset.pattern.permute.xlu0 %v3236
      %3238 = vperm.xlu0 %3237, %v3143
      %v3239 = vpop.permute.xlu0 %3238
      %v3240 = vperm.slane %v328, 7
      %v3241 = vlaneseq
      %v3242 = vshrl.u32 %v3241, 7
      %3244 = vset.pattern.permute.xlu0 %v3242
      %3245 = vperm.xlu0 %3244, %v3240
      %v3246 = vpop.permute.xlu0 %3245
      %v3247 = vlaneseq
      %v3248 = vshrl.u32 %v3247, 7
      %v3249 = vadd.s32 %v3248, 8
      %3250 = vset.pattern.permute.xlu0 %v3249
      %3251 = vperm.xlu0 %3250, %v3240
      %v3252 = vpop.permute.xlu0 %3251
      %v3253 = vlaneseq
      %v3254 = vshrl.u32 %v3253, 7
      %v3255 = vadd.s32 %v3254, 16
      %3256 = vset.pattern.permute.xlu0 %v3255
      %3257 = vperm.xlu0 %3256, %v3240
      %v3258 = vpop.permute.xlu0 %3257
      %v3259 = vlaneseq
      %v3260 = vshrl.u32 %v3259, 7
      %v3261 = vadd.s32 %v3260, 24
      %3262 = vset.pattern.permute.xlu0 %v3261
      %3263 = vperm.xlu0 %3262, %v3240
      %v3264 = vpop.permute.xlu0 %3263
      %v3265 = vlaneseq
      %v3266 = vshrl.u32 %v3265, 7
      %v3267 = vadd.s32 %v3266, 32
      %3268 = vset.pattern.permute.xlu0 %v3267
      %3269 = vperm.xlu0 %3268, %v3240
      %v3270 = vpop.permute.xlu0 %3269
      %v3271 = vlaneseq
      %v3272 = vshrl.u32 %v3271, 7
      %v3273 = vadd.s32 %v3272, 40
      %3274 = vset.pattern.permute.xlu0 %v3273
      %3275 = vperm.xlu0 %3274, %v3240
      %v3276 = vpop.permute.xlu0 %3275
      %v3277 = vlaneseq
      %v3278 = vshrl.u32 %v3277, 7
      %v3279 = vadd.s32 %v3278, 48
      %3280 = vset.pattern.permute.xlu0 %v3279
      %3281 = vperm.xlu0 %3280, %v3240
      %v3282 = vpop.permute.xlu0 %3281
      %v3283 = vlaneseq
      %v3284 = vshrl.u32 %v3283, 7
      %v3285 = vadd.s32 %v3284, 56
      %3286 = vset.pattern.permute.xlu0 %v3285
      %3287 = vperm.xlu0 %3286, %v3240
      %v3288 = vpop.permute.xlu0 %3287
      %v3289 = vlaneseq
      %v3290 = vshrl.u32 %v3289, 7
      %v3291 = vadd.s32 %v3290, 64
      %3292 = vset.pattern.permute.xlu0 %v3291
      %3293 = vperm.xlu0 %3292, %v3240
      %v3294 = vpop.permute.xlu0 %3293
      %v3295 = vlaneseq
      %v3296 = vshrl.u32 %v3295, 7
      %v3297 = vadd.s32 %v3296, 72
      %3298 = vset.pattern.permute.xlu0 %v3297
      %3299 = vperm.xlu0 %3298, %v3240
      %v3300 = vpop.permute.xlu0 %3299
      %v3301 = vlaneseq
      %v3302 = vshrl.u32 %v3301, 7
      %v3303 = vadd.s32 %v3302, 80
      %3304 = vset.pattern.permute.xlu0 %v3303
      %3305 = vperm.xlu0 %3304, %v3240
      %v3306 = vpop.permute.xlu0 %3305
      %v3307 = vlaneseq
      %v3308 = vshrl.u32 %v3307, 7
      %v3309 = vadd.s32 %v3308, 88
      %3310 = vset.pattern.permute.xlu0 %v3309
      %3311 = vperm.xlu0 %3310, %v3240
      %v3312 = vpop.permute.xlu0 %3311
      %v3313 = vlaneseq
      %v3314 = vshrl.u32 %v3313, 7
      %v3315 = vadd.s32 %v3314, 96
      %3316 = vset.pattern.permute.xlu0 %v3315
      %3317 = vperm.xlu0 %3316, %v3240
      %v3318 = vpop.permute.xlu0 %3317
      %v3319 = vlaneseq
      %v3320 = vshrl.u32 %v3319, 7
      %v3321 = vadd.s32 %v3320, 104
      %3322 = vset.pattern.permute.xlu0 %v3321
      %3323 = vperm.xlu0 %3322, %v3240
      %v3324 = vpop.permute.xlu0 %3323
      %v3325 = vlaneseq
      %v3326 = vshrl.u32 %v3325, 7
      %v3327 = vadd.s32 %v3326, 112
      %3328 = vset.pattern.permute.xlu0 %v3327
      %3329 = vperm.xlu0 %3328, %v3240
      %v3330 = vpop.permute.xlu0 %3329
      %v3331 = vlaneseq
      %v3332 = vshrl.u32 %v3331, 7
      %v3333 = vadd.s32 %v3332, 120
      %3334 = vset.pattern.permute.xlu0 %v3333
      %3335 = vperm.xlu0 %3334, %v3240
      %v3336 = vpop.permute.xlu0 %3335
      %v3337 = vperm.slane %v329, 7
      %v3338 = vlaneseq
      %v3339 = vshrl.u32 %v3338, 7
      %3341 = vset.pattern.permute.xlu0 %v3339
      %3342 = vperm.xlu0 %3341, %v3337
      %v3343 = vpop.permute.xlu0 %3342
      %v3344 = vlaneseq
      %v3345 = vshrl.u32 %v3344, 7
      %v3346 = vadd.s32 %v3345, 8
      %3347 = vset.pattern.permute.xlu0 %v3346
      %3348 = vperm.xlu0 %3347, %v3337
      %v3349 = vpop.permute.xlu0 %3348
      %v3350 = vlaneseq
      %v3351 = vshrl.u32 %v3350, 7
      %v3352 = vadd.s32 %v3351, 16
      %3353 = vset.pattern.permute.xlu0 %v3352
      %3354 = vperm.xlu0 %3353, %v3337
      %v3355 = vpop.permute.xlu0 %3354
      %v3356 = vlaneseq
      %v3357 = vshrl.u32 %v3356, 7
      %v3358 = vadd.s32 %v3357, 24
      %3359 = vset.pattern.permute.xlu0 %v3358
      %3360 = vperm.xlu0 %3359, %v3337
      %v3361 = vpop.permute.xlu0 %3360
      %v3362 = vlaneseq
      %v3363 = vshrl.u32 %v3362, 7
      %v3364 = vadd.s32 %v3363, 32
      %3365 = vset.pattern.permute.xlu0 %v3364
      %3366 = vperm.xlu0 %3365, %v3337
      %v3367 = vpop.permute.xlu0 %3366
      %v3368 = vlaneseq
      %v3369 = vshrl.u32 %v3368, 7
      %v3370 = vadd.s32 %v3369, 40
      %3371 = vset.pattern.permute.xlu0 %v3370
      %3372 = vperm.xlu0 %3371, %v3337
      %v3373 = vpop.permute.xlu0 %3372
      %v3374 = vlaneseq
      %v3375 = vshrl.u32 %v3374, 7
      %v3376 = vadd.s32 %v3375, 48
      %3377 = vset.pattern.permute.xlu0 %v3376
      %3378 = vperm.xlu0 %3377, %v3337
      %v3379 = vpop.permute.xlu0 %3378
      %v3380 = vlaneseq
      %v3381 = vshrl.u32 %v3380, 7
      %v3382 = vadd.s32 %v3381, 56
      %3383 = vset.pattern.permute.xlu0 %v3382
      %3384 = vperm.xlu0 %3383, %v3337
      %v3385 = vpop.permute.xlu0 %3384
      %v3386 = vlaneseq
      %v3387 = vshrl.u32 %v3386, 7
      %v3388 = vadd.s32 %v3387, 64
      %3389 = vset.pattern.permute.xlu0 %v3388
      %3390 = vperm.xlu0 %3389, %v3337
      %v3391 = vpop.permute.xlu0 %3390
      %v3392 = vlaneseq
      %v3393 = vshrl.u32 %v3392, 7
      %v3394 = vadd.s32 %v3393, 72
      %3395 = vset.pattern.permute.xlu0 %v3394
      %3396 = vperm.xlu0 %3395, %v3337
      %v3397 = vpop.permute.xlu0 %3396
      %v3398 = vlaneseq
      %v3399 = vshrl.u32 %v3398, 7
      %v3400 = vadd.s32 %v3399, 80
      %3401 = vset.pattern.permute.xlu0 %v3400
      %3402 = vperm.xlu0 %3401, %v3337
      %v3403 = vpop.permute.xlu0 %3402
      %v3404 = vlaneseq
      %v3405 = vshrl.u32 %v3404, 7
      %v3406 = vadd.s32 %v3405, 88
      %3407 = vset.pattern.permute.xlu0 %v3406
      %3408 = vperm.xlu0 %3407, %v3337
      %v3409 = vpop.permute.xlu0 %3408
      %v3410 = vlaneseq
      %v3411 = vshrl.u32 %v3410, 7
      %v3412 = vadd.s32 %v3411, 96
      %3413 = vset.pattern.permute.xlu0 %v3412
      %3414 = vperm.xlu0 %3413, %v3337
      %v3415 = vpop.permute.xlu0 %3414
      %v3416 = vlaneseq
      %v3417 = vshrl.u32 %v3416, 7
      %v3418 = vadd.s32 %v3417, 104
      %3419 = vset.pattern.permute.xlu0 %v3418
      %3420 = vperm.xlu0 %3419, %v3337
      %v3421 = vpop.permute.xlu0 %3420
      %v3422 = vlaneseq
      %v3423 = vshrl.u32 %v3422, 7
      %v3424 = vadd.s32 %v3423, 112
      %3425 = vset.pattern.permute.xlu0 %v3424
      %3426 = vperm.xlu0 %3425, %v3337
      %v3427 = vpop.permute.xlu0 %3426
      %v3428 = vlaneseq
      %v3429 = vshrl.u32 %v3428, 7
      %v3430 = vadd.s32 %v3429, 120
      %3431 = vset.pattern.permute.xlu0 %v3430
      %3432 = vperm.xlu0 %3431, %v3337
      %v3433 = vpop.permute.xlu0 %3432
      %vm3434 = vcmask 7168
      %v3435 = vsel %vm3434, %v336, %v1888
      %v3436 = vsel %vm3434, %v342, %v1894
      %v3437 = vsel %vm3434, %v348, %v1900
      %v3438 = vsel %vm3434, %v354, %v1906
      %v3439 = vsel %vm3434, %v360, %v1912
      %v3440 = vsel %vm3434, %v366, %v1918
      %v3441 = vsel %vm3434, %v372, %v1924
      %v3442 = vsel %vm3434, %v378, %v1930
      %v3443 = vsel %vm3434, %v384, %v1936
      %v3444 = vsel %vm3434, %v390, %v1942
      %v3445 = vsel %vm3434, %v396, %v1948
      %v3446 = vsel %vm3434, %v402, %v1954
      %v3447 = vsel %vm3434, %v408, %v1960
      %v3448 = vsel %vm3434, %v414, %v1966
      %v3449 = vsel %vm3434, %v420, %v1972
      %v3450 = vsel %vm3434, %v426, %v1978
      %v3451 = vsel %vm3434, %v433, %v1985
      %v3452 = vsel %vm3434, %v439, %v1991
      %v3453 = vsel %vm3434, %v445, %v1997
      %v3454 = vsel %vm3434, %v451, %v2003
      %v3455 = vsel %vm3434, %v457, %v2009
      %v3456 = vsel %vm3434, %v463, %v2015
      %v3457 = vsel %vm3434, %v469, %v2021
      %v3458 = vsel %vm3434, %v475, %v2027
      %v3459 = vsel %vm3434, %v481, %v2033
      %v3460 = vsel %vm3434, %v487, %v2039
      %v3461 = vsel %vm3434, %v493, %v2045
      %v3462 = vsel %vm3434, %v499, %v2051
      %v3463 = vsel %vm3434, %v505, %v2057
      %v3464 = vsel %vm3434, %v511, %v2063
      %v3465 = vsel %vm3434, %v517, %v2069
      %v3466 = vsel %vm3434, %v523, %v2075
      %v3467 = vsel %vm3434, %v530, %v2082
      %v3468 = vsel %vm3434, %v536, %v2088
      %v3469 = vsel %vm3434, %v542, %v2094
      %v3470 = vsel %vm3434, %v548, %v2100
      %v3471 = vsel %vm3434, %v554, %v2106
      %v3472 = vsel %vm3434, %v560, %v2112
      %v3473 = vsel %vm3434, %v566, %v2118
      %v3474 = vsel %vm3434, %v572, %v2124
      %v3475 = vsel %vm3434, %v578, %v2130
      %v3476 = vsel %vm3434, %v584, %v2136
      %v3477 = vsel %vm3434, %v590, %v2142
      %v3478 = vsel %vm3434, %v596, %v2148
      %v3479 = vsel %vm3434, %v602, %v2154
      %v3480 = vsel %vm3434, %v608, %v2160
      %v3481 = vsel %vm3434, %v614, %v2166
      %v3482 = vsel %vm3434, %v620, %v2172
      %v3483 = vsel %vm3434, %v627, %v2179
      %v3484 = vsel %vm3434, %v633, %v2185
      %v3485 = vsel %vm3434, %v639, %v2191
      %v3486 = vsel %vm3434, %v645, %v2197
      %v3487 = vsel %vm3434, %v651, %v2203
      %v3488 = vsel %vm3434, %v657, %v2209
      %v3489 = vsel %vm3434, %v663, %v2215
      %v3490 = vsel %vm3434, %v669, %v2221
      %v3491 = vsel %vm3434, %v675, %v2227
      %v3492 = vsel %vm3434, %v681, %v2233
      %v3493 = vsel %vm3434, %v687, %v2239
      %v3494 = vsel %vm3434, %v693, %v2245
      %v3495 = vsel %vm3434, %v699, %v2251
      %v3496 = vsel %vm3434, %v705, %v2257
      %v3497 = vsel %vm3434, %v711, %v2263
      %v3498 = vsel %vm3434, %v717, %v2269
      %v3499 = vsel %vm3434, %v724, %v2276
      %v3500 = vsel %vm3434, %v730, %v2282
      %v3501 = vsel %vm3434, %v736, %v2288
      %v3502 = vsel %vm3434, %v742, %v2294
      %v3503 = vsel %vm3434, %v748, %v2300
      %v3504 = vsel %vm3434, %v754, %v2306
      %v3505 = vsel %vm3434, %v760, %v2312
      %v3506 = vsel %vm3434, %v766, %v2318
      %v3507 = vsel %vm3434, %v772, %v2324
      %v3508 = vsel %vm3434, %v778, %v2330
      %v3509 = vsel %vm3434, %v784, %v2336
      %v3510 = vsel %vm3434, %v790, %v2342
      %v3511 = vsel %vm3434, %v796, %v2348
      %v3512 = vsel %vm3434, %v802, %v2354
      %v3513 = vsel %vm3434, %v808, %v2360
      %v3514 = vsel %vm3434, %v814, %v2366
      %v3515 = vsel %vm3434, %v821, %v2373
      %v3516 = vsel %vm3434, %v827, %v2379
      %v3517 = vsel %vm3434, %v833, %v2385
      %v3518 = vsel %vm3434, %v839, %v2391
      %v3519 = vsel %vm3434, %v845, %v2397
      %v3520 = vsel %vm3434, %v851, %v2403
      %v3521 = vsel %vm3434, %v857, %v2409
      %v3522 = vsel %vm3434, %v863, %v2415
      %v3523 = vsel %vm3434, %v869, %v2421
      %v3524 = vsel %vm3434, %v875, %v2427
      %v3525 = vsel %vm3434, %v881, %v2433
      %v3526 = vsel %vm3434, %v887, %v2439
      %v3527 = vsel %vm3434, %v893, %v2445
      %v3528 = vsel %vm3434, %v899, %v2451
      %v3529 = vsel %vm3434, %v905, %v2457
      %v3530 = vsel %vm3434, %v911, %v2463
      %v3531 = vsel %vm3434, %v918, %v2470
      %v3532 = vsel %vm3434, %v924, %v2476
      %v3533 = vsel %vm3434, %v930, %v2482
      %v3534 = vsel %vm3434, %v936, %v2488
      %v3535 = vsel %vm3434, %v942, %v2494
      %v3536 = vsel %vm3434, %v948, %v2500
      %v3537 = vsel %vm3434, %v954, %v2506
      %v3538 = vsel %vm3434, %v960, %v2512
      %v3539 = vsel %vm3434, %v966, %v2518
      %v3540 = vsel %vm3434, %v972, %v2524
      %v3541 = vsel %vm3434, %v978, %v2530
      %v3542 = vsel %vm3434, %v984, %v2536
      %v3543 = vsel %vm3434, %v990, %v2542
      %v3544 = vsel %vm3434, %v996, %v2548
      %v3545 = vsel %vm3434, %v1002, %v2554
      %v3546 = vsel %vm3434, %v1008, %v2560
      %v3547 = vsel %vm3434, %v1015, %v2567
      %v3548 = vsel %vm3434, %v1021, %v2573
      %v3549 = vsel %vm3434, %v1027, %v2579
      %v3550 = vsel %vm3434, %v1033, %v2585
      %v3551 = vsel %vm3434, %v1039, %v2591
      %v3552 = vsel %vm3434, %v1045, %v2597
      %v3553 = vsel %vm3434, %v1051, %v2603
      %v3554 = vsel %vm3434, %v1057, %v2609
      %v3555 = vsel %vm3434, %v1063, %v2615
      %v3556 = vsel %vm3434, %v1069, %v2621
      %v3557 = vsel %vm3434, %v1075, %v2627
      %v3558 = vsel %vm3434, %v1081, %v2633
      %v3559 = vsel %vm3434, %v1087, %v2639
      %v3560 = vsel %vm3434, %v1093, %v2645
      %v3561 = vsel %vm3434, %v1099, %v2651
      %v3562 = vsel %vm3434, %v1105, %v2657
      %v3563 = vsel %vm3434, %v1112, %v2664
      %v3564 = vsel %vm3434, %v1118, %v2670
      %v3565 = vsel %vm3434, %v1124, %v2676
      %v3566 = vsel %vm3434, %v1130, %v2682
      %v3567 = vsel %vm3434, %v1136, %v2688
      %v3568 = vsel %vm3434, %v1142, %v2694
      %v3569 = vsel %vm3434, %v1148, %v2700
      %v3570 = vsel %vm3434, %v1154, %v2706
      %v3571 = vsel %vm3434, %v1160, %v2712
      %v3572 = vsel %vm3434, %v1166, %v2718
      %v3573 = vsel %vm3434, %v1172, %v2724
      %v3574 = vsel %vm3434, %v1178, %v2730
      %v3575 = vsel %vm3434, %v1184, %v2736
      %v3576 = vsel %vm3434, %v1190, %v2742
      %v3577 = vsel %vm3434, %v1196, %v2748
      %v3578 = vsel %vm3434, %v1202, %v2754
      %v3579 = vsel %vm3434, %v1209, %v2761
      %v3580 = vsel %vm3434, %v1215, %v2767
      %v3581 = vsel %vm3434, %v1221, %v2773
      %v3582 = vsel %vm3434, %v1227, %v2779
      %v3583 = vsel %vm3434, %v1233, %v2785
      %v3584 = vsel %vm3434, %v1239, %v2791
      %v3585 = vsel %vm3434, %v1245, %v2797
      %v3586 = vsel %vm3434, %v1251, %v2803
      %v3587 = vsel %vm3434, %v1257, %v2809
      %v3588 = vsel %vm3434, %v1263, %v2815
      %v3589 = vsel %vm3434, %v1269, %v2821
      %v3590 = vsel %vm3434, %v1275, %v2827
      %v3591 = vsel %vm3434, %v1281, %v2833
      %v3592 = vsel %vm3434, %v1287, %v2839
      %v3593 = vsel %vm3434, %v1293, %v2845
      %v3594 = vsel %vm3434, %v1299, %v2851
      %v3595 = vsel %vm3434, %v1306, %v2858
      %v3596 = vsel %vm3434, %v1312, %v2864
      %v3597 = vsel %vm3434, %v1318, %v2870
      %v3598 = vsel %vm3434, %v1324, %v2876
      %v3599 = vsel %vm3434, %v1330, %v2882
      %v3600 = vsel %vm3434, %v1336, %v2888
      %v3601 = vsel %vm3434, %v1342, %v2894
      %v3602 = vsel %vm3434, %v1348, %v2900
      %v3603 = vsel %vm3434, %v1354, %v2906
      %v3604 = vsel %vm3434, %v1360, %v2912
      %v3605 = vsel %vm3434, %v1366, %v2918
      %v3606 = vsel %vm3434, %v1372, %v2924
      %v3607 = vsel %vm3434, %v1378, %v2930
      %v3608 = vsel %vm3434, %v1384, %v2936
      %v3609 = vsel %vm3434, %v1390, %v2942
      %v3610 = vsel %vm3434, %v1396, %v2948
      %v3611 = vsel %vm3434, %v1403, %v2955
      %v3612 = vsel %vm3434, %v1409, %v2961
      %v3613 = vsel %vm3434, %v1415, %v2967
      %v3614 = vsel %vm3434, %v1421, %v2973
      %v3615 = vsel %vm3434, %v1427, %v2979
      %v3616 = vsel %vm3434, %v1433, %v2985
      %v3617 = vsel %vm3434, %v1439, %v2991
      %v3618 = vsel %vm3434, %v1445, %v2997
      %v3619 = vsel %vm3434, %v1451, %v3003
      %v3620 = vsel %vm3434, %v1457, %v3009
      %v3621 = vsel %vm3434, %v1463, %v3015
      %v3622 = vsel %vm3434, %v1469, %v3021
      %v3623 = vsel %vm3434, %v1475, %v3027
      %v3624 = vsel %vm3434, %v1481, %v3033
      %v3625 = vsel %vm3434, %v1487, %v3039
      %v3626 = vsel %vm3434, %v1493, %v3045
      %v3627 = vsel %vm3434, %v1500, %v3052
      %v3628 = vsel %vm3434, %v1506, %v3058
      %v3629 = vsel %vm3434, %v1512, %v3064
      %v3630 = vsel %vm3434, %v1518, %v3070
      %v3631 = vsel %vm3434, %v1524, %v3076
      %v3632 = vsel %vm3434, %v1530, %v3082
      %v3633 = vsel %vm3434, %v1536, %v3088
      %v3634 = vsel %vm3434, %v1542, %v3094
      %v3635 = vsel %vm3434, %v1548, %v3100
      %v3636 = vsel %vm3434, %v1554, %v3106
      %v3637 = vsel %vm3434, %v1560, %v3112
      %v3638 = vsel %vm3434, %v1566, %v3118
      %v3639 = vsel %vm3434, %v1572, %v3124
      %v3640 = vsel %vm3434, %v1578, %v3130
      %v3641 = vsel %vm3434, %v1584, %v3136
      %v3642 = vsel %vm3434, %v1590, %v3142
      %v3643 = vsel %vm3434, %v1597, %v3149
      %v3644 = vsel %vm3434, %v1603, %v3155
      %v3645 = vsel %vm3434, %v1609, %v3161
      %v3646 = vsel %vm3434, %v1615, %v3167
      %v3647 = vsel %vm3434, %v1621, %v3173
      %v3648 = vsel %vm3434, %v1627, %v3179
      %v3649 = vsel %vm3434, %v1633, %v3185
      %v3650 = vsel %vm3434, %v1639, %v3191
      %v3651 = vsel %vm3434, %v1645, %v3197
      %v3652 = vsel %vm3434, %v1651, %v3203
      %v3653 = vsel %vm3434, %v1657, %v3209
      %v3654 = vsel %vm3434, %v1663, %v3215
      %v3655 = vsel %vm3434, %v1669, %v3221
      %v3656 = vsel %vm3434, %v1675, %v3227
      %v3657 = vsel %vm3434, %v1681, %v3233
      %v3658 = vsel %vm3434, %v1687, %v3239
      %v3659 = vsel %vm3434, %v1694, %v3246
      %v3660 = vsel %vm3434, %v1700, %v3252
      %v3661 = vsel %vm3434, %v1706, %v3258
      %v3662 = vsel %vm3434, %v1712, %v3264
      %v3663 = vsel %vm3434, %v1718, %v3270
      %v3664 = vsel %vm3434, %v1724, %v3276
      %v3665 = vsel %vm3434, %v1730, %v3282
      %v3666 = vsel %vm3434, %v1736, %v3288
      %v3667 = vsel %vm3434, %v1742, %v3294
      %v3668 = vsel %vm3434, %v1748, %v3300
      %v3669 = vsel %vm3434, %v1754, %v3306
      %v3670 = vsel %vm3434, %v1760, %v3312
      %v3671 = vsel %vm3434, %v1766, %v3318
      %v3672 = vsel %vm3434, %v1772, %v3324
      %v3673 = vsel %vm3434, %v1778, %v3330
      %v3674 = vsel %vm3434, %v1784, %v3336
      %v3675 = vsel %vm3434, %v1791, %v3343
      %v3676 = vsel %vm3434, %v1797, %v3349
      %v3677 = vsel %vm3434, %v1803, %v3355
      %v3678 = vsel %vm3434, %v1809, %v3361
      %v3679 = vsel %vm3434, %v1815, %v3367
      %v3680 = vsel %vm3434, %v1821, %v3373
      %v3681 = vsel %vm3434, %v1827, %v3379
      %v3682 = vsel %vm3434, %v1833, %v3385
      %v3683 = vsel %vm3434, %v1839, %v3391
      %v3684 = vsel %vm3434, %v1845, %v3397
      %v3685 = vsel %vm3434, %v1851, %v3403
      %v3686 = vsel %vm3434, %v1857, %v3409
      %v3687 = vsel %vm3434, %v1863, %v3415
      %v3688 = vsel %vm3434, %v1869, %v3421
      %v3689 = vsel %vm3434, %v1875, %v3427
      %v3690 = vsel %vm3434, %v1881, %v3433
      %v3691 = vrot.slane %v3499, 4
      %vm3692 = vcmask 1047556
      %v3693 = vsel %vm3692, %v3691, %v3435
      %v3694 = vrot.slane %v3435, 4
      %v3695 = vsel %vm3692, %v3499, %v3694
      %v3697 = vunpack.c.l.s4 1983009808
      %v3698 = vunpack.c.0.s8 %v3697
      %v3699 = vperm.slane %v3693, %v3698
      %v3701 = vunpack.c.l.s4 1983009808
      %v3702 = vunpack.c.0.s8 %v3701
      %v3703 = vperm.slane %v3695, %v3702
      %v3704 = vrot.slane %v3531, 4
      %v3705 = vsel %vm3692, %v3704, %v3467
      %v3706 = vrot.slane %v3467, 4
      %v3707 = vsel %vm3692, %v3531, %v3706
      %v3709 = vunpack.c.l.s4 1983009808
      %v3710 = vunpack.c.0.s8 %v3709
      %v3711 = vperm.slane %v3705, %v3710
      %v3713 = vunpack.c.l.s4 1983009808
      %v3714 = vunpack.c.0.s8 %v3713
      %v3715 = vperm.slane %v3707, %v3714
      %v3716 = vrot.slane %v3627, 4
      %v3717 = vsel %vm3692, %v3716, %v3563
      %v3718 = vrot.slane %v3563, 4
      %v3719 = vsel %vm3692, %v3627, %v3718
      %v3721 = vunpack.c.l.s4 1983009808
      %v3722 = vunpack.c.0.s8 %v3721
      %v3723 = vperm.slane %v3717, %v3722
      %v3725 = vunpack.c.l.s4 1983009808
      %v3726 = vunpack.c.0.s8 %v3725
      %v3727 = vperm.slane %v3719, %v3726
      %v3728 = vrot.slane %v3659, 4
      %v3729 = vsel %vm3692, %v3728, %v3595
      %v3730 = vrot.slane %v3595, 4
      %v3731 = vsel %vm3692, %v3659, %v3730
      %v3733 = vunpack.c.l.s4 1983009808
      %v3734 = vunpack.c.0.s8 %v3733
      %v3735 = vperm.slane %v3729, %v3734
      %v3737 = vunpack.c.l.s4 1983009808
      %v3738 = vunpack.c.0.s8 %v3737
      %v3739 = vperm.slane %v3731, %v3738
      %v3740 = vrot.slane %v3711, 4
      %v3741 = vsel %vm3692, %v3740, %v3699
      %v3742 = vrot.slane %v3699, 4
      %v3743 = vsel %vm3692, %v3711, %v3742
      %v3745 = vunpack.c.l.s4 1934713408
      %v3746 = vunpack.c.0.s8 %v3745
      %v3747 = vperm.slane %v3741, %v3746
      %v3749 = vunpack.c.l.s4 1934713408
      %v3750 = vunpack.c.0.s8 %v3749
      %v3751 = vperm.slane %v3743, %v3750
      %v3752 = vrot.slane %v3715, 4
      %v3753 = vsel %vm3692, %v3752, %v3703
      %v3754 = vrot.slane %v3703, 4
      %v3755 = vsel %vm3692, %v3715, %v3754
      %v3757 = vunpack.c.l.s4 1934713408
      %v3758 = vunpack.c.0.s8 %v3757
      %v3759 = vperm.slane %v3753, %v3758
      %v3761 = vunpack.c.l.s4 1934713408
      %v3762 = vunpack.c.0.s8 %v3761
      %v3763 = vperm.slane %v3755, %v3762
      %v3764 = vrot.slane %v3735, 4
      %v3765 = vsel %vm3692, %v3764, %v3723
      %v3766 = vrot.slane %v3723, 4
      %v3767 = vsel %vm3692, %v3735, %v3766
      %v3769 = vunpack.c.l.s4 1934713408
      %v3770 = vunpack.c.0.s8 %v3769
      %v3771 = vperm.slane %v3765, %v3770
      %v3773 = vunpack.c.l.s4 1934713408
      %v3774 = vunpack.c.0.s8 %v3773
      %v3775 = vperm.slane %v3767, %v3774
      %v3776 = vrot.slane %v3739, 4
      %v3777 = vsel %vm3692, %v3776, %v3727
      %v3778 = vrot.slane %v3727, 4
      %v3779 = vsel %vm3692, %v3739, %v3778
      %v3781 = vunpack.c.l.s4 1934713408
      %v3782 = vunpack.c.0.s8 %v3781
      %v3783 = vperm.slane %v3777, %v3782
      %v3785 = vunpack.c.l.s4 1934713408
      %v3786 = vunpack.c.0.s8 %v3785
      %v3787 = vperm.slane %v3779, %v3786
      %v3788 = vrot.slane %v3771, 4
      %v3789 = vsel %vm3692, %v3788, %v3747
      %v3790 = vrot.slane %v3747, 4
      %v3791 = vsel %vm3692, %v3771, %v3790
      %v3792 = vrot.slane %v3775, 4
      %v3793 = vsel %vm3692, %v3792, %v3751
      %v3794 = vrot.slane %v3751, 4
      %v3795 = vsel %vm3692, %v3775, %v3794
      %v3796 = vrot.slane %v3783, 4
      %v3797 = vsel %vm3692, %v3796, %v3759
      %v3798 = vrot.slane %v3759, 4
      %v3799 = vsel %vm3692, %v3783, %v3798
      %v3800 = vrot.slane %v3787, 4
      %v3801 = vsel %vm3692, %v3800, %v3763
      %v3802 = vrot.slane %v3763, 4
      %v3803 = vsel %vm3692, %v3787, %v3802
      %v3804 = vrot.slane %v3500, 4
      %v3805 = vsel %vm3692, %v3804, %v3436
      %v3806 = vrot.slane %v3436, 4
      %v3807 = vsel %vm3692, %v3500, %v3806
      %v3809 = vunpack.c.l.s4 1983009808
      %v3810 = vunpack.c.0.s8 %v3809
      %v3811 = vperm.slane %v3805, %v3810
      %v3813 = vunpack.c.l.s4 1983009808
      %v3814 = vunpack.c.0.s8 %v3813
      %v3815 = vperm.slane %v3807, %v3814
      %v3816 = vrot.slane %v3532, 4
      %v3817 = vsel %vm3692, %v3816, %v3468
      %v3818 = vrot.slane %v3468, 4
      %v3819 = vsel %vm3692, %v3532, %v3818
      %v3821 = vunpack.c.l.s4 1983009808
      %v3822 = vunpack.c.0.s8 %v3821
      %v3823 = vperm.slane %v3817, %v3822
      %v3825 = vunpack.c.l.s4 1983009808
      %v3826 = vunpack.c.0.s8 %v3825
      %v3827 = vperm.slane %v3819, %v3826
      %v3828 = vrot.slane %v3628, 4
      %v3829 = vsel %vm3692, %v3828, %v3564
      %v3830 = vrot.slane %v3564, 4
      %v3831 = vsel %vm3692, %v3628, %v3830
      %v3833 = vunpack.c.l.s4 1983009808
      %v3834 = vunpack.c.0.s8 %v3833
      %v3835 = vperm.slane %v3829, %v3834
      %v3837 = vunpack.c.l.s4 1983009808
      %v3838 = vunpack.c.0.s8 %v3837
      %v3839 = vperm.slane %v3831, %v3838
      %v3840 = vrot.slane %v3660, 4
      %v3841 = vsel %vm3692, %v3840, %v3596
      %v3842 = vrot.slane %v3596, 4
      %v3843 = vsel %vm3692, %v3660, %v3842
      %v3845 = vunpack.c.l.s4 1983009808
      %v3846 = vunpack.c.0.s8 %v3845
      %v3847 = vperm.slane %v3841, %v3846
      %v3849 = vunpack.c.l.s4 1983009808
      %v3850 = vunpack.c.0.s8 %v3849
      %v3851 = vperm.slane %v3843, %v3850
      %v3852 = vrot.slane %v3823, 4
      %v3853 = vsel %vm3692, %v3852, %v3811
      %v3854 = vrot.slane %v3811, 4
      %v3855 = vsel %vm3692, %v3823, %v3854
      %v3857 = vunpack.c.l.s4 1934713408
      %v3858 = vunpack.c.0.s8 %v3857
      %v3859 = vperm.slane %v3853, %v3858
      %v3861 = vunpack.c.l.s4 1934713408
      %v3862 = vunpack.c.0.s8 %v3861
      %v3863 = vperm.slane %v3855, %v3862
      %v3864 = vrot.slane %v3827, 4
      %v3865 = vsel %vm3692, %v3864, %v3815
      %v3866 = vrot.slane %v3815, 4
      %v3867 = vsel %vm3692, %v3827, %v3866
      %v3869 = vunpack.c.l.s4 1934713408
      %v3870 = vunpack.c.0.s8 %v3869
      %v3871 = vperm.slane %v3865, %v3870
      %v3873 = vunpack.c.l.s4 1934713408
      %v3874 = vunpack.c.0.s8 %v3873
      %v3875 = vperm.slane %v3867, %v3874
      %v3876 = vrot.slane %v3847, 4
      %v3877 = vsel %vm3692, %v3876, %v3835
      %v3878 = vrot.slane %v3835, 4
      %v3879 = vsel %vm3692, %v3847, %v3878
      %v3881 = vunpack.c.l.s4 1934713408
      %v3882 = vunpack.c.0.s8 %v3881
      %v3883 = vperm.slane %v3877, %v3882
      %v3885 = vunpack.c.l.s4 1934713408
      %v3886 = vunpack.c.0.s8 %v3885
      %v3887 = vperm.slane %v3879, %v3886
      %v3888 = vrot.slane %v3851, 4
      %v3889 = vsel %vm3692, %v3888, %v3839
      %v3890 = vrot.slane %v3839, 4
      %v3891 = vsel %vm3692, %v3851, %v3890
      %v3893 = vunpack.c.l.s4 1934713408
      %v3894 = vunpack.c.0.s8 %v3893
      %v3895 = vperm.slane %v3889, %v3894
      %v3897 = vunpack.c.l.s4 1934713408
      %v3898 = vunpack.c.0.s8 %v3897
      %v3899 = vperm.slane %v3891, %v3898
      %v3900 = vrot.slane %v3883, 4
      %v3901 = vsel %vm3692, %v3900, %v3859
      %v3902 = vrot.slane %v3859, 4
      %v3903 = vsel %vm3692, %v3883, %v3902
      %v3904 = vrot.slane %v3887, 4
      %v3905 = vsel %vm3692, %v3904, %v3863
      %v3906 = vrot.slane %v3863, 4
      %v3907 = vsel %vm3692, %v3887, %v3906
      %v3908 = vrot.slane %v3895, 4
      %v3909 = vsel %vm3692, %v3908, %v3871
      %v3910 = vrot.slane %v3871, 4
      %v3911 = vsel %vm3692, %v3895, %v3910
      %v3912 = vrot.slane %v3899, 4
      %v3913 = vsel %vm3692, %v3912, %v3875
      %v3914 = vrot.slane %v3875, 4
      %v3915 = vsel %vm3692, %v3899, %v3914
      %v3916 = vrot.slane %v3501, 4
      %v3917 = vsel %vm3692, %v3916, %v3437
      %v3918 = vrot.slane %v3437, 4
      %v3919 = vsel %vm3692, %v3501, %v3918
      %v3921 = vunpack.c.l.s4 1983009808
      %v3922 = vunpack.c.0.s8 %v3921
      %v3923 = vperm.slane %v3917, %v3922
      %v3925 = vunpack.c.l.s4 1983009808
      %v3926 = vunpack.c.0.s8 %v3925
      %v3927 = vperm.slane %v3919, %v3926
      %v3928 = vrot.slane %v3533, 4
      %v3929 = vsel %vm3692, %v3928, %v3469
      %v3930 = vrot.slane %v3469, 4
      %v3931 = vsel %vm3692, %v3533, %v3930
      %v3933 = vunpack.c.l.s4 1983009808
      %v3934 = vunpack.c.0.s8 %v3933
      %v3935 = vperm.slane %v3929, %v3934
      %v3937 = vunpack.c.l.s4 1983009808
      %v3938 = vunpack.c.0.s8 %v3937
      %v3939 = vperm.slane %v3931, %v3938
      %v3940 = vrot.slane %v3629, 4
      %v3941 = vsel %vm3692, %v3940, %v3565
      %v3942 = vrot.slane %v3565, 4
      %v3943 = vsel %vm3692, %v3629, %v3942
      %v3945 = vunpack.c.l.s4 1983009808
      %v3946 = vunpack.c.0.s8 %v3945
      %v3947 = vperm.slane %v3941, %v3946
      %v3949 = vunpack.c.l.s4 1983009808
      %v3950 = vunpack.c.0.s8 %v3949
      %v3951 = vperm.slane %v3943, %v3950
      %v3952 = vrot.slane %v3661, 4
      %v3953 = vsel %vm3692, %v3952, %v3597
      %v3954 = vrot.slane %v3597, 4
      %v3955 = vsel %vm3692, %v3661, %v3954
      %v3957 = vunpack.c.l.s4 1983009808
      %v3958 = vunpack.c.0.s8 %v3957
      %v3959 = vperm.slane %v3953, %v3958
      %v3961 = vunpack.c.l.s4 1983009808
      %v3962 = vunpack.c.0.s8 %v3961
      %v3963 = vperm.slane %v3955, %v3962
      %v3964 = vrot.slane %v3935, 4
      %v3965 = vsel %vm3692, %v3964, %v3923
      %v3966 = vrot.slane %v3923, 4
      %v3967 = vsel %vm3692, %v3935, %v3966
      %v3969 = vunpack.c.l.s4 1934713408
      %v3970 = vunpack.c.0.s8 %v3969
      %v3971 = vperm.slane %v3965, %v3970
      %v3973 = vunpack.c.l.s4 1934713408
      %v3974 = vunpack.c.0.s8 %v3973
      %v3975 = vperm.slane %v3967, %v3974
      %v3976 = vrot.slane %v3939, 4
      %v3977 = vsel %vm3692, %v3976, %v3927
      %v3978 = vrot.slane %v3927, 4
      %v3979 = vsel %vm3692, %v3939, %v3978
      %v3981 = vunpack.c.l.s4 1934713408
      %v3982 = vunpack.c.0.s8 %v3981
      %v3983 = vperm.slane %v3977, %v3982
      %v3985 = vunpack.c.l.s4 1934713408
      %v3986 = vunpack.c.0.s8 %v3985
      %v3987 = vperm.slane %v3979, %v3986
      %v3988 = vrot.slane %v3959, 4
      %v3989 = vsel %vm3692, %v3988, %v3947
      %v3990 = vrot.slane %v3947, 4
      %v3991 = vsel %vm3692, %v3959, %v3990
      %v3993 = vunpack.c.l.s4 1934713408
      %v3994 = vunpack.c.0.s8 %v3993
      %v3995 = vperm.slane %v3989, %v3994
      %v3997 = vunpack.c.l.s4 1934713408
      %v3998 = vunpack.c.0.s8 %v3997
      %v3999 = vperm.slane %v3991, %v3998
      %v4000 = vrot.slane %v3963, 4
      %v4001 = vsel %vm3692, %v4000, %v3951
      %v4002 = vrot.slane %v3951, 4
      %v4003 = vsel %vm3692, %v3963, %v4002
      %v4005 = vunpack.c.l.s4 1934713408
      %v4006 = vunpack.c.0.s8 %v4005
      %v4007 = vperm.slane %v4001, %v4006
      %v4009 = vunpack.c.l.s4 1934713408
      %v4010 = vunpack.c.0.s8 %v4009
      %v4011 = vperm.slane %v4003, %v4010
      %v4012 = vrot.slane %v3995, 4
      %v4013 = vsel %vm3692, %v4012, %v3971
      %v4014 = vrot.slane %v3971, 4
      %v4015 = vsel %vm3692, %v3995, %v4014
      %v4016 = vrot.slane %v3999, 4
      %v4017 = vsel %vm3692, %v4016, %v3975
      %v4018 = vrot.slane %v3975, 4
      %v4019 = vsel %vm3692, %v3999, %v4018
      %v4020 = vrot.slane %v4007, 4
      %v4021 = vsel %vm3692, %v4020, %v3983
      %v4022 = vrot.slane %v3983, 4
      %v4023 = vsel %vm3692, %v4007, %v4022
      %v4024 = vrot.slane %v4011, 4
      %v4025 = vsel %vm3692, %v4024, %v3987
      %v4026 = vrot.slane %v3987, 4
      %v4027 = vsel %vm3692, %v4011, %v4026
      %v4028 = vrot.slane %v3502, 4
      %v4029 = vsel %vm3692, %v4028, %v3438
      %v4030 = vrot.slane %v3438, 4
      %v4031 = vsel %vm3692, %v3502, %v4030
      %v4033 = vunpack.c.l.s4 1983009808
      %v4034 = vunpack.c.0.s8 %v4033
      %v4035 = vperm.slane %v4029, %v4034
      %v4037 = vunpack.c.l.s4 1983009808
      %v4038 = vunpack.c.0.s8 %v4037
      %v4039 = vperm.slane %v4031, %v4038
      %v4040 = vrot.slane %v3534, 4
      %v4041 = vsel %vm3692, %v4040, %v3470
      %v4042 = vrot.slane %v3470, 4
      %v4043 = vsel %vm3692, %v3534, %v4042
      %v4045 = vunpack.c.l.s4 1983009808
      %v4046 = vunpack.c.0.s8 %v4045
      %v4047 = vperm.slane %v4041, %v4046
      %v4049 = vunpack.c.l.s4 1983009808
      %v4050 = vunpack.c.0.s8 %v4049
      %v4051 = vperm.slane %v4043, %v4050
      %v4052 = vrot.slane %v3630, 4
      %v4053 = vsel %vm3692, %v4052, %v3566
      %v4054 = vrot.slane %v3566, 4
      %v4055 = vsel %vm3692, %v3630, %v4054
      %v4057 = vunpack.c.l.s4 1983009808
      %v4058 = vunpack.c.0.s8 %v4057
      %v4059 = vperm.slane %v4053, %v4058
      %v4061 = vunpack.c.l.s4 1983009808
      %v4062 = vunpack.c.0.s8 %v4061
      %v4063 = vperm.slane %v4055, %v4062
      %v4064 = vrot.slane %v3662, 4
      %v4065 = vsel %vm3692, %v4064, %v3598
      %v4066 = vrot.slane %v3598, 4
      %v4067 = vsel %vm3692, %v3662, %v4066
      %v4069 = vunpack.c.l.s4 1983009808
      %v4070 = vunpack.c.0.s8 %v4069
      %v4071 = vperm.slane %v4065, %v4070
      %v4073 = vunpack.c.l.s4 1983009808
      %v4074 = vunpack.c.0.s8 %v4073
      %v4075 = vperm.slane %v4067, %v4074
      %v4076 = vrot.slane %v4047, 4
      %v4077 = vsel %vm3692, %v4076, %v4035
      %v4078 = vrot.slane %v4035, 4
      %v4079 = vsel %vm3692, %v4047, %v4078
      %v4081 = vunpack.c.l.s4 1934713408
      %v4082 = vunpack.c.0.s8 %v4081
      %v4083 = vperm.slane %v4077, %v4082
      %v4085 = vunpack.c.l.s4 1934713408
      %v4086 = vunpack.c.0.s8 %v4085
      %v4087 = vperm.slane %v4079, %v4086
      %v4088 = vrot.slane %v4051, 4
      %v4089 = vsel %vm3692, %v4088, %v4039
      %v4090 = vrot.slane %v4039, 4
      %v4091 = vsel %vm3692, %v4051, %v4090
      %v4093 = vunpack.c.l.s4 1934713408
      %v4094 = vunpack.c.0.s8 %v4093
      %v4095 = vperm.slane %v4089, %v4094
      %v4097 = vunpack.c.l.s4 1934713408
      %v4098 = vunpack.c.0.s8 %v4097
      %v4099 = vperm.slane %v4091, %v4098
      %v4100 = vrot.slane %v4071, 4
      %v4101 = vsel %vm3692, %v4100, %v4059
      %v4102 = vrot.slane %v4059, 4
      %v4103 = vsel %vm3692, %v4071, %v4102
      %v4105 = vunpack.c.l.s4 1934713408
      %v4106 = vunpack.c.0.s8 %v4105
      %v4107 = vperm.slane %v4101, %v4106
      %v4109 = vunpack.c.l.s4 1934713408
      %v4110 = vunpack.c.0.s8 %v4109
      %v4111 = vperm.slane %v4103, %v4110
      %v4112 = vrot.slane %v4075, 4
      %v4113 = vsel %vm3692, %v4112, %v4063
      %v4114 = vrot.slane %v4063, 4
      %v4115 = vsel %vm3692, %v4075, %v4114
      %v4117 = vunpack.c.l.s4 1934713408
      %v4118 = vunpack.c.0.s8 %v4117
      %v4119 = vperm.slane %v4113, %v4118
      %v4121 = vunpack.c.l.s4 1934713408
      %v4122 = vunpack.c.0.s8 %v4121
      %v4123 = vperm.slane %v4115, %v4122
      %v4124 = vrot.slane %v4107, 4
      %v4125 = vsel %vm3692, %v4124, %v4083
      %v4126 = vrot.slane %v4083, 4
      %v4127 = vsel %vm3692, %v4107, %v4126
      %v4128 = vrot.slane %v4111, 4
      %v4129 = vsel %vm3692, %v4128, %v4087
      %v4130 = vrot.slane %v4087, 4
      %v4131 = vsel %vm3692, %v4111, %v4130
      %v4132 = vrot.slane %v4119, 4
      %v4133 = vsel %vm3692, %v4132, %v4095
      %v4134 = vrot.slane %v4095, 4
      %v4135 = vsel %vm3692, %v4119, %v4134
      %v4136 = vrot.slane %v4123, 4
      %v4137 = vsel %vm3692, %v4136, %v4099
      %v4138 = vrot.slane %v4099, 4
      %v4139 = vsel %vm3692, %v4123, %v4138
      %v4140 = vrot.slane %v3503, 4
      %v4141 = vsel %vm3692, %v4140, %v3439
      %v4142 = vrot.slane %v3439, 4
      %v4143 = vsel %vm3692, %v3503, %v4142
      %v4145 = vunpack.c.l.s4 1983009808
      %v4146 = vunpack.c.0.s8 %v4145
      %v4147 = vperm.slane %v4141, %v4146
      %v4149 = vunpack.c.l.s4 1983009808
      %v4150 = vunpack.c.0.s8 %v4149
      %v4151 = vperm.slane %v4143, %v4150
      %v4152 = vrot.slane %v3535, 4
      %v4153 = vsel %vm3692, %v4152, %v3471
      %v4154 = vrot.slane %v3471, 4
      %v4155 = vsel %vm3692, %v3535, %v4154
      %v4157 = vunpack.c.l.s4 1983009808
      %v4158 = vunpack.c.0.s8 %v4157
      %v4159 = vperm.slane %v4153, %v4158
      %v4161 = vunpack.c.l.s4 1983009808
      %v4162 = vunpack.c.0.s8 %v4161
      %v4163 = vperm.slane %v4155, %v4162
      %v4164 = vrot.slane %v3631, 4
      %v4165 = vsel %vm3692, %v4164, %v3567
      %v4166 = vrot.slane %v3567, 4
      %v4167 = vsel %vm3692, %v3631, %v4166
      %v4169 = vunpack.c.l.s4 1983009808
      %v4170 = vunpack.c.0.s8 %v4169
      %v4171 = vperm.slane %v4165, %v4170
      %v4173 = vunpack.c.l.s4 1983009808
      %v4174 = vunpack.c.0.s8 %v4173
      %v4175 = vperm.slane %v4167, %v4174
      %v4176 = vrot.slane %v3663, 4
      %v4177 = vsel %vm3692, %v4176, %v3599
      %v4178 = vrot.slane %v3599, 4
      %v4179 = vsel %vm3692, %v3663, %v4178
      %v4181 = vunpack.c.l.s4 1983009808
      %v4182 = vunpack.c.0.s8 %v4181
      %v4183 = vperm.slane %v4177, %v4182
      %v4185 = vunpack.c.l.s4 1983009808
      %v4186 = vunpack.c.0.s8 %v4185
      %v4187 = vperm.slane %v4179, %v4186
      %v4188 = vrot.slane %v4159, 4
      %v4189 = vsel %vm3692, %v4188, %v4147
      %v4190 = vrot.slane %v4147, 4
      %v4191 = vsel %vm3692, %v4159, %v4190
      %v4193 = vunpack.c.l.s4 1934713408
      %v4194 = vunpack.c.0.s8 %v4193
      %v4195 = vperm.slane %v4189, %v4194
      %v4197 = vunpack.c.l.s4 1934713408
      %v4198 = vunpack.c.0.s8 %v4197
      %v4199 = vperm.slane %v4191, %v4198
      %v4200 = vrot.slane %v4163, 4
      %v4201 = vsel %vm3692, %v4200, %v4151
      %v4202 = vrot.slane %v4151, 4
      %v4203 = vsel %vm3692, %v4163, %v4202
      %v4205 = vunpack.c.l.s4 1934713408
      %v4206 = vunpack.c.0.s8 %v4205
      %v4207 = vperm.slane %v4201, %v4206
      %v4209 = vunpack.c.l.s4 1934713408
      %v4210 = vunpack.c.0.s8 %v4209
      %v4211 = vperm.slane %v4203, %v4210
      %v4212 = vrot.slane %v4183, 4
      %v4213 = vsel %vm3692, %v4212, %v4171
      %v4214 = vrot.slane %v4171, 4
      %v4215 = vsel %vm3692, %v4183, %v4214
      %v4217 = vunpack.c.l.s4 1934713408
      %v4218 = vunpack.c.0.s8 %v4217
      %v4219 = vperm.slane %v4213, %v4218
      %v4221 = vunpack.c.l.s4 1934713408
      %v4222 = vunpack.c.0.s8 %v4221
      %v4223 = vperm.slane %v4215, %v4222
      %v4224 = vrot.slane %v4187, 4
      %v4225 = vsel %vm3692, %v4224, %v4175
      %v4226 = vrot.slane %v4175, 4
      %v4227 = vsel %vm3692, %v4187, %v4226
      %v4229 = vunpack.c.l.s4 1934713408
      %v4230 = vunpack.c.0.s8 %v4229
      %v4231 = vperm.slane %v4225, %v4230
      %v4233 = vunpack.c.l.s4 1934713408
      %v4234 = vunpack.c.0.s8 %v4233
      %v4235 = vperm.slane %v4227, %v4234
      %v4236 = vrot.slane %v4219, 4
      %v4237 = vsel %vm3692, %v4236, %v4195
      %v4238 = vrot.slane %v4195, 4
      %v4239 = vsel %vm3692, %v4219, %v4238
      %v4240 = vrot.slane %v4223, 4
      %v4241 = vsel %vm3692, %v4240, %v4199
      %v4242 = vrot.slane %v4199, 4
      %v4243 = vsel %vm3692, %v4223, %v4242
      %v4244 = vrot.slane %v4231, 4
      %v4245 = vsel %vm3692, %v4244, %v4207
      %v4246 = vrot.slane %v4207, 4
      %v4247 = vsel %vm3692, %v4231, %v4246
      %v4248 = vrot.slane %v4235, 4
      %v4249 = vsel %vm3692, %v4248, %v4211
      %v4250 = vrot.slane %v4211, 4
      %v4251 = vsel %vm3692, %v4235, %v4250
      %v4252 = vrot.slane %v3504, 4
      %v4253 = vsel %vm3692, %v4252, %v3440
      %v4254 = vrot.slane %v3440, 4
      %v4255 = vsel %vm3692, %v3504, %v4254
      %v4257 = vunpack.c.l.s4 1983009808
      %v4258 = vunpack.c.0.s8 %v4257
      %v4259 = vperm.slane %v4253, %v4258
      %v4261 = vunpack.c.l.s4 1983009808
      %v4262 = vunpack.c.0.s8 %v4261
      %v4263 = vperm.slane %v4255, %v4262
      %v4264 = vrot.slane %v3536, 4
      %v4265 = vsel %vm3692, %v4264, %v3472
      %v4266 = vrot.slane %v3472, 4
      %v4267 = vsel %vm3692, %v3536, %v4266
      %v4269 = vunpack.c.l.s4 1983009808
      %v4270 = vunpack.c.0.s8 %v4269
      %v4271 = vperm.slane %v4265, %v4270
      %v4273 = vunpack.c.l.s4 1983009808
      %v4274 = vunpack.c.0.s8 %v4273
      %v4275 = vperm.slane %v4267, %v4274
      %v4276 = vrot.slane %v3632, 4
      %v4277 = vsel %vm3692, %v4276, %v3568
      %v4278 = vrot.slane %v3568, 4
      %v4279 = vsel %vm3692, %v3632, %v4278
      %v4281 = vunpack.c.l.s4 1983009808
      %v4282 = vunpack.c.0.s8 %v4281
      %v4283 = vperm.slane %v4277, %v4282
      %v4285 = vunpack.c.l.s4 1983009808
      %v4286 = vunpack.c.0.s8 %v4285
      %v4287 = vperm.slane %v4279, %v4286
      %v4288 = vrot.slane %v3664, 4
      %v4289 = vsel %vm3692, %v4288, %v3600
      %v4290 = vrot.slane %v3600, 4
      %v4291 = vsel %vm3692, %v3664, %v4290
      %v4293 = vunpack.c.l.s4 1983009808
      %v4294 = vunpack.c.0.s8 %v4293
      %v4295 = vperm.slane %v4289, %v4294
      %v4297 = vunpack.c.l.s4 1983009808
      %v4298 = vunpack.c.0.s8 %v4297
      %v4299 = vperm.slane %v4291, %v4298
      %v4300 = vrot.slane %v4271, 4
      %v4301 = vsel %vm3692, %v4300, %v4259
      %v4302 = vrot.slane %v4259, 4
      %v4303 = vsel %vm3692, %v4271, %v4302
      %v4305 = vunpack.c.l.s4 1934713408
      %v4306 = vunpack.c.0.s8 %v4305
      %v4307 = vperm.slane %v4301, %v4306
      %v4309 = vunpack.c.l.s4 1934713408
      %v4310 = vunpack.c.0.s8 %v4309
      %v4311 = vperm.slane %v4303, %v4310
      %v4312 = vrot.slane %v4275, 4
      %v4313 = vsel %vm3692, %v4312, %v4263
      %v4314 = vrot.slane %v4263, 4
      %v4315 = vsel %vm3692, %v4275, %v4314
      %v4317 = vunpack.c.l.s4 1934713408
      %v4318 = vunpack.c.0.s8 %v4317
      %v4319 = vperm.slane %v4313, %v4318
      %v4321 = vunpack.c.l.s4 1934713408
      %v4322 = vunpack.c.0.s8 %v4321
      %v4323 = vperm.slane %v4315, %v4322
      %v4324 = vrot.slane %v4295, 4
      %v4325 = vsel %vm3692, %v4324, %v4283
      %v4326 = vrot.slane %v4283, 4
      %v4327 = vsel %vm3692, %v4295, %v4326
      %v4329 = vunpack.c.l.s4 1934713408
      %v4330 = vunpack.c.0.s8 %v4329
      %v4331 = vperm.slane %v4325, %v4330
      %v4333 = vunpack.c.l.s4 1934713408
      %v4334 = vunpack.c.0.s8 %v4333
      %v4335 = vperm.slane %v4327, %v4334
      %v4336 = vrot.slane %v4299, 4
      %v4337 = vsel %vm3692, %v4336, %v4287
      %v4338 = vrot.slane %v4287, 4
      %v4339 = vsel %vm3692, %v4299, %v4338
      %v4341 = vunpack.c.l.s4 1934713408
      %v4342 = vunpack.c.0.s8 %v4341
      %v4343 = vperm.slane %v4337, %v4342
      %v4345 = vunpack.c.l.s4 1934713408
      %v4346 = vunpack.c.0.s8 %v4345
      %v4347 = vperm.slane %v4339, %v4346
      %v4348 = vrot.slane %v4331, 4
      %v4349 = vsel %vm3692, %v4348, %v4307
      %v4350 = vrot.slane %v4307, 4
      %v4351 = vsel %vm3692, %v4331, %v4350
      %v4352 = vrot.slane %v4335, 4
      %v4353 = vsel %vm3692, %v4352, %v4311
      %v4354 = vrot.slane %v4311, 4
      %v4355 = vsel %vm3692, %v4335, %v4354
      %v4356 = vrot.slane %v4343, 4
      %v4357 = vsel %vm3692, %v4356, %v4319
      %v4358 = vrot.slane %v4319, 4
      %v4359 = vsel %vm3692, %v4343, %v4358
      %v4360 = vrot.slane %v4347, 4
      %v4361 = vsel %vm3692, %v4360, %v4323
      %v4362 = vrot.slane %v4323, 4
      %v4363 = vsel %vm3692, %v4347, %v4362
      %v4364 = vrot.slane %v3505, 4
      %v4365 = vsel %vm3692, %v4364, %v3441
      %v4366 = vrot.slane %v3441, 4
      %v4367 = vsel %vm3692, %v3505, %v4366
      %v4369 = vunpack.c.l.s4 1983009808
      %v4370 = vunpack.c.0.s8 %v4369
      %v4371 = vperm.slane %v4365, %v4370
      %v4373 = vunpack.c.l.s4 1983009808
      %v4374 = vunpack.c.0.s8 %v4373
      %v4375 = vperm.slane %v4367, %v4374
      %v4376 = vrot.slane %v3537, 4
      %v4377 = vsel %vm3692, %v4376, %v3473
      %v4378 = vrot.slane %v3473, 4
      %v4379 = vsel %vm3692, %v3537, %v4378
      %v4381 = vunpack.c.l.s4 1983009808
      %v4382 = vunpack.c.0.s8 %v4381
      %v4383 = vperm.slane %v4377, %v4382
      %v4385 = vunpack.c.l.s4 1983009808
      %v4386 = vunpack.c.0.s8 %v4385
      %v4387 = vperm.slane %v4379, %v4386
      %v4388 = vrot.slane %v3633, 4
      %v4389 = vsel %vm3692, %v4388, %v3569
      %v4390 = vrot.slane %v3569, 4
      %v4391 = vsel %vm3692, %v3633, %v4390
      %v4393 = vunpack.c.l.s4 1983009808
      %v4394 = vunpack.c.0.s8 %v4393
      %v4395 = vperm.slane %v4389, %v4394
      %v4397 = vunpack.c.l.s4 1983009808
      %v4398 = vunpack.c.0.s8 %v4397
      %v4399 = vperm.slane %v4391, %v4398
      %v4400 = vrot.slane %v3665, 4
      %v4401 = vsel %vm3692, %v4400, %v3601
      %v4402 = vrot.slane %v3601, 4
      %v4403 = vsel %vm3692, %v3665, %v4402
      %v4405 = vunpack.c.l.s4 1983009808
      %v4406 = vunpack.c.0.s8 %v4405
      %v4407 = vperm.slane %v4401, %v4406
      %v4409 = vunpack.c.l.s4 1983009808
      %v4410 = vunpack.c.0.s8 %v4409
      %v4411 = vperm.slane %v4403, %v4410
      %v4412 = vrot.slane %v4383, 4
      %v4413 = vsel %vm3692, %v4412, %v4371
      %v4414 = vrot.slane %v4371, 4
      %v4415 = vsel %vm3692, %v4383, %v4414
      %v4417 = vunpack.c.l.s4 1934713408
      %v4418 = vunpack.c.0.s8 %v4417
      %v4419 = vperm.slane %v4413, %v4418
      %v4421 = vunpack.c.l.s4 1934713408
      %v4422 = vunpack.c.0.s8 %v4421
      %v4423 = vperm.slane %v4415, %v4422
      %v4424 = vrot.slane %v4387, 4
      %v4425 = vsel %vm3692, %v4424, %v4375
      %v4426 = vrot.slane %v4375, 4
      %v4427 = vsel %vm3692, %v4387, %v4426
      %v4429 = vunpack.c.l.s4 1934713408
      %v4430 = vunpack.c.0.s8 %v4429
      %v4431 = vperm.slane %v4425, %v4430
      %v4433 = vunpack.c.l.s4 1934713408
      %v4434 = vunpack.c.0.s8 %v4433
      %v4435 = vperm.slane %v4427, %v4434
      %v4436 = vrot.slane %v4407, 4
      %v4437 = vsel %vm3692, %v4436, %v4395
      %v4438 = vrot.slane %v4395, 4
      %v4439 = vsel %vm3692, %v4407, %v4438
      %v4441 = vunpack.c.l.s4 1934713408
      %v4442 = vunpack.c.0.s8 %v4441
      %v4443 = vperm.slane %v4437, %v4442
      %v4445 = vunpack.c.l.s4 1934713408
      %v4446 = vunpack.c.0.s8 %v4445
      %v4447 = vperm.slane %v4439, %v4446
      %v4448 = vrot.slane %v4411, 4
      %v4449 = vsel %vm3692, %v4448, %v4399
      %v4450 = vrot.slane %v4399, 4
      %v4451 = vsel %vm3692, %v4411, %v4450
      %v4453 = vunpack.c.l.s4 1934713408
      %v4454 = vunpack.c.0.s8 %v4453
      %v4455 = vperm.slane %v4449, %v4454
      %v4457 = vunpack.c.l.s4 1934713408
      %v4458 = vunpack.c.0.s8 %v4457
      %v4459 = vperm.slane %v4451, %v4458
      %v4460 = vrot.slane %v4443, 4
      %v4461 = vsel %vm3692, %v4460, %v4419
      %v4462 = vrot.slane %v4419, 4
      %v4463 = vsel %vm3692, %v4443, %v4462
      %v4464 = vrot.slane %v4447, 4
      %v4465 = vsel %vm3692, %v4464, %v4423
      %v4466 = vrot.slane %v4423, 4
      %v4467 = vsel %vm3692, %v4447, %v4466
      %v4468 = vrot.slane %v4455, 4
      %v4469 = vsel %vm3692, %v4468, %v4431
      %v4470 = vrot.slane %v4431, 4
      %v4471 = vsel %vm3692, %v4455, %v4470
      %v4472 = vrot.slane %v4459, 4
      %v4473 = vsel %vm3692, %v4472, %v4435
      %v4474 = vrot.slane %v4435, 4
      %v4475 = vsel %vm3692, %v4459, %v4474
      %v4476 = vrot.slane %v3506, 4
      %v4477 = vsel %vm3692, %v4476, %v3442
      %v4478 = vrot.slane %v3442, 4
      %v4479 = vsel %vm3692, %v3506, %v4478
      %v4481 = vunpack.c.l.s4 1983009808
      %v4482 = vunpack.c.0.s8 %v4481
      %v4483 = vperm.slane %v4477, %v4482
      %v4485 = vunpack.c.l.s4 1983009808
      %v4486 = vunpack.c.0.s8 %v4485
      %v4487 = vperm.slane %v4479, %v4486
      %v4488 = vrot.slane %v3538, 4
      %v4489 = vsel %vm3692, %v4488, %v3474
      %v4490 = vrot.slane %v3474, 4
      %v4491 = vsel %vm3692, %v3538, %v4490
      %v4493 = vunpack.c.l.s4 1983009808
      %v4494 = vunpack.c.0.s8 %v4493
      %v4495 = vperm.slane %v4489, %v4494
      %v4497 = vunpack.c.l.s4 1983009808
      %v4498 = vunpack.c.0.s8 %v4497
      %v4499 = vperm.slane %v4491, %v4498
      %v4500 = vrot.slane %v3634, 4
      %v4501 = vsel %vm3692, %v4500, %v3570
      %v4502 = vrot.slane %v3570, 4
      %v4503 = vsel %vm3692, %v3634, %v4502
      %v4505 = vunpack.c.l.s4 1983009808
      %v4506 = vunpack.c.0.s8 %v4505
      %v4507 = vperm.slane %v4501, %v4506
      %v4509 = vunpack.c.l.s4 1983009808
      %v4510 = vunpack.c.0.s8 %v4509
      %v4511 = vperm.slane %v4503, %v4510
      %v4512 = vrot.slane %v3666, 4
      %v4513 = vsel %vm3692, %v4512, %v3602
      %v4514 = vrot.slane %v3602, 4
      %v4515 = vsel %vm3692, %v3666, %v4514
      %v4517 = vunpack.c.l.s4 1983009808
      %v4518 = vunpack.c.0.s8 %v4517
      %v4519 = vperm.slane %v4513, %v4518
      %v4521 = vunpack.c.l.s4 1983009808
      %v4522 = vunpack.c.0.s8 %v4521
      %v4523 = vperm.slane %v4515, %v4522
      %v4524 = vrot.slane %v4495, 4
      %v4525 = vsel %vm3692, %v4524, %v4483
      %v4526 = vrot.slane %v4483, 4
      %v4527 = vsel %vm3692, %v4495, %v4526
      %v4529 = vunpack.c.l.s4 1934713408
      %v4530 = vunpack.c.0.s8 %v4529
      %v4531 = vperm.slane %v4525, %v4530
      %v4533 = vunpack.c.l.s4 1934713408
      %v4534 = vunpack.c.0.s8 %v4533
      %v4535 = vperm.slane %v4527, %v4534
      %v4536 = vrot.slane %v4499, 4
      %v4537 = vsel %vm3692, %v4536, %v4487
      %v4538 = vrot.slane %v4487, 4
      %v4539 = vsel %vm3692, %v4499, %v4538
      %v4541 = vunpack.c.l.s4 1934713408
      %v4542 = vunpack.c.0.s8 %v4541
      %v4543 = vperm.slane %v4537, %v4542
      %v4545 = vunpack.c.l.s4 1934713408
      %v4546 = vunpack.c.0.s8 %v4545
      %v4547 = vperm.slane %v4539, %v4546
      %v4548 = vrot.slane %v4519, 4
      %v4549 = vsel %vm3692, %v4548, %v4507
      %v4550 = vrot.slane %v4507, 4
      %v4551 = vsel %vm3692, %v4519, %v4550
      %v4553 = vunpack.c.l.s4 1934713408
      %v4554 = vunpack.c.0.s8 %v4553
      %v4555 = vperm.slane %v4549, %v4554
      %v4557 = vunpack.c.l.s4 1934713408
      %v4558 = vunpack.c.0.s8 %v4557
      %v4559 = vperm.slane %v4551, %v4558
      %v4560 = vrot.slane %v4523, 4
      %v4561 = vsel %vm3692, %v4560, %v4511
      %v4562 = vrot.slane %v4511, 4
      %v4563 = vsel %vm3692, %v4523, %v4562
      %v4565 = vunpack.c.l.s4 1934713408
      %v4566 = vunpack.c.0.s8 %v4565
      %v4567 = vperm.slane %v4561, %v4566
      %v4569 = vunpack.c.l.s4 1934713408
      %v4570 = vunpack.c.0.s8 %v4569
      %v4571 = vperm.slane %v4563, %v4570
      %v4572 = vrot.slane %v4555, 4
      %v4573 = vsel %vm3692, %v4572, %v4531
      %v4574 = vrot.slane %v4531, 4
      %v4575 = vsel %vm3692, %v4555, %v4574
      %v4576 = vrot.slane %v4559, 4
      %v4577 = vsel %vm3692, %v4576, %v4535
      %v4578 = vrot.slane %v4535, 4
      %v4579 = vsel %vm3692, %v4559, %v4578
      %v4580 = vrot.slane %v4567, 4
      %v4581 = vsel %vm3692, %v4580, %v4543
      %v4582 = vrot.slane %v4543, 4
      %v4583 = vsel %vm3692, %v4567, %v4582
      %v4584 = vrot.slane %v4571, 4
      %v4585 = vsel %vm3692, %v4584, %v4547
      %v4586 = vrot.slane %v4547, 4
      %v4587 = vsel %vm3692, %v4571, %v4586
      %v4588 = vrot.slane %v3507, 4
      %v4589 = vsel %vm3692, %v4588, %v3443
      %v4590 = vrot.slane %v3443, 4
      %v4591 = vsel %vm3692, %v3507, %v4590
      %v4593 = vunpack.c.l.s4 1983009808
      %v4594 = vunpack.c.0.s8 %v4593
      %v4595 = vperm.slane %v4589, %v4594
      %v4597 = vunpack.c.l.s4 1983009808
      %v4598 = vunpack.c.0.s8 %v4597
      %v4599 = vperm.slane %v4591, %v4598
      %v4600 = vrot.slane %v3539, 4
      %v4601 = vsel %vm3692, %v4600, %v3475
      %v4602 = vrot.slane %v3475, 4
      %v4603 = vsel %vm3692, %v3539, %v4602
      %v4605 = vunpack.c.l.s4 1983009808
      %v4606 = vunpack.c.0.s8 %v4605
      %v4607 = vperm.slane %v4601, %v4606
      %v4609 = vunpack.c.l.s4 1983009808
      %v4610 = vunpack.c.0.s8 %v4609
      %v4611 = vperm.slane %v4603, %v4610
      %v4612 = vrot.slane %v3635, 4
      %v4613 = vsel %vm3692, %v4612, %v3571
      %v4614 = vrot.slane %v3571, 4
      %v4615 = vsel %vm3692, %v3635, %v4614
      %v4617 = vunpack.c.l.s4 1983009808
      %v4618 = vunpack.c.0.s8 %v4617
      %v4619 = vperm.slane %v4613, %v4618
      %v4621 = vunpack.c.l.s4 1983009808
      %v4622 = vunpack.c.0.s8 %v4621
      %v4623 = vperm.slane %v4615, %v4622
      %v4624 = vrot.slane %v3667, 4
      %v4625 = vsel %vm3692, %v4624, %v3603
      %v4626 = vrot.slane %v3603, 4
      %v4627 = vsel %vm3692, %v3667, %v4626
      %v4629 = vunpack.c.l.s4 1983009808
      %v4630 = vunpack.c.0.s8 %v4629
      %v4631 = vperm.slane %v4625, %v4630
      %v4633 = vunpack.c.l.s4 1983009808
      %v4634 = vunpack.c.0.s8 %v4633
      %v4635 = vperm.slane %v4627, %v4634
      %v4636 = vrot.slane %v4607, 4
      %v4637 = vsel %vm3692, %v4636, %v4595
      %v4638 = vrot.slane %v4595, 4
      %v4639 = vsel %vm3692, %v4607, %v4638
      %v4641 = vunpack.c.l.s4 1934713408
      %v4642 = vunpack.c.0.s8 %v4641
      %v4643 = vperm.slane %v4637, %v4642
      %v4645 = vunpack.c.l.s4 1934713408
      %v4646 = vunpack.c.0.s8 %v4645
      %v4647 = vperm.slane %v4639, %v4646
      %v4648 = vrot.slane %v4611, 4
      %v4649 = vsel %vm3692, %v4648, %v4599
      %v4650 = vrot.slane %v4599, 4
      %v4651 = vsel %vm3692, %v4611, %v4650
      %v4653 = vunpack.c.l.s4 1934713408
      %v4654 = vunpack.c.0.s8 %v4653
      %v4655 = vperm.slane %v4649, %v4654
      %v4657 = vunpack.c.l.s4 1934713408
      %v4658 = vunpack.c.0.s8 %v4657
      %v4659 = vperm.slane %v4651, %v4658
      %v4660 = vrot.slane %v4631, 4
      %v4661 = vsel %vm3692, %v4660, %v4619
      %v4662 = vrot.slane %v4619, 4
      %v4663 = vsel %vm3692, %v4631, %v4662
      %v4665 = vunpack.c.l.s4 1934713408
      %v4666 = vunpack.c.0.s8 %v4665
      %v4667 = vperm.slane %v4661, %v4666
      %v4669 = vunpack.c.l.s4 1934713408
      %v4670 = vunpack.c.0.s8 %v4669
      %v4671 = vperm.slane %v4663, %v4670
      %v4672 = vrot.slane %v4635, 4
      %v4673 = vsel %vm3692, %v4672, %v4623
      %v4674 = vrot.slane %v4623, 4
      %v4675 = vsel %vm3692, %v4635, %v4674
      %v4677 = vunpack.c.l.s4 1934713408
      %v4678 = vunpack.c.0.s8 %v4677
      %v4679 = vperm.slane %v4673, %v4678
      %v4681 = vunpack.c.l.s4 1934713408
      %v4682 = vunpack.c.0.s8 %v4681
      %v4683 = vperm.slane %v4675, %v4682
      %v4684 = vrot.slane %v4667, 4
      %v4685 = vsel %vm3692, %v4684, %v4643
      %v4686 = vrot.slane %v4643, 4
      %v4687 = vsel %vm3692, %v4667, %v4686
      %v4688 = vrot.slane %v4671, 4
      %v4689 = vsel %vm3692, %v4688, %v4647
      %v4690 = vrot.slane %v4647, 4
      %v4691 = vsel %vm3692, %v4671, %v4690
      %v4692 = vrot.slane %v4679, 4
      %v4693 = vsel %vm3692, %v4692, %v4655
      %v4694 = vrot.slane %v4655, 4
      %v4695 = vsel %vm3692, %v4679, %v4694
      %v4696 = vrot.slane %v4683, 4
      %v4697 = vsel %vm3692, %v4696, %v4659
      %v4698 = vrot.slane %v4659, 4
      %v4699 = vsel %vm3692, %v4683, %v4698
      %v4700 = vrot.slane %v3508, 4
      %v4701 = vsel %vm3692, %v4700, %v3444
      %v4702 = vrot.slane %v3444, 4
      %v4703 = vsel %vm3692, %v3508, %v4702
      %v4705 = vunpack.c.l.s4 1983009808
      %v4706 = vunpack.c.0.s8 %v4705
      %v4707 = vperm.slane %v4701, %v4706
      %v4709 = vunpack.c.l.s4 1983009808
      %v4710 = vunpack.c.0.s8 %v4709
      %v4711 = vperm.slane %v4703, %v4710
      %v4712 = vrot.slane %v3540, 4
      %v4713 = vsel %vm3692, %v4712, %v3476
      %v4714 = vrot.slane %v3476, 4
      %v4715 = vsel %vm3692, %v3540, %v4714
      %v4717 = vunpack.c.l.s4 1983009808
      %v4718 = vunpack.c.0.s8 %v4717
      %v4719 = vperm.slane %v4713, %v4718
      %v4721 = vunpack.c.l.s4 1983009808
      %v4722 = vunpack.c.0.s8 %v4721
      %v4723 = vperm.slane %v4715, %v4722
      %v4724 = vrot.slane %v3636, 4
      %v4725 = vsel %vm3692, %v4724, %v3572
      %v4726 = vrot.slane %v3572, 4
      %v4727 = vsel %vm3692, %v3636, %v4726
      %v4729 = vunpack.c.l.s4 1983009808
      %v4730 = vunpack.c.0.s8 %v4729
      %v4731 = vperm.slane %v4725, %v4730
      %v4733 = vunpack.c.l.s4 1983009808
      %v4734 = vunpack.c.0.s8 %v4733
      %v4735 = vperm.slane %v4727, %v4734
      %v4736 = vrot.slane %v3668, 4
      %v4737 = vsel %vm3692, %v4736, %v3604
      %v4738 = vrot.slane %v3604, 4
      %v4739 = vsel %vm3692, %v3668, %v4738
      %v4741 = vunpack.c.l.s4 1983009808
      %v4742 = vunpack.c.0.s8 %v4741
      %v4743 = vperm.slane %v4737, %v4742
      %v4745 = vunpack.c.l.s4 1983009808
      %v4746 = vunpack.c.0.s8 %v4745
      %v4747 = vperm.slane %v4739, %v4746
      %v4748 = vrot.slane %v4719, 4
      %v4749 = vsel %vm3692, %v4748, %v4707
      %v4750 = vrot.slane %v4707, 4
      %v4751 = vsel %vm3692, %v4719, %v4750
      %v4753 = vunpack.c.l.s4 1934713408
      %v4754 = vunpack.c.0.s8 %v4753
      %v4755 = vperm.slane %v4749, %v4754
      %v4757 = vunpack.c.l.s4 1934713408
      %v4758 = vunpack.c.0.s8 %v4757
      %v4759 = vperm.slane %v4751, %v4758
      %v4760 = vrot.slane %v4723, 4
      %v4761 = vsel %vm3692, %v4760, %v4711
      %v4762 = vrot.slane %v4711, 4
      %v4763 = vsel %vm3692, %v4723, %v4762
      %v4765 = vunpack.c.l.s4 1934713408
      %v4766 = vunpack.c.0.s8 %v4765
      %v4767 = vperm.slane %v4761, %v4766
      %v4769 = vunpack.c.l.s4 1934713408
      %v4770 = vunpack.c.0.s8 %v4769
      %v4771 = vperm.slane %v4763, %v4770
      %v4772 = vrot.slane %v4743, 4
      %v4773 = vsel %vm3692, %v4772, %v4731
      %v4774 = vrot.slane %v4731, 4
      %v4775 = vsel %vm3692, %v4743, %v4774
      %v4777 = vunpack.c.l.s4 1934713408
      %v4778 = vunpack.c.0.s8 %v4777
      %v4779 = vperm.slane %v4773, %v4778
      %v4781 = vunpack.c.l.s4 1934713408
      %v4782 = vunpack.c.0.s8 %v4781
      %v4783 = vperm.slane %v4775, %v4782
      %v4784 = vrot.slane %v4747, 4
      %v4785 = vsel %vm3692, %v4784, %v4735
      %v4786 = vrot.slane %v4735, 4
      %v4787 = vsel %vm3692, %v4747, %v4786
      %v4789 = vunpack.c.l.s4 1934713408
      %v4790 = vunpack.c.0.s8 %v4789
      %v4791 = vperm.slane %v4785, %v4790
      %v4793 = vunpack.c.l.s4 1934713408
      %v4794 = vunpack.c.0.s8 %v4793
      %v4795 = vperm.slane %v4787, %v4794
      %v4796 = vrot.slane %v4779, 4
      %v4797 = vsel %vm3692, %v4796, %v4755
      %v4798 = vrot.slane %v4755, 4
      %v4799 = vsel %vm3692, %v4779, %v4798
      %v4800 = vrot.slane %v4783, 4
      %v4801 = vsel %vm3692, %v4800, %v4759
      %v4802 = vrot.slane %v4759, 4
      %v4803 = vsel %vm3692, %v4783, %v4802
      %v4804 = vrot.slane %v4791, 4
      %v4805 = vsel %vm3692, %v4804, %v4767
      %v4806 = vrot.slane %v4767, 4
      %v4807 = vsel %vm3692, %v4791, %v4806
      %v4808 = vrot.slane %v4795, 4
      %v4809 = vsel %vm3692, %v4808, %v4771
      %v4810 = vrot.slane %v4771, 4
      %v4811 = vsel %vm3692, %v4795, %v4810
      %v4812 = vrot.slane %v3509, 4
      %v4813 = vsel %vm3692, %v4812, %v3445
      %v4814 = vrot.slane %v3445, 4
      %v4815 = vsel %vm3692, %v3509, %v4814
      %v4817 = vunpack.c.l.s4 1983009808
      %v4818 = vunpack.c.0.s8 %v4817
      %v4819 = vperm.slane %v4813, %v4818
      %v4821 = vunpack.c.l.s4 1983009808
      %v4822 = vunpack.c.0.s8 %v4821
      %v4823 = vperm.slane %v4815, %v4822
      %v4824 = vrot.slane %v3541, 4
      %v4825 = vsel %vm3692, %v4824, %v3477
      %v4826 = vrot.slane %v3477, 4
      %v4827 = vsel %vm3692, %v3541, %v4826
      %v4829 = vunpack.c.l.s4 1983009808
      %v4830 = vunpack.c.0.s8 %v4829
      %v4831 = vperm.slane %v4825, %v4830
      %v4833 = vunpack.c.l.s4 1983009808
      %v4834 = vunpack.c.0.s8 %v4833
      %v4835 = vperm.slane %v4827, %v4834
      %v4836 = vrot.slane %v3637, 4
      %v4837 = vsel %vm3692, %v4836, %v3573
      %v4838 = vrot.slane %v3573, 4
      %v4839 = vsel %vm3692, %v3637, %v4838
      %v4841 = vunpack.c.l.s4 1983009808
      %v4842 = vunpack.c.0.s8 %v4841
      %v4843 = vperm.slane %v4837, %v4842
      %v4845 = vunpack.c.l.s4 1983009808
      %v4846 = vunpack.c.0.s8 %v4845
      %v4847 = vperm.slane %v4839, %v4846
      %v4848 = vrot.slane %v3669, 4
      %v4849 = vsel %vm3692, %v4848, %v3605
      %v4850 = vrot.slane %v3605, 4
      %v4851 = vsel %vm3692, %v3669, %v4850
      %v4853 = vunpack.c.l.s4 1983009808
      %v4854 = vunpack.c.0.s8 %v4853
      %v4855 = vperm.slane %v4849, %v4854
      %v4857 = vunpack.c.l.s4 1983009808
      %v4858 = vunpack.c.0.s8 %v4857
      %v4859 = vperm.slane %v4851, %v4858
      %v4860 = vrot.slane %v4831, 4
      %v4861 = vsel %vm3692, %v4860, %v4819
      %v4862 = vrot.slane %v4819, 4
      %v4863 = vsel %vm3692, %v4831, %v4862
      %v4865 = vunpack.c.l.s4 1934713408
      %v4866 = vunpack.c.0.s8 %v4865
      %v4867 = vperm.slane %v4861, %v4866
      %v4869 = vunpack.c.l.s4 1934713408
      %v4870 = vunpack.c.0.s8 %v4869
      %v4871 = vperm.slane %v4863, %v4870
      %v4872 = vrot.slane %v4835, 4
      %v4873 = vsel %vm3692, %v4872, %v4823
      %v4874 = vrot.slane %v4823, 4
      %v4875 = vsel %vm3692, %v4835, %v4874
      %v4877 = vunpack.c.l.s4 1934713408
      %v4878 = vunpack.c.0.s8 %v4877
      %v4879 = vperm.slane %v4873, %v4878
      %v4881 = vunpack.c.l.s4 1934713408
      %v4882 = vunpack.c.0.s8 %v4881
      %v4883 = vperm.slane %v4875, %v4882
      %v4884 = vrot.slane %v4855, 4
      %v4885 = vsel %vm3692, %v4884, %v4843
      %v4886 = vrot.slane %v4843, 4
      %v4887 = vsel %vm3692, %v4855, %v4886
      %v4889 = vunpack.c.l.s4 1934713408
      %v4890 = vunpack.c.0.s8 %v4889
      %v4891 = vperm.slane %v4885, %v4890
      %v4893 = vunpack.c.l.s4 1934713408
      %v4894 = vunpack.c.0.s8 %v4893
      %v4895 = vperm.slane %v4887, %v4894
      %v4896 = vrot.slane %v4859, 4
      %v4897 = vsel %vm3692, %v4896, %v4847
      %v4898 = vrot.slane %v4847, 4
      %v4899 = vsel %vm3692, %v4859, %v4898
      %v4901 = vunpack.c.l.s4 1934713408
      %v4902 = vunpack.c.0.s8 %v4901
      %v4903 = vperm.slane %v4897, %v4902
      %v4905 = vunpack.c.l.s4 1934713408
      %v4906 = vunpack.c.0.s8 %v4905
      %v4907 = vperm.slane %v4899, %v4906
      %v4908 = vrot.slane %v4891, 4
      %v4909 = vsel %vm3692, %v4908, %v4867
      %v4910 = vrot.slane %v4867, 4
      %v4911 = vsel %vm3692, %v4891, %v4910
      %v4912 = vrot.slane %v4895, 4
      %v4913 = vsel %vm3692, %v4912, %v4871
      %v4914 = vrot.slane %v4871, 4
      %v4915 = vsel %vm3692, %v4895, %v4914
      %v4916 = vrot.slane %v4903, 4
      %v4917 = vsel %vm3692, %v4916, %v4879
      %v4918 = vrot.slane %v4879, 4
      %v4919 = vsel %vm3692, %v4903, %v4918
      %v4920 = vrot.slane %v4907, 4
      %v4921 = vsel %vm3692, %v4920, %v4883
      %v4922 = vrot.slane %v4883, 4
      %v4923 = vsel %vm3692, %v4907, %v4922
      %v4924 = vrot.slane %v3510, 4
      %v4925 = vsel %vm3692, %v4924, %v3446
      %v4926 = vrot.slane %v3446, 4
      %v4927 = vsel %vm3692, %v3510, %v4926
      %v4929 = vunpack.c.l.s4 1983009808
      %v4930 = vunpack.c.0.s8 %v4929
      %v4931 = vperm.slane %v4925, %v4930
      %v4933 = vunpack.c.l.s4 1983009808
      %v4934 = vunpack.c.0.s8 %v4933
      %v4935 = vperm.slane %v4927, %v4934
      %v4936 = vrot.slane %v3542, 4
      %v4937 = vsel %vm3692, %v4936, %v3478
      %v4938 = vrot.slane %v3478, 4
      %v4939 = vsel %vm3692, %v3542, %v4938
      %v4941 = vunpack.c.l.s4 1983009808
      %v4942 = vunpack.c.0.s8 %v4941
      %v4943 = vperm.slane %v4937, %v4942
      %v4945 = vunpack.c.l.s4 1983009808
      %v4946 = vunpack.c.0.s8 %v4945
      %v4947 = vperm.slane %v4939, %v4946
      %v4948 = vrot.slane %v3638, 4
      %v4949 = vsel %vm3692, %v4948, %v3574
      %v4950 = vrot.slane %v3574, 4
      %v4951 = vsel %vm3692, %v3638, %v4950
      %v4953 = vunpack.c.l.s4 1983009808
      %v4954 = vunpack.c.0.s8 %v4953
      %v4955 = vperm.slane %v4949, %v4954
      %v4957 = vunpack.c.l.s4 1983009808
      %v4958 = vunpack.c.0.s8 %v4957
      %v4959 = vperm.slane %v4951, %v4958
      %v4960 = vrot.slane %v3670, 4
      %v4961 = vsel %vm3692, %v4960, %v3606
      %v4962 = vrot.slane %v3606, 4
      %v4963 = vsel %vm3692, %v3670, %v4962
      %v4965 = vunpack.c.l.s4 1983009808
      %v4966 = vunpack.c.0.s8 %v4965
      %v4967 = vperm.slane %v4961, %v4966
      %v4969 = vunpack.c.l.s4 1983009808
      %v4970 = vunpack.c.0.s8 %v4969
      %v4971 = vperm.slane %v4963, %v4970
      %v4972 = vrot.slane %v4943, 4
      %v4973 = vsel %vm3692, %v4972, %v4931
      %v4974 = vrot.slane %v4931, 4
      %v4975 = vsel %vm3692, %v4943, %v4974
      %v4977 = vunpack.c.l.s4 1934713408
      %v4978 = vunpack.c.0.s8 %v4977
      %v4979 = vperm.slane %v4973, %v4978
      %v4981 = vunpack.c.l.s4 1934713408
      %v4982 = vunpack.c.0.s8 %v4981
      %v4983 = vperm.slane %v4975, %v4982
      %v4984 = vrot.slane %v4947, 4
      %v4985 = vsel %vm3692, %v4984, %v4935
      %v4986 = vrot.slane %v4935, 4
      %v4987 = vsel %vm3692, %v4947, %v4986
      %v4989 = vunpack.c.l.s4 1934713408
      %v4990 = vunpack.c.0.s8 %v4989
      %v4991 = vperm.slane %v4985, %v4990
      %v4993 = vunpack.c.l.s4 1934713408
      %v4994 = vunpack.c.0.s8 %v4993
      %v4995 = vperm.slane %v4987, %v4994
      %v4996 = vrot.slane %v4967, 4
      %v4997 = vsel %vm3692, %v4996, %v4955
      %v4998 = vrot.slane %v4955, 4
      %v4999 = vsel %vm3692, %v4967, %v4998
      %v5001 = vunpack.c.l.s4 1934713408
      %v5002 = vunpack.c.0.s8 %v5001
      %v5003 = vperm.slane %v4997, %v5002
      %v5005 = vunpack.c.l.s4 1934713408
      %v5006 = vunpack.c.0.s8 %v5005
      %v5007 = vperm.slane %v4999, %v5006
      %v5008 = vrot.slane %v4971, 4
      %v5009 = vsel %vm3692, %v5008, %v4959
      %v5010 = vrot.slane %v4959, 4
      %v5011 = vsel %vm3692, %v4971, %v5010
      %v5013 = vunpack.c.l.s4 1934713408
      %v5014 = vunpack.c.0.s8 %v5013
      %v5015 = vperm.slane %v5009, %v5014
      %v5017 = vunpack.c.l.s4 1934713408
      %v5018 = vunpack.c.0.s8 %v5017
      %v5019 = vperm.slane %v5011, %v5018
      %v5020 = vrot.slane %v5003, 4
      %v5021 = vsel %vm3692, %v5020, %v4979
      %v5022 = vrot.slane %v4979, 4
      %v5023 = vsel %vm3692, %v5003, %v5022
      %v5024 = vrot.slane %v5007, 4
      %v5025 = vsel %vm3692, %v5024, %v4983
      %v5026 = vrot.slane %v4983, 4
      %v5027 = vsel %vm3692, %v5007, %v5026
      %v5028 = vrot.slane %v5015, 4
      %v5029 = vsel %vm3692, %v5028, %v4991
      %v5030 = vrot.slane %v4991, 4
      %v5031 = vsel %vm3692, %v5015, %v5030
      %v5032 = vrot.slane %v5019, 4
      %v5033 = vsel %vm3692, %v5032, %v4995
      %v5034 = vrot.slane %v4995, 4
      %v5035 = vsel %vm3692, %v5019, %v5034
      %v5036 = vrot.slane %v3511, 4
      %v5037 = vsel %vm3692, %v5036, %v3447
      %v5038 = vrot.slane %v3447, 4
      %v5039 = vsel %vm3692, %v3511, %v5038
      %v5041 = vunpack.c.l.s4 1983009808
      %v5042 = vunpack.c.0.s8 %v5041
      %v5043 = vperm.slane %v5037, %v5042
      %v5045 = vunpack.c.l.s4 1983009808
      %v5046 = vunpack.c.0.s8 %v5045
      %v5047 = vperm.slane %v5039, %v5046
      %v5048 = vrot.slane %v3543, 4
      %v5049 = vsel %vm3692, %v5048, %v3479
      %v5050 = vrot.slane %v3479, 4
      %v5051 = vsel %vm3692, %v3543, %v5050
      %v5053 = vunpack.c.l.s4 1983009808
      %v5054 = vunpack.c.0.s8 %v5053
      %v5055 = vperm.slane %v5049, %v5054
      %v5057 = vunpack.c.l.s4 1983009808
      %v5058 = vunpack.c.0.s8 %v5057
      %v5059 = vperm.slane %v5051, %v5058
      %v5060 = vrot.slane %v3639, 4
      %v5061 = vsel %vm3692, %v5060, %v3575
      %v5062 = vrot.slane %v3575, 4
      %v5063 = vsel %vm3692, %v3639, %v5062
      %v5065 = vunpack.c.l.s4 1983009808
      %v5066 = vunpack.c.0.s8 %v5065
      %v5067 = vperm.slane %v5061, %v5066
      %v5069 = vunpack.c.l.s4 1983009808
      %v5070 = vunpack.c.0.s8 %v5069
      %v5071 = vperm.slane %v5063, %v5070
      %v5072 = vrot.slane %v3671, 4
      %v5073 = vsel %vm3692, %v5072, %v3607
      %v5074 = vrot.slane %v3607, 4
      %v5075 = vsel %vm3692, %v3671, %v5074
      %v5077 = vunpack.c.l.s4 1983009808
      %v5078 = vunpack.c.0.s8 %v5077
      %v5079 = vperm.slane %v5073, %v5078
      %v5081 = vunpack.c.l.s4 1983009808
      %v5082 = vunpack.c.0.s8 %v5081
      %v5083 = vperm.slane %v5075, %v5082
      %v5084 = vrot.slane %v5055, 4
      %v5085 = vsel %vm3692, %v5084, %v5043
      %v5086 = vrot.slane %v5043, 4
      %v5087 = vsel %vm3692, %v5055, %v5086
      %v5089 = vunpack.c.l.s4 1934713408
      %v5090 = vunpack.c.0.s8 %v5089
      %v5091 = vperm.slane %v5085, %v5090
      %v5093 = vunpack.c.l.s4 1934713408
      %v5094 = vunpack.c.0.s8 %v5093
      %v5095 = vperm.slane %v5087, %v5094
      %v5096 = vrot.slane %v5059, 4
      %v5097 = vsel %vm3692, %v5096, %v5047
      %v5098 = vrot.slane %v5047, 4
      %v5099 = vsel %vm3692, %v5059, %v5098
      %v5101 = vunpack.c.l.s4 1934713408
      %v5102 = vunpack.c.0.s8 %v5101
      %v5103 = vperm.slane %v5097, %v5102
      %v5105 = vunpack.c.l.s4 1934713408
      %v5106 = vunpack.c.0.s8 %v5105
      %v5107 = vperm.slane %v5099, %v5106
      %v5108 = vrot.slane %v5079, 4
      %v5109 = vsel %vm3692, %v5108, %v5067
      %v5110 = vrot.slane %v5067, 4
      %v5111 = vsel %vm3692, %v5079, %v5110
      %v5113 = vunpack.c.l.s4 1934713408
      %v5114 = vunpack.c.0.s8 %v5113
      %v5115 = vperm.slane %v5109, %v5114
      %v5117 = vunpack.c.l.s4 1934713408
      %v5118 = vunpack.c.0.s8 %v5117
      %v5119 = vperm.slane %v5111, %v5118
      %v5120 = vrot.slane %v5083, 4
      %v5121 = vsel %vm3692, %v5120, %v5071
      %v5122 = vrot.slane %v5071, 4
      %v5123 = vsel %vm3692, %v5083, %v5122
      %v5125 = vunpack.c.l.s4 1934713408
      %v5126 = vunpack.c.0.s8 %v5125
      %v5127 = vperm.slane %v5121, %v5126
      %v5129 = vunpack.c.l.s4 1934713408
      %v5130 = vunpack.c.0.s8 %v5129
      %v5131 = vperm.slane %v5123, %v5130
      %v5132 = vrot.slane %v5115, 4
      %v5133 = vsel %vm3692, %v5132, %v5091
      %v5134 = vrot.slane %v5091, 4
      %v5135 = vsel %vm3692, %v5115, %v5134
      %v5136 = vrot.slane %v5119, 4
      %v5137 = vsel %vm3692, %v5136, %v5095
      %v5138 = vrot.slane %v5095, 4
      %v5139 = vsel %vm3692, %v5119, %v5138
      %v5140 = vrot.slane %v5127, 4
      %v5141 = vsel %vm3692, %v5140, %v5103
      %v5142 = vrot.slane %v5103, 4
      %v5143 = vsel %vm3692, %v5127, %v5142
      %v5144 = vrot.slane %v5131, 4
      %v5145 = vsel %vm3692, %v5144, %v5107
      %v5146 = vrot.slane %v5107, 4
      %v5147 = vsel %vm3692, %v5131, %v5146
      %v5148 = vrot.slane %v3512, 4
      %v5149 = vsel %vm3692, %v5148, %v3448
      %v5150 = vrot.slane %v3448, 4
      %v5151 = vsel %vm3692, %v3512, %v5150
      %v5153 = vunpack.c.l.s4 1983009808
      %v5154 = vunpack.c.0.s8 %v5153
      %v5155 = vperm.slane %v5149, %v5154
      %v5157 = vunpack.c.l.s4 1983009808
      %v5158 = vunpack.c.0.s8 %v5157
      %v5159 = vperm.slane %v5151, %v5158
      %v5160 = vrot.slane %v3544, 4
      %v5161 = vsel %vm3692, %v5160, %v3480
      %v5162 = vrot.slane %v3480, 4
      %v5163 = vsel %vm3692, %v3544, %v5162
      %v5165 = vunpack.c.l.s4 1983009808
      %v5166 = vunpack.c.0.s8 %v5165
      %v5167 = vperm.slane %v5161, %v5166
      %v5169 = vunpack.c.l.s4 1983009808
      %v5170 = vunpack.c.0.s8 %v5169
      %v5171 = vperm.slane %v5163, %v5170
      %v5172 = vrot.slane %v3640, 4
      %v5173 = vsel %vm3692, %v5172, %v3576
      %v5174 = vrot.slane %v3576, 4
      %v5175 = vsel %vm3692, %v3640, %v5174
      %v5177 = vunpack.c.l.s4 1983009808
      %v5178 = vunpack.c.0.s8 %v5177
      %v5179 = vperm.slane %v5173, %v5178
      %v5181 = vunpack.c.l.s4 1983009808
      %v5182 = vunpack.c.0.s8 %v5181
      %v5183 = vperm.slane %v5175, %v5182
      %v5184 = vrot.slane %v3672, 4
      %v5185 = vsel %vm3692, %v5184, %v3608
      %v5186 = vrot.slane %v3608, 4
      %v5187 = vsel %vm3692, %v3672, %v5186
      %v5189 = vunpack.c.l.s4 1983009808
      %v5190 = vunpack.c.0.s8 %v5189
      %v5191 = vperm.slane %v5185, %v5190
      %v5193 = vunpack.c.l.s4 1983009808
      %v5194 = vunpack.c.0.s8 %v5193
      %v5195 = vperm.slane %v5187, %v5194
      %v5196 = vrot.slane %v5167, 4
      %v5197 = vsel %vm3692, %v5196, %v5155
      %v5198 = vrot.slane %v5155, 4
      %v5199 = vsel %vm3692, %v5167, %v5198
      %v5201 = vunpack.c.l.s4 1934713408
      %v5202 = vunpack.c.0.s8 %v5201
      %v5203 = vperm.slane %v5197, %v5202
      %v5205 = vunpack.c.l.s4 1934713408
      %v5206 = vunpack.c.0.s8 %v5205
      %v5207 = vperm.slane %v5199, %v5206
      %v5208 = vrot.slane %v5171, 4
      %v5209 = vsel %vm3692, %v5208, %v5159
      %v5210 = vrot.slane %v5159, 4
      %v5211 = vsel %vm3692, %v5171, %v5210
      %v5213 = vunpack.c.l.s4 1934713408
      %v5214 = vunpack.c.0.s8 %v5213
      %v5215 = vperm.slane %v5209, %v5214
      %v5217 = vunpack.c.l.s4 1934713408
      %v5218 = vunpack.c.0.s8 %v5217
      %v5219 = vperm.slane %v5211, %v5218
      %v5220 = vrot.slane %v5191, 4
      %v5221 = vsel %vm3692, %v5220, %v5179
      %v5222 = vrot.slane %v5179, 4
      %v5223 = vsel %vm3692, %v5191, %v5222
      %v5225 = vunpack.c.l.s4 1934713408
      %v5226 = vunpack.c.0.s8 %v5225
      %v5227 = vperm.slane %v5221, %v5226
      %v5229 = vunpack.c.l.s4 1934713408
      %v5230 = vunpack.c.0.s8 %v5229
      %v5231 = vperm.slane %v5223, %v5230
      %v5232 = vrot.slane %v5195, 4
      %v5233 = vsel %vm3692, %v5232, %v5183
      %v5234 = vrot.slane %v5183, 4
      %v5235 = vsel %vm3692, %v5195, %v5234
      %v5237 = vunpack.c.l.s4 1934713408
      %v5238 = vunpack.c.0.s8 %v5237
      %v5239 = vperm.slane %v5233, %v5238
      %v5241 = vunpack.c.l.s4 1934713408
      %v5242 = vunpack.c.0.s8 %v5241
      %v5243 = vperm.slane %v5235, %v5242
      %v5244 = vrot.slane %v5227, 4
      %v5245 = vsel %vm3692, %v5244, %v5203
      %v5246 = vrot.slane %v5203, 4
      %v5247 = vsel %vm3692, %v5227, %v5246
      %v5248 = vrot.slane %v5231, 4
      %v5249 = vsel %vm3692, %v5248, %v5207
      %v5250 = vrot.slane %v5207, 4
      %v5251 = vsel %vm3692, %v5231, %v5250
      %v5252 = vrot.slane %v5239, 4
      %v5253 = vsel %vm3692, %v5252, %v5215
      %v5254 = vrot.slane %v5215, 4
      %v5255 = vsel %vm3692, %v5239, %v5254
      %v5256 = vrot.slane %v5243, 4
      %v5257 = vsel %vm3692, %v5256, %v5219
      %v5258 = vrot.slane %v5219, 4
      %v5259 = vsel %vm3692, %v5243, %v5258
      %v5260 = vrot.slane %v3513, 4
      %v5261 = vsel %vm3692, %v5260, %v3449
      %v5262 = vrot.slane %v3449, 4
      %v5263 = vsel %vm3692, %v3513, %v5262
      %v5265 = vunpack.c.l.s4 1983009808
      %v5266 = vunpack.c.0.s8 %v5265
      %v5267 = vperm.slane %v5261, %v5266
      %v5269 = vunpack.c.l.s4 1983009808
      %v5270 = vunpack.c.0.s8 %v5269
      %v5271 = vperm.slane %v5263, %v5270
      %v5272 = vrot.slane %v3545, 4
      %v5273 = vsel %vm3692, %v5272, %v3481
      %v5274 = vrot.slane %v3481, 4
      %v5275 = vsel %vm3692, %v3545, %v5274
      %v5277 = vunpack.c.l.s4 1983009808
      %v5278 = vunpack.c.0.s8 %v5277
      %v5279 = vperm.slane %v5273, %v5278
      %v5281 = vunpack.c.l.s4 1983009808
      %v5282 = vunpack.c.0.s8 %v5281
      %v5283 = vperm.slane %v5275, %v5282
      %v5284 = vrot.slane %v3641, 4
      %v5285 = vsel %vm3692, %v5284, %v3577
      %v5286 = vrot.slane %v3577, 4
      %v5287 = vsel %vm3692, %v3641, %v5286
      %v5289 = vunpack.c.l.s4 1983009808
      %v5290 = vunpack.c.0.s8 %v5289
      %v5291 = vperm.slane %v5285, %v5290
      %v5293 = vunpack.c.l.s4 1983009808
      %v5294 = vunpack.c.0.s8 %v5293
      %v5295 = vperm.slane %v5287, %v5294
      %v5296 = vrot.slane %v3673, 4
      %v5297 = vsel %vm3692, %v5296, %v3609
      %v5298 = vrot.slane %v3609, 4
      %v5299 = vsel %vm3692, %v3673, %v5298
      %v5301 = vunpack.c.l.s4 1983009808
      %v5302 = vunpack.c.0.s8 %v5301
      %v5303 = vperm.slane %v5297, %v5302
      %v5305 = vunpack.c.l.s4 1983009808
      %v5306 = vunpack.c.0.s8 %v5305
      %v5307 = vperm.slane %v5299, %v5306
      %v5308 = vrot.slane %v5279, 4
      %v5309 = vsel %vm3692, %v5308, %v5267
      %v5310 = vrot.slane %v5267, 4
      %v5311 = vsel %vm3692, %v5279, %v5310
      %v5313 = vunpack.c.l.s4 1934713408
      %v5314 = vunpack.c.0.s8 %v5313
      %v5315 = vperm.slane %v5309, %v5314
      %v5317 = vunpack.c.l.s4 1934713408
      %v5318 = vunpack.c.0.s8 %v5317
      %v5319 = vperm.slane %v5311, %v5318
      %v5320 = vrot.slane %v5283, 4
      %v5321 = vsel %vm3692, %v5320, %v5271
      %v5322 = vrot.slane %v5271, 4
      %v5323 = vsel %vm3692, %v5283, %v5322
      %v5325 = vunpack.c.l.s4 1934713408
      %v5326 = vunpack.c.0.s8 %v5325
      %v5327 = vperm.slane %v5321, %v5326
      %v5329 = vunpack.c.l.s4 1934713408
      %v5330 = vunpack.c.0.s8 %v5329
      %v5331 = vperm.slane %v5323, %v5330
      %v5332 = vrot.slane %v5303, 4
      %v5333 = vsel %vm3692, %v5332, %v5291
      %v5334 = vrot.slane %v5291, 4
      %v5335 = vsel %vm3692, %v5303, %v5334
      %v5337 = vunpack.c.l.s4 1934713408
      %v5338 = vunpack.c.0.s8 %v5337
      %v5339 = vperm.slane %v5333, %v5338
      %v5341 = vunpack.c.l.s4 1934713408
      %v5342 = vunpack.c.0.s8 %v5341
      %v5343 = vperm.slane %v5335, %v5342
      %v5344 = vrot.slane %v5307, 4
      %v5345 = vsel %vm3692, %v5344, %v5295
      %v5346 = vrot.slane %v5295, 4
      %v5347 = vsel %vm3692, %v5307, %v5346
      %v5349 = vunpack.c.l.s4 1934713408
      %v5350 = vunpack.c.0.s8 %v5349
      %v5351 = vperm.slane %v5345, %v5350
      %v5353 = vunpack.c.l.s4 1934713408
      %v5354 = vunpack.c.0.s8 %v5353
      %v5355 = vperm.slane %v5347, %v5354
      %v5356 = vrot.slane %v5339, 4
      %v5357 = vsel %vm3692, %v5356, %v5315
      %v5358 = vrot.slane %v5315, 4
      %v5359 = vsel %vm3692, %v5339, %v5358
      %v5360 = vrot.slane %v5343, 4
      %v5361 = vsel %vm3692, %v5360, %v5319
      %v5362 = vrot.slane %v5319, 4
      %v5363 = vsel %vm3692, %v5343, %v5362
      %v5364 = vrot.slane %v5351, 4
      %v5365 = vsel %vm3692, %v5364, %v5327
      %v5366 = vrot.slane %v5327, 4
      %v5367 = vsel %vm3692, %v5351, %v5366
      %v5368 = vrot.slane %v5355, 4
      %v5369 = vsel %vm3692, %v5368, %v5331
      %v5370 = vrot.slane %v5331, 4
      %v5371 = vsel %vm3692, %v5355, %v5370
      %v5372 = vrot.slane %v3514, 4
      %v5373 = vsel %vm3692, %v5372, %v3450
      %v5374 = vrot.slane %v3450, 4
      %v5375 = vsel %vm3692, %v3514, %v5374
      %v5377 = vunpack.c.l.s4 1983009808
      %v5378 = vunpack.c.0.s8 %v5377
      %v5379 = vperm.slane %v5373, %v5378
      %v5381 = vunpack.c.l.s4 1983009808
      %v5382 = vunpack.c.0.s8 %v5381
      %v5383 = vperm.slane %v5375, %v5382
      %v5384 = vrot.slane %v3546, 4
      %v5385 = vsel %vm3692, %v5384, %v3482
      %v5386 = vrot.slane %v3482, 4
      %v5387 = vsel %vm3692, %v3546, %v5386
      %v5389 = vunpack.c.l.s4 1983009808
      %v5390 = vunpack.c.0.s8 %v5389
      %v5391 = vperm.slane %v5385, %v5390
      %v5393 = vunpack.c.l.s4 1983009808
      %v5394 = vunpack.c.0.s8 %v5393
      %v5395 = vperm.slane %v5387, %v5394
      %v5396 = vrot.slane %v3642, 4
      %v5397 = vsel %vm3692, %v5396, %v3578
      %v5398 = vrot.slane %v3578, 4
      %v5399 = vsel %vm3692, %v3642, %v5398
      %v5401 = vunpack.c.l.s4 1983009808
      %v5402 = vunpack.c.0.s8 %v5401
      %v5403 = vperm.slane %v5397, %v5402
      %v5405 = vunpack.c.l.s4 1983009808
      %v5406 = vunpack.c.0.s8 %v5405
      %v5407 = vperm.slane %v5399, %v5406
      %v5408 = vrot.slane %v3674, 4
      %v5409 = vsel %vm3692, %v5408, %v3610
      %v5410 = vrot.slane %v3610, 4
      %v5411 = vsel %vm3692, %v3674, %v5410
      %v5413 = vunpack.c.l.s4 1983009808
      %v5414 = vunpack.c.0.s8 %v5413
      %v5415 = vperm.slane %v5409, %v5414
      %v5417 = vunpack.c.l.s4 1983009808
      %v5418 = vunpack.c.0.s8 %v5417
      %v5419 = vperm.slane %v5411, %v5418
      %v5420 = vrot.slane %v5391, 4
      %v5421 = vsel %vm3692, %v5420, %v5379
      %v5422 = vrot.slane %v5379, 4
      %v5423 = vsel %vm3692, %v5391, %v5422
      %v5425 = vunpack.c.l.s4 1934713408
      %v5426 = vunpack.c.0.s8 %v5425
      %v5427 = vperm.slane %v5421, %v5426
      %v5429 = vunpack.c.l.s4 1934713408
      %v5430 = vunpack.c.0.s8 %v5429
      %v5431 = vperm.slane %v5423, %v5430
      %v5432 = vrot.slane %v5395, 4
      %v5433 = vsel %vm3692, %v5432, %v5383
      %v5434 = vrot.slane %v5383, 4
      %v5435 = vsel %vm3692, %v5395, %v5434
      %v5437 = vunpack.c.l.s4 1934713408
      %v5438 = vunpack.c.0.s8 %v5437
      %v5439 = vperm.slane %v5433, %v5438
      %v5441 = vunpack.c.l.s4 1934713408
      %v5442 = vunpack.c.0.s8 %v5441
      %v5443 = vperm.slane %v5435, %v5442
      %v5444 = vrot.slane %v5415, 4
      %v5445 = vsel %vm3692, %v5444, %v5403
      %v5446 = vrot.slane %v5403, 4
      %v5447 = vsel %vm3692, %v5415, %v5446
      %v5449 = vunpack.c.l.s4 1934713408
      %v5450 = vunpack.c.0.s8 %v5449
      %v5451 = vperm.slane %v5445, %v5450
      %v5453 = vunpack.c.l.s4 1934713408
      %v5454 = vunpack.c.0.s8 %v5453
      %v5455 = vperm.slane %v5447, %v5454
      %v5456 = vrot.slane %v5419, 4
      %v5457 = vsel %vm3692, %v5456, %v5407
      %v5458 = vrot.slane %v5407, 4
      %v5459 = vsel %vm3692, %v5419, %v5458
      %v5461 = vunpack.c.l.s4 1934713408
      %v5462 = vunpack.c.0.s8 %v5461
      %v5463 = vperm.slane %v5457, %v5462
      %v5465 = vunpack.c.l.s4 1934713408
      %v5466 = vunpack.c.0.s8 %v5465
      %v5467 = vperm.slane %v5459, %v5466
      %v5468 = vrot.slane %v5451, 4
      %v5469 = vsel %vm3692, %v5468, %v5427
      %v5470 = vrot.slane %v5427, 4
      %v5471 = vsel %vm3692, %v5451, %v5470
      %v5472 = vrot.slane %v5455, 4
      %v5473 = vsel %vm3692, %v5472, %v5431
      %v5474 = vrot.slane %v5431, 4
      %v5475 = vsel %vm3692, %v5455, %v5474
      %v5476 = vrot.slane %v5463, 4
      %v5477 = vsel %vm3692, %v5476, %v5439
      %v5478 = vrot.slane %v5439, 4
      %v5479 = vsel %vm3692, %v5463, %v5478
      %v5480 = vrot.slane %v5467, 4
      %v5481 = vsel %vm3692, %v5480, %v5443
      %v5482 = vrot.slane %v5443, 4
      %v5483 = vsel %vm3692, %v5467, %v5482
      %v5484 = vrot.slane %v3515, 4
      %v5485 = vsel %vm3692, %v5484, %v3451
      %v5486 = vrot.slane %v3451, 4
      %v5487 = vsel %vm3692, %v3515, %v5486
      %v5489 = vunpack.c.l.s4 1983009808
      %v5490 = vunpack.c.0.s8 %v5489
      %v5491 = vperm.slane %v5485, %v5490
      %v5493 = vunpack.c.l.s4 1983009808
      %v5494 = vunpack.c.0.s8 %v5493
      %v5495 = vperm.slane %v5487, %v5494
      %v5496 = vrot.slane %v3547, 4
      %v5497 = vsel %vm3692, %v5496, %v3483
      %v5498 = vrot.slane %v3483, 4
      %v5499 = vsel %vm3692, %v3547, %v5498
      %v5501 = vunpack.c.l.s4 1983009808
      %v5502 = vunpack.c.0.s8 %v5501
      %v5503 = vperm.slane %v5497, %v5502
      %v5505 = vunpack.c.l.s4 1983009808
      %v5506 = vunpack.c.0.s8 %v5505
      %v5507 = vperm.slane %v5499, %v5506
      %v5508 = vrot.slane %v3643, 4
      %v5509 = vsel %vm3692, %v5508, %v3579
      %v5510 = vrot.slane %v3579, 4
      %v5511 = vsel %vm3692, %v3643, %v5510
      %v5513 = vunpack.c.l.s4 1983009808
      %v5514 = vunpack.c.0.s8 %v5513
      %v5515 = vperm.slane %v5509, %v5514
      %v5517 = vunpack.c.l.s4 1983009808
      %v5518 = vunpack.c.0.s8 %v5517
      %v5519 = vperm.slane %v5511, %v5518
      %v5520 = vrot.slane %v3675, 4
      %v5521 = vsel %vm3692, %v5520, %v3611
      %v5522 = vrot.slane %v3611, 4
      %v5523 = vsel %vm3692, %v3675, %v5522
      %v5525 = vunpack.c.l.s4 1983009808
      %v5526 = vunpack.c.0.s8 %v5525
      %v5527 = vperm.slane %v5521, %v5526
      %v5529 = vunpack.c.l.s4 1983009808
      %v5530 = vunpack.c.0.s8 %v5529
      %v5531 = vperm.slane %v5523, %v5530
      %v5532 = vrot.slane %v5503, 4
      %v5533 = vsel %vm3692, %v5532, %v5491
      %v5534 = vrot.slane %v5491, 4
      %v5535 = vsel %vm3692, %v5503, %v5534
      %v5537 = vunpack.c.l.s4 1934713408
      %v5538 = vunpack.c.0.s8 %v5537
      %v5539 = vperm.slane %v5533, %v5538
      %v5541 = vunpack.c.l.s4 1934713408
      %v5542 = vunpack.c.0.s8 %v5541
      %v5543 = vperm.slane %v5535, %v5542
      %v5544 = vrot.slane %v5507, 4
      %v5545 = vsel %vm3692, %v5544, %v5495
      %v5546 = vrot.slane %v5495, 4
      %v5547 = vsel %vm3692, %v5507, %v5546
      %v5549 = vunpack.c.l.s4 1934713408
      %v5550 = vunpack.c.0.s8 %v5549
      %v5551 = vperm.slane %v5545, %v5550
      %v5553 = vunpack.c.l.s4 1934713408
      %v5554 = vunpack.c.0.s8 %v5553
      %v5555 = vperm.slane %v5547, %v5554
      %v5556 = vrot.slane %v5527, 4
      %v5557 = vsel %vm3692, %v5556, %v5515
      %v5558 = vrot.slane %v5515, 4
      %v5559 = vsel %vm3692, %v5527, %v5558
      %v5561 = vunpack.c.l.s4 1934713408
      %v5562 = vunpack.c.0.s8 %v5561
      %v5563 = vperm.slane %v5557, %v5562
      %v5565 = vunpack.c.l.s4 1934713408
      %v5566 = vunpack.c.0.s8 %v5565
      %v5567 = vperm.slane %v5559, %v5566
      %v5568 = vrot.slane %v5531, 4
      %v5569 = vsel %vm3692, %v5568, %v5519
      %v5570 = vrot.slane %v5519, 4
      %v5571 = vsel %vm3692, %v5531, %v5570
      %v5573 = vunpack.c.l.s4 1934713408
      %v5574 = vunpack.c.0.s8 %v5573
      %v5575 = vperm.slane %v5569, %v5574
      %v5577 = vunpack.c.l.s4 1934713408
      %v5578 = vunpack.c.0.s8 %v5577
      %v5579 = vperm.slane %v5571, %v5578
      %v5580 = vrot.slane %v5563, 4
      %v5581 = vsel %vm3692, %v5580, %v5539
      %v5582 = vrot.slane %v5539, 4
      %v5583 = vsel %vm3692, %v5563, %v5582
      %v5584 = vrot.slane %v5567, 4
      %v5585 = vsel %vm3692, %v5584, %v5543
      %v5586 = vrot.slane %v5543, 4
      %v5587 = vsel %vm3692, %v5567, %v5586
      %v5588 = vrot.slane %v5575, 4
      %v5589 = vsel %vm3692, %v5588, %v5551
      %v5590 = vrot.slane %v5551, 4
      %v5591 = vsel %vm3692, %v5575, %v5590
      %v5592 = vrot.slane %v5579, 4
      %v5593 = vsel %vm3692, %v5592, %v5555
      %v5594 = vrot.slane %v5555, 4
      %v5595 = vsel %vm3692, %v5579, %v5594
      %v5596 = vrot.slane %v3516, 4
      %v5597 = vsel %vm3692, %v5596, %v3452
      %v5598 = vrot.slane %v3452, 4
      %v5599 = vsel %vm3692, %v3516, %v5598
      %v5601 = vunpack.c.l.s4 1983009808
      %v5602 = vunpack.c.0.s8 %v5601
      %v5603 = vperm.slane %v5597, %v5602
      %v5605 = vunpack.c.l.s4 1983009808
      %v5606 = vunpack.c.0.s8 %v5605
      %v5607 = vperm.slane %v5599, %v5606
      %v5608 = vrot.slane %v3548, 4
      %v5609 = vsel %vm3692, %v5608, %v3484
      %v5610 = vrot.slane %v3484, 4
      %v5611 = vsel %vm3692, %v3548, %v5610
      %v5613 = vunpack.c.l.s4 1983009808
      %v5614 = vunpack.c.0.s8 %v5613
      %v5615 = vperm.slane %v5609, %v5614
      %v5617 = vunpack.c.l.s4 1983009808
      %v5618 = vunpack.c.0.s8 %v5617
      %v5619 = vperm.slane %v5611, %v5618
      %v5620 = vrot.slane %v3644, 4
      %v5621 = vsel %vm3692, %v5620, %v3580
      %v5622 = vrot.slane %v3580, 4
      %v5623 = vsel %vm3692, %v3644, %v5622
      %v5625 = vunpack.c.l.s4 1983009808
      %v5626 = vunpack.c.0.s8 %v5625
      %v5627 = vperm.slane %v5621, %v5626
      %v5629 = vunpack.c.l.s4 1983009808
      %v5630 = vunpack.c.0.s8 %v5629
      %v5631 = vperm.slane %v5623, %v5630
      %v5632 = vrot.slane %v3676, 4
      %v5633 = vsel %vm3692, %v5632, %v3612
      %v5634 = vrot.slane %v3612, 4
      %v5635 = vsel %vm3692, %v3676, %v5634
      %v5637 = vunpack.c.l.s4 1983009808
      %v5638 = vunpack.c.0.s8 %v5637
      %v5639 = vperm.slane %v5633, %v5638
      %v5641 = vunpack.c.l.s4 1983009808
      %v5642 = vunpack.c.0.s8 %v5641
      %v5643 = vperm.slane %v5635, %v5642
      %v5644 = vrot.slane %v5615, 4
      %v5645 = vsel %vm3692, %v5644, %v5603
      %v5646 = vrot.slane %v5603, 4
      %v5647 = vsel %vm3692, %v5615, %v5646
      %v5649 = vunpack.c.l.s4 1934713408
      %v5650 = vunpack.c.0.s8 %v5649
      %v5651 = vperm.slane %v5645, %v5650
      %v5653 = vunpack.c.l.s4 1934713408
      %v5654 = vunpack.c.0.s8 %v5653
      %v5655 = vperm.slane %v5647, %v5654
      %v5656 = vrot.slane %v5619, 4
      %v5657 = vsel %vm3692, %v5656, %v5607
      %v5658 = vrot.slane %v5607, 4
      %v5659 = vsel %vm3692, %v5619, %v5658
      %v5661 = vunpack.c.l.s4 1934713408
      %v5662 = vunpack.c.0.s8 %v5661
      %v5663 = vperm.slane %v5657, %v5662
      %v5665 = vunpack.c.l.s4 1934713408
      %v5666 = vunpack.c.0.s8 %v5665
      %v5667 = vperm.slane %v5659, %v5666
      %v5668 = vrot.slane %v5639, 4
      %v5669 = vsel %vm3692, %v5668, %v5627
      %v5670 = vrot.slane %v5627, 4
      %v5671 = vsel %vm3692, %v5639, %v5670
      %v5673 = vunpack.c.l.s4 1934713408
      %v5674 = vunpack.c.0.s8 %v5673
      %v5675 = vperm.slane %v5669, %v5674
      %v5677 = vunpack.c.l.s4 1934713408
      %v5678 = vunpack.c.0.s8 %v5677
      %v5679 = vperm.slane %v5671, %v5678
      %v5680 = vrot.slane %v5643, 4
      %v5681 = vsel %vm3692, %v5680, %v5631
      %v5682 = vrot.slane %v5631, 4
      %v5683 = vsel %vm3692, %v5643, %v5682
      %v5685 = vunpack.c.l.s4 1934713408
      %v5686 = vunpack.c.0.s8 %v5685
      %v5687 = vperm.slane %v5681, %v5686
      %v5689 = vunpack.c.l.s4 1934713408
      %v5690 = vunpack.c.0.s8 %v5689
      %v5691 = vperm.slane %v5683, %v5690
      %v5692 = vrot.slane %v5675, 4
      %v5693 = vsel %vm3692, %v5692, %v5651
      %v5694 = vrot.slane %v5651, 4
      %v5695 = vsel %vm3692, %v5675, %v5694
      %v5696 = vrot.slane %v5679, 4
      %v5697 = vsel %vm3692, %v5696, %v5655
      %v5698 = vrot.slane %v5655, 4
      %v5699 = vsel %vm3692, %v5679, %v5698
      %v5700 = vrot.slane %v5687, 4
      %v5701 = vsel %vm3692, %v5700, %v5663
      %v5702 = vrot.slane %v5663, 4
      %v5703 = vsel %vm3692, %v5687, %v5702
      %v5704 = vrot.slane %v5691, 4
      %v5705 = vsel %vm3692, %v5704, %v5667
      %v5706 = vrot.slane %v5667, 4
      %v5707 = vsel %vm3692, %v5691, %v5706
      %v5708 = vrot.slane %v3517, 4
      %v5709 = vsel %vm3692, %v5708, %v3453
      %v5710 = vrot.slane %v3453, 4
      %v5711 = vsel %vm3692, %v3517, %v5710
      %v5713 = vunpack.c.l.s4 1983009808
      %v5714 = vunpack.c.0.s8 %v5713
      %v5715 = vperm.slane %v5709, %v5714
      %v5717 = vunpack.c.l.s4 1983009808
      %v5718 = vunpack.c.0.s8 %v5717
      %v5719 = vperm.slane %v5711, %v5718
      %v5720 = vrot.slane %v3549, 4
      %v5721 = vsel %vm3692, %v5720, %v3485
      %v5722 = vrot.slane %v3485, 4
      %v5723 = vsel %vm3692, %v3549, %v5722
      %v5725 = vunpack.c.l.s4 1983009808
      %v5726 = vunpack.c.0.s8 %v5725
      %v5727 = vperm.slane %v5721, %v5726
      %v5729 = vunpack.c.l.s4 1983009808
      %v5730 = vunpack.c.0.s8 %v5729
      %v5731 = vperm.slane %v5723, %v5730
      %v5732 = vrot.slane %v3645, 4
      %v5733 = vsel %vm3692, %v5732, %v3581
      %v5734 = vrot.slane %v3581, 4
      %v5735 = vsel %vm3692, %v3645, %v5734
      %v5737 = vunpack.c.l.s4 1983009808
      %v5738 = vunpack.c.0.s8 %v5737
      %v5739 = vperm.slane %v5733, %v5738
      %v5741 = vunpack.c.l.s4 1983009808
      %v5742 = vunpack.c.0.s8 %v5741
      %v5743 = vperm.slane %v5735, %v5742
      %v5744 = vrot.slane %v3677, 4
      %v5745 = vsel %vm3692, %v5744, %v3613
      %v5746 = vrot.slane %v3613, 4
      %v5747 = vsel %vm3692, %v3677, %v5746
      %v5749 = vunpack.c.l.s4 1983009808
      %v5750 = vunpack.c.0.s8 %v5749
      %v5751 = vperm.slane %v5745, %v5750
      %v5753 = vunpack.c.l.s4 1983009808
      %v5754 = vunpack.c.0.s8 %v5753
      %v5755 = vperm.slane %v5747, %v5754
      %v5756 = vrot.slane %v5727, 4
      %v5757 = vsel %vm3692, %v5756, %v5715
      %v5758 = vrot.slane %v5715, 4
      %v5759 = vsel %vm3692, %v5727, %v5758
      %v5761 = vunpack.c.l.s4 1934713408
      %v5762 = vunpack.c.0.s8 %v5761
      %v5763 = vperm.slane %v5757, %v5762
      %v5765 = vunpack.c.l.s4 1934713408
      %v5766 = vunpack.c.0.s8 %v5765
      %v5767 = vperm.slane %v5759, %v5766
      %v5768 = vrot.slane %v5731, 4
      %v5769 = vsel %vm3692, %v5768, %v5719
      %v5770 = vrot.slane %v5719, 4
      %v5771 = vsel %vm3692, %v5731, %v5770
      %v5773 = vunpack.c.l.s4 1934713408
      %v5774 = vunpack.c.0.s8 %v5773
      %v5775 = vperm.slane %v5769, %v5774
      %v5777 = vunpack.c.l.s4 1934713408
      %v5778 = vunpack.c.0.s8 %v5777
      %v5779 = vperm.slane %v5771, %v5778
      %v5780 = vrot.slane %v5751, 4
      %v5781 = vsel %vm3692, %v5780, %v5739
      %v5782 = vrot.slane %v5739, 4
      %v5783 = vsel %vm3692, %v5751, %v5782
      %v5785 = vunpack.c.l.s4 1934713408
      %v5786 = vunpack.c.0.s8 %v5785
      %v5787 = vperm.slane %v5781, %v5786
      %v5789 = vunpack.c.l.s4 1934713408
      %v5790 = vunpack.c.0.s8 %v5789
      %v5791 = vperm.slane %v5783, %v5790
      %v5792 = vrot.slane %v5755, 4
      %v5793 = vsel %vm3692, %v5792, %v5743
      %v5794 = vrot.slane %v5743, 4
      %v5795 = vsel %vm3692, %v5755, %v5794
      %v5797 = vunpack.c.l.s4 1934713408
      %v5798 = vunpack.c.0.s8 %v5797
      %v5799 = vperm.slane %v5793, %v5798
      %v5801 = vunpack.c.l.s4 1934713408
      %v5802 = vunpack.c.0.s8 %v5801
      %v5803 = vperm.slane %v5795, %v5802
      %v5804 = vrot.slane %v5787, 4
      %v5805 = vsel %vm3692, %v5804, %v5763
      %v5806 = vrot.slane %v5763, 4
      %v5807 = vsel %vm3692, %v5787, %v5806
      %v5808 = vrot.slane %v5791, 4
      %v5809 = vsel %vm3692, %v5808, %v5767
      %v5810 = vrot.slane %v5767, 4
      %v5811 = vsel %vm3692, %v5791, %v5810
      %v5812 = vrot.slane %v5799, 4
      %v5813 = vsel %vm3692, %v5812, %v5775
      %v5814 = vrot.slane %v5775, 4
      %v5815 = vsel %vm3692, %v5799, %v5814
      %v5816 = vrot.slane %v5803, 4
      %v5817 = vsel %vm3692, %v5816, %v5779
      %v5818 = vrot.slane %v5779, 4
      %v5819 = vsel %vm3692, %v5803, %v5818
      %v5820 = vrot.slane %v3518, 4
      %v5821 = vsel %vm3692, %v5820, %v3454
      %v5822 = vrot.slane %v3454, 4
      %v5823 = vsel %vm3692, %v3518, %v5822
      %v5825 = vunpack.c.l.s4 1983009808
      %v5826 = vunpack.c.0.s8 %v5825
      %v5827 = vperm.slane %v5821, %v5826
      %v5829 = vunpack.c.l.s4 1983009808
      %v5830 = vunpack.c.0.s8 %v5829
      %v5831 = vperm.slane %v5823, %v5830
      %v5832 = vrot.slane %v3550, 4
      %v5833 = vsel %vm3692, %v5832, %v3486
      %v5834 = vrot.slane %v3486, 4
      %v5835 = vsel %vm3692, %v3550, %v5834
      %v5837 = vunpack.c.l.s4 1983009808
      %v5838 = vunpack.c.0.s8 %v5837
      %v5839 = vperm.slane %v5833, %v5838
      %v5841 = vunpack.c.l.s4 1983009808
      %v5842 = vunpack.c.0.s8 %v5841
      %v5843 = vperm.slane %v5835, %v5842
      %v5844 = vrot.slane %v3646, 4
      %v5845 = vsel %vm3692, %v5844, %v3582
      %v5846 = vrot.slane %v3582, 4
      %v5847 = vsel %vm3692, %v3646, %v5846
      %v5849 = vunpack.c.l.s4 1983009808
      %v5850 = vunpack.c.0.s8 %v5849
      %v5851 = vperm.slane %v5845, %v5850
      %v5853 = vunpack.c.l.s4 1983009808
      %v5854 = vunpack.c.0.s8 %v5853
      %v5855 = vperm.slane %v5847, %v5854
      %v5856 = vrot.slane %v3678, 4
      %v5857 = vsel %vm3692, %v5856, %v3614
      %v5858 = vrot.slane %v3614, 4
      %v5859 = vsel %vm3692, %v3678, %v5858
      %v5861 = vunpack.c.l.s4 1983009808
      %v5862 = vunpack.c.0.s8 %v5861
      %v5863 = vperm.slane %v5857, %v5862
      %v5865 = vunpack.c.l.s4 1983009808
      %v5866 = vunpack.c.0.s8 %v5865
      %v5867 = vperm.slane %v5859, %v5866
      %v5868 = vrot.slane %v5839, 4
      %v5869 = vsel %vm3692, %v5868, %v5827
      %v5870 = vrot.slane %v5827, 4
      %v5871 = vsel %vm3692, %v5839, %v5870
      %v5873 = vunpack.c.l.s4 1934713408
      %v5874 = vunpack.c.0.s8 %v5873
      %v5875 = vperm.slane %v5869, %v5874
      %v5877 = vunpack.c.l.s4 1934713408
      %v5878 = vunpack.c.0.s8 %v5877
      %v5879 = vperm.slane %v5871, %v5878
      %v5880 = vrot.slane %v5843, 4
      %v5881 = vsel %vm3692, %v5880, %v5831
      %v5882 = vrot.slane %v5831, 4
      %v5883 = vsel %vm3692, %v5843, %v5882
      %v5885 = vunpack.c.l.s4 1934713408
      %v5886 = vunpack.c.0.s8 %v5885
      %v5887 = vperm.slane %v5881, %v5886
      %v5889 = vunpack.c.l.s4 1934713408
      %v5890 = vunpack.c.0.s8 %v5889
      %v5891 = vperm.slane %v5883, %v5890
      %v5892 = vrot.slane %v5863, 4
      %v5893 = vsel %vm3692, %v5892, %v5851
      %v5894 = vrot.slane %v5851, 4
      %v5895 = vsel %vm3692, %v5863, %v5894
      %v5897 = vunpack.c.l.s4 1934713408
      %v5898 = vunpack.c.0.s8 %v5897
      %v5899 = vperm.slane %v5893, %v5898
      %v5901 = vunpack.c.l.s4 1934713408
      %v5902 = vunpack.c.0.s8 %v5901
      %v5903 = vperm.slane %v5895, %v5902
      %v5904 = vrot.slane %v5867, 4
      %v5905 = vsel %vm3692, %v5904, %v5855
      %v5906 = vrot.slane %v5855, 4
      %v5907 = vsel %vm3692, %v5867, %v5906
      %v5909 = vunpack.c.l.s4 1934713408
      %v5910 = vunpack.c.0.s8 %v5909
      %v5911 = vperm.slane %v5905, %v5910
      %v5913 = vunpack.c.l.s4 1934713408
      %v5914 = vunpack.c.0.s8 %v5913
      %v5915 = vperm.slane %v5907, %v5914
      %v5916 = vrot.slane %v5899, 4
      %v5917 = vsel %vm3692, %v5916, %v5875
      %v5918 = vrot.slane %v5875, 4
      %v5919 = vsel %vm3692, %v5899, %v5918
      %v5920 = vrot.slane %v5903, 4
      %v5921 = vsel %vm3692, %v5920, %v5879
      %v5922 = vrot.slane %v5879, 4
      %v5923 = vsel %vm3692, %v5903, %v5922
      %v5924 = vrot.slane %v5911, 4
      %v5925 = vsel %vm3692, %v5924, %v5887
      %v5926 = vrot.slane %v5887, 4
      %v5927 = vsel %vm3692, %v5911, %v5926
      %v5928 = vrot.slane %v5915, 4
      %v5929 = vsel %vm3692, %v5928, %v5891
      %v5930 = vrot.slane %v5891, 4
      %v5931 = vsel %vm3692, %v5915, %v5930
      %v5932 = vrot.slane %v3519, 4
      %v5933 = vsel %vm3692, %v5932, %v3455
      %v5934 = vrot.slane %v3455, 4
      %v5935 = vsel %vm3692, %v3519, %v5934
      %v5937 = vunpack.c.l.s4 1983009808
      %v5938 = vunpack.c.0.s8 %v5937
      %v5939 = vperm.slane %v5933, %v5938
      %v5941 = vunpack.c.l.s4 1983009808
      %v5942 = vunpack.c.0.s8 %v5941
      %v5943 = vperm.slane %v5935, %v5942
      %v5944 = vrot.slane %v3551, 4
      %v5945 = vsel %vm3692, %v5944, %v3487
      %v5946 = vrot.slane %v3487, 4
      %v5947 = vsel %vm3692, %v3551, %v5946
      %v5949 = vunpack.c.l.s4 1983009808
      %v5950 = vunpack.c.0.s8 %v5949
      %v5951 = vperm.slane %v5945, %v5950
      %v5953 = vunpack.c.l.s4 1983009808
      %v5954 = vunpack.c.0.s8 %v5953
      %v5955 = vperm.slane %v5947, %v5954
      %v5956 = vrot.slane %v3647, 4
      %v5957 = vsel %vm3692, %v5956, %v3583
      %v5958 = vrot.slane %v3583, 4
      %v5959 = vsel %vm3692, %v3647, %v5958
      %v5961 = vunpack.c.l.s4 1983009808
      %v5962 = vunpack.c.0.s8 %v5961
      %v5963 = vperm.slane %v5957, %v5962
      %v5965 = vunpack.c.l.s4 1983009808
      %v5966 = vunpack.c.0.s8 %v5965
      %v5967 = vperm.slane %v5959, %v5966
      %v5968 = vrot.slane %v3679, 4
      %v5969 = vsel %vm3692, %v5968, %v3615
      %v5970 = vrot.slane %v3615, 4
      %v5971 = vsel %vm3692, %v3679, %v5970
      %v5973 = vunpack.c.l.s4 1983009808
      %v5974 = vunpack.c.0.s8 %v5973
      %v5975 = vperm.slane %v5969, %v5974
      %v5977 = vunpack.c.l.s4 1983009808
      %v5978 = vunpack.c.0.s8 %v5977
      %v5979 = vperm.slane %v5971, %v5978
      %v5980 = vrot.slane %v5951, 4
      %v5981 = vsel %vm3692, %v5980, %v5939
      %v5982 = vrot.slane %v5939, 4
      %v5983 = vsel %vm3692, %v5951, %v5982
      %v5985 = vunpack.c.l.s4 1934713408
      %v5986 = vunpack.c.0.s8 %v5985
      %v5987 = vperm.slane %v5981, %v5986
      %v5989 = vunpack.c.l.s4 1934713408
      %v5990 = vunpack.c.0.s8 %v5989
      %v5991 = vperm.slane %v5983, %v5990
      %v5992 = vrot.slane %v5955, 4
      %v5993 = vsel %vm3692, %v5992, %v5943
      %v5994 = vrot.slane %v5943, 4
      %v5995 = vsel %vm3692, %v5955, %v5994
      %v5997 = vunpack.c.l.s4 1934713408
      %v5998 = vunpack.c.0.s8 %v5997
      %v5999 = vperm.slane %v5993, %v5998
      %v6001 = vunpack.c.l.s4 1934713408
      %v6002 = vunpack.c.0.s8 %v6001
      %v6003 = vperm.slane %v5995, %v6002
      %v6004 = vrot.slane %v5975, 4
      %v6005 = vsel %vm3692, %v6004, %v5963
      %v6006 = vrot.slane %v5963, 4
      %v6007 = vsel %vm3692, %v5975, %v6006
      %v6009 = vunpack.c.l.s4 1934713408
      %v6010 = vunpack.c.0.s8 %v6009
      %v6011 = vperm.slane %v6005, %v6010
      %v6013 = vunpack.c.l.s4 1934713408
      %v6014 = vunpack.c.0.s8 %v6013
      %v6015 = vperm.slane %v6007, %v6014
      %v6016 = vrot.slane %v5979, 4
      %v6017 = vsel %vm3692, %v6016, %v5967
      %v6018 = vrot.slane %v5967, 4
      %v6019 = vsel %vm3692, %v5979, %v6018
      %v6021 = vunpack.c.l.s4 1934713408
      %v6022 = vunpack.c.0.s8 %v6021
      %v6023 = vperm.slane %v6017, %v6022
      %v6025 = vunpack.c.l.s4 1934713408
      %v6026 = vunpack.c.0.s8 %v6025
      %v6027 = vperm.slane %v6019, %v6026
      %v6028 = vrot.slane %v6011, 4
      %v6029 = vsel %vm3692, %v6028, %v5987
      %v6030 = vrot.slane %v5987, 4
      %v6031 = vsel %vm3692, %v6011, %v6030
      %v6032 = vrot.slane %v6015, 4
      %v6033 = vsel %vm3692, %v6032, %v5991
      %v6034 = vrot.slane %v5991, 4
      %v6035 = vsel %vm3692, %v6015, %v6034
      %v6036 = vrot.slane %v6023, 4
      %v6037 = vsel %vm3692, %v6036, %v5999
      %v6038 = vrot.slane %v5999, 4
      %v6039 = vsel %vm3692, %v6023, %v6038
      %v6040 = vrot.slane %v6027, 4
      %v6041 = vsel %vm3692, %v6040, %v6003
      %v6042 = vrot.slane %v6003, 4
      %v6043 = vsel %vm3692, %v6027, %v6042
      %v6044 = vrot.slane %v3520, 4
      %v6045 = vsel %vm3692, %v6044, %v3456
      %v6046 = vrot.slane %v3456, 4
      %v6047 = vsel %vm3692, %v3520, %v6046
      %v6049 = vunpack.c.l.s4 1983009808
      %v6050 = vunpack.c.0.s8 %v6049
      %v6051 = vperm.slane %v6045, %v6050
      %v6053 = vunpack.c.l.s4 1983009808
      %v6054 = vunpack.c.0.s8 %v6053
      %v6055 = vperm.slane %v6047, %v6054
      %v6056 = vrot.slane %v3552, 4
      %v6057 = vsel %vm3692, %v6056, %v3488
      %v6058 = vrot.slane %v3488, 4
      %v6059 = vsel %vm3692, %v3552, %v6058
      %v6061 = vunpack.c.l.s4 1983009808
      %v6062 = vunpack.c.0.s8 %v6061
      %v6063 = vperm.slane %v6057, %v6062
      %v6065 = vunpack.c.l.s4 1983009808
      %v6066 = vunpack.c.0.s8 %v6065
      %v6067 = vperm.slane %v6059, %v6066
      %v6068 = vrot.slane %v3648, 4
      %v6069 = vsel %vm3692, %v6068, %v3584
      %v6070 = vrot.slane %v3584, 4
      %v6071 = vsel %vm3692, %v3648, %v6070
      %v6073 = vunpack.c.l.s4 1983009808
      %v6074 = vunpack.c.0.s8 %v6073
      %v6075 = vperm.slane %v6069, %v6074
      %v6077 = vunpack.c.l.s4 1983009808
      %v6078 = vunpack.c.0.s8 %v6077
      %v6079 = vperm.slane %v6071, %v6078
      %v6080 = vrot.slane %v3680, 4
      %v6081 = vsel %vm3692, %v6080, %v3616
      %v6082 = vrot.slane %v3616, 4
      %v6083 = vsel %vm3692, %v3680, %v6082
      %v6085 = vunpack.c.l.s4 1983009808
      %v6086 = vunpack.c.0.s8 %v6085
      %v6087 = vperm.slane %v6081, %v6086
      %v6089 = vunpack.c.l.s4 1983009808
      %v6090 = vunpack.c.0.s8 %v6089
      %v6091 = vperm.slane %v6083, %v6090
      %v6092 = vrot.slane %v6063, 4
      %v6093 = vsel %vm3692, %v6092, %v6051
      %v6094 = vrot.slane %v6051, 4
      %v6095 = vsel %vm3692, %v6063, %v6094
      %v6097 = vunpack.c.l.s4 1934713408
      %v6098 = vunpack.c.0.s8 %v6097
      %v6099 = vperm.slane %v6093, %v6098
      %v6101 = vunpack.c.l.s4 1934713408
      %v6102 = vunpack.c.0.s8 %v6101
      %v6103 = vperm.slane %v6095, %v6102
      %v6104 = vrot.slane %v6067, 4
      %v6105 = vsel %vm3692, %v6104, %v6055
      %v6106 = vrot.slane %v6055, 4
      %v6107 = vsel %vm3692, %v6067, %v6106
      %v6109 = vunpack.c.l.s4 1934713408
      %v6110 = vunpack.c.0.s8 %v6109
      %v6111 = vperm.slane %v6105, %v6110
      %v6113 = vunpack.c.l.s4 1934713408
      %v6114 = vunpack.c.0.s8 %v6113
      %v6115 = vperm.slane %v6107, %v6114
      %v6116 = vrot.slane %v6087, 4
      %v6117 = vsel %vm3692, %v6116, %v6075
      %v6118 = vrot.slane %v6075, 4
      %v6119 = vsel %vm3692, %v6087, %v6118
      %v6121 = vunpack.c.l.s4 1934713408
      %v6122 = vunpack.c.0.s8 %v6121
      %v6123 = vperm.slane %v6117, %v6122
      %v6125 = vunpack.c.l.s4 1934713408
      %v6126 = vunpack.c.0.s8 %v6125
      %v6127 = vperm.slane %v6119, %v6126
      %v6128 = vrot.slane %v6091, 4
      %v6129 = vsel %vm3692, %v6128, %v6079
      %v6130 = vrot.slane %v6079, 4
      %v6131 = vsel %vm3692, %v6091, %v6130
      %v6133 = vunpack.c.l.s4 1934713408
      %v6134 = vunpack.c.0.s8 %v6133
      %v6135 = vperm.slane %v6129, %v6134
      %v6137 = vunpack.c.l.s4 1934713408
      %v6138 = vunpack.c.0.s8 %v6137
      %v6139 = vperm.slane %v6131, %v6138
      %v6140 = vrot.slane %v6123, 4
      %v6141 = vsel %vm3692, %v6140, %v6099
      %v6142 = vrot.slane %v6099, 4
      %v6143 = vsel %vm3692, %v6123, %v6142
      %v6144 = vrot.slane %v6127, 4
      %v6145 = vsel %vm3692, %v6144, %v6103
      %v6146 = vrot.slane %v6103, 4
      %v6147 = vsel %vm3692, %v6127, %v6146
      %v6148 = vrot.slane %v6135, 4
      %v6149 = vsel %vm3692, %v6148, %v6111
      %v6150 = vrot.slane %v6111, 4
      %v6151 = vsel %vm3692, %v6135, %v6150
      %v6152 = vrot.slane %v6139, 4
      %v6153 = vsel %vm3692, %v6152, %v6115
      %v6154 = vrot.slane %v6115, 4
      %v6155 = vsel %vm3692, %v6139, %v6154
      %v6156 = vrot.slane %v3521, 4
      %v6157 = vsel %vm3692, %v6156, %v3457
      %v6158 = vrot.slane %v3457, 4
      %v6159 = vsel %vm3692, %v3521, %v6158
      %v6161 = vunpack.c.l.s4 1983009808
      %v6162 = vunpack.c.0.s8 %v6161
      %v6163 = vperm.slane %v6157, %v6162
      %v6165 = vunpack.c.l.s4 1983009808
      %v6166 = vunpack.c.0.s8 %v6165
      %v6167 = vperm.slane %v6159, %v6166
      %v6168 = vrot.slane %v3553, 4
      %v6169 = vsel %vm3692, %v6168, %v3489
      %v6170 = vrot.slane %v3489, 4
      %v6171 = vsel %vm3692, %v3553, %v6170
      %v6173 = vunpack.c.l.s4 1983009808
      %v6174 = vunpack.c.0.s8 %v6173
      %v6175 = vperm.slane %v6169, %v6174
      %v6177 = vunpack.c.l.s4 1983009808
      %v6178 = vunpack.c.0.s8 %v6177
      %v6179 = vperm.slane %v6171, %v6178
      %v6180 = vrot.slane %v3649, 4
      %v6181 = vsel %vm3692, %v6180, %v3585
      %v6182 = vrot.slane %v3585, 4
      %v6183 = vsel %vm3692, %v3649, %v6182
      %v6185 = vunpack.c.l.s4 1983009808
      %v6186 = vunpack.c.0.s8 %v6185
      %v6187 = vperm.slane %v6181, %v6186
      %v6189 = vunpack.c.l.s4 1983009808
      %v6190 = vunpack.c.0.s8 %v6189
      %v6191 = vperm.slane %v6183, %v6190
      %v6192 = vrot.slane %v3681, 4
      %v6193 = vsel %vm3692, %v6192, %v3617
      %v6194 = vrot.slane %v3617, 4
      %v6195 = vsel %vm3692, %v3681, %v6194
      %v6197 = vunpack.c.l.s4 1983009808
      %v6198 = vunpack.c.0.s8 %v6197
      %v6199 = vperm.slane %v6193, %v6198
      %v6201 = vunpack.c.l.s4 1983009808
      %v6202 = vunpack.c.0.s8 %v6201
      %v6203 = vperm.slane %v6195, %v6202
      %v6204 = vrot.slane %v6175, 4
      %v6205 = vsel %vm3692, %v6204, %v6163
      %v6206 = vrot.slane %v6163, 4
      %v6207 = vsel %vm3692, %v6175, %v6206
      %v6209 = vunpack.c.l.s4 1934713408
      %v6210 = vunpack.c.0.s8 %v6209
      %v6211 = vperm.slane %v6205, %v6210
      %v6213 = vunpack.c.l.s4 1934713408
      %v6214 = vunpack.c.0.s8 %v6213
      %v6215 = vperm.slane %v6207, %v6214
      %v6216 = vrot.slane %v6179, 4
      %v6217 = vsel %vm3692, %v6216, %v6167
      %v6218 = vrot.slane %v6167, 4
      %v6219 = vsel %vm3692, %v6179, %v6218
      %v6221 = vunpack.c.l.s4 1934713408
      %v6222 = vunpack.c.0.s8 %v6221
      %v6223 = vperm.slane %v6217, %v6222
      %v6225 = vunpack.c.l.s4 1934713408
      %v6226 = vunpack.c.0.s8 %v6225
      %v6227 = vperm.slane %v6219, %v6226
      %v6228 = vrot.slane %v6199, 4
      %v6229 = vsel %vm3692, %v6228, %v6187
      %v6230 = vrot.slane %v6187, 4
      %v6231 = vsel %vm3692, %v6199, %v6230
      %v6233 = vunpack.c.l.s4 1934713408
      %v6234 = vunpack.c.0.s8 %v6233
      %v6235 = vperm.slane %v6229, %v6234
      %v6237 = vunpack.c.l.s4 1934713408
      %v6238 = vunpack.c.0.s8 %v6237
      %v6239 = vperm.slane %v6231, %v6238
      %v6240 = vrot.slane %v6203, 4
      %v6241 = vsel %vm3692, %v6240, %v6191
      %v6242 = vrot.slane %v6191, 4
      %v6243 = vsel %vm3692, %v6203, %v6242
      %v6245 = vunpack.c.l.s4 1934713408
      %v6246 = vunpack.c.0.s8 %v6245
      %v6247 = vperm.slane %v6241, %v6246
      %v6249 = vunpack.c.l.s4 1934713408
      %v6250 = vunpack.c.0.s8 %v6249
      %v6251 = vperm.slane %v6243, %v6250
      %v6252 = vrot.slane %v6235, 4
      %v6253 = vsel %vm3692, %v6252, %v6211
      %v6254 = vrot.slane %v6211, 4
      %v6255 = vsel %vm3692, %v6235, %v6254
      %v6256 = vrot.slane %v6239, 4
      %v6257 = vsel %vm3692, %v6256, %v6215
      %v6258 = vrot.slane %v6215, 4
      %v6259 = vsel %vm3692, %v6239, %v6258
      %v6260 = vrot.slane %v6247, 4
      %v6261 = vsel %vm3692, %v6260, %v6223
      %v6262 = vrot.slane %v6223, 4
      %v6263 = vsel %vm3692, %v6247, %v6262
      %v6264 = vrot.slane %v6251, 4
      %v6265 = vsel %vm3692, %v6264, %v6227
      %v6266 = vrot.slane %v6227, 4
      %v6267 = vsel %vm3692, %v6251, %v6266
      %v6268 = vrot.slane %v3522, 4
      %v6269 = vsel %vm3692, %v6268, %v3458
      %v6270 = vrot.slane %v3458, 4
      %v6271 = vsel %vm3692, %v3522, %v6270
      %v6273 = vunpack.c.l.s4 1983009808
      %v6274 = vunpack.c.0.s8 %v6273
      %v6275 = vperm.slane %v6269, %v6274
      %v6277 = vunpack.c.l.s4 1983009808
      %v6278 = vunpack.c.0.s8 %v6277
      %v6279 = vperm.slane %v6271, %v6278
      %v6280 = vrot.slane %v3554, 4
      %v6281 = vsel %vm3692, %v6280, %v3490
      %v6282 = vrot.slane %v3490, 4
      %v6283 = vsel %vm3692, %v3554, %v6282
      %v6285 = vunpack.c.l.s4 1983009808
      %v6286 = vunpack.c.0.s8 %v6285
      %v6287 = vperm.slane %v6281, %v6286
      %v6289 = vunpack.c.l.s4 1983009808
      %v6290 = vunpack.c.0.s8 %v6289
      %v6291 = vperm.slane %v6283, %v6290
      %v6292 = vrot.slane %v3650, 4
      %v6293 = vsel %vm3692, %v6292, %v3586
      %v6294 = vrot.slane %v3586, 4
      %v6295 = vsel %vm3692, %v3650, %v6294
      %v6297 = vunpack.c.l.s4 1983009808
      %v6298 = vunpack.c.0.s8 %v6297
      %v6299 = vperm.slane %v6293, %v6298
      %v6301 = vunpack.c.l.s4 1983009808
      %v6302 = vunpack.c.0.s8 %v6301
      %v6303 = vperm.slane %v6295, %v6302
      %v6304 = vrot.slane %v3682, 4
      %v6305 = vsel %vm3692, %v6304, %v3618
      %v6306 = vrot.slane %v3618, 4
      %v6307 = vsel %vm3692, %v3682, %v6306
      %v6309 = vunpack.c.l.s4 1983009808
      %v6310 = vunpack.c.0.s8 %v6309
      %v6311 = vperm.slane %v6305, %v6310
      %v6313 = vunpack.c.l.s4 1983009808
      %v6314 = vunpack.c.0.s8 %v6313
      %v6315 = vperm.slane %v6307, %v6314
      %v6316 = vrot.slane %v6287, 4
      %v6317 = vsel %vm3692, %v6316, %v6275
      %v6318 = vrot.slane %v6275, 4
      %v6319 = vsel %vm3692, %v6287, %v6318
      %v6321 = vunpack.c.l.s4 1934713408
      %v6322 = vunpack.c.0.s8 %v6321
      %v6323 = vperm.slane %v6317, %v6322
      %v6325 = vunpack.c.l.s4 1934713408
      %v6326 = vunpack.c.0.s8 %v6325
      %v6327 = vperm.slane %v6319, %v6326
      %v6328 = vrot.slane %v6291, 4
      %v6329 = vsel %vm3692, %v6328, %v6279
      %v6330 = vrot.slane %v6279, 4
      %v6331 = vsel %vm3692, %v6291, %v6330
      %v6333 = vunpack.c.l.s4 1934713408
      %v6334 = vunpack.c.0.s8 %v6333
      %v6335 = vperm.slane %v6329, %v6334
      %v6337 = vunpack.c.l.s4 1934713408
      %v6338 = vunpack.c.0.s8 %v6337
      %v6339 = vperm.slane %v6331, %v6338
      %v6340 = vrot.slane %v6311, 4
      %v6341 = vsel %vm3692, %v6340, %v6299
      %v6342 = vrot.slane %v6299, 4
      %v6343 = vsel %vm3692, %v6311, %v6342
      %v6345 = vunpack.c.l.s4 1934713408
      %v6346 = vunpack.c.0.s8 %v6345
      %v6347 = vperm.slane %v6341, %v6346
      %v6349 = vunpack.c.l.s4 1934713408
      %v6350 = vunpack.c.0.s8 %v6349
      %v6351 = vperm.slane %v6343, %v6350
      %v6352 = vrot.slane %v6315, 4
      %v6353 = vsel %vm3692, %v6352, %v6303
      %v6354 = vrot.slane %v6303, 4
      %v6355 = vsel %vm3692, %v6315, %v6354
      %v6357 = vunpack.c.l.s4 1934713408
      %v6358 = vunpack.c.0.s8 %v6357
      %v6359 = vperm.slane %v6353, %v6358
      %v6361 = vunpack.c.l.s4 1934713408
      %v6362 = vunpack.c.0.s8 %v6361
      %v6363 = vperm.slane %v6355, %v6362
      %v6364 = vrot.slane %v6347, 4
      %v6365 = vsel %vm3692, %v6364, %v6323
      %v6366 = vrot.slane %v6323, 4
      %v6367 = vsel %vm3692, %v6347, %v6366
      %v6368 = vrot.slane %v6351, 4
      %v6369 = vsel %vm3692, %v6368, %v6327
      %v6370 = vrot.slane %v6327, 4
      %v6371 = vsel %vm3692, %v6351, %v6370
      %v6372 = vrot.slane %v6359, 4
      %v6373 = vsel %vm3692, %v6372, %v6335
      %v6374 = vrot.slane %v6335, 4
      %v6375 = vsel %vm3692, %v6359, %v6374
      %v6376 = vrot.slane %v6363, 4
      %v6377 = vsel %vm3692, %v6376, %v6339
      %v6378 = vrot.slane %v6339, 4
      %v6379 = vsel %vm3692, %v6363, %v6378
      %v6380 = vrot.slane %v3523, 4
      %v6381 = vsel %vm3692, %v6380, %v3459
      %v6382 = vrot.slane %v3459, 4
      %v6383 = vsel %vm3692, %v3523, %v6382
      %v6385 = vunpack.c.l.s4 1983009808
      %v6386 = vunpack.c.0.s8 %v6385
      %v6387 = vperm.slane %v6381, %v6386
      %v6389 = vunpack.c.l.s4 1983009808
      %v6390 = vunpack.c.0.s8 %v6389
      %v6391 = vperm.slane %v6383, %v6390
      %v6392 = vrot.slane %v3555, 4
      %v6393 = vsel %vm3692, %v6392, %v3491
      %v6394 = vrot.slane %v3491, 4
      %v6395 = vsel %vm3692, %v3555, %v6394
      %v6397 = vunpack.c.l.s4 1983009808
      %v6398 = vunpack.c.0.s8 %v6397
      %v6399 = vperm.slane %v6393, %v6398
      %v6401 = vunpack.c.l.s4 1983009808
      %v6402 = vunpack.c.0.s8 %v6401
      %v6403 = vperm.slane %v6395, %v6402
      %v6404 = vrot.slane %v3651, 4
      %v6405 = vsel %vm3692, %v6404, %v3587
      %v6406 = vrot.slane %v3587, 4
      %v6407 = vsel %vm3692, %v3651, %v6406
      %v6409 = vunpack.c.l.s4 1983009808
      %v6410 = vunpack.c.0.s8 %v6409
      %v6411 = vperm.slane %v6405, %v6410
      %v6413 = vunpack.c.l.s4 1983009808
      %v6414 = vunpack.c.0.s8 %v6413
      %v6415 = vperm.slane %v6407, %v6414
      %v6416 = vrot.slane %v3683, 4
      %v6417 = vsel %vm3692, %v6416, %v3619
      %v6418 = vrot.slane %v3619, 4
      %v6419 = vsel %vm3692, %v3683, %v6418
      %v6421 = vunpack.c.l.s4 1983009808
      %v6422 = vunpack.c.0.s8 %v6421
      %v6423 = vperm.slane %v6417, %v6422
      %v6425 = vunpack.c.l.s4 1983009808
      %v6426 = vunpack.c.0.s8 %v6425
      %v6427 = vperm.slane %v6419, %v6426
      %v6428 = vrot.slane %v6399, 4
      %v6429 = vsel %vm3692, %v6428, %v6387
      %v6430 = vrot.slane %v6387, 4
      %v6431 = vsel %vm3692, %v6399, %v6430
      %v6433 = vunpack.c.l.s4 1934713408
      %v6434 = vunpack.c.0.s8 %v6433
      %v6435 = vperm.slane %v6429, %v6434
      %v6437 = vunpack.c.l.s4 1934713408
      %v6438 = vunpack.c.0.s8 %v6437
      %v6439 = vperm.slane %v6431, %v6438
      %v6440 = vrot.slane %v6403, 4
      %v6441 = vsel %vm3692, %v6440, %v6391
      %v6442 = vrot.slane %v6391, 4
      %v6443 = vsel %vm3692, %v6403, %v6442
      %v6445 = vunpack.c.l.s4 1934713408
      %v6446 = vunpack.c.0.s8 %v6445
      %v6447 = vperm.slane %v6441, %v6446
      %v6449 = vunpack.c.l.s4 1934713408
      %v6450 = vunpack.c.0.s8 %v6449
      %v6451 = vperm.slane %v6443, %v6450
      %v6452 = vrot.slane %v6423, 4
      %v6453 = vsel %vm3692, %v6452, %v6411
      %v6454 = vrot.slane %v6411, 4
      %v6455 = vsel %vm3692, %v6423, %v6454
      %v6457 = vunpack.c.l.s4 1934713408
      %v6458 = vunpack.c.0.s8 %v6457
      %v6459 = vperm.slane %v6453, %v6458
      %v6461 = vunpack.c.l.s4 1934713408
      %v6462 = vunpack.c.0.s8 %v6461
      %v6463 = vperm.slane %v6455, %v6462
      %v6464 = vrot.slane %v6427, 4
      %v6465 = vsel %vm3692, %v6464, %v6415
      %v6466 = vrot.slane %v6415, 4
      %v6467 = vsel %vm3692, %v6427, %v6466
      %v6469 = vunpack.c.l.s4 1934713408
      %v6470 = vunpack.c.0.s8 %v6469
      %v6471 = vperm.slane %v6465, %v6470
      %v6473 = vunpack.c.l.s4 1934713408
      %v6474 = vunpack.c.0.s8 %v6473
      %v6475 = vperm.slane %v6467, %v6474
      %v6476 = vrot.slane %v6459, 4
      %v6477 = vsel %vm3692, %v6476, %v6435
      %v6478 = vrot.slane %v6435, 4
      %v6479 = vsel %vm3692, %v6459, %v6478
      %v6480 = vrot.slane %v6463, 4
      %v6481 = vsel %vm3692, %v6480, %v6439
      %v6482 = vrot.slane %v6439, 4
      %v6483 = vsel %vm3692, %v6463, %v6482
      %v6484 = vrot.slane %v6471, 4
      %v6485 = vsel %vm3692, %v6484, %v6447
      %v6486 = vrot.slane %v6447, 4
      %v6487 = vsel %vm3692, %v6471, %v6486
      %v6488 = vrot.slane %v6475, 4
      %v6489 = vsel %vm3692, %v6488, %v6451
      %v6490 = vrot.slane %v6451, 4
      %v6491 = vsel %vm3692, %v6475, %v6490
      %v6492 = vrot.slane %v3524, 4
      %v6493 = vsel %vm3692, %v6492, %v3460
      %v6494 = vrot.slane %v3460, 4
      %v6495 = vsel %vm3692, %v3524, %v6494
      %v6497 = vunpack.c.l.s4 1983009808
      %v6498 = vunpack.c.0.s8 %v6497
      %v6499 = vperm.slane %v6493, %v6498
      %v6501 = vunpack.c.l.s4 1983009808
      %v6502 = vunpack.c.0.s8 %v6501
      %v6503 = vperm.slane %v6495, %v6502
      %v6504 = vrot.slane %v3556, 4
      %v6505 = vsel %vm3692, %v6504, %v3492
      %v6506 = vrot.slane %v3492, 4
      %v6507 = vsel %vm3692, %v3556, %v6506
      %v6509 = vunpack.c.l.s4 1983009808
      %v6510 = vunpack.c.0.s8 %v6509
      %v6511 = vperm.slane %v6505, %v6510
      %v6513 = vunpack.c.l.s4 1983009808
      %v6514 = vunpack.c.0.s8 %v6513
      %v6515 = vperm.slane %v6507, %v6514
      %v6516 = vrot.slane %v3652, 4
      %v6517 = vsel %vm3692, %v6516, %v3588
      %v6518 = vrot.slane %v3588, 4
      %v6519 = vsel %vm3692, %v3652, %v6518
      %v6521 = vunpack.c.l.s4 1983009808
      %v6522 = vunpack.c.0.s8 %v6521
      %v6523 = vperm.slane %v6517, %v6522
      %v6525 = vunpack.c.l.s4 1983009808
      %v6526 = vunpack.c.0.s8 %v6525
      %v6527 = vperm.slane %v6519, %v6526
      %v6528 = vrot.slane %v3684, 4
      %v6529 = vsel %vm3692, %v6528, %v3620
      %v6530 = vrot.slane %v3620, 4
      %v6531 = vsel %vm3692, %v3684, %v6530
      %v6533 = vunpack.c.l.s4 1983009808
      %v6534 = vunpack.c.0.s8 %v6533
      %v6535 = vperm.slane %v6529, %v6534
      %v6537 = vunpack.c.l.s4 1983009808
      %v6538 = vunpack.c.0.s8 %v6537
      %v6539 = vperm.slane %v6531, %v6538
      %v6540 = vrot.slane %v6511, 4
      %v6541 = vsel %vm3692, %v6540, %v6499
      %v6542 = vrot.slane %v6499, 4
      %v6543 = vsel %vm3692, %v6511, %v6542
      %v6545 = vunpack.c.l.s4 1934713408
      %v6546 = vunpack.c.0.s8 %v6545
      %v6547 = vperm.slane %v6541, %v6546
      %v6549 = vunpack.c.l.s4 1934713408
      %v6550 = vunpack.c.0.s8 %v6549
      %v6551 = vperm.slane %v6543, %v6550
      %v6552 = vrot.slane %v6515, 4
      %v6553 = vsel %vm3692, %v6552, %v6503
      %v6554 = vrot.slane %v6503, 4
      %v6555 = vsel %vm3692, %v6515, %v6554
      %v6557 = vunpack.c.l.s4 1934713408
      %v6558 = vunpack.c.0.s8 %v6557
      %v6559 = vperm.slane %v6553, %v6558
      %v6561 = vunpack.c.l.s4 1934713408
      %v6562 = vunpack.c.0.s8 %v6561
      %v6563 = vperm.slane %v6555, %v6562
      %v6564 = vrot.slane %v6535, 4
      %v6565 = vsel %vm3692, %v6564, %v6523
      %v6566 = vrot.slane %v6523, 4
      %v6567 = vsel %vm3692, %v6535, %v6566
      %v6569 = vunpack.c.l.s4 1934713408
      %v6570 = vunpack.c.0.s8 %v6569
      %v6571 = vperm.slane %v6565, %v6570
      %v6573 = vunpack.c.l.s4 1934713408
      %v6574 = vunpack.c.0.s8 %v6573
      %v6575 = vperm.slane %v6567, %v6574
      %v6576 = vrot.slane %v6539, 4
      %v6577 = vsel %vm3692, %v6576, %v6527
      %v6578 = vrot.slane %v6527, 4
      %v6579 = vsel %vm3692, %v6539, %v6578
      %v6581 = vunpack.c.l.s4 1934713408
      %v6582 = vunpack.c.0.s8 %v6581
      %v6583 = vperm.slane %v6577, %v6582
      %v6585 = vunpack.c.l.s4 1934713408
      %v6586 = vunpack.c.0.s8 %v6585
      %v6587 = vperm.slane %v6579, %v6586
      %v6588 = vrot.slane %v6571, 4
      %v6589 = vsel %vm3692, %v6588, %v6547
      %v6590 = vrot.slane %v6547, 4
      %v6591 = vsel %vm3692, %v6571, %v6590
      %v6592 = vrot.slane %v6575, 4
      %v6593 = vsel %vm3692, %v6592, %v6551
      %v6594 = vrot.slane %v6551, 4
      %v6595 = vsel %vm3692, %v6575, %v6594
      %v6596 = vrot.slane %v6583, 4
      %v6597 = vsel %vm3692, %v6596, %v6559
      %v6598 = vrot.slane %v6559, 4
      %v6599 = vsel %vm3692, %v6583, %v6598
      %v6600 = vrot.slane %v6587, 4
      %v6601 = vsel %vm3692, %v6600, %v6563
      %v6602 = vrot.slane %v6563, 4
      %v6603 = vsel %vm3692, %v6587, %v6602
      %v6604 = vrot.slane %v3525, 4
      %v6605 = vsel %vm3692, %v6604, %v3461
      %v6606 = vrot.slane %v3461, 4
      %v6607 = vsel %vm3692, %v3525, %v6606
      %v6609 = vunpack.c.l.s4 1983009808
      %v6610 = vunpack.c.0.s8 %v6609
      %v6611 = vperm.slane %v6605, %v6610
      %v6613 = vunpack.c.l.s4 1983009808
      %v6614 = vunpack.c.0.s8 %v6613
      %v6615 = vperm.slane %v6607, %v6614
      %v6616 = vrot.slane %v3557, 4
      %v6617 = vsel %vm3692, %v6616, %v3493
      %v6618 = vrot.slane %v3493, 4
      %v6619 = vsel %vm3692, %v3557, %v6618
      %v6621 = vunpack.c.l.s4 1983009808
      %v6622 = vunpack.c.0.s8 %v6621
      %v6623 = vperm.slane %v6617, %v6622
      %v6625 = vunpack.c.l.s4 1983009808
      %v6626 = vunpack.c.0.s8 %v6625
      %v6627 = vperm.slane %v6619, %v6626
      %v6628 = vrot.slane %v3653, 4
      %v6629 = vsel %vm3692, %v6628, %v3589
      %v6630 = vrot.slane %v3589, 4
      %v6631 = vsel %vm3692, %v3653, %v6630
      %v6633 = vunpack.c.l.s4 1983009808
      %v6634 = vunpack.c.0.s8 %v6633
      %v6635 = vperm.slane %v6629, %v6634
      %v6637 = vunpack.c.l.s4 1983009808
      %v6638 = vunpack.c.0.s8 %v6637
      %v6639 = vperm.slane %v6631, %v6638
      %v6640 = vrot.slane %v3685, 4
      %v6641 = vsel %vm3692, %v6640, %v3621
      %v6642 = vrot.slane %v3621, 4
      %v6643 = vsel %vm3692, %v3685, %v6642
      %v6645 = vunpack.c.l.s4 1983009808
      %v6646 = vunpack.c.0.s8 %v6645
      %v6647 = vperm.slane %v6641, %v6646
      %v6649 = vunpack.c.l.s4 1983009808
      %v6650 = vunpack.c.0.s8 %v6649
      %v6651 = vperm.slane %v6643, %v6650
      %v6652 = vrot.slane %v6623, 4
      %v6653 = vsel %vm3692, %v6652, %v6611
      %v6654 = vrot.slane %v6611, 4
      %v6655 = vsel %vm3692, %v6623, %v6654
      %v6657 = vunpack.c.l.s4 1934713408
      %v6658 = vunpack.c.0.s8 %v6657
      %v6659 = vperm.slane %v6653, %v6658
      %v6661 = vunpack.c.l.s4 1934713408
      %v6662 = vunpack.c.0.s8 %v6661
      %v6663 = vperm.slane %v6655, %v6662
      %v6664 = vrot.slane %v6627, 4
      %v6665 = vsel %vm3692, %v6664, %v6615
      %v6666 = vrot.slane %v6615, 4
      %v6667 = vsel %vm3692, %v6627, %v6666
      %v6669 = vunpack.c.l.s4 1934713408
      %v6670 = vunpack.c.0.s8 %v6669
      %v6671 = vperm.slane %v6665, %v6670
      %v6673 = vunpack.c.l.s4 1934713408
      %v6674 = vunpack.c.0.s8 %v6673
      %v6675 = vperm.slane %v6667, %v6674
      %v6676 = vrot.slane %v6647, 4
      %v6677 = vsel %vm3692, %v6676, %v6635
      %v6678 = vrot.slane %v6635, 4
      %v6679 = vsel %vm3692, %v6647, %v6678
      %v6681 = vunpack.c.l.s4 1934713408
      %v6682 = vunpack.c.0.s8 %v6681
      %v6683 = vperm.slane %v6677, %v6682
      %v6685 = vunpack.c.l.s4 1934713408
      %v6686 = vunpack.c.0.s8 %v6685
      %v6687 = vperm.slane %v6679, %v6686
      %v6688 = vrot.slane %v6651, 4
      %v6689 = vsel %vm3692, %v6688, %v6639
      %v6690 = vrot.slane %v6639, 4
      %v6691 = vsel %vm3692, %v6651, %v6690
      %v6693 = vunpack.c.l.s4 1934713408
      %v6694 = vunpack.c.0.s8 %v6693
      %v6695 = vperm.slane %v6689, %v6694
      %v6697 = vunpack.c.l.s4 1934713408
      %v6698 = vunpack.c.0.s8 %v6697
      %v6699 = vperm.slane %v6691, %v6698
      %v6700 = vrot.slane %v6683, 4
      %v6701 = vsel %vm3692, %v6700, %v6659
      %v6702 = vrot.slane %v6659, 4
      %v6703 = vsel %vm3692, %v6683, %v6702
      %v6704 = vrot.slane %v6687, 4
      %v6705 = vsel %vm3692, %v6704, %v6663
      %v6706 = vrot.slane %v6663, 4
      %v6707 = vsel %vm3692, %v6687, %v6706
      %v6708 = vrot.slane %v6695, 4
      %v6709 = vsel %vm3692, %v6708, %v6671
      %v6710 = vrot.slane %v6671, 4
      %v6711 = vsel %vm3692, %v6695, %v6710
      %v6712 = vrot.slane %v6699, 4
      %v6713 = vsel %vm3692, %v6712, %v6675
      %v6714 = vrot.slane %v6675, 4
      %v6715 = vsel %vm3692, %v6699, %v6714
      %v6716 = vrot.slane %v3526, 4
      %v6717 = vsel %vm3692, %v6716, %v3462
      %v6718 = vrot.slane %v3462, 4
      %v6719 = vsel %vm3692, %v3526, %v6718
      %v6721 = vunpack.c.l.s4 1983009808
      %v6722 = vunpack.c.0.s8 %v6721
      %v6723 = vperm.slane %v6717, %v6722
      %v6725 = vunpack.c.l.s4 1983009808
      %v6726 = vunpack.c.0.s8 %v6725
      %v6727 = vperm.slane %v6719, %v6726
      %v6728 = vrot.slane %v3558, 4
      %v6729 = vsel %vm3692, %v6728, %v3494
      %v6730 = vrot.slane %v3494, 4
      %v6731 = vsel %vm3692, %v3558, %v6730
      %v6733 = vunpack.c.l.s4 1983009808
      %v6734 = vunpack.c.0.s8 %v6733
      %v6735 = vperm.slane %v6729, %v6734
      %v6737 = vunpack.c.l.s4 1983009808
      %v6738 = vunpack.c.0.s8 %v6737
      %v6739 = vperm.slane %v6731, %v6738
      %v6740 = vrot.slane %v3654, 4
      %v6741 = vsel %vm3692, %v6740, %v3590
      %v6742 = vrot.slane %v3590, 4
      %v6743 = vsel %vm3692, %v3654, %v6742
      %v6745 = vunpack.c.l.s4 1983009808
      %v6746 = vunpack.c.0.s8 %v6745
      %v6747 = vperm.slane %v6741, %v6746
      %v6749 = vunpack.c.l.s4 1983009808
      %v6750 = vunpack.c.0.s8 %v6749
      %v6751 = vperm.slane %v6743, %v6750
      %v6752 = vrot.slane %v3686, 4
      %v6753 = vsel %vm3692, %v6752, %v3622
      %v6754 = vrot.slane %v3622, 4
      %v6755 = vsel %vm3692, %v3686, %v6754
      %v6757 = vunpack.c.l.s4 1983009808
      %v6758 = vunpack.c.0.s8 %v6757
      %v6759 = vperm.slane %v6753, %v6758
      %v6761 = vunpack.c.l.s4 1983009808
      %v6762 = vunpack.c.0.s8 %v6761
      %v6763 = vperm.slane %v6755, %v6762
      %v6764 = vrot.slane %v6735, 4
      %v6765 = vsel %vm3692, %v6764, %v6723
      %v6766 = vrot.slane %v6723, 4
      %v6767 = vsel %vm3692, %v6735, %v6766
      %v6769 = vunpack.c.l.s4 1934713408
      %v6770 = vunpack.c.0.s8 %v6769
      %v6771 = vperm.slane %v6765, %v6770
      %v6773 = vunpack.c.l.s4 1934713408
      %v6774 = vunpack.c.0.s8 %v6773
      %v6775 = vperm.slane %v6767, %v6774
      %v6776 = vrot.slane %v6739, 4
      %v6777 = vsel %vm3692, %v6776, %v6727
      %v6778 = vrot.slane %v6727, 4
      %v6779 = vsel %vm3692, %v6739, %v6778
      %v6781 = vunpack.c.l.s4 1934713408
      %v6782 = vunpack.c.0.s8 %v6781
      %v6783 = vperm.slane %v6777, %v6782
      %v6785 = vunpack.c.l.s4 1934713408
      %v6786 = vunpack.c.0.s8 %v6785
      %v6787 = vperm.slane %v6779, %v6786
      %v6788 = vrot.slane %v6759, 4
      %v6789 = vsel %vm3692, %v6788, %v6747
      %v6790 = vrot.slane %v6747, 4
      %v6791 = vsel %vm3692, %v6759, %v6790
      %v6793 = vunpack.c.l.s4 1934713408
      %v6794 = vunpack.c.0.s8 %v6793
      %v6795 = vperm.slane %v6789, %v6794
      %v6797 = vunpack.c.l.s4 1934713408
      %v6798 = vunpack.c.0.s8 %v6797
      %v6799 = vperm.slane %v6791, %v6798
      %v6800 = vrot.slane %v6763, 4
      %v6801 = vsel %vm3692, %v6800, %v6751
      %v6802 = vrot.slane %v6751, 4
      %v6803 = vsel %vm3692, %v6763, %v6802
      %v6805 = vunpack.c.l.s4 1934713408
      %v6806 = vunpack.c.0.s8 %v6805
      %v6807 = vperm.slane %v6801, %v6806
      %v6809 = vunpack.c.l.s4 1934713408
      %v6810 = vunpack.c.0.s8 %v6809
      %v6811 = vperm.slane %v6803, %v6810
      %v6812 = vrot.slane %v6795, 4
      %v6813 = vsel %vm3692, %v6812, %v6771
      %v6814 = vrot.slane %v6771, 4
      %v6815 = vsel %vm3692, %v6795, %v6814
      %v6816 = vrot.slane %v6799, 4
      %v6817 = vsel %vm3692, %v6816, %v6775
      %v6818 = vrot.slane %v6775, 4
      %v6819 = vsel %vm3692, %v6799, %v6818
      %v6820 = vrot.slane %v6807, 4
      %v6821 = vsel %vm3692, %v6820, %v6783
      %v6822 = vrot.slane %v6783, 4
      %v6823 = vsel %vm3692, %v6807, %v6822
      %v6824 = vrot.slane %v6811, 4
      %v6825 = vsel %vm3692, %v6824, %v6787
      %v6826 = vrot.slane %v6787, 4
      %v6827 = vsel %vm3692, %v6811, %v6826
      %v6828 = vrot.slane %v3527, 4
      %v6829 = vsel %vm3692, %v6828, %v3463
      %v6830 = vrot.slane %v3463, 4
      %v6831 = vsel %vm3692, %v3527, %v6830
      %v6833 = vunpack.c.l.s4 1983009808
      %v6834 = vunpack.c.0.s8 %v6833
      %v6835 = vperm.slane %v6829, %v6834
      %v6837 = vunpack.c.l.s4 1983009808
      %v6838 = vunpack.c.0.s8 %v6837
      %v6839 = vperm.slane %v6831, %v6838
      %v6840 = vrot.slane %v3559, 4
      %v6841 = vsel %vm3692, %v6840, %v3495
      %v6842 = vrot.slane %v3495, 4
      %v6843 = vsel %vm3692, %v3559, %v6842
      %v6845 = vunpack.c.l.s4 1983009808
      %v6846 = vunpack.c.0.s8 %v6845
      %v6847 = vperm.slane %v6841, %v6846
      %v6849 = vunpack.c.l.s4 1983009808
      %v6850 = vunpack.c.0.s8 %v6849
      %v6851 = vperm.slane %v6843, %v6850
      %v6852 = vrot.slane %v3655, 4
      %v6853 = vsel %vm3692, %v6852, %v3591
      %v6854 = vrot.slane %v3591, 4
      %v6855 = vsel %vm3692, %v3655, %v6854
      %v6857 = vunpack.c.l.s4 1983009808
      %v6858 = vunpack.c.0.s8 %v6857
      %v6859 = vperm.slane %v6853, %v6858
      %v6861 = vunpack.c.l.s4 1983009808
      %v6862 = vunpack.c.0.s8 %v6861
      %v6863 = vperm.slane %v6855, %v6862
      %v6864 = vrot.slane %v3687, 4
      %v6865 = vsel %vm3692, %v6864, %v3623
      %v6866 = vrot.slane %v3623, 4
      %v6867 = vsel %vm3692, %v3687, %v6866
      %v6869 = vunpack.c.l.s4 1983009808
      %v6870 = vunpack.c.0.s8 %v6869
      %v6871 = vperm.slane %v6865, %v6870
      %v6873 = vunpack.c.l.s4 1983009808
      %v6874 = vunpack.c.0.s8 %v6873
      %v6875 = vperm.slane %v6867, %v6874
      %v6876 = vrot.slane %v6847, 4
      %v6877 = vsel %vm3692, %v6876, %v6835
      %v6878 = vrot.slane %v6835, 4
      %v6879 = vsel %vm3692, %v6847, %v6878
      %v6881 = vunpack.c.l.s4 1934713408
      %v6882 = vunpack.c.0.s8 %v6881
      %v6883 = vperm.slane %v6877, %v6882
      %v6885 = vunpack.c.l.s4 1934713408
      %v6886 = vunpack.c.0.s8 %v6885
      %v6887 = vperm.slane %v6879, %v6886
      %v6888 = vrot.slane %v6851, 4
      %v6889 = vsel %vm3692, %v6888, %v6839
      %v6890 = vrot.slane %v6839, 4
      %v6891 = vsel %vm3692, %v6851, %v6890
      %v6893 = vunpack.c.l.s4 1934713408
      %v6894 = vunpack.c.0.s8 %v6893
      %v6895 = vperm.slane %v6889, %v6894
      %v6897 = vunpack.c.l.s4 1934713408
      %v6898 = vunpack.c.0.s8 %v6897
      %v6899 = vperm.slane %v6891, %v6898
      %v6900 = vrot.slane %v6871, 4
      %v6901 = vsel %vm3692, %v6900, %v6859
      %v6902 = vrot.slane %v6859, 4
      %v6903 = vsel %vm3692, %v6871, %v6902
      %v6905 = vunpack.c.l.s4 1934713408
      %v6906 = vunpack.c.0.s8 %v6905
      %v6907 = vperm.slane %v6901, %v6906
      %v6909 = vunpack.c.l.s4 1934713408
      %v6910 = vunpack.c.0.s8 %v6909
      %v6911 = vperm.slane %v6903, %v6910
      %v6912 = vrot.slane %v6875, 4
      %v6913 = vsel %vm3692, %v6912, %v6863
      %v6914 = vrot.slane %v6863, 4
      %v6915 = vsel %vm3692, %v6875, %v6914
      %v6917 = vunpack.c.l.s4 1934713408
      %v6918 = vunpack.c.0.s8 %v6917
      %v6919 = vperm.slane %v6913, %v6918
      %v6921 = vunpack.c.l.s4 1934713408
      %v6922 = vunpack.c.0.s8 %v6921
      %v6923 = vperm.slane %v6915, %v6922
      %v6924 = vrot.slane %v6907, 4
      %v6925 = vsel %vm3692, %v6924, %v6883
      %v6926 = vrot.slane %v6883, 4
      %v6927 = vsel %vm3692, %v6907, %v6926
      %v6928 = vrot.slane %v6911, 4
      %v6929 = vsel %vm3692, %v6928, %v6887
      %v6930 = vrot.slane %v6887, 4
      %v6931 = vsel %vm3692, %v6911, %v6930
      %v6932 = vrot.slane %v6919, 4
      %v6933 = vsel %vm3692, %v6932, %v6895
      %v6934 = vrot.slane %v6895, 4
      %v6935 = vsel %vm3692, %v6919, %v6934
      %v6936 = vrot.slane %v6923, 4
      %v6937 = vsel %vm3692, %v6936, %v6899
      %v6938 = vrot.slane %v6899, 4
      %v6939 = vsel %vm3692, %v6923, %v6938
      %v6940 = vrot.slane %v3528, 4
      %v6941 = vsel %vm3692, %v6940, %v3464
      %v6942 = vrot.slane %v3464, 4
      %v6943 = vsel %vm3692, %v3528, %v6942
      %v6945 = vunpack.c.l.s4 1983009808
      %v6946 = vunpack.c.0.s8 %v6945
      %v6947 = vperm.slane %v6941, %v6946
      %v6949 = vunpack.c.l.s4 1983009808
      %v6950 = vunpack.c.0.s8 %v6949
      %v6951 = vperm.slane %v6943, %v6950
      %v6952 = vrot.slane %v3560, 4
      %v6953 = vsel %vm3692, %v6952, %v3496
      %v6954 = vrot.slane %v3496, 4
      %v6955 = vsel %vm3692, %v3560, %v6954
      %v6957 = vunpack.c.l.s4 1983009808
      %v6958 = vunpack.c.0.s8 %v6957
      %v6959 = vperm.slane %v6953, %v6958
      %v6961 = vunpack.c.l.s4 1983009808
      %v6962 = vunpack.c.0.s8 %v6961
      %v6963 = vperm.slane %v6955, %v6962
      %v6964 = vrot.slane %v3656, 4
      %v6965 = vsel %vm3692, %v6964, %v3592
      %v6966 = vrot.slane %v3592, 4
      %v6967 = vsel %vm3692, %v3656, %v6966
      %v6969 = vunpack.c.l.s4 1983009808
      %v6970 = vunpack.c.0.s8 %v6969
      %v6971 = vperm.slane %v6965, %v6970
      %v6973 = vunpack.c.l.s4 1983009808
      %v6974 = vunpack.c.0.s8 %v6973
      %v6975 = vperm.slane %v6967, %v6974
      %v6976 = vrot.slane %v3688, 4
      %v6977 = vsel %vm3692, %v6976, %v3624
      %v6978 = vrot.slane %v3624, 4
      %v6979 = vsel %vm3692, %v3688, %v6978
      %v6981 = vunpack.c.l.s4 1983009808
      %v6982 = vunpack.c.0.s8 %v6981
      %v6983 = vperm.slane %v6977, %v6982
      %v6985 = vunpack.c.l.s4 1983009808
      %v6986 = vunpack.c.0.s8 %v6985
      %v6987 = vperm.slane %v6979, %v6986
      %v6988 = vrot.slane %v6959, 4
      %v6989 = vsel %vm3692, %v6988, %v6947
      %v6990 = vrot.slane %v6947, 4
      %v6991 = vsel %vm3692, %v6959, %v6990
      %v6993 = vunpack.c.l.s4 1934713408
      %v6994 = vunpack.c.0.s8 %v6993
      %v6995 = vperm.slane %v6989, %v6994
      %v6997 = vunpack.c.l.s4 1934713408
      %v6998 = vunpack.c.0.s8 %v6997
      %v6999 = vperm.slane %v6991, %v6998
      %v7000 = vrot.slane %v6963, 4
      %v7001 = vsel %vm3692, %v7000, %v6951
      %v7002 = vrot.slane %v6951, 4
      %v7003 = vsel %vm3692, %v6963, %v7002
      %v7005 = vunpack.c.l.s4 1934713408
      %v7006 = vunpack.c.0.s8 %v7005
      %v7007 = vperm.slane %v7001, %v7006
      %v7009 = vunpack.c.l.s4 1934713408
      %v7010 = vunpack.c.0.s8 %v7009
      %v7011 = vperm.slane %v7003, %v7010
      %v7012 = vrot.slane %v6983, 4
      %v7013 = vsel %vm3692, %v7012, %v6971
      %v7014 = vrot.slane %v6971, 4
      %v7015 = vsel %vm3692, %v6983, %v7014
      %v7017 = vunpack.c.l.s4 1934713408
      %v7018 = vunpack.c.0.s8 %v7017
      %v7019 = vperm.slane %v7013, %v7018
      %v7021 = vunpack.c.l.s4 1934713408
      %v7022 = vunpack.c.0.s8 %v7021
      %v7023 = vperm.slane %v7015, %v7022
      %v7024 = vrot.slane %v6987, 4
      %v7025 = vsel %vm3692, %v7024, %v6975
      %v7026 = vrot.slane %v6975, 4
      %v7027 = vsel %vm3692, %v6987, %v7026
      %v7029 = vunpack.c.l.s4 1934713408
      %v7030 = vunpack.c.0.s8 %v7029
      %v7031 = vperm.slane %v7025, %v7030
      %v7033 = vunpack.c.l.s4 1934713408
      %v7034 = vunpack.c.0.s8 %v7033
      %v7035 = vperm.slane %v7027, %v7034
      %v7036 = vrot.slane %v7019, 4
      %v7037 = vsel %vm3692, %v7036, %v6995
      %v7038 = vrot.slane %v6995, 4
      %v7039 = vsel %vm3692, %v7019, %v7038
      %v7040 = vrot.slane %v7023, 4
      %v7041 = vsel %vm3692, %v7040, %v6999
      %v7042 = vrot.slane %v6999, 4
      %v7043 = vsel %vm3692, %v7023, %v7042
      %v7044 = vrot.slane %v7031, 4
      %v7045 = vsel %vm3692, %v7044, %v7007
      %v7046 = vrot.slane %v7007, 4
      %v7047 = vsel %vm3692, %v7031, %v7046
      %v7048 = vrot.slane %v7035, 4
      %v7049 = vsel %vm3692, %v7048, %v7011
      %v7050 = vrot.slane %v7011, 4
      %v7051 = vsel %vm3692, %v7035, %v7050
      %v7052 = vrot.slane %v3529, 4
      %v7053 = vsel %vm3692, %v7052, %v3465
      %v7054 = vrot.slane %v3465, 4
      %v7055 = vsel %vm3692, %v3529, %v7054
      %v7057 = vunpack.c.l.s4 1983009808
      %v7058 = vunpack.c.0.s8 %v7057
      %v7059 = vperm.slane %v7053, %v7058
      %v7061 = vunpack.c.l.s4 1983009808
      %v7062 = vunpack.c.0.s8 %v7061
      %v7063 = vperm.slane %v7055, %v7062
      %v7064 = vrot.slane %v3561, 4
      %v7065 = vsel %vm3692, %v7064, %v3497
      %v7066 = vrot.slane %v3497, 4
      %v7067 = vsel %vm3692, %v3561, %v7066
      %v7069 = vunpack.c.l.s4 1983009808
      %v7070 = vunpack.c.0.s8 %v7069
      %v7071 = vperm.slane %v7065, %v7070
      %v7073 = vunpack.c.l.s4 1983009808
      %v7074 = vunpack.c.0.s8 %v7073
      %v7075 = vperm.slane %v7067, %v7074
      %v7076 = vrot.slane %v3657, 4
      %v7077 = vsel %vm3692, %v7076, %v3593
      %v7078 = vrot.slane %v3593, 4
      %v7079 = vsel %vm3692, %v3657, %v7078
      %v7081 = vunpack.c.l.s4 1983009808
      %v7082 = vunpack.c.0.s8 %v7081
      %v7083 = vperm.slane %v7077, %v7082
      %v7085 = vunpack.c.l.s4 1983009808
      %v7086 = vunpack.c.0.s8 %v7085
      %v7087 = vperm.slane %v7079, %v7086
      %v7088 = vrot.slane %v3689, 4
      %v7089 = vsel %vm3692, %v7088, %v3625
      %v7090 = vrot.slane %v3625, 4
      %v7091 = vsel %vm3692, %v3689, %v7090
      %v7093 = vunpack.c.l.s4 1983009808
      %v7094 = vunpack.c.0.s8 %v7093
      %v7095 = vperm.slane %v7089, %v7094
      %v7097 = vunpack.c.l.s4 1983009808
      %v7098 = vunpack.c.0.s8 %v7097
      %v7099 = vperm.slane %v7091, %v7098
      %v7100 = vrot.slane %v7071, 4
      %v7101 = vsel %vm3692, %v7100, %v7059
      %v7102 = vrot.slane %v7059, 4
      %v7103 = vsel %vm3692, %v7071, %v7102
      %v7105 = vunpack.c.l.s4 1934713408
      %v7106 = vunpack.c.0.s8 %v7105
      %v7107 = vperm.slane %v7101, %v7106
      %v7109 = vunpack.c.l.s4 1934713408
      %v7110 = vunpack.c.0.s8 %v7109
      %v7111 = vperm.slane %v7103, %v7110
      %v7112 = vrot.slane %v7075, 4
      %v7113 = vsel %vm3692, %v7112, %v7063
      %v7114 = vrot.slane %v7063, 4
      %v7115 = vsel %vm3692, %v7075, %v7114
      %v7117 = vunpack.c.l.s4 1934713408
      %v7118 = vunpack.c.0.s8 %v7117
      %v7119 = vperm.slane %v7113, %v7118
      %v7121 = vunpack.c.l.s4 1934713408
      %v7122 = vunpack.c.0.s8 %v7121
      %v7123 = vperm.slane %v7115, %v7122
      %v7124 = vrot.slane %v7095, 4
      %v7125 = vsel %vm3692, %v7124, %v7083
      %v7126 = vrot.slane %v7083, 4
      %v7127 = vsel %vm3692, %v7095, %v7126
      %v7129 = vunpack.c.l.s4 1934713408
      %v7130 = vunpack.c.0.s8 %v7129
      %v7131 = vperm.slane %v7125, %v7130
      %v7133 = vunpack.c.l.s4 1934713408
      %v7134 = vunpack.c.0.s8 %v7133
      %v7135 = vperm.slane %v7127, %v7134
      %v7136 = vrot.slane %v7099, 4
      %v7137 = vsel %vm3692, %v7136, %v7087
      %v7138 = vrot.slane %v7087, 4
      %v7139 = vsel %vm3692, %v7099, %v7138
      %v7141 = vunpack.c.l.s4 1934713408
      %v7142 = vunpack.c.0.s8 %v7141
      %v7143 = vperm.slane %v7137, %v7142
      %v7145 = vunpack.c.l.s4 1934713408
      %v7146 = vunpack.c.0.s8 %v7145
      %v7147 = vperm.slane %v7139, %v7146
      %v7148 = vrot.slane %v7131, 4
      %v7149 = vsel %vm3692, %v7148, %v7107
      %v7150 = vrot.slane %v7107, 4
      %v7151 = vsel %vm3692, %v7131, %v7150
      %v7152 = vrot.slane %v7135, 4
      %v7153 = vsel %vm3692, %v7152, %v7111
      %v7154 = vrot.slane %v7111, 4
      %v7155 = vsel %vm3692, %v7135, %v7154
      %v7156 = vrot.slane %v7143, 4
      %v7157 = vsel %vm3692, %v7156, %v7119
      %v7158 = vrot.slane %v7119, 4
      %v7159 = vsel %vm3692, %v7143, %v7158
      %v7160 = vrot.slane %v7147, 4
      %v7161 = vsel %vm3692, %v7160, %v7123
      %v7162 = vrot.slane %v7123, 4
      %v7163 = vsel %vm3692, %v7147, %v7162
      %v7164 = vrot.slane %v3530, 4
      %v7165 = vsel %vm3692, %v7164, %v3466
      %v7166 = vrot.slane %v3466, 4
      %v7167 = vsel %vm3692, %v3530, %v7166
      %v7169 = vunpack.c.l.s4 1983009808
      %v7170 = vunpack.c.0.s8 %v7169
      %v7171 = vperm.slane %v7165, %v7170
      %v7173 = vunpack.c.l.s4 1983009808
      %v7174 = vunpack.c.0.s8 %v7173
      %v7175 = vperm.slane %v7167, %v7174
      %v7176 = vrot.slane %v3562, 4
      %v7177 = vsel %vm3692, %v7176, %v3498
      %v7178 = vrot.slane %v3498, 4
      %v7179 = vsel %vm3692, %v3562, %v7178
      %v7181 = vunpack.c.l.s4 1983009808
      %v7182 = vunpack.c.0.s8 %v7181
      %v7183 = vperm.slane %v7177, %v7182
      %v7185 = vunpack.c.l.s4 1983009808
      %v7186 = vunpack.c.0.s8 %v7185
      %v7187 = vperm.slane %v7179, %v7186
      %v7188 = vrot.slane %v3658, 4
      %v7189 = vsel %vm3692, %v7188, %v3594
      %v7190 = vrot.slane %v3594, 4
      %v7191 = vsel %vm3692, %v3658, %v7190
      %v7193 = vunpack.c.l.s4 1983009808
      %v7194 = vunpack.c.0.s8 %v7193
      %v7195 = vperm.slane %v7189, %v7194
      %v7197 = vunpack.c.l.s4 1983009808
      %v7198 = vunpack.c.0.s8 %v7197
      %v7199 = vperm.slane %v7191, %v7198
      %v7200 = vrot.slane %v3690, 4
      %v7201 = vsel %vm3692, %v7200, %v3626
      %v7202 = vrot.slane %v3626, 4
      %v7203 = vsel %vm3692, %v3690, %v7202
      %v7205 = vunpack.c.l.s4 1983009808
      %v7206 = vunpack.c.0.s8 %v7205
      %v7207 = vperm.slane %v7201, %v7206
      %v7209 = vunpack.c.l.s4 1983009808
      %v7210 = vunpack.c.0.s8 %v7209
      %v7211 = vperm.slane %v7203, %v7210
      %v7212 = vrot.slane %v7183, 4
      %v7213 = vsel %vm3692, %v7212, %v7171
      %v7214 = vrot.slane %v7171, 4
      %v7215 = vsel %vm3692, %v7183, %v7214
      %v7217 = vunpack.c.l.s4 1934713408
      %v7218 = vunpack.c.0.s8 %v7217
      %v7219 = vperm.slane %v7213, %v7218
      %v7221 = vunpack.c.l.s4 1934713408
      %v7222 = vunpack.c.0.s8 %v7221
      %v7223 = vperm.slane %v7215, %v7222
      %v7224 = vrot.slane %v7187, 4
      %v7225 = vsel %vm3692, %v7224, %v7175
      %v7226 = vrot.slane %v7175, 4
      %v7227 = vsel %vm3692, %v7187, %v7226
      %v7229 = vunpack.c.l.s4 1934713408
      %v7230 = vunpack.c.0.s8 %v7229
      %v7231 = vperm.slane %v7225, %v7230
      %v7233 = vunpack.c.l.s4 1934713408
      %v7234 = vunpack.c.0.s8 %v7233
      %v7235 = vperm.slane %v7227, %v7234
      %v7236 = vrot.slane %v7207, 4
      %v7237 = vsel %vm3692, %v7236, %v7195
      %v7238 = vrot.slane %v7195, 4
      %v7239 = vsel %vm3692, %v7207, %v7238
      %v7241 = vunpack.c.l.s4 1934713408
      %v7242 = vunpack.c.0.s8 %v7241
      %v7243 = vperm.slane %v7237, %v7242
      %v7245 = vunpack.c.l.s4 1934713408
      %v7246 = vunpack.c.0.s8 %v7245
      %v7247 = vperm.slane %v7239, %v7246
      %v7248 = vrot.slane %v7211, 4
      %v7249 = vsel %vm3692, %v7248, %v7199
      %v7250 = vrot.slane %v7199, 4
      %v7251 = vsel %vm3692, %v7211, %v7250
      %v7253 = vunpack.c.l.s4 1934713408
      %v7254 = vunpack.c.0.s8 %v7253
      %v7255 = vperm.slane %v7249, %v7254
      %v7257 = vunpack.c.l.s4 1934713408
      %v7258 = vunpack.c.0.s8 %v7257
      %v7259 = vperm.slane %v7251, %v7258
      %v7260 = vrot.slane %v7243, 4
      %v7261 = vsel %vm3692, %v7260, %v7219
      %v7262 = vrot.slane %v7219, 4
      %v7263 = vsel %vm3692, %v7243, %v7262
      %v7264 = vrot.slane %v7247, 4
      %v7265 = vsel %vm3692, %v7264, %v7223
      %v7266 = vrot.slane %v7223, 4
      %v7267 = vsel %vm3692, %v7247, %v7266
      %v7268 = vrot.slane %v7255, 4
      %v7269 = vsel %vm3692, %v7268, %v7231
      %v7270 = vrot.slane %v7231, 4
      %v7271 = vsel %vm3692, %v7255, %v7270
      %v7272 = vrot.slane %v7259, 4
      %v7273 = vsel %vm3692, %v7272, %v7235
      %v7274 = vrot.slane %v7235, 4
      %v7275 = vsel %vm3692, %v7259, %v7274
      %7277 = vrot.lane.b32.xlu0 %v3791, 2
      %v7278 = vpop.permute.xlu0 %7277
      %7281 = vrot.lane.b32.xlu0 %v3793, 4
      %v7282 = vpop.permute.xlu0 %7281
      %7285 = vrot.lane.b32.xlu0 %v3795, 6
      %v7286 = vpop.permute.xlu0 %7285
      %7289 = vrot.lane.b32.xlu0 %v3797, 8
      %v7290 = vpop.permute.xlu0 %7289
      %7293 = vrot.lane.b32.xlu0 %v3799, 10
      %v7294 = vpop.permute.xlu0 %7293
      %7297 = vrot.lane.b32.xlu0 %v3801, 12
      %v7298 = vpop.permute.xlu0 %7297
      %7301 = vrot.lane.b32.xlu0 %v3803, 14
      %v7302 = vpop.permute.xlu0 %7301
      %7305 = vrot.lane.b32.xlu0 %v3901, 16
      %v7306 = vpop.permute.xlu0 %7305
      %7309 = vrot.lane.b32.xlu0 %v3903, 18
      %v7310 = vpop.permute.xlu0 %7309
      %7313 = vrot.lane.b32.xlu0 %v3905, 20
      %v7314 = vpop.permute.xlu0 %7313
      %7317 = vrot.lane.b32.xlu0 %v3907, 22
      %v7318 = vpop.permute.xlu0 %7317
      %7321 = vrot.lane.b32.xlu0 %v3909, 24
      %v7322 = vpop.permute.xlu0 %7321
      %7325 = vrot.lane.b32.xlu0 %v3911, 26
      %v7326 = vpop.permute.xlu0 %7325
      %7329 = vrot.lane.b32.xlu0 %v3913, 28
      %v7330 = vpop.permute.xlu0 %7329
      %7333 = vrot.lane.b32.xlu0 %v3915, 30
      %v7334 = vpop.permute.xlu0 %7333
      %7337 = vrot.lane.b32.xlu0 %v4013, 32
      %v7338 = vpop.permute.xlu0 %7337
      %7341 = vrot.lane.b32.xlu0 %v4015, 34
      %v7342 = vpop.permute.xlu0 %7341
      %7345 = vrot.lane.b32.xlu0 %v4017, 36
      %v7346 = vpop.permute.xlu0 %7345
      %7349 = vrot.lane.b32.xlu0 %v4019, 38
      %v7350 = vpop.permute.xlu0 %7349
      %7353 = vrot.lane.b32.xlu0 %v4021, 40
      %v7354 = vpop.permute.xlu0 %7353
      %7357 = vrot.lane.b32.xlu0 %v4023, 42
      %v7358 = vpop.permute.xlu0 %7357
      %7361 = vrot.lane.b32.xlu0 %v4025, 44
      %v7362 = vpop.permute.xlu0 %7361
      %7365 = vrot.lane.b32.xlu0 %v4027, 46
      %v7366 = vpop.permute.xlu0 %7365
      %7369 = vrot.lane.b32.xlu0 %v4125, 48
      %v7370 = vpop.permute.xlu0 %7369
      %7373 = vrot.lane.b32.xlu0 %v4127, 50
      %v7374 = vpop.permute.xlu0 %7373
      %7377 = vrot.lane.b32.xlu0 %v4129, 52
      %v7378 = vpop.permute.xlu0 %7377
      %7381 = vrot.lane.b32.xlu0 %v4131, 54
      %v7382 = vpop.permute.xlu0 %7381
      %7385 = vrot.lane.b32.xlu0 %v4133, 56
      %v7386 = vpop.permute.xlu0 %7385
      %7389 = vrot.lane.b32.xlu0 %v4135, 58
      %v7390 = vpop.permute.xlu0 %7389
      %7393 = vrot.lane.b32.xlu0 %v4137, 60
      %v7394 = vpop.permute.xlu0 %7393
      %7397 = vrot.lane.b32.xlu0 %v4139, 62
      %v7398 = vpop.permute.xlu0 %7397
      %7401 = vrot.lane.b32.xlu0 %v4237, 64
      %v7402 = vpop.permute.xlu0 %7401
      %7405 = vrot.lane.b32.xlu0 %v4239, 66
      %v7406 = vpop.permute.xlu0 %7405
      %7409 = vrot.lane.b32.xlu0 %v4241, 68
      %v7410 = vpop.permute.xlu0 %7409
      %7413 = vrot.lane.b32.xlu0 %v4243, 70
      %v7414 = vpop.permute.xlu0 %7413
      %7417 = vrot.lane.b32.xlu0 %v4245, 72
      %v7418 = vpop.permute.xlu0 %7417
      %7421 = vrot.lane.b32.xlu0 %v4247, 74
      %v7422 = vpop.permute.xlu0 %7421
      %7425 = vrot.lane.b32.xlu0 %v4249, 76
      %v7426 = vpop.permute.xlu0 %7425
      %7429 = vrot.lane.b32.xlu0 %v4251, 78
      %v7430 = vpop.permute.xlu0 %7429
      %7433 = vrot.lane.b32.xlu0 %v4349, 80
      %v7434 = vpop.permute.xlu0 %7433
      %7437 = vrot.lane.b32.xlu0 %v4351, 82
      %v7438 = vpop.permute.xlu0 %7437
      %7441 = vrot.lane.b32.xlu0 %v4353, 84
      %v7442 = vpop.permute.xlu0 %7441
      %7445 = vrot.lane.b32.xlu0 %v4355, 86
      %v7446 = vpop.permute.xlu0 %7445
      %7449 = vrot.lane.b32.xlu0 %v4357, 88
      %v7450 = vpop.permute.xlu0 %7449
      %7453 = vrot.lane.b32.xlu0 %v4359, 90
      %v7454 = vpop.permute.xlu0 %7453
      %7457 = vrot.lane.b32.xlu0 %v4361, 92
      %v7458 = vpop.permute.xlu0 %7457
      %7461 = vrot.lane.b32.xlu0 %v4363, 94
      %v7462 = vpop.permute.xlu0 %7461
      %7465 = vrot.lane.b32.xlu0 %v4461, 96
      %v7466 = vpop.permute.xlu0 %7465
      %7469 = vrot.lane.b32.xlu0 %v4463, 98
      %v7470 = vpop.permute.xlu0 %7469
      %7473 = vrot.lane.b32.xlu0 %v4465, 100
      %v7474 = vpop.permute.xlu0 %7473
      %7477 = vrot.lane.b32.xlu0 %v4467, 102
      %v7478 = vpop.permute.xlu0 %7477
      %7481 = vrot.lane.b32.xlu0 %v4469, 104
      %v7482 = vpop.permute.xlu0 %7481
      %7485 = vrot.lane.b32.xlu0 %v4471, 106
      %v7486 = vpop.permute.xlu0 %7485
      %7489 = vrot.lane.b32.xlu0 %v4473, 108
      %v7490 = vpop.permute.xlu0 %7489
      %7493 = vrot.lane.b32.xlu0 %v4475, 110
      %v7494 = vpop.permute.xlu0 %7493
      %7497 = vrot.lane.b32.xlu0 %v4573, 112
      %v7498 = vpop.permute.xlu0 %7497
      %7501 = vrot.lane.b32.xlu0 %v4575, 114
      %v7502 = vpop.permute.xlu0 %7501
      %7505 = vrot.lane.b32.xlu0 %v4577, 116
      %v7506 = vpop.permute.xlu0 %7505
      %7509 = vrot.lane.b32.xlu0 %v4579, 118
      %v7510 = vpop.permute.xlu0 %7509
      %7513 = vrot.lane.b32.xlu0 %v4581, 120
      %v7514 = vpop.permute.xlu0 %7513
      %7517 = vrot.lane.b32.xlu0 %v4583, 122
      %v7518 = vpop.permute.xlu0 %7517
      %7521 = vrot.lane.b32.xlu0 %v4585, 124
      %v7522 = vpop.permute.xlu0 %7521
      %7525 = vrot.lane.b32.xlu0 %v4587, 126
      %v7526 = vpop.permute.xlu0 %7525
      %7529 = vrot.lane.b32.xlu0 %v4687, 2
      %v7530 = vpop.permute.xlu0 %7529
      %7533 = vrot.lane.b32.xlu0 %v4689, 4
      %v7534 = vpop.permute.xlu0 %7533
      %7537 = vrot.lane.b32.xlu0 %v4691, 6
      %v7538 = vpop.permute.xlu0 %7537
      %7541 = vrot.lane.b32.xlu0 %v4693, 8
      %v7542 = vpop.permute.xlu0 %7541
      %7545 = vrot.lane.b32.xlu0 %v4695, 10
      %v7546 = vpop.permute.xlu0 %7545
      %7549 = vrot.lane.b32.xlu0 %v4697, 12
      %v7550 = vpop.permute.xlu0 %7549
      %7553 = vrot.lane.b32.xlu0 %v4699, 14
      %v7554 = vpop.permute.xlu0 %7553
      %7557 = vrot.lane.b32.xlu0 %v4797, 16
      %v7558 = vpop.permute.xlu0 %7557
      %7561 = vrot.lane.b32.xlu0 %v4799, 18
      %v7562 = vpop.permute.xlu0 %7561
      %7565 = vrot.lane.b32.xlu0 %v4801, 20
      %v7566 = vpop.permute.xlu0 %7565
      %7569 = vrot.lane.b32.xlu0 %v4803, 22
      %v7570 = vpop.permute.xlu0 %7569
      %7573 = vrot.lane.b32.xlu0 %v4805, 24
      %v7574 = vpop.permute.xlu0 %7573
      %7577 = vrot.lane.b32.xlu0 %v4807, 26
      %v7578 = vpop.permute.xlu0 %7577
      %7581 = vrot.lane.b32.xlu0 %v4809, 28
      %v7582 = vpop.permute.xlu0 %7581
      %7585 = vrot.lane.b32.xlu0 %v4811, 30
      %v7586 = vpop.permute.xlu0 %7585
      %7589 = vrot.lane.b32.xlu0 %v4909, 32
      %v7590 = vpop.permute.xlu0 %7589
      %7593 = vrot.lane.b32.xlu0 %v4911, 34
      %v7594 = vpop.permute.xlu0 %7593
      %7597 = vrot.lane.b32.xlu0 %v4913, 36
      %v7598 = vpop.permute.xlu0 %7597
      %7601 = vrot.lane.b32.xlu0 %v4915, 38
      %v7602 = vpop.permute.xlu0 %7601
      %7605 = vrot.lane.b32.xlu0 %v4917, 40
      %v7606 = vpop.permute.xlu0 %7605
      %7609 = vrot.lane.b32.xlu0 %v4919, 42
      %v7610 = vpop.permute.xlu0 %7609
      %7613 = vrot.lane.b32.xlu0 %v4921, 44
      %v7614 = vpop.permute.xlu0 %7613
      %7617 = vrot.lane.b32.xlu0 %v4923, 46
      %v7618 = vpop.permute.xlu0 %7617
      %7621 = vrot.lane.b32.xlu0 %v5021, 48
      %v7622 = vpop.permute.xlu0 %7621
      %7625 = vrot.lane.b32.xlu0 %v5023, 50
      %v7626 = vpop.permute.xlu0 %7625
      %7629 = vrot.lane.b32.xlu0 %v5025, 52
      %v7630 = vpop.permute.xlu0 %7629
      %7633 = vrot.lane.b32.xlu0 %v5027, 54
      %v7634 = vpop.permute.xlu0 %7633
      %7637 = vrot.lane.b32.xlu0 %v5029, 56
      %v7638 = vpop.permute.xlu0 %7637
      %7641 = vrot.lane.b32.xlu0 %v5031, 58
      %v7642 = vpop.permute.xlu0 %7641
      %7645 = vrot.lane.b32.xlu0 %v5033, 60
      %v7646 = vpop.permute.xlu0 %7645
      %7649 = vrot.lane.b32.xlu0 %v5035, 62
      %v7650 = vpop.permute.xlu0 %7649
      %7653 = vrot.lane.b32.xlu0 %v5133, 64
      %v7654 = vpop.permute.xlu0 %7653
      %7657 = vrot.lane.b32.xlu0 %v5135, 66
      %v7658 = vpop.permute.xlu0 %7657
      %7661 = vrot.lane.b32.xlu0 %v5137, 68
      %v7662 = vpop.permute.xlu0 %7661
      %7665 = vrot.lane.b32.xlu0 %v5139, 70
      %v7666 = vpop.permute.xlu0 %7665
      %7669 = vrot.lane.b32.xlu0 %v5141, 72
      %v7670 = vpop.permute.xlu0 %7669
      %7673 = vrot.lane.b32.xlu0 %v5143, 74
      %v7674 = vpop.permute.xlu0 %7673
      %7677 = vrot.lane.b32.xlu0 %v5145, 76
      %v7678 = vpop.permute.xlu0 %7677
      %7681 = vrot.lane.b32.xlu0 %v5147, 78
      %v7682 = vpop.permute.xlu0 %7681
      %7685 = vrot.lane.b32.xlu0 %v5245, 80
      %v7686 = vpop.permute.xlu0 %7685
      %7689 = vrot.lane.b32.xlu0 %v5247, 82
      %v7690 = vpop.permute.xlu0 %7689
      %7693 = vrot.lane.b32.xlu0 %v5249, 84
      %v7694 = vpop.permute.xlu0 %7693
      %7697 = vrot.lane.b32.xlu0 %v5251, 86
      %v7698 = vpop.permute.xlu0 %7697
      %7701 = vrot.lane.b32.xlu0 %v5253, 88
      %v7702 = vpop.permute.xlu0 %7701
      %7705 = vrot.lane.b32.xlu0 %v5255, 90
      %v7706 = vpop.permute.xlu0 %7705
      %7709 = vrot.lane.b32.xlu0 %v5257, 92
      %v7710 = vpop.permute.xlu0 %7709
      %7713 = vrot.lane.b32.xlu0 %v5259, 94
      %v7714 = vpop.permute.xlu0 %7713
      %7717 = vrot.lane.b32.xlu0 %v5357, 96
      %v7718 = vpop.permute.xlu0 %7717
      %7721 = vrot.lane.b32.xlu0 %v5359, 98
      %v7722 = vpop.permute.xlu0 %7721
      %7725 = vrot.lane.b32.xlu0 %v5361, 100
      %v7726 = vpop.permute.xlu0 %7725
      %7729 = vrot.lane.b32.xlu0 %v5363, 102
      %v7730 = vpop.permute.xlu0 %7729
      %7733 = vrot.lane.b32.xlu0 %v5365, 104
      %v7734 = vpop.permute.xlu0 %7733
      %7737 = vrot.lane.b32.xlu0 %v5367, 106
      %v7738 = vpop.permute.xlu0 %7737
      %7741 = vrot.lane.b32.xlu0 %v5369, 108
      %v7742 = vpop.permute.xlu0 %7741
      %7745 = vrot.lane.b32.xlu0 %v5371, 110
      %v7746 = vpop.permute.xlu0 %7745
      %7749 = vrot.lane.b32.xlu0 %v5469, 112
      %v7750 = vpop.permute.xlu0 %7749
      %7753 = vrot.lane.b32.xlu0 %v5471, 114
      %v7754 = vpop.permute.xlu0 %7753
      %7757 = vrot.lane.b32.xlu0 %v5473, 116
      %v7758 = vpop.permute.xlu0 %7757
      %7761 = vrot.lane.b32.xlu0 %v5475, 118
      %v7762 = vpop.permute.xlu0 %7761
      %7765 = vrot.lane.b32.xlu0 %v5477, 120
      %v7766 = vpop.permute.xlu0 %7765
      %7769 = vrot.lane.b32.xlu0 %v5479, 122
      %v7770 = vpop.permute.xlu0 %7769
      %7773 = vrot.lane.b32.xlu0 %v5481, 124
      %v7774 = vpop.permute.xlu0 %7773
      %7777 = vrot.lane.b32.xlu0 %v5483, 126
      %v7778 = vpop.permute.xlu0 %7777
      %7781 = vrot.lane.b32.xlu0 %v5583, 2
      %v7782 = vpop.permute.xlu0 %7781
      %7785 = vrot.lane.b32.xlu0 %v5585, 4
      %v7786 = vpop.permute.xlu0 %7785
      %7789 = vrot.lane.b32.xlu0 %v5587, 6
      %v7790 = vpop.permute.xlu0 %7789
      %7793 = vrot.lane.b32.xlu0 %v5589, 8
      %v7794 = vpop.permute.xlu0 %7793
      %7797 = vrot.lane.b32.xlu0 %v5591, 10
      %v7798 = vpop.permute.xlu0 %7797
      %7801 = vrot.lane.b32.xlu0 %v5593, 12
      %v7802 = vpop.permute.xlu0 %7801
      %7805 = vrot.lane.b32.xlu0 %v5595, 14
      %v7806 = vpop.permute.xlu0 %7805
      %7809 = vrot.lane.b32.xlu0 %v5693, 16
      %v7810 = vpop.permute.xlu0 %7809
      %7813 = vrot.lane.b32.xlu0 %v5695, 18
      %v7814 = vpop.permute.xlu0 %7813
      %7817 = vrot.lane.b32.xlu0 %v5697, 20
      %v7818 = vpop.permute.xlu0 %7817
      %7821 = vrot.lane.b32.xlu0 %v5699, 22
      %v7822 = vpop.permute.xlu0 %7821
      %7825 = vrot.lane.b32.xlu0 %v5701, 24
      %v7826 = vpop.permute.xlu0 %7825
      %7829 = vrot.lane.b32.xlu0 %v5703, 26
      %v7830 = vpop.permute.xlu0 %7829
      %7833 = vrot.lane.b32.xlu0 %v5705, 28
      %v7834 = vpop.permute.xlu0 %7833
      %7837 = vrot.lane.b32.xlu0 %v5707, 30
      %v7838 = vpop.permute.xlu0 %7837
      %7841 = vrot.lane.b32.xlu0 %v5805, 32
      %v7842 = vpop.permute.xlu0 %7841
      %7845 = vrot.lane.b32.xlu0 %v5807, 34
      %v7846 = vpop.permute.xlu0 %7845
      %7849 = vrot.lane.b32.xlu0 %v5809, 36
      %v7850 = vpop.permute.xlu0 %7849
      %7853 = vrot.lane.b32.xlu0 %v5811, 38
      %v7854 = vpop.permute.xlu0 %7853
      %7857 = vrot.lane.b32.xlu0 %v5813, 40
      %v7858 = vpop.permute.xlu0 %7857
      %7861 = vrot.lane.b32.xlu0 %v5815, 42
      %v7862 = vpop.permute.xlu0 %7861
      %7865 = vrot.lane.b32.xlu0 %v5817, 44
      %v7866 = vpop.permute.xlu0 %7865
      %7869 = vrot.lane.b32.xlu0 %v5819, 46
      %v7870 = vpop.permute.xlu0 %7869
      %7873 = vrot.lane.b32.xlu0 %v5917, 48
      %v7874 = vpop.permute.xlu0 %7873
      %7877 = vrot.lane.b32.xlu0 %v5919, 50
      %v7878 = vpop.permute.xlu0 %7877
      %7881 = vrot.lane.b32.xlu0 %v5921, 52
      %v7882 = vpop.permute.xlu0 %7881
      %7885 = vrot.lane.b32.xlu0 %v5923, 54
      %v7886 = vpop.permute.xlu0 %7885
      %7889 = vrot.lane.b32.xlu0 %v5925, 56
      %v7890 = vpop.permute.xlu0 %7889
      %7893 = vrot.lane.b32.xlu0 %v5927, 58
      %v7894 = vpop.permute.xlu0 %7893
      %7897 = vrot.lane.b32.xlu0 %v5929, 60
      %v7898 = vpop.permute.xlu0 %7897
      %7901 = vrot.lane.b32.xlu0 %v5931, 62
      %v7902 = vpop.permute.xlu0 %7901
      %7905 = vrot.lane.b32.xlu0 %v6029, 64
      %v7906 = vpop.permute.xlu0 %7905
      %7909 = vrot.lane.b32.xlu0 %v6031, 66
      %v7910 = vpop.permute.xlu0 %7909
      %7913 = vrot.lane.b32.xlu0 %v6033, 68
      %v7914 = vpop.permute.xlu0 %7913
      %7917 = vrot.lane.b32.xlu0 %v6035, 70
      %v7918 = vpop.permute.xlu0 %7917
      %7921 = vrot.lane.b32.xlu0 %v6037, 72
      %v7922 = vpop.permute.xlu0 %7921
      %7925 = vrot.lane.b32.xlu0 %v6039, 74
      %v7926 = vpop.permute.xlu0 %7925
      %7929 = vrot.lane.b32.xlu0 %v6041, 76
      %v7930 = vpop.permute.xlu0 %7929
      %7933 = vrot.lane.b32.xlu0 %v6043, 78
      %v7934 = vpop.permute.xlu0 %7933
      %7937 = vrot.lane.b32.xlu0 %v6141, 80
      %v7938 = vpop.permute.xlu0 %7937
      %7941 = vrot.lane.b32.xlu0 %v6143, 82
      %v7942 = vpop.permute.xlu0 %7941
      %7945 = vrot.lane.b32.xlu0 %v6145, 84
      %v7946 = vpop.permute.xlu0 %7945
      %7949 = vrot.lane.b32.xlu0 %v6147, 86
      %v7950 = vpop.permute.xlu0 %7949
      %7953 = vrot.lane.b32.xlu0 %v6149, 88
      %v7954 = vpop.permute.xlu0 %7953
      %7957 = vrot.lane.b32.xlu0 %v6151, 90
      %v7958 = vpop.permute.xlu0 %7957
      %7961 = vrot.lane.b32.xlu0 %v6153, 92
      %v7962 = vpop.permute.xlu0 %7961
      %7965 = vrot.lane.b32.xlu0 %v6155, 94
      %v7966 = vpop.permute.xlu0 %7965
      %7969 = vrot.lane.b32.xlu0 %v6253, 96
      %v7970 = vpop.permute.xlu0 %7969
      %7973 = vrot.lane.b32.xlu0 %v6255, 98
      %v7974 = vpop.permute.xlu0 %7973
      %7977 = vrot.lane.b32.xlu0 %v6257, 100
      %v7978 = vpop.permute.xlu0 %7977
      %7981 = vrot.lane.b32.xlu0 %v6259, 102
      %v7982 = vpop.permute.xlu0 %7981
      %7985 = vrot.lane.b32.xlu0 %v6261, 104
      %v7986 = vpop.permute.xlu0 %7985
      %7989 = vrot.lane.b32.xlu0 %v6263, 106
      %v7990 = vpop.permute.xlu0 %7989
      %7993 = vrot.lane.b32.xlu0 %v6265, 108
      %v7994 = vpop.permute.xlu0 %7993
      %7997 = vrot.lane.b32.xlu0 %v6267, 110
      %v7998 = vpop.permute.xlu0 %7997
      %8001 = vrot.lane.b32.xlu0 %v6365, 112
      %v8002 = vpop.permute.xlu0 %8001
      %8005 = vrot.lane.b32.xlu0 %v6367, 114
      %v8006 = vpop.permute.xlu0 %8005
      %8009 = vrot.lane.b32.xlu0 %v6369, 116
      %v8010 = vpop.permute.xlu0 %8009
      %8013 = vrot.lane.b32.xlu0 %v6371, 118
      %v8014 = vpop.permute.xlu0 %8013
      %8017 = vrot.lane.b32.xlu0 %v6373, 120
      %v8018 = vpop.permute.xlu0 %8017
      %8021 = vrot.lane.b32.xlu0 %v6375, 122
      %v8022 = vpop.permute.xlu0 %8021
      %8025 = vrot.lane.b32.xlu0 %v6377, 124
      %v8026 = vpop.permute.xlu0 %8025
      %8029 = vrot.lane.b32.xlu0 %v6379, 126
      %v8030 = vpop.permute.xlu0 %8029
      %8033 = vrot.lane.b32.xlu0 %v6479, 2
      %v8034 = vpop.permute.xlu0 %8033
      %8037 = vrot.lane.b32.xlu0 %v6481, 4
      %v8038 = vpop.permute.xlu0 %8037
      %8041 = vrot.lane.b32.xlu0 %v6483, 6
      %v8042 = vpop.permute.xlu0 %8041
      %8045 = vrot.lane.b32.xlu0 %v6485, 8
      %v8046 = vpop.permute.xlu0 %8045
      %8049 = vrot.lane.b32.xlu0 %v6487, 10
      %v8050 = vpop.permute.xlu0 %8049
      %8053 = vrot.lane.b32.xlu0 %v6489, 12
      %v8054 = vpop.permute.xlu0 %8053
      %8057 = vrot.lane.b32.xlu0 %v6491, 14
      %v8058 = vpop.permute.xlu0 %8057
      %8061 = vrot.lane.b32.xlu0 %v6589, 16
      %v8062 = vpop.permute.xlu0 %8061
      %8065 = vrot.lane.b32.xlu0 %v6591, 18
      %v8066 = vpop.permute.xlu0 %8065
      %8069 = vrot.lane.b32.xlu0 %v6593, 20
      %v8070 = vpop.permute.xlu0 %8069
      %8073 = vrot.lane.b32.xlu0 %v6595, 22
      %v8074 = vpop.permute.xlu0 %8073
      %8077 = vrot.lane.b32.xlu0 %v6597, 24
      %v8078 = vpop.permute.xlu0 %8077
      %8081 = vrot.lane.b32.xlu0 %v6599, 26
      %v8082 = vpop.permute.xlu0 %8081
      %8085 = vrot.lane.b32.xlu0 %v6601, 28
      %v8086 = vpop.permute.xlu0 %8085
      %8089 = vrot.lane.b32.xlu0 %v6603, 30
      %v8090 = vpop.permute.xlu0 %8089
      %8093 = vrot.lane.b32.xlu0 %v6701, 32
      %v8094 = vpop.permute.xlu0 %8093
      %8097 = vrot.lane.b32.xlu0 %v6703, 34
      %v8098 = vpop.permute.xlu0 %8097
      %8101 = vrot.lane.b32.xlu0 %v6705, 36
      %v8102 = vpop.permute.xlu0 %8101
      %8105 = vrot.lane.b32.xlu0 %v6707, 38
      %v8106 = vpop.permute.xlu0 %8105
      %8109 = vrot.lane.b32.xlu0 %v6709, 40
      %v8110 = vpop.permute.xlu0 %8109
      %8113 = vrot.lane.b32.xlu0 %v6711, 42
      %v8114 = vpop.permute.xlu0 %8113
      %8117 = vrot.lane.b32.xlu0 %v6713, 44
      %v8118 = vpop.permute.xlu0 %8117
      %8121 = vrot.lane.b32.xlu0 %v6715, 46
      %v8122 = vpop.permute.xlu0 %8121
      %8125 = vrot.lane.b32.xlu0 %v6813, 48
      %v8126 = vpop.permute.xlu0 %8125
      %8129 = vrot.lane.b32.xlu0 %v6815, 50
      %v8130 = vpop.permute.xlu0 %8129
      %8133 = vrot.lane.b32.xlu0 %v6817, 52
      %v8134 = vpop.permute.xlu0 %8133
      %8137 = vrot.lane.b32.xlu0 %v6819, 54
      %v8138 = vpop.permute.xlu0 %8137
      %8141 = vrot.lane.b32.xlu0 %v6821, 56
      %v8142 = vpop.permute.xlu0 %8141
      %8145 = vrot.lane.b32.xlu0 %v6823, 58
      %v8146 = vpop.permute.xlu0 %8145
      %8149 = vrot.lane.b32.xlu0 %v6825, 60
      %v8150 = vpop.permute.xlu0 %8149
      %8153 = vrot.lane.b32.xlu0 %v6827, 62
      %v8154 = vpop.permute.xlu0 %8153
      %8157 = vrot.lane.b32.xlu0 %v6925, 64
      %v8158 = vpop.permute.xlu0 %8157
      %8161 = vrot.lane.b32.xlu0 %v6927, 66
      %v8162 = vpop.permute.xlu0 %8161
      %8165 = vrot.lane.b32.xlu0 %v6929, 68
      %v8166 = vpop.permute.xlu0 %8165
      %8169 = vrot.lane.b32.xlu0 %v6931, 70
      %v8170 = vpop.permute.xlu0 %8169
      %8173 = vrot.lane.b32.xlu0 %v6933, 72
      %v8174 = vpop.permute.xlu0 %8173
      %8177 = vrot.lane.b32.xlu0 %v6935, 74
      %v8178 = vpop.permute.xlu0 %8177
      %8181 = vrot.lane.b32.xlu0 %v6937, 76
      %v8182 = vpop.permute.xlu0 %8181
      %8185 = vrot.lane.b32.xlu0 %v6939, 78
      %v8186 = vpop.permute.xlu0 %8185
      %8189 = vrot.lane.b32.xlu0 %v7037, 80
      %v8190 = vpop.permute.xlu0 %8189
      %8193 = vrot.lane.b32.xlu0 %v7039, 82
      %v8194 = vpop.permute.xlu0 %8193
      %8197 = vrot.lane.b32.xlu0 %v7041, 84
      %v8198 = vpop.permute.xlu0 %8197
      %8201 = vrot.lane.b32.xlu0 %v7043, 86
      %v8202 = vpop.permute.xlu0 %8201
      %8205 = vrot.lane.b32.xlu0 %v7045, 88
      %v8206 = vpop.permute.xlu0 %8205
      %8209 = vrot.lane.b32.xlu0 %v7047, 90
      %v8210 = vpop.permute.xlu0 %8209
      %8213 = vrot.lane.b32.xlu0 %v7049, 92
      %v8214 = vpop.permute.xlu0 %8213
      %8217 = vrot.lane.b32.xlu0 %v7051, 94
      %v8218 = vpop.permute.xlu0 %8217
      %8221 = vrot.lane.b32.xlu0 %v7149, 96
      %v8222 = vpop.permute.xlu0 %8221
      %8225 = vrot.lane.b32.xlu0 %v7151, 98
      %v8226 = vpop.permute.xlu0 %8225
      %8229 = vrot.lane.b32.xlu0 %v7153, 100
      %v8230 = vpop.permute.xlu0 %8229
      %8233 = vrot.lane.b32.xlu0 %v7155, 102
      %v8234 = vpop.permute.xlu0 %8233
      %8237 = vrot.lane.b32.xlu0 %v7157, 104
      %v8238 = vpop.permute.xlu0 %8237
      %8241 = vrot.lane.b32.xlu0 %v7159, 106
      %v8242 = vpop.permute.xlu0 %8241
      %8245 = vrot.lane.b32.xlu0 %v7161, 108
      %v8246 = vpop.permute.xlu0 %8245
      %8249 = vrot.lane.b32.xlu0 %v7163, 110
      %v8250 = vpop.permute.xlu0 %8249
      %8253 = vrot.lane.b32.xlu0 %v7261, 112
      %v8254 = vpop.permute.xlu0 %8253
      %8257 = vrot.lane.b32.xlu0 %v7263, 114
      %v8258 = vpop.permute.xlu0 %8257
      %8261 = vrot.lane.b32.xlu0 %v7265, 116
      %v8262 = vpop.permute.xlu0 %8261
      %8265 = vrot.lane.b32.xlu0 %v7267, 118
      %v8266 = vpop.permute.xlu0 %8265
      %8269 = vrot.lane.b32.xlu0 %v7269, 120
      %v8270 = vpop.permute.xlu0 %8269
      %8273 = vrot.lane.b32.xlu0 %v7271, 122
      %v8274 = vpop.permute.xlu0 %8273
      %8277 = vrot.lane.b32.xlu0 %v7273, 124
      %v8278 = vpop.permute.xlu0 %8277
      %8281 = vrot.lane.b32.xlu0 %v7275, 126
      %v8282 = vpop.permute.xlu0 %8281
      %vm8284 = vcmask 15360
      %v8285 = vsel %vm8284, %v3789, %v7278
      %vm8286 = vcmask 31744
      %v8287 = vsel %vm8286, %v8285, %v7282
      %vm8288 = vcmask 48128
      %v8289 = vsel %vm8288, %v8287, %v7286
      %vm8290 = vcmask 64512
      %v8291 = vsel %vm8290, %v8289, %v7290
      %vm8292 = vcmask 80896
      %v8293 = vsel %vm8292, %v8291, %v7294
      %vm8294 = vcmask 97280
      %v8295 = vsel %vm8294, %v8293, %v7298
      %vm8296 = vcmask 113664
      %v8297 = vsel %vm8296, %v8295, %v7302
      %vm8298 = vcmask 130048
      %v8299 = vsel %vm8298, %v8297, %v7306
      %vm8300 = vcmask 146432
      %v8301 = vsel %vm8300, %v8299, %v7310
      %vm8302 = vcmask 162816
      %v8303 = vsel %vm8302, %v8301, %v7314
      %vm8304 = vcmask 179200
      %v8305 = vsel %vm8304, %v8303, %v7318
      %vm8306 = vcmask 195584
      %v8307 = vsel %vm8306, %v8305, %v7322
      %vm8308 = vcmask 211968
      %v8309 = vsel %vm8308, %v8307, %v7326
      %vm8310 = vcmask 228352
      %v8311 = vsel %vm8310, %v8309, %v7330
      %vm8312 = vcmask 244736
      %v8313 = vsel %vm8312, %v8311, %v7334
      %vm8314 = vcmask 261120
      %v8315 = vsel %vm8314, %v8313, %v7338
      %vm8316 = vcmask 277504
      %v8317 = vsel %vm8316, %v8315, %v7342
      %vm8318 = vcmask 293888
      %v8319 = vsel %vm8318, %v8317, %v7346
      %vm8320 = vcmask 310272
      %v8321 = vsel %vm8320, %v8319, %v7350
      %vm8322 = vcmask 326656
      %v8323 = vsel %vm8322, %v8321, %v7354
      %vm8324 = vcmask 343040
      %v8325 = vsel %vm8324, %v8323, %v7358
      %vm8326 = vcmask 359424
      %v8327 = vsel %vm8326, %v8325, %v7362
      %vm8328 = vcmask 375808
      %v8329 = vsel %vm8328, %v8327, %v7366
      %vm8330 = vcmask 392192
      %v8331 = vsel %vm8330, %v8329, %v7370
      %vm8332 = vcmask 408576
      %v8333 = vsel %vm8332, %v8331, %v7374
      %vm8334 = vcmask 424960
      %v8335 = vsel %vm8334, %v8333, %v7378
      %vm8336 = vcmask 441344
      %v8337 = vsel %vm8336, %v8335, %v7382
      %vm8338 = vcmask 457728
      %v8339 = vsel %vm8338, %v8337, %v7386
      %vm8340 = vcmask 474112
      %v8341 = vsel %vm8340, %v8339, %v7390
      %vm8342 = vcmask 490496
      %v8343 = vsel %vm8342, %v8341, %v7394
      %vm8344 = vcmask 506880
      %v8345 = vsel %vm8344, %v8343, %v7398
      %vm8346 = vcmask 523264
      %v8347 = vsel %vm8346, %v8345, %v7402
      %vm8348 = vcmask 539648
      %v8349 = vsel %vm8348, %v8347, %v7406
      %vm8350 = vcmask 556032
      %v8351 = vsel %vm8350, %v8349, %v7410
      %vm8352 = vcmask 572416
      %v8353 = vsel %vm8352, %v8351, %v7414
      %vm8354 = vcmask 588800
      %v8355 = vsel %vm8354, %v8353, %v7418
      %vm8356 = vcmask 605184
      %v8357 = vsel %vm8356, %v8355, %v7422
      %vm8358 = vcmask 621568
      %v8359 = vsel %vm8358, %v8357, %v7426
      %vm8360 = vcmask 637952
      %v8361 = vsel %vm8360, %v8359, %v7430
      %vm8362 = vcmask 654336
      %v8363 = vsel %vm8362, %v8361, %v7434
      %vm8364 = vcmask 670720
      %v8365 = vsel %vm8364, %v8363, %v7438
      %vm8366 = vcmask 687104
      %v8367 = vsel %vm8366, %v8365, %v7442
      %vm8368 = vcmask 703488
      %v8369 = vsel %vm8368, %v8367, %v7446
      %vm8370 = vcmask 719872
      %v8371 = vsel %vm8370, %v8369, %v7450
      %vm8372 = vcmask 736256
      %v8373 = vsel %vm8372, %v8371, %v7454
      %vm8374 = vcmask 752640
      %v8375 = vsel %vm8374, %v8373, %v7458
      %vm8376 = vcmask 769024
      %v8377 = vsel %vm8376, %v8375, %v7462
      %vm8378 = vcmask 785408
      %v8379 = vsel %vm8378, %v8377, %v7466
      %vm8380 = vcmask 801792
      %v8381 = vsel %vm8380, %v8379, %v7470
      %vm8382 = vcmask 818176
      %v8383 = vsel %vm8382, %v8381, %v7474
      %vm8384 = vcmask 834560
      %v8385 = vsel %vm8384, %v8383, %v7478
      %vm8386 = vcmask 850944
      %v8387 = vsel %vm8386, %v8385, %v7482
      %vm8388 = vcmask 867328
      %v8389 = vsel %vm8388, %v8387, %v7486
      %vm8390 = vcmask 883712
      %v8391 = vsel %vm8390, %v8389, %v7490
      %vm8392 = vcmask 900096
      %v8393 = vsel %vm8392, %v8391, %v7494
      %vm8394 = vcmask 916480
      %v8395 = vsel %vm8394, %v8393, %v7498
      %vm8396 = vcmask 932864
      %v8397 = vsel %vm8396, %v8395, %v7502
      %vm8398 = vcmask 949248
      %v8399 = vsel %vm8398, %v8397, %v7506
      %vm8400 = vcmask 965632
      %v8401 = vsel %vm8400, %v8399, %v7510
      %vm8402 = vcmask 982016
      %v8403 = vsel %vm8402, %v8401, %v7514
      %vm8404 = vcmask 998400
      %v8405 = vsel %vm8404, %v8403, %v7518
      %vm8406 = vcmask 1014784
      %v8407 = vsel %vm8406, %v8405, %v7522
      %vm8408 = vcmask 1031168
      %v8409 = vsel %vm8408, %v8407, %v7526
      %v8410 = vsel %vm8284, %v4685, %v7530
      %v8411 = vsel %vm8286, %v8410, %v7534
      %v8412 = vsel %vm8288, %v8411, %v7538
      %v8413 = vsel %vm8290, %v8412, %v7542
      %v8414 = vsel %vm8292, %v8413, %v7546
      %v8415 = vsel %vm8294, %v8414, %v7550
      %v8416 = vsel %vm8296, %v8415, %v7554
      %v8417 = vsel %vm8298, %v8416, %v7558
      %v8418 = vsel %vm8300, %v8417, %v7562
      %v8419 = vsel %vm8302, %v8418, %v7566
      %v8420 = vsel %vm8304, %v8419, %v7570
      %v8421 = vsel %vm8306, %v8420, %v7574
      %v8422 = vsel %vm8308, %v8421, %v7578
      %v8423 = vsel %vm8310, %v8422, %v7582
      %v8424 = vsel %vm8312, %v8423, %v7586
      %v8425 = vsel %vm8314, %v8424, %v7590
      %v8426 = vsel %vm8316, %v8425, %v7594
      %v8427 = vsel %vm8318, %v8426, %v7598
      %v8428 = vsel %vm8320, %v8427, %v7602
      %v8429 = vsel %vm8322, %v8428, %v7606
      %v8430 = vsel %vm8324, %v8429, %v7610
      %v8431 = vsel %vm8326, %v8430, %v7614
      %v8432 = vsel %vm8328, %v8431, %v7618
      %v8433 = vsel %vm8330, %v8432, %v7622
      %v8434 = vsel %vm8332, %v8433, %v7626
      %v8435 = vsel %vm8334, %v8434, %v7630
      %v8436 = vsel %vm8336, %v8435, %v7634
      %v8437 = vsel %vm8338, %v8436, %v7638
      %v8438 = vsel %vm8340, %v8437, %v7642
      %v8439 = vsel %vm8342, %v8438, %v7646
      %v8440 = vsel %vm8344, %v8439, %v7650
      %v8441 = vsel %vm8346, %v8440, %v7654
      %v8442 = vsel %vm8348, %v8441, %v7658
      %v8443 = vsel %vm8350, %v8442, %v7662
      %v8444 = vsel %vm8352, %v8443, %v7666
      %v8445 = vsel %vm8354, %v8444, %v7670
      %v8446 = vsel %vm8356, %v8445, %v7674
      %v8447 = vsel %vm8358, %v8446, %v7678
      %v8448 = vsel %vm8360, %v8447, %v7682
      %v8449 = vsel %vm8362, %v8448, %v7686
      %v8450 = vsel %vm8364, %v8449, %v7690
      %v8451 = vsel %vm8366, %v8450, %v7694
      %v8452 = vsel %vm8368, %v8451, %v7698
      %v8453 = vsel %vm8370, %v8452, %v7702
      %v8454 = vsel %vm8372, %v8453, %v7706
      %v8455 = vsel %vm8374, %v8454, %v7710
      %v8456 = vsel %vm8376, %v8455, %v7714
      %v8457 = vsel %vm8378, %v8456, %v7718
      %v8458 = vsel %vm8380, %v8457, %v7722
      %v8459 = vsel %vm8382, %v8458, %v7726
      %v8460 = vsel %vm8384, %v8459, %v7730
      %v8461 = vsel %vm8386, %v8460, %v7734
      %v8462 = vsel %vm8388, %v8461, %v7738
      %v8463 = vsel %vm8390, %v8462, %v7742
      %v8464 = vsel %vm8392, %v8463, %v7746
      %v8465 = vsel %vm8394, %v8464, %v7750
      %v8466 = vsel %vm8396, %v8465, %v7754
      %v8467 = vsel %vm8398, %v8466, %v7758
      %v8468 = vsel %vm8400, %v8467, %v7762
      %v8469 = vsel %vm8402, %v8468, %v7766
      %v8470 = vsel %vm8404, %v8469, %v7770
      %v8471 = vsel %vm8406, %v8470, %v7774
      %v8472 = vsel %vm8408, %v8471, %v7778
      %v8473 = vsel %vm8284, %v5581, %v7782
      %v8474 = vsel %vm8286, %v8473, %v7786
      %v8475 = vsel %vm8288, %v8474, %v7790
      %v8476 = vsel %vm8290, %v8475, %v7794
      %v8477 = vsel %vm8292, %v8476, %v7798
      %v8478 = vsel %vm8294, %v8477, %v7802
      %v8479 = vsel %vm8296, %v8478, %v7806
      %v8480 = vsel %vm8298, %v8479, %v7810
      %v8481 = vsel %vm8300, %v8480, %v7814
      %v8482 = vsel %vm8302, %v8481, %v7818
      %v8483 = vsel %vm8304, %v8482, %v7822
      %v8484 = vsel %vm8306, %v8483, %v7826
      %v8485 = vsel %vm8308, %v8484, %v7830
      %v8486 = vsel %vm8310, %v8485, %v7834
      %v8487 = vsel %vm8312, %v8486, %v7838
      %v8488 = vsel %vm8314, %v8487, %v7842
      %v8489 = vsel %vm8316, %v8488, %v7846
      %v8490 = vsel %vm8318, %v8489, %v7850
      %v8491 = vsel %vm8320, %v8490, %v7854
      %v8492 = vsel %vm8322, %v8491, %v7858
      %v8493 = vsel %vm8324, %v8492, %v7862
      %v8494 = vsel %vm8326, %v8493, %v7866
      %v8495 = vsel %vm8328, %v8494, %v7870
      %v8496 = vsel %vm8330, %v8495, %v7874
      %v8497 = vsel %vm8332, %v8496, %v7878
      %v8498 = vsel %vm8334, %v8497, %v7882
      %v8499 = vsel %vm8336, %v8498, %v7886
      %v8500 = vsel %vm8338, %v8499, %v7890
      %v8501 = vsel %vm8340, %v8500, %v7894
      %v8502 = vsel %vm8342, %v8501, %v7898
      %v8503 = vsel %vm8344, %v8502, %v7902
      %v8504 = vsel %vm8346, %v8503, %v7906
      %v8505 = vsel %vm8348, %v8504, %v7910
      %v8506 = vsel %vm8350, %v8505, %v7914
      %v8507 = vsel %vm8352, %v8506, %v7918
      %v8508 = vsel %vm8354, %v8507, %v7922
      %v8509 = vsel %vm8356, %v8508, %v7926
      %v8510 = vsel %vm8358, %v8509, %v7930
      %v8511 = vsel %vm8360, %v8510, %v7934
      %v8512 = vsel %vm8362, %v8511, %v7938
      %v8513 = vsel %vm8364, %v8512, %v7942
      %v8514 = vsel %vm8366, %v8513, %v7946
      %v8515 = vsel %vm8368, %v8514, %v7950
      %v8516 = vsel %vm8370, %v8515, %v7954
      %v8517 = vsel %vm8372, %v8516, %v7958
      %v8518 = vsel %vm8374, %v8517, %v7962
      %v8519 = vsel %vm8376, %v8518, %v7966
      %v8520 = vsel %vm8378, %v8519, %v7970
      %v8521 = vsel %vm8380, %v8520, %v7974
      %v8522 = vsel %vm8382, %v8521, %v7978
      %v8523 = vsel %vm8384, %v8522, %v7982
      %v8524 = vsel %vm8386, %v8523, %v7986
      %v8525 = vsel %vm8388, %v8524, %v7990
      %v8526 = vsel %vm8390, %v8525, %v7994
      %v8527 = vsel %vm8392, %v8526, %v7998
      %v8528 = vsel %vm8394, %v8527, %v8002
      %v8529 = vsel %vm8396, %v8528, %v8006
      %v8530 = vsel %vm8398, %v8529, %v8010
      %v8531 = vsel %vm8400, %v8530, %v8014
      %v8532 = vsel %vm8402, %v8531, %v8018
      %v8533 = vsel %vm8404, %v8532, %v8022
      %v8534 = vsel %vm8406, %v8533, %v8026
      %v8535 = vsel %vm8408, %v8534, %v8030
      %v8536 = vsel %vm8284, %v6477, %v8034
      %v8537 = vsel %vm8286, %v8536, %v8038
      %v8538 = vsel %vm8288, %v8537, %v8042
      %v8539 = vsel %vm8290, %v8538, %v8046
      %v8540 = vsel %vm8292, %v8539, %v8050
      %v8541 = vsel %vm8294, %v8540, %v8054
      %v8542 = vsel %vm8296, %v8541, %v8058
      %v8543 = vsel %vm8298, %v8542, %v8062
      %v8544 = vsel %vm8300, %v8543, %v8066
      %v8545 = vsel %vm8302, %v8544, %v8070
      %v8546 = vsel %vm8304, %v8545, %v8074
      %v8547 = vsel %vm8306, %v8546, %v8078
      %v8548 = vsel %vm8308, %v8547, %v8082
      %v8549 = vsel %vm8310, %v8548, %v8086
      %v8550 = vsel %vm8312, %v8549, %v8090
      %v8551 = vsel %vm8314, %v8550, %v8094
      %v8552 = vsel %vm8316, %v8551, %v8098
      %v8553 = vsel %vm8318, %v8552, %v8102
      %v8554 = vsel %vm8320, %v8553, %v8106
      %v8555 = vsel %vm8322, %v8554, %v8110
      %v8556 = vsel %vm8324, %v8555, %v8114
      %v8557 = vsel %vm8326, %v8556, %v8118
      %v8558 = vsel %vm8328, %v8557, %v8122
      %v8559 = vsel %vm8330, %v8558, %v8126
      %v8560 = vsel %vm8332, %v8559, %v8130
      %v8561 = vsel %vm8334, %v8560, %v8134
      %v8562 = vsel %vm8336, %v8561, %v8138
      %v8563 = vsel %vm8338, %v8562, %v8142
      %v8564 = vsel %vm8340, %v8563, %v8146
      %v8565 = vsel %vm8342, %v8564, %v8150
      %v8566 = vsel %vm8344, %v8565, %v8154
      %v8567 = vsel %vm8346, %v8566, %v8158
      %v8568 = vsel %vm8348, %v8567, %v8162
      %v8569 = vsel %vm8350, %v8568, %v8166
      %v8570 = vsel %vm8352, %v8569, %v8170
      %v8571 = vsel %vm8354, %v8570, %v8174
      %v8572 = vsel %vm8356, %v8571, %v8178
      %v8573 = vsel %vm8358, %v8572, %v8182
      %v8574 = vsel %vm8360, %v8573, %v8186
      %v8575 = vsel %vm8362, %v8574, %v8190
      %v8576 = vsel %vm8364, %v8575, %v8194
      %v8577 = vsel %vm8366, %v8576, %v8198
      %v8578 = vsel %vm8368, %v8577, %v8202
      %v8579 = vsel %vm8370, %v8578, %v8206
      %v8580 = vsel %vm8372, %v8579, %v8210
      %v8581 = vsel %vm8374, %v8580, %v8214
      %v8582 = vsel %vm8376, %v8581, %v8218
      %v8583 = vsel %vm8378, %v8582, %v8222
      %v8584 = vsel %vm8380, %v8583, %v8226
      %v8585 = vsel %vm8382, %v8584, %v8230
      %v8586 = vsel %vm8384, %v8585, %v8234
      %v8587 = vsel %vm8386, %v8586, %v8238
      %v8588 = vsel %vm8388, %v8587, %v8242
      %v8589 = vsel %vm8390, %v8588, %v8246
      %v8590 = vsel %vm8392, %v8589, %v8250
      %v8591 = vsel %vm8394, %v8590, %v8254
      %v8592 = vsel %vm8396, %v8591, %v8258
      %v8593 = vsel %vm8398, %v8592, %v8262
      %v8594 = vsel %vm8400, %v8593, %v8266
      %v8595 = vsel %vm8402, %v8594, %v8270
      %v8596 = vsel %vm8404, %v8595, %v8274
      %v8597 = vsel %vm8406, %v8596, %v8278
      %v8598 = vsel %vm8408, %v8597, %v8282
      %8599 = vst [vmem:[%s208] sm:$0xff] %v8409
      %8600 = vst [vmem:[%s208 + $0x8] sm:$0xff] %v8472
      %8601 = vst [vmem:[%s208 + $0x10] sm:$0xff] %v8535
      %8602 = vst [vmem:[%s208 + $0x18] sm:$0xff] %v8598
      %s8603 = smul.u32 4, %s19
      %p8604 = scmp.lt.s32.totalorder %s18, 1
      %s8605 = scalar_select %p8604, %s18, 1
      %p8606 = scmp.lt.s32.totalorder %s8603, 3
      %s8607 = scalar_select %p8606, %s8603, 3
      %s8608 = smul.addr %s8605, 4
      %s8609 = sadd.s32 %s8607, %s8608
      %s8610 = smul.addr %s8609, 8
      %s8611 = scalar_lea.vmem %s3, %s8610
      // Predicated region
      $region33: #{upsampling_forward.1} parent=31 // pred_check
        %p8612 = pneg %p116
      $region34: #{upsampling_forward.1} parent=31 // pred_check_branch
        %8614 = sbr.rel (%p8612) target = $region36
      $region35: #{upsampling_forward.1} parent=31 // pred_region
        %s8615 = smul.u32 4, %s19
      $region36: #{upsampling_forward.1} parent=31 // pred_fallthru
        _
    $region32: #{upsampling_forward.1} parent=5 // pred_fallthru
      _
    %p8616 = scmp.le.s32.totalorder 2, %s9
    // Predicated region
    $region37: #{upsampling_forward.1} parent=5 // pred_check
      %p8617 = pneg %p8616
    $region38: #{upsampling_forward.1} parent=5 // pred_check_branch
      %8619 = sbr.rel (%p8617) target = $region40
    $region39: #{upsampling_forward.1} parent=5 // pred_region
      %s8620 = ssub.s32 %s9, 2
      // Predicated region
      $region41: #{upsampling_forward.1} parent=39 // pred_check
        %p8621 = pneg %p122
      $region42: #{upsampling_forward.1} parent=39 // pred_check_branch
        %8623 = sbr.rel (%p8621) target = $region44
      $region43: #{upsampling_forward.1} parent=39 // pred_region
        %s8624 = smul.u32 4, %s21
        %p8625 = scmp.lt.s32.totalorder %s20, 1
        %s8626 = scalar_select %p8625, %s20, 1
        %p8627 = scmp.lt.s32.totalorder %s8624, 3
        %s8628 = scalar_select %p8627, %s8624, 3
        %s8629 = smul.addr %s8626, 4
        %s8630 = sadd.s32 %s8628, %s8629
        %s8631 = smul.addr %s8630, 8
        %s8632 = scalar_lea.vmem %s3, %s8631
      $region44: #{upsampling_forward.1} parent=39 // pred_fallthru
        _
    $region40: #{upsampling_forward.1} parent=5 // pred_fallthru
      _
  $region6: #{upsampling_forward.1} parent=0 // loop_footer
    %s13 = sadd.s32 1, %s9
  $region7: #{upsampling_forward.1} parent=0 // loop_footer_branch
    %8 = sbr.rel target = $region3
  $region8: #{upsampling_forward.1} parent=0 // loop_exit
    _

</llo_original>
